<compile_context>
chip_gen: v5e
topology: v5e:2x2
jax: 0.10.0
libtpu: 0.0.40
codegen_flags: <defaults>
</compile_context>

<pallas_src>
import functools

import numpy as np
import jax
import jax.numpy as jnp
from jax.experimental import pallas as pl
from jax.experimental.pallas import tpu as pltpu

C_X = 256    # channels of the high-level (ASPP) input and of low_level_feat
C_LL = 48    # channels of the projected low-level features
C_MID = 256  # sep1 / sep2 output channels
HALO = 8     # left/right column halo of the padded scratches (sublane aligned)


# ------------------------------ fused kernel --------------------------------

def _decoder_spp_kernel(xh_ref, llf_ref, aw_ref,
                        wll_ref, bll_ref,
                        wdw1a_ref, bdw1a_ref, wdw1b_ref, bdw1b_ref,
                        wpw1a_ref, wpw1b_ref, bpw1_ref,
                        wdw2_ref, bdw2_ref,
                        wpw2_ref, bpw2_ref,
                        out_ref,
                        xup, pad_ll, pad_mid,
                        *, TH, W):
    """One (batch, H-strip) tile: W-interp, ll-projection, (fused) concat, sep1, sep2."""
    f32 = jnp.float32
    bf16 = jnp.bfloat16
    W_PAD = W + 2 * HALO

    t = pl.program_id(1)
    last = pl.num_programs(1) - 1
    r0 = t * TH                      # row offset into the (H+4)-row padded inputs

    # ---- x branch: W-direction bilinear interp on the MXU --------------------
    # aw's zero rows produce the zero column halo for free, so every element of
    # `xup` is rewritten each strip -> no explicit zero fill needed at all.
    aw = aw_ref[...]                                          # (W_PAD, ws) bf16
    xh = xh_ref[0, pl.ds(r0, TH + 4)]                         # (TH+4, ws, 256) bf16
    for i in range(TH + 4):
        xup[i] = jnp.dot(aw, xh[i], preferred_element_type=f32)   # (W_PAD, 256) f32

    # ---- low-level branch: 1x1 conv (BN folded) + ReLU for TH+4 rows ----------
    llf = llf_ref[0, pl.ds(r0, TH + 4)].reshape((TH + 4) * W, C_X)   # bf16
    y_ll = jnp.dot(llf, wll_ref[...], preferred_element_type=f32)
    y_ll = jnp.maximum(y_ll + bll_ref[0], 0.0)                       # f32
    pad_ll[:, HALO:HALO + W, :] = y_ll.reshape(TH + 4, W, C_LL)

    # Conv zero-padding: out-of-image rows only exist for the first/last strip;
    # the 1-px column halo lives in 8-wide aligned bands (unmasked stores).
    # Zeroing is per-step because scratch is per-core under megacore sharding.
    @pl.when(t == 0)
    def _():
        pad_ll[0:2] = jnp.zeros((2, W_PAD, C_LL), f32)

    @pl.when(t == last)
    def _():
        pad_ll[TH + 2:TH + 4] = jnp.zeros((2, W_PAD, C_LL), f32)

    pad_ll[:, 0:HALO, :] = jnp.zeros((TH + 4, HALO, C_LL), f32)
    pad_ll[:, HALO + W:, :] = jnp.zeros((TH + 4, HALO, C_LL), f32)

    def dw3x3(src, nrows, w9, bias):
        # 3x3 depthwise conv (stride 1, padding already in `src`) + bias + ReLU.
        acc = None
        for kh in range(3):
            for kw in range(3):
                c0 = HALO - 1 + kw
                tap = src[kh:kh + nrows, c0:c0 + W, :] * w9[kh * 3 + kw]
                acc = tap if acc is None else acc + tap
        return jnp.maximum(acc + bias, 0.0)

    # ---- sep1 depthwise (+BN folded, ReLU); concat kept as two branches -------
    da = dw3x3(xup, TH + 2, wdw1a_ref[...], bdw1a_ref[0])       # (TH+2, W, 256) f32
    db = dw3x3(pad_ll, TH + 2, wdw1b_ref[...], bdw1b_ref[0])    # (TH+2, W, 48)  f32

    # ---- sep1 pointwise (304 -> 256) as two MXU matmuls over the split --------
    z1 = jnp.dot(da.reshape((TH + 2) * W, C_X).astype(bf16), wpw1a_ref[...],
                 preferred_element_type=f32)
    z1 = z1 + jnp.dot(db.reshape((TH + 2) * W, C_LL).astype(bf16), wpw1b_ref[...],
                      preferred_element_type=f32)
    z1 = jnp.maximum(z1 + bpw1_ref[0], 0.0)                     # (.., 256) f32
    pad_mid[:, HALO:HALO + W, :] = z1.reshape(TH + 2, W, C_MID)

    @pl.when(t == 0)
    def _():
        pad_mid[0:1] = jnp.zeros((1, W_PAD, C_MID), f32)

    @pl.when(t == last)
    def _():
        pad_mid[TH + 1:TH + 2] = jnp.zeros((1, W_PAD, C_MID), f32)

    pad_mid[:, 0:HALO, :] = jnp.zeros((TH + 2, HALO, C_MID), f32)
    pad_mid[:, HALO + W:, :] = jnp.zeros((TH + 2, HALO, C_MID), f32)

    # ---- sep2: depthwise + BN + ReLU, pointwise + BN + ReLU -------------------
    d2 = dw3x3(pad_mid, TH, wdw2_ref[...], bdw2_ref[0])         # (TH, W, 256) f32
    z2 = jnp.dot(d2.reshape(TH * W, C_MID).astype(bf16), wpw2_ref[...],
                 preferred_element_type=f32)
    z2 = jnp.maximum(z2 + bpw2_ref[0], 0.0)
    out_ref[0] = z2.reshape(TH, W, C_MID).astype(out_ref.dtype)


# ------------------------------ wrapper --------------------------------------

def _interp_matrix(out_size, in_size, pad):
    """Bilinear align_corners=True interpolation matrix with `pad` zero rows
    prepended/appended (the zero rows double as conv zero-padding rows)."""
    m = np.zeros((out_size + 2 * pad, in_size), np.float32)
    for i in range(out_size):
        if out_size == 1 or in_size == 1:
            s = 0.0
        else:
            s = i * (in_size - 1) / (out_size - 1)
        p0 = min(int(np.floor(s)), in_size - 1)
        p1 = min(p0 + 1, in_size - 1)
        frac = s - p0
        m[pad + i, p0] += 1.0 - frac
        m[pad + i, p1] += frac
    return m


def decoder_spp_forward(x_nchw, llf_nchw, params, *, tile_h=8):
    """DecoderSPP.forward(x, low_level_feat). NCHW in / NCHW out."""
    N, cx, hs, ws = x_nchw.shape
    n2, cl, H, W = llf_nchw.shape
    assert cx == C_X and cl == C_X and n2 == N
    assert W % 8 == 0, "in-kernel (R,W,C)->(R*W,C) reshapes assume W % 8 == 0"

    # Strip height: largest divisor of H with 2 <= TH <= tile_h (fallback: one
    # whole-image strip).  TH >= 2 keeps out-of-image halo rows confined to the
    # first/last strip.
    TH = max((d for d in range(2, min(tile_h, H) + 1) if H % d == 0), default=H)
    S = H // TH
    W_PAD = W + 2 * HALO

    x = jnp.transpose(x_nchw, (0, 2, 3, 1)).astype(jnp.float32)      # (N,hs,ws,256)

    # Low-level features: NHWC bf16, padded by 2 zero rows top/bottom so every
    # strip slices a fixed TH+4-row window (pad fuses with the transpose+cast).
    llf = jnp.transpose(llf_nchw, (0, 2, 3, 1)).astype(jnp.bfloat16)
    llf = jnp.pad(llf, ((0, 0), (2, 2), (0, 0), (0, 0)))             # (N,H+4,W,256)

    # Separable bilinear resize:
    #  * H-direction here on the small low-res-W side (zero rows = row halo).
    #  * W-direction inside the kernel on the MXU (full-res xup never hits HBM).
    ah = jnp.asarray(_interp_matrix(H, hs, pad=2))                   # (H+4, hs)
    xh = jnp.einsum('ip,npqc->niqc', ah, x).astype(jnp.bfloat16)     # (N,H+4,ws,256)

    aw_np = np.zeros((W_PAD, ws), np.float32)
    aw_np[HALO:HALO + W] = _interp_matrix(W, ws, pad=0)
    aw = jnp.asarray(aw_np, jnp.bfloat16)                            # (W_PAD, ws)

    weight_args = (
        params['w_ll'], params['b_ll'],
        params['w_dw1a'], params['b_dw1a'], params['w_dw1b'], params['b_dw1b'],
        params['w_pw1a'], params['w_pw1b'], params['b_pw1'],
        params['w_dw2'], params['b_dw2'],
        params['w_pw2'], params['b_pw2'],
    )

    def full_spec(arr):
        nd = arr.ndim
        return pl.BlockSpec(arr.shape, lambda n, t, _nd=nd: (0,) * _nd)

    out = pl.pallas_call(
        functools.partial(_decoder_spp_kernel, TH=TH, W=W),
        grid=(N, S),
        in_specs=[
            pl.BlockSpec((1, H + 4, ws, C_X), lambda n, t: (n, 0, 0, 0)),   # xh
            pl.BlockSpec((1, H + 4, W, C_X), lambda n, t: (n, 0, 0, 0)),    # llf (padded)
            full_spec(aw),
        ] + [full_spec(a) for a in weight_args],
        out_specs=pl.BlockSpec((1, TH, W, C_MID), lambda n, t: (n, t, 0, 0)),
        out_shape=jax.ShapeDtypeStruct((N, H, W, C_MID), jnp.bfloat16),
        scratch_shapes=[
            pltpu.VMEM((TH + 4, W_PAD, C_X), jnp.float32),    # upsampled-x strip
            pltpu.VMEM((TH + 4, W_PAD, C_LL), jnp.float32),   # projected low-level strip
            pltpu.VMEM((TH + 2, W_PAD, C_MID), jnp.float32),  # sep1 output strip
        ],
        compiler_params=pltpu.CompilerParams(
            dimension_semantics=("parallel", "parallel"),
            vmem_limit_bytes=48 * 1024 * 1024),
    )(xh, llf, aw, *weight_args)

    return jnp.transpose(out, (0, 3, 1, 2)).astype(jnp.float32)


# ------------------------------ parameters -----------------------------------

def _bn_fold(key, c):
    k1, k2, k3, k4 = jax.random.split(key, 4)
    gamma = 1.0 + 0.1 * jax.random.normal(k1, (c,), jnp.float32)
    beta = 0.05 * jax.random.normal(k2, (c,), jnp.float32)
    mean = 0.05 * jax.random.normal(k3, (c,), jnp.float32)
    var = jax.random.uniform(k4, (c,), jnp.float32, minval=0.8, maxval=1.2)
    scale = gamma * jax.lax.rsqrt(var + 1e-5)
    bias = beta - mean * scale
    return scale, bias


def init_params(key):
    ks = iter(jax.random.split(key, 32))
    p = {}

    # low-level projection: Conv2d(256, 48, 1, bias=False) + BN (ReLU in fwd)
    w = jax.random.normal(next(ks), (C_X, C_LL), jnp.float32) * (1.0 / C_X) ** 0.5
    s, b = _bn_fold(next(ks), C_LL)
    p['w_ll'] = (w * s[None, :]).astype(jnp.bfloat16)
    p['b_ll'] = b.reshape(1, C_LL)

    # sep1: depthwise 3x3 over 304 ch (+BN+ReLU), pointwise 304->256 (+BN+ReLU)
    wdw = jax.random.normal(next(ks), (9, C_X + C_LL), jnp.float32) / 3.0
    s, b = _bn_fold(next(ks), C_X + C_LL)
    wdw = wdw * s[None, :]
    p['w_dw1a'] = wdw[:, :C_X]                      # x branch (concat order: x first)
    p['w_dw1b'] = wdw[:, C_X:]                      # low-level branch
    p['b_dw1a'] = b[:C_X].reshape(1, C_X)
    p['b_dw1b'] = b[C_X:].reshape(1, C_LL)

    wpw = jax.random.normal(next(ks), (C_X + C_LL, C_MID), jnp.float32) \
        * (1.0 / (C_X + C_LL)) ** 0.5
    s, b = _bn_fold(next(ks), C_MID)
    wpw = wpw * s[None, :]
    p['w_pw1a'] = wpw[:C_X, :].astype(jnp.bfloat16)
    p['w_pw1b'] = wpw[C_X:, :].astype(jnp.bfloat16)
    p['b_pw1'] = b.reshape(1, C_MID)

    # sep2: depthwise 3x3 over 256 ch (+BN+ReLU), pointwise 256->256 (+BN+ReLU)
    wdw = jax.random.normal(next(ks), (9, C_MID), jnp.float32) / 3.0
    s, b = _bn_fold(next(ks), C_MID)
    p['w_dw2'] = wdw * s[None, :]
    p['b_dw2'] = b.reshape(1, C_MID)

    wpw = jax.random.normal(next(ks), (C_MID, C_MID), jnp.float32) * (1.0 / C_MID) ** 0.5
    s, b = _bn_fold(next(ks), C_MID)
    p['w_pw2'] = (wpw * s[None, :]).astype(jnp.bfloat16)
    p['b_pw2'] = b.reshape(1, C_MID)
    return p


# ------------------------------ demo ------------------------------------------

if __name__ == "__main__":
    key = jax.random.PRNGKey(0)
    kp, kx, kl = jax.random.split(key, 3)
    params = init_params(kp)

    # DecoderSPP inputs: high-level ASPP features (256 ch, low res) and
    # low-level backbone features (256 ch, high res).  NCHW like PyTorch.
    x = jax.random.normal(kx, (2, 256, 8, 8), jnp.float32)
    low_level_feat = jax.random.normal(kl, (2, 256, 16, 16), jnp.float32)

    fwd = jax.jit(decoder_spp_forward)
    out = jax.block_until_ready(fwd(x, low_level_feat, params))

    assert out.shape == (2, 256, 16, 16), out.shape
    assert bool(jnp.all(jnp.isfinite(out)))
    print("KERNEL_OK")
</pallas_src>

<mosaic_0001>
module attributes {stable_mosaic.version = 11 : i64} {
  func.func @_decoder_spp_kernel(%arg0: i32, %arg1: i32, %arg2: memref<1x20x8x256xbf16, #tpu.memory_space<vmem>>, %arg3: memref<1x20x16x256xbf16, #tpu.memory_space<vmem>>, %arg4: memref<32x8xbf16, #tpu.memory_space<vmem>>, %arg5: memref<256x48xbf16, #tpu.memory_space<vmem>>, %arg6: memref<1x48xf32, #tpu.memory_space<vmem>>, %arg7: memref<9x256xf32, #tpu.memory_space<vmem>>, %arg8: memref<1x256xf32, #tpu.memory_space<vmem>>, %arg9: memref<9x48xf32, #tpu.memory_space<vmem>>, %arg10: memref<1x48xf32, #tpu.memory_space<vmem>>, %arg11: memref<256x256xbf16, #tpu.memory_space<vmem>>, %arg12: memref<48x256xbf16, #tpu.memory_space<vmem>>, %arg13: memref<1x256xf32, #tpu.memory_space<vmem>>, %arg14: memref<9x256xf32, #tpu.memory_space<vmem>>, %arg15: memref<1x256xf32, #tpu.memory_space<vmem>>, %arg16: memref<256x256xbf16, #tpu.memory_space<vmem>>, %arg17: memref<1x256xf32, #tpu.memory_space<vmem>>, %arg18: memref<1x8x16x256xbf16, #tpu.memory_space<vmem>>, %arg19: memref<12x32x256xf32, #tpu.memory_space<vmem>>, %arg20: memref<12x32x48xf32, #tpu.memory_space<vmem>>, %arg21: memref<10x32x256xf32, #tpu.memory_space<vmem>>) attributes {dimension_semantics = [#tpu.dimension_semantics<parallel>, #tpu.dimension_semantics<parallel>], iteration_bounds = array<i64: 2, 2>, scalar_prefetch = 0 : i64, scratch_operands = 3 : i64, tpu.core_type = #tpu.core_type<tc>, window_params = [{transform_indices = @transform_0, window_bounds = array<i64: 1, 20, 8, 256>}, {transform_indices = @transform_1, window_bounds = array<i64: 1, 20, 16, 256>}, {pipeline_mode = #tpu.pipeline_mode<synchronous>, transform_indices = @transform_2, window_bounds = array<i64: 32, 8>}, {pipeline_mode = #tpu.pipeline_mode<synchronous>, transform_indices = @transform_3, window_bounds = array<i64: 256, 48>}, {pipeline_mode = #tpu.pipeline_mode<synchronous>, transform_indices = @transform_4, window_bounds = array<i64: 1, 48>}, {pipeline_mode = #tpu.pipeline_mode<synchronous>, transform_indices = @transform_5, window_bounds = array<i64: 9, 256>}, {pipeline_mode = #tpu.pipeline_mode<synchronous>, transform_indices = @transform_6, window_bounds = array<i64: 1, 256>}, {pipeline_mode = #tpu.pipeline_mode<synchronous>, transform_indices = @transform_7, window_bounds = array<i64: 9, 48>}, {pipeline_mode = #tpu.pipeline_mode<synchronous>, transform_indices = @transform_8, window_bounds = array<i64: 1, 48>}, {pipeline_mode = #tpu.pipeline_mode<synchronous>, transform_indices = @transform_9, window_bounds = array<i64: 256, 256>}, {pipeline_mode = #tpu.pipeline_mode<synchronous>, transform_indices = @transform_10, window_bounds = array<i64: 48, 256>}, {pipeline_mode = #tpu.pipeline_mode<synchronous>, transform_indices = @transform_11, window_bounds = array<i64: 1, 256>}, {pipeline_mode = #tpu.pipeline_mode<synchronous>, transform_indices = @transform_12, window_bounds = array<i64: 9, 256>}, {pipeline_mode = #tpu.pipeline_mode<synchronous>, transform_indices = @transform_13, window_bounds = array<i64: 1, 256>}, {pipeline_mode = #tpu.pipeline_mode<synchronous>, transform_indices = @transform_14, window_bounds = array<i64: 256, 256>}, {pipeline_mode = #tpu.pipeline_mode<synchronous>, transform_indices = @transform_15, window_bounds = array<i64: 1, 256>}, {transform_indices = @transform_16, window_bounds = array<i64: 1, 8, 16, 256>}]} {
    %c8_i32 = arith.constant 8 : i32
    %0 = arith.muli %arg1, %c8_i32 : i32
    %c0 = arith.constant 0 : index
    %c0_0 = arith.constant 0 : index
    %1 = vector.load %arg4[%c0, %c0_0] : memref<32x8xbf16, #tpu.memory_space<vmem>>, vector<32x8xbf16>
    %c0_1 = arith.constant 0 : index
    %2 = arith.index_cast %0 : i32 to index
    %c0_2 = arith.constant 0 : index
    %c0_3 = arith.constant 0 : index
    %3 = vector.load %arg2[%c0_1, %2, %c0_2, %c0_3] : memref<1x20x8x256xbf16, #tpu.memory_space<vmem>>, vector<1x12x8x256xbf16>
    %4 = vector.shape_cast %3 : vector<1x12x8x256xbf16> to vector<12x8x256xbf16>
    %5 = vector.extract_strided_slice %4 {offsets = [0, 0, 0], sizes = [1, 8, 256], strides = [1, 1, 1]} : vector<12x8x256xbf16> to vector<1x8x256xbf16>
    %6 = vector.shape_cast %5 : vector<1x8x256xbf16> to vector<8x256xbf16>
    %cst = arith.constant dense<0.000000e+00> : vector<32x256xf32>
    %7 = tpu.matmul %1, %6, %cst {dimension_numbers = #tpu.dot_dimension_numbers<[1], [0], [0], [1], [0, 0, 1, 1], [], []>} : vector<32x8xbf16>, vector<8x256xbf16>, vector<32x256xf32> -> vector<32x256xf32>
    %c0_4 = arith.constant 0 : index
    %c0_5 = arith.constant 0 : index
    %c0_6 = arith.constant 0 : index
    %8 = vector.load %arg19[%c0_4, %c0_5, %c0_6] : memref<12x32x256xf32, #tpu.memory_space<vmem>>, vector<1x32x256xf32>
    %9 = vector.shape_cast %8 : vector<1x32x256xf32> to vector<32x256xf32>
    %10 = vector.shape_cast %7 : vector<32x256xf32> to vector<1x32x256xf32>
    tpu.vector_store %arg19[%c0_4, %c0_5, %c0_6], %10 {strides = array<i32>} : memref<12x32x256xf32, #tpu.memory_space<vmem>>, vector<1x32x256xf32>,
    %11 = vector.extract_strided_slice %4 {offsets = [1, 0, 0], sizes = [1, 8, 256], strides = [1, 1, 1]} : vector<12x8x256xbf16> to vector<1x8x256xbf16>
    %12 = vector.shape_cast %11 : vector<1x8x256xbf16> to vector<8x256xbf16>
    %cst_7 = arith.constant dense<0.000000e+00> : vector<32x256xf32>
    %13 = tpu.matmul %1, %12, %cst_7 {dimension_numbers = #tpu.dot_dimension_numbers<[1], [0], [0], [1], [0, 0, 1, 1], [], []>} : vector<32x8xbf16>, vector<8x256xbf16>, vector<32x256xf32> -> vector<32x256xf32>
    %c1 = arith.constant 1 : index
    %c0_8 = arith.constant 0 : index
    %c0_9 = arith.constant 0 : index
    %14 = vector.load %arg19[%c1, %c0_8, %c0_9] : memref<12x32x256xf32, #tpu.memory_space<vmem>>, vector<1x32x256xf32>
    %15 = vector.shape_cast %14 : vector<1x32x256xf32> to vector<32x256xf32>
    %16 = vector.shape_cast %13 : vector<32x256xf32> to vector<1x32x256xf32>
    tpu.vector_store %arg19[%c1, %c0_8, %c0_9], %16 {strides = array<i32>} : memref<12x32x256xf32, #tpu.memory_space<vmem>>, vector<1x32x256xf32>,
    %17 = vector.extract_strided_slice %4 {offsets = [2, 0, 0], sizes = [1, 8, 256], strides = [1, 1, 1]} : vector<12x8x256xbf16> to vector<1x8x256xbf16>
    %18 = vector.shape_cast %17 : vector<1x8x256xbf16> to vector<8x256xbf16>
    %cst_10 = arith.constant dense<0.000000e+00> : vector<32x256xf32>
    %19 = tpu.matmul %1, %18, %cst_10 {dimension_numbers = #tpu.dot_dimension_numbers<[1], [0], [0], [1], [0, 0, 1, 1], [], []>} : vector<32x8xbf16>, vector<8x256xbf16>, vector<32x256xf32> -> vector<32x256xf32>
    %c2 = arith.constant 2 : index
    %c0_11 = arith.constant 0 : index
    %c0_12 = arith.constant 0 : index
    %20 = vector.load %arg19[%c2, %c0_11, %c0_12] : memref<12x32x256xf32, #tpu.memory_space<vmem>>, vector<1x32x256xf32>
    %21 = vector.shape_cast %20 : vector<1x32x256xf32> to vector<32x256xf32>
    %22 = vector.shape_cast %19 : vector<32x256xf32> to vector<1x32x256xf32>
    tpu.vector_store %arg19[%c2, %c0_11, %c0_12], %22 {strides = array<i32>} : memref<12x32x256xf32, #tpu.memory_space<vmem>>, vector<1x32x256xf32>,
    %23 = vector.extract_strided_slice %4 {offsets = [3, 0, 0], sizes = [1, 8, 256], strides = [1, 1, 1]} : vector<12x8x256xbf16> to vector<1x8x256xbf16>
    %24 = vector.shape_cast %23 : vector<1x8x256xbf16> to vector<8x256xbf16>
    %cst_13 = arith.constant dense<0.000000e+00> : vector<32x256xf32>
    %25 = tpu.matmul %1, %24, %cst_13 {dimension_numbers = #tpu.dot_dimension_numbers<[1], [0], [0], [1], [0, 0, 1, 1], [], []>} : vector<32x8xbf16>, vector<8x256xbf16>, vector<32x256xf32> -> vector<32x256xf32>
    %c3 = arith.constant 3 : index
    %c0_14 = arith.constant 0 : index
    %c0_15 = arith.constant 0 : index
    %26 = vector.load %arg19[%c3, %c0_14, %c0_15] : memref<12x32x256xf32, #tpu.memory_space<vmem>>, vector<1x32x256xf32>
    %27 = vector.shape_cast %26 : vector<1x32x256xf32> to vector<32x256xf32>
    %28 = vector.shape_cast %25 : vector<32x256xf32> to vector<1x32x256xf32>
    tpu.vector_store %arg19[%c3, %c0_14, %c0_15], %28 {strides = array<i32>} : memref<12x32x256xf32, #tpu.memory_space<vmem>>, vector<1x32x256xf32>,
    %29 = vector.extract_strided_slice %4 {offsets = [4, 0, 0], sizes = [1, 8, 256], strides = [1, 1, 1]} : vector<12x8x256xbf16> to vector<1x8x256xbf16>
    %30 = vector.shape_cast %29 : vector<1x8x256xbf16> to vector<8x256xbf16>
    %cst_16 = arith.constant dense<0.000000e+00> : vector<32x256xf32>
    %31 = tpu.matmul %1, %30, %cst_16 {dimension_numbers = #tpu.dot_dimension_numbers<[1], [0], [0], [1], [0, 0, 1, 1], [], []>} : vector<32x8xbf16>, vector<8x256xbf16>, vector<32x256xf32> -> vector<32x256xf32>
    %c4 = arith.constant 4 : index
    %c0_17 = arith.constant 0 : index
    %c0_18 = arith.constant 0 : index
    %32 = vector.load %arg19[%c4, %c0_17, %c0_18] : memref<12x32x256xf32, #tpu.memory_space<vmem>>, vector<1x32x256xf32>
    %33 = vector.shape_cast %32 : vector<1x32x256xf32> to vector<32x256xf32>
    %34 = vector.shape_cast %31 : vector<32x256xf32> to vector<1x32x256xf32>
    tpu.vector_store %arg19[%c4, %c0_17, %c0_18], %34 {strides = array<i32>} : memref<12x32x256xf32, #tpu.memory_space<vmem>>, vector<1x32x256xf32>,
    %35 = vector.extract_strided_slice %4 {offsets = [5, 0, 0], sizes = [1, 8, 256], strides = [1, 1, 1]} : vector<12x8x256xbf16> to vector<1x8x256xbf16>
    %36 = vector.shape_cast %35 : vector<1x8x256xbf16> to vector<8x256xbf16>
    %cst_19 = arith.constant dense<0.000000e+00> : vector<32x256xf32>
    %37 = tpu.matmul %1, %36, %cst_19 {dimension_numbers = #tpu.dot_dimension_numbers<[1], [0], [0], [1], [0, 0, 1, 1], [], []>} : vector<32x8xbf16>, vector<8x256xbf16>, vector<32x256xf32> -> vector<32x256xf32>
    %c5 = arith.constant 5 : index
    %c0_20 = arith.constant 0 : index
    %c0_21 = arith.constant 0 : index
    %38 = vector.load %arg19[%c5, %c0_20, %c0_21] : memref<12x32x256xf32, #tpu.memory_space<vmem>>, vector<1x32x256xf32>
    %39 = vector.shape_cast %38 : vector<1x32x256xf32> to vector<32x256xf32>
    %40 = vector.shape_cast %37 : vector<32x256xf32> to vector<1x32x256xf32>
    tpu.vector_store %arg19[%c5, %c0_20, %c0_21], %40 {strides = array<i32>} : memref<12x32x256xf32, #tpu.memory_space<vmem>>, vector<1x32x256xf32>,
    %41 = vector.extract_strided_slice %4 {offsets = [6, 0, 0], sizes = [1, 8, 256], strides = [1, 1, 1]} : vector<12x8x256xbf16> to vector<1x8x256xbf16>
    %42 = vector.shape_cast %41 : vector<1x8x256xbf16> to vector<8x256xbf16>
    %cst_22 = arith.constant dense<0.000000e+00> : vector<32x256xf32>
    %43 = tpu.matmul %1, %42, %cst_22 {dimension_numbers = #tpu.dot_dimension_numbers<[1], [0], [0], [1], [0, 0, 1, 1], [], []>} : vector<32x8xbf16>, vector<8x256xbf16>, vector<32x256xf32> -> vector<32x256xf32>
    %c6 = arith.constant 6 : index
    %c0_23 = arith.constant 0 : index
    %c0_24 = arith.constant 0 : index
    %44 = vector.load %arg19[%c6, %c0_23, %c0_24] : memref<12x32x256xf32, #tpu.memory_space<vmem>>, vector<1x32x256xf32>
    %45 = vector.shape_cast %44 : vector<1x32x256xf32> to vector<32x256xf32>
    %46 = vector.shape_cast %43 : vector<32x256xf32> to vector<1x32x256xf32>
    tpu.vector_store %arg19[%c6, %c0_23, %c0_24], %46 {strides = array<i32>} : memref<12x32x256xf32, #tpu.memory_space<vmem>>, vector<1x32x256xf32>,
    %47 = vector.extract_strided_slice %4 {offsets = [7, 0, 0], sizes = [1, 8, 256], strides = [1, 1, 1]} : vector<12x8x256xbf16> to vector<1x8x256xbf16>
    %48 = vector.shape_cast %47 : vector<1x8x256xbf16> to vector<8x256xbf16>
    %cst_25 = arith.constant dense<0.000000e+00> : vector<32x256xf32>
    %49 = tpu.matmul %1, %48, %cst_25 {dimension_numbers = #tpu.dot_dimension_numbers<[1], [0], [0], [1], [0, 0, 1, 1], [], []>} : vector<32x8xbf16>, vector<8x256xbf16>, vector<32x256xf32> -> vector<32x256xf32>
    %c7 = arith.constant 7 : index
    %c0_26 = arith.constant 0 : index
    %c0_27 = arith.constant 0 : index
    %50 = vector.load %arg19[%c7, %c0_26, %c0_27] : memref<12x32x256xf32, #tpu.memory_space<vmem>>, vector<1x32x256xf32>
    %51 = vector.shape_cast %50 : vector<1x32x256xf32> to vector<32x256xf32>
    %52 = vector.shape_cast %49 : vector<32x256xf32> to vector<1x32x256xf32>
    tpu.vector_store %arg19[%c7, %c0_26, %c0_27], %52 {strides = array<i32>} : memref<12x32x256xf32, #tpu.memory_space<vmem>>, vector<1x32x256xf32>,
    %53 = vector.extract_strided_slice %4 {offsets = [8, 0, 0], sizes = [1, 8, 256], strides = [1, 1, 1]} : vector<12x8x256xbf16> to vector<1x8x256xbf16>
    %54 = vector.shape_cast %53 : vector<1x8x256xbf16> to vector<8x256xbf16>
    %cst_28 = arith.constant dense<0.000000e+00> : vector<32x256xf32>
    %55 = tpu.matmul %1, %54, %cst_28 {dimension_numbers = #tpu.dot_dimension_numbers<[1], [0], [0], [1], [0, 0, 1, 1], [], []>} : vector<32x8xbf16>, vector<8x256xbf16>, vector<32x256xf32> -> vector<32x256xf32>
    %c8 = arith.constant 8 : index
    %c0_29 = arith.constant 0 : index
    %c0_30 = arith.constant 0 : index
    %56 = vector.load %arg19[%c8, %c0_29, %c0_30] : memref<12x32x256xf32, #tpu.memory_space<vmem>>, vector<1x32x256xf32>
    %57 = vector.shape_cast %56 : vector<1x32x256xf32> to vector<32x256xf32>
    %58 = vector.shape_cast %55 : vector<32x256xf32> to vector<1x32x256xf32>
    tpu.vector_store %arg19[%c8, %c0_29, %c0_30], %58 {strides = array<i32>} : memref<12x32x256xf32, #tpu.memory_space<vmem>>, vector<1x32x256xf32>,
    %59 = vector.extract_strided_slice %4 {offsets = [9, 0, 0], sizes = [1, 8, 256], strides = [1, 1, 1]} : vector<12x8x256xbf16> to vector<1x8x256xbf16>
    %60 = vector.shape_cast %59 : vector<1x8x256xbf16> to vector<8x256xbf16>
    %cst_31 = arith.constant dense<0.000000e+00> : vector<32x256xf32>
    %61 = tpu.matmul %1, %60, %cst_31 {dimension_numbers = #tpu.dot_dimension_numbers<[1], [0], [0], [1], [0, 0, 1, 1], [], []>} : vector<32x8xbf16>, vector<8x256xbf16>, vector<32x256xf32> -> vector<32x256xf32>
    %c9 = arith.constant 9 : index
    %c0_32 = arith.constant 0 : index
    %c0_33 = arith.constant 0 : index
    %62 = vector.load %arg19[%c9, %c0_32, %c0_33] : memref<12x32x256xf32, #tpu.memory_space<vmem>>, vector<1x32x256xf32>
    %63 = vector.shape_cast %62 : vector<1x32x256xf32> to vector<32x256xf32>
    %64 = vector.shape_cast %61 : vector<32x256xf32> to vector<1x32x256xf32>
    tpu.vector_store %arg19[%c9, %c0_32, %c0_33], %64 {strides = array<i32>} : memref<12x32x256xf32, #tpu.memory_space<vmem>>, vector<1x32x256xf32>,
    %65 = vector.extract_strided_slice %4 {offsets = [10, 0, 0], sizes = [1, 8, 256], strides = [1, 1, 1]} : vector<12x8x256xbf16> to vector<1x8x256xbf16>
    %66 = vector.shape_cast %65 : vector<1x8x256xbf16> to vector<8x256xbf16>
    %cst_34 = arith.constant dense<0.000000e+00> : vector<32x256xf32>
    %67 = tpu.matmul %1, %66, %cst_34 {dimension_numbers = #tpu.dot_dimension_numbers<[1], [0], [0], [1], [0, 0, 1, 1], [], []>} : vector<32x8xbf16>, vector<8x256xbf16>, vector<32x256xf32> -> vector<32x256xf32>
    %c10 = arith.constant 10 : index
    %c0_35 = arith.constant 0 : index
    %c0_36 = arith.constant 0 : index
    %68 = vector.load %arg19[%c10, %c0_35, %c0_36] : memref<12x32x256xf32, #tpu.memory_space<vmem>>, vector<1x32x256xf32>
    %69 = vector.shape_cast %68 : vector<1x32x256xf32> to vector<32x256xf32>
    %70 = vector.shape_cast %67 : vector<32x256xf32> to vector<1x32x256xf32>
    tpu.vector_store %arg19[%c10, %c0_35, %c0_36], %70 {strides = array<i32>} : memref<12x32x256xf32, #tpu.memory_space<vmem>>, vector<1x32x256xf32>,
    %71 = vector.extract_strided_slice %4 {offsets = [11, 0, 0], sizes = [1, 8, 256], strides = [1, 1, 1]} : vector<12x8x256xbf16> to vector<1x8x256xbf16>
    %72 = vector.shape_cast %71 : vector<1x8x256xbf16> to vector<8x256xbf16>
    %cst_37 = arith.constant dense<0.000000e+00> : vector<32x256xf32>
    %73 = tpu.matmul %1, %72, %cst_37 {dimension_numbers = #tpu.dot_dimension_numbers<[1], [0], [0], [1], [0, 0, 1, 1], [], []>} : vector<32x8xbf16>, vector<8x256xbf16>, vector<32x256xf32> -> vector<32x256xf32>
    %c11 = arith.constant 11 : index
    %c0_38 = arith.constant 0 : index
    %c0_39 = arith.constant 0 : index
    %74 = vector.load %arg19[%c11, %c0_38, %c0_39] : memref<12x32x256xf32, #tpu.memory_space<vmem>>, vector<1x32x256xf32>
    %75 = vector.shape_cast %74 : vector<1x32x256xf32> to vector<32x256xf32>
    %76 = vector.shape_cast %73 : vector<32x256xf32> to vector<1x32x256xf32>
    tpu.vector_store %arg19[%c11, %c0_38, %c0_39], %76 {strides = array<i32>} : memref<12x32x256xf32, #tpu.memory_space<vmem>>, vector<1x32x256xf32>,
    %c0_40 = arith.constant 0 : index
    %77 = arith.index_cast %0 : i32 to index
    %c0_41 = arith.constant 0 : index
    %c0_42 = arith.constant 0 : index
    %78 = vector.load %arg3[%c0_40, %77, %c0_41, %c0_42] : memref<1x20x16x256xbf16, #tpu.memory_space<vmem>>, vector<1x12x16x256xbf16>
    %79 = vector.shape_cast %78 : vector<1x12x16x256xbf16> to vector<12x16x256xbf16>
    %80 = vector.shape_cast %79 : vector<12x16x256xbf16> to vector<192x256xbf16>
    %c0_43 = arith.constant 0 : index
    %c0_44 = arith.constant 0 : index
    %81 = vector.load %arg5[%c0_43, %c0_44] : memref<256x48xbf16, #tpu.memory_space<vmem>>, vector<256x48xbf16>
    %cst_45 = arith.constant dense<0.000000e+00> : vector<192x48xf32>
    %82 = tpu.matmul %80, %81, %cst_45 {dimension_numbers = #tpu.dot_dimension_numbers<[1], [0], [0], [1], [0, 0, 1, 1], [], []>} : vector<192x256xbf16>, vector<256x48xbf16>, vector<192x48xf32> -> vector<192x48xf32>
    %c0_46 = arith.constant 0 : index
    %c0_47 = arith.constant 0 : index
    %83 = vector.load %arg6[%c0_46, %c0_47] : memref<1x48xf32, #tpu.memory_space<vmem>>, vector<1x48xf32>
    %84 = vector.shape_cast %83 : vector<1x48xf32> to vector<48xf32>
    %85 = vector.shape_cast %84 : vector<48xf32> to vector<1x48xf32>
    %86 = vector.broadcast %85 : vector<1x48xf32> to vector<192x48xf32>
    %87 = arith.addf %82, %86 : vector<192x48xf32>
    %cst_48 = arith.constant 0.000000e+00 : f32
    %88 = vector.broadcast %cst_48 : f32 to vector<192x48xf32>
    %89 = arith.maximumf %87, %88 : vector<192x48xf32>
    %90 = vector.shape_cast %89 : vector<192x48xf32> to vector<12x16x48xf32>
    %c0_49 = arith.constant 0 : index
    %c8_50 = arith.constant 8 : index
    %c0_51 = arith.constant 0 : index
    %91 = vector.load %arg20[%c0_49, %c8_50, %c0_51] : memref<12x32x48xf32, #tpu.memory_space<vmem>>, vector<12x16x48xf32>
    tpu.vector_store %arg20[%c0_49, %c8_50, %c0_51], %90 {strides = array<i32>} : memref<12x32x48xf32, #tpu.memory_space<vmem>>, vector<12x16x48xf32>,
    %c0_i32 = arith.constant 0 : i32
    %92 = arith.cmpi eq, %arg1, %c0_i32 : i32
    %93 = arith.extui %92 : i1 to i32
    %c0_i32_52 = arith.constant 0 : i32
    %94 = arith.cmpi ne, %93, %c0_i32_52 : i32
    scf.if %94 {
      %cst_191 = arith.constant 0.000000e+00 : f32
      %356 = vector.broadcast %cst_191 : f32 to vector<2x32x48xf32>
      %c0_192 = arith.constant 0 : index
      %c0_193 = arith.constant 0 : index
      %c0_194 = arith.constant 0 : index
      %357 = vector.load %arg20[%c0_192, %c0_193, %c0_194] : memref<12x32x48xf32, #tpu.memory_space<vmem>>, vector<2x32x48xf32>
      tpu.vector_store %arg20[%c0_192, %c0_193, %c0_194], %356 {strides = array<i32>} : memref<12x32x48xf32, #tpu.memory_space<vmem>>, vector<2x32x48xf32>,
    } else {
    }
    %c1_i32 = arith.constant 1 : i32
    %95 = arith.cmpi eq, %arg1, %c1_i32 : i32
    %96 = arith.extui %95 : i1 to i32
    %c0_i32_53 = arith.constant 0 : i32
    %97 = arith.cmpi ne, %96, %c0_i32_53 : i32
    scf.if %97 {
      %cst_191 = arith.constant 0.000000e+00 : f32
      %356 = vector.broadcast %cst_191 : f32 to vector<2x32x48xf32>
      %c10_192 = arith.constant 10 : index
      %c0_193 = arith.constant 0 : index
      %c0_194 = arith.constant 0 : index
      %357 = vector.load %arg20[%c10_192, %c0_193, %c0_194] : memref<12x32x48xf32, #tpu.memory_space<vmem>>, vector<2x32x48xf32>
      tpu.vector_store %arg20[%c10_192, %c0_193, %c0_194], %356 {strides = array<i32>} : memref<12x32x48xf32, #tpu.memory_space<vmem>>, vector<2x32x48xf32>,
    } else {
    }
    %cst_54 = arith.constant 0.000000e+00 : f32
    %98 = vector.broadcast %cst_54 : f32 to vector<12x8x48xf32>
    %c0_55 = arith.constant 0 : index
    %c0_56 = arith.constant 0 : index
    %c0_57 = arith.constant 0 : index
    %99 = vector.load %arg20[%c0_55, %c0_56, %c0_57] : memref<12x32x48xf32, #tpu.memory_space<vmem>>, vector<12x8x48xf32>
    tpu.vector_store %arg20[%c0_55, %c0_56, %c0_57], %98 {strides = array<i32>} : memref<12x32x48xf32, #tpu.memory_space<vmem>>, vector<12x8x48xf32>,
    %cst_58 = arith.constant 0.000000e+00 : f32
    %100 = vector.broadcast %cst_58 : f32 to vector<12x8x48xf32>
    %c0_59 = arith.constant 0 : index
    %c24 = arith.constant 24 : index
    %c0_60 = arith.constant 0 : index
    %101 = vector.load %arg20[%c0_59, %c24, %c0_60] : memref<12x32x48xf32, #tpu.memory_space<vmem>>, vector<12x8x48xf32>
    tpu.vector_store %arg20[%c0_59, %c24, %c0_60], %100 {strides = array<i32>} : memref<12x32x48xf32, #tpu.memory_space<vmem>>, vector<12x8x48xf32>,
    %c0_61 = arith.constant 0 : index
    %c0_62 = arith.constant 0 : index
    %102 = vector.load %arg7[%c0_61, %c0_62] : memref<9x256xf32, #tpu.memory_space<vmem>>, vector<9x256xf32>
    %c0_63 = arith.constant 0 : index
    %c0_64 = arith.constant 0 : index
    %103 = vector.load %arg8[%c0_63, %c0_64] : memref<1x256xf32, #tpu.memory_space<vmem>>, vector<1x256xf32>
    %104 = vector.shape_cast %103 : vector<1x256xf32> to vector<256xf32>
    %c0_65 = arith.constant 0 : index
    %c7_66 = arith.constant 7 : index
    %c0_67 = arith.constant 0 : index
    %105 = vector.load %arg19[%c0_65, %c7_66, %c0_67] : memref<12x32x256xf32, #tpu.memory_space<vmem>>, vector<10x16x256xf32>
    %106 = vector.extract_strided_slice %102 {offsets = [0, 0], sizes = [1, 256], strides = [1, 1]} : vector<9x256xf32> to vector<1x256xf32>
    %107 = vector.shape_cast %106 : vector<1x256xf32> to vector<256xf32>
    %108 = vector.shape_cast %107 : vector<256xf32> to vector<1x1x256xf32>
    %109 = vector.broadcast %108 : vector<1x1x256xf32> to vector<10x16x256xf32>
    %110 = arith.mulf %105, %109 : vector<10x16x256xf32>
    %c0_68 = arith.constant 0 : index
    %c8_69 = arith.constant 8 : index
    %c0_70 = arith.constant 0 : index
    %111 = vector.load %arg19[%c0_68, %c8_69, %c0_70] : memref<12x32x256xf32, #tpu.memory_space<vmem>>, vector<10x16x256xf32>
    %112 = vector.extract_strided_slice %102 {offsets = [1, 0], sizes = [1, 256], strides = [1, 1]} : vector<9x256xf32> to vector<1x256xf32>
    %113 = vector.shape_cast %112 : vector<1x256xf32> to vector<256xf32>
    %114 = vector.shape_cast %113 : vector<256xf32> to vector<1x1x256xf32>
    %115 = vector.broadcast %114 : vector<1x1x256xf32> to vector<10x16x256xf32>
    %116 = arith.mulf %111, %115 : vector<10x16x256xf32>
    %117 = arith.addf %110, %116 : vector<10x16x256xf32>
    %c0_71 = arith.constant 0 : index
    %c9_72 = arith.constant 9 : index
    %c0_73 = arith.constant 0 : index
    %118 = vector.load %arg19[%c0_71, %c9_72, %c0_73] : memref<12x32x256xf32, #tpu.memory_space<vmem>>, vector<10x16x256xf32>
    %119 = vector.extract_strided_slice %102 {offsets = [2, 0], sizes = [1, 256], strides = [1, 1]} : vector<9x256xf32> to vector<1x256xf32>
    %120 = vector.shape_cast %119 : vector<1x256xf32> to vector<256xf32>
    %121 = vector.shape_cast %120 : vector<256xf32> to vector<1x1x256xf32>
    %122 = vector.broadcast %121 : vector<1x1x256xf32> to vector<10x16x256xf32>
    %123 = arith.mulf %118, %122 : vector<10x16x256xf32>
    %124 = arith.addf %117, %123 : vector<10x16x256xf32>
    %c1_74 = arith.constant 1 : index
    %c7_75 = arith.constant 7 : index
    %c0_76 = arith.constant 0 : index
    %125 = vector.load %arg19[%c1_74, %c7_75, %c0_76] : memref<12x32x256xf32, #tpu.memory_space<vmem>>, vector<10x16x256xf32>
    %126 = vector.extract_strided_slice %102 {offsets = [3, 0], sizes = [1, 256], strides = [1, 1]} : vector<9x256xf32> to vector<1x256xf32>
    %127 = vector.shape_cast %126 : vector<1x256xf32> to vector<256xf32>
    %128 = vector.shape_cast %127 : vector<256xf32> to vector<1x1x256xf32>
    %129 = vector.broadcast %128 : vector<1x1x256xf32> to vector<10x16x256xf32>
    %130 = arith.mulf %125, %129 : vector<10x16x256xf32>
    %131 = arith.addf %124, %130 : vector<10x16x256xf32>
    %c1_77 = arith.constant 1 : index
    %c8_78 = arith.constant 8 : index
    %c0_79 = arith.constant 0 : index
    %132 = vector.load %arg19[%c1_77, %c8_78, %c0_79] : memref<12x32x256xf32, #tpu.memory_space<vmem>>, vector<10x16x256xf32>
    %133 = vector.extract_strided_slice %102 {offsets = [4, 0], sizes = [1, 256], strides = [1, 1]} : vector<9x256xf32> to vector<1x256xf32>
    %134 = vector.shape_cast %133 : vector<1x256xf32> to vector<256xf32>
    %135 = vector.shape_cast %134 : vector<256xf32> to vector<1x1x256xf32>
    %136 = vector.broadcast %135 : vector<1x1x256xf32> to vector<10x16x256xf32>
    %137 = arith.mulf %132, %136 : vector<10x16x256xf32>
    %138 = arith.addf %131, %137 : vector<10x16x256xf32>
    %c1_80 = arith.constant 1 : index
    %c9_81 = arith.constant 9 : index
    %c0_82 = arith.constant 0 : index
    %139 = vector.load %arg19[%c1_80, %c9_81, %c0_82] : memref<12x32x256xf32, #tpu.memory_space<vmem>>, vector<10x16x256xf32>
    %140 = vector.extract_strided_slice %102 {offsets = [5, 0], sizes = [1, 256], strides = [1, 1]} : vector<9x256xf32> to vector<1x256xf32>
    %141 = vector.shape_cast %140 : vector<1x256xf32> to vector<256xf32>
    %142 = vector.shape_cast %141 : vector<256xf32> to vector<1x1x256xf32>
    %143 = vector.broadcast %142 : vector<1x1x256xf32> to vector<10x16x256xf32>
    %144 = arith.mulf %139, %143 : vector<10x16x256xf32>
    %145 = arith.addf %138, %144 : vector<10x16x256xf32>
    %c2_83 = arith.constant 2 : index
    %c7_84 = arith.constant 7 : index
    %c0_85 = arith.constant 0 : index
    %146 = vector.load %arg19[%c2_83, %c7_84, %c0_85] : memref<12x32x256xf32, #tpu.memory_space<vmem>>, vector<10x16x256xf32>
    %147 = vector.extract_strided_slice %102 {offsets = [6, 0], sizes = [1, 256], strides = [1, 1]} : vector<9x256xf32> to vector<1x256xf32>
    %148 = vector.shape_cast %147 : vector<1x256xf32> to vector<256xf32>
    %149 = vector.shape_cast %148 : vector<256xf32> to vector<1x1x256xf32>
    %150 = vector.broadcast %149 : vector<1x1x256xf32> to vector<10x16x256xf32>
    %151 = arith.mulf %146, %150 : vector<10x16x256xf32>
    %152 = arith.addf %145, %151 : vector<10x16x256xf32>
    %c2_86 = arith.constant 2 : index
    %c8_87 = arith.constant 8 : index
    %c0_88 = arith.constant 0 : index
    %153 = vector.load %arg19[%c2_86, %c8_87, %c0_88] : memref<12x32x256xf32, #tpu.memory_space<vmem>>, vector<10x16x256xf32>
    %154 = vector.extract_strided_slice %102 {offsets = [7, 0], sizes = [1, 256], strides = [1, 1]} : vector<9x256xf32> to vector<1x256xf32>
    %155 = vector.shape_cast %154 : vector<1x256xf32> to vector<256xf32>
    %156 = vector.shape_cast %155 : vector<256xf32> to vector<1x1x256xf32>
    %157 = vector.broadcast %156 : vector<1x1x256xf32> to vector<10x16x256xf32>
    %158 = arith.mulf %153, %157 : vector<10x16x256xf32>
    %159 = arith.addf %152, %158 : vector<10x16x256xf32>
    %c2_89 = arith.constant 2 : index
    %c9_90 = arith.constant 9 : index
    %c0_91 = arith.constant 0 : index
    %160 = vector.load %arg19[%c2_89, %c9_90, %c0_91] : memref<12x32x256xf32, #tpu.memory_space<vmem>>, vector<10x16x256xf32>
    %161 = vector.extract_strided_slice %102 {offsets = [8, 0], sizes = [1, 256], strides = [1, 1]} : vector<9x256xf32> to vector<1x256xf32>
    %162 = vector.shape_cast %161 : vector<1x256xf32> to vector<256xf32>
    %163 = vector.shape_cast %162 : vector<256xf32> to vector<1x1x256xf32>
    %164 = vector.broadcast %163 : vector<1x1x256xf32> to vector<10x16x256xf32>
    %165 = arith.mulf %160, %164 : vector<10x16x256xf32>
    %166 = arith.addf %159, %165 : vector<10x16x256xf32>
    %167 = vector.shape_cast %104 : vector<256xf32> to vector<1x1x256xf32>
    %168 = vector.broadcast %167 : vector<1x1x256xf32> to vector<10x16x256xf32>
    %169 = arith.addf %166, %168 : vector<10x16x256xf32>
    %cst_92 = arith.constant 0.000000e+00 : f32
    %170 = vector.broadcast %cst_92 : f32 to vector<10x16x256xf32>
    %171 = arith.maximumf %169, %170 : vector<10x16x256xf32>
    %c0_93 = arith.constant 0 : index
    %c0_94 = arith.constant 0 : index
    %172 = vector.load %arg9[%c0_93, %c0_94] : memref<9x48xf32, #tpu.memory_space<vmem>>, vector<9x48xf32>
    %c0_95 = arith.constant 0 : index
    %c0_96 = arith.constant 0 : index
    %173 = vector.load %arg10[%c0_95, %c0_96] : memref<1x48xf32, #tpu.memory_space<vmem>>, vector<1x48xf32>
    %174 = vector.shape_cast %173 : vector<1x48xf32> to vector<48xf32>
    %c0_97 = arith.constant 0 : index
    %c7_98 = arith.constant 7 : index
    %c0_99 = arith.constant 0 : index
    %175 = vector.load %arg20[%c0_97, %c7_98, %c0_99] : memref<12x32x48xf32, #tpu.memory_space<vmem>>, vector<10x16x48xf32>
    %176 = vector.extract_strided_slice %172 {offsets = [0, 0], sizes = [1, 48], strides = [1, 1]} : vector<9x48xf32> to vector<1x48xf32>
    %177 = vector.shape_cast %176 : vector<1x48xf32> to vector<48xf32>
    %178 = vector.shape_cast %177 : vector<48xf32> to vector<1x1x48xf32>
    %179 = vector.broadcast %178 : vector<1x1x48xf32> to vector<10x16x48xf32>
    %180 = arith.mulf %175, %179 : vector<10x16x48xf32>
    %c0_100 = arith.constant 0 : index
    %c8_101 = arith.constant 8 : index
    %c0_102 = arith.constant 0 : index
    %181 = vector.load %arg20[%c0_100, %c8_101, %c0_102] : memref<12x32x48xf32, #tpu.memory_space<vmem>>, vector<10x16x48xf32>
    %182 = vector.extract_strided_slice %172 {offsets = [1, 0], sizes = [1, 48], strides = [1, 1]} : vector<9x48xf32> to vector<1x48xf32>
    %183 = vector.shape_cast %182 : vector<1x48xf32> to vector<48xf32>
    %184 = vector.shape_cast %183 : vector<48xf32> to vector<1x1x48xf32>
    %185 = vector.broadcast %184 : vector<1x1x48xf32> to vector<10x16x48xf32>
    %186 = arith.mulf %181, %185 : vector<10x16x48xf32>
    %187 = arith.addf %180, %186 : vector<10x16x48xf32>
    %c0_103 = arith.constant 0 : index
    %c9_104 = arith.constant 9 : index
    %c0_105 = arith.constant 0 : index
    %188 = vector.load %arg20[%c0_103, %c9_104, %c0_105] : memref<12x32x48xf32, #tpu.memory_space<vmem>>, vector<10x16x48xf32>
    %189 = vector.extract_strided_slice %172 {offsets = [2, 0], sizes = [1, 48], strides = [1, 1]} : vector<9x48xf32> to vector<1x48xf32>
    %190 = vector.shape_cast %189 : vector<1x48xf32> to vector<48xf32>
    %191 = vector.shape_cast %190 : vector<48xf32> to vector<1x1x48xf32>
    %192 = vector.broadcast %191 : vector<1x1x48xf32> to vector<10x16x48xf32>
    %193 = arith.mulf %188, %192 : vector<10x16x48xf32>
    %194 = arith.addf %187, %193 : vector<10x16x48xf32>
    %c1_106 = arith.constant 1 : index
    %c7_107 = arith.constant 7 : index
    %c0_108 = arith.constant 0 : index
    %195 = vector.load %arg20[%c1_106, %c7_107, %c0_108] : memref<12x32x48xf32, #tpu.memory_space<vmem>>, vector<10x16x48xf32>
    %196 = vector.extract_strided_slice %172 {offsets = [3, 0], sizes = [1, 48], strides = [1, 1]} : vector<9x48xf32> to vector<1x48xf32>
    %197 = vector.shape_cast %196 : vector<1x48xf32> to vector<48xf32>
    %198 = vector.shape_cast %197 : vector<48xf32> to vector<1x1x48xf32>
    %199 = vector.broadcast %198 : vector<1x1x48xf32> to vector<10x16x48xf32>
    %200 = arith.mulf %195, %199 : vector<10x16x48xf32>
    %201 = arith.addf %194, %200 : vector<10x16x48xf32>
    %c1_109 = arith.constant 1 : index
    %c8_110 = arith.constant 8 : index
    %c0_111 = arith.constant 0 : index
    %202 = vector.load %arg20[%c1_109, %c8_110, %c0_111] : memref<12x32x48xf32, #tpu.memory_space<vmem>>, vector<10x16x48xf32>
    %203 = vector.extract_strided_slice %172 {offsets = [4, 0], sizes = [1, 48], strides = [1, 1]} : vector<9x48xf32> to vector<1x48xf32>
    %204 = vector.shape_cast %203 : vector<1x48xf32> to vector<48xf32>
    %205 = vector.shape_cast %204 : vector<48xf32> to vector<1x1x48xf32>
    %206 = vector.broadcast %205 : vector<1x1x48xf32> to vector<10x16x48xf32>
    %207 = arith.mulf %202, %206 : vector<10x16x48xf32>
    %208 = arith.addf %201, %207 : vector<10x16x48xf32>
    %c1_112 = arith.constant 1 : index
    %c9_113 = arith.constant 9 : index
    %c0_114 = arith.constant 0 : index
    %209 = vector.load %arg20[%c1_112, %c9_113, %c0_114] : memref<12x32x48xf32, #tpu.memory_space<vmem>>, vector<10x16x48xf32>
    %210 = vector.extract_strided_slice %172 {offsets = [5, 0], sizes = [1, 48], strides = [1, 1]} : vector<9x48xf32> to vector<1x48xf32>
    %211 = vector.shape_cast %210 : vector<1x48xf32> to vector<48xf32>
    %212 = vector.shape_cast %211 : vector<48xf32> to vector<1x1x48xf32>
    %213 = vector.broadcast %212 : vector<1x1x48xf32> to vector<10x16x48xf32>
    %214 = arith.mulf %209, %213 : vector<10x16x48xf32>
    %215 = arith.addf %208, %214 : vector<10x16x48xf32>
    %c2_115 = arith.constant 2 : index
    %c7_116 = arith.constant 7 : index
    %c0_117 = arith.constant 0 : index
    %216 = vector.load %arg20[%c2_115, %c7_116, %c0_117] : memref<12x32x48xf32, #tpu.memory_space<vmem>>, vector<10x16x48xf32>
    %217 = vector.extract_strided_slice %172 {offsets = [6, 0], sizes = [1, 48], strides = [1, 1]} : vector<9x48xf32> to vector<1x48xf32>
    %218 = vector.shape_cast %217 : vector<1x48xf32> to vector<48xf32>
    %219 = vector.shape_cast %218 : vector<48xf32> to vector<1x1x48xf32>
    %220 = vector.broadcast %219 : vector<1x1x48xf32> to vector<10x16x48xf32>
    %221 = arith.mulf %216, %220 : vector<10x16x48xf32>
    %222 = arith.addf %215, %221 : vector<10x16x48xf32>
    %c2_118 = arith.constant 2 : index
    %c8_119 = arith.constant 8 : index
    %c0_120 = arith.constant 0 : index
    %223 = vector.load %arg20[%c2_118, %c8_119, %c0_120] : memref<12x32x48xf32, #tpu.memory_space<vmem>>, vector<10x16x48xf32>
    %224 = vector.extract_strided_slice %172 {offsets = [7, 0], sizes = [1, 48], strides = [1, 1]} : vector<9x48xf32> to vector<1x48xf32>
    %225 = vector.shape_cast %224 : vector<1x48xf32> to vector<48xf32>
    %226 = vector.shape_cast %225 : vector<48xf32> to vector<1x1x48xf32>
    %227 = vector.broadcast %226 : vector<1x1x48xf32> to vector<10x16x48xf32>
    %228 = arith.mulf %223, %227 : vector<10x16x48xf32>
    %229 = arith.addf %222, %228 : vector<10x16x48xf32>
    %c2_121 = arith.constant 2 : index
    %c9_122 = arith.constant 9 : index
    %c0_123 = arith.constant 0 : index
    %230 = vector.load %arg20[%c2_121, %c9_122, %c0_123] : memref<12x32x48xf32, #tpu.memory_space<vmem>>, vector<10x16x48xf32>
    %231 = vector.extract_strided_slice %172 {offsets = [8, 0], sizes = [1, 48], strides = [1, 1]} : vector<9x48xf32> to vector<1x48xf32>
    %232 = vector.shape_cast %231 : vector<1x48xf32> to vector<48xf32>
    %233 = vector.shape_cast %232 : vector<48xf32> to vector<1x1x48xf32>
    %234 = vector.broadcast %233 : vector<1x1x48xf32> to vector<10x16x48xf32>
    %235 = arith.mulf %230, %234 : vector<10x16x48xf32>
    %236 = arith.addf %229, %235 : vector<10x16x48xf32>
    %237 = vector.shape_cast %174 : vector<48xf32> to vector<1x1x48xf32>
    %238 = vector.broadcast %237 : vector<1x1x48xf32> to vector<10x16x48xf32>
    %239 = arith.addf %236, %238 : vector<10x16x48xf32>
    %cst_124 = arith.constant 0.000000e+00 : f32
    %240 = vector.broadcast %cst_124 : f32 to vector<10x16x48xf32>
    %241 = arith.maximumf %239, %240 : vector<10x16x48xf32>
    %242 = vector.shape_cast %171 : vector<10x16x256xf32> to vector<160x256xf32>
    %243 = arith.truncf %242 : vector<160x256xf32> to vector<160x256xbf16>
    %c0_125 = arith.constant 0 : index
    %c0_126 = arith.constant 0 : index
    %244 = vector.load %arg11[%c0_125, %c0_126] : memref<256x256xbf16, #tpu.memory_space<vmem>>, vector<256x256xbf16>
    %cst_127 = arith.constant dense<0.000000e+00> : vector<160x256xf32>
    %245 = tpu.matmul %243, %244, %cst_127 {dimension_numbers = #tpu.dot_dimension_numbers<[1], [0], [0], [1], [0, 0, 1, 1], [], []>} : vector<160x256xbf16>, vector<256x256xbf16>, vector<160x256xf32> -> vector<160x256xf32>
    %246 = vector.shape_cast %241 : vector<10x16x48xf32> to vector<160x48xf32>
    %247 = arith.truncf %246 : vector<160x48xf32> to vector<160x48xbf16>
    %c0_128 = arith.constant 0 : index
    %c0_129 = arith.constant 0 : index
    %248 = vector.load %arg12[%c0_128, %c0_129] : memref<48x256xbf16, #tpu.memory_space<vmem>>, vector<48x256xbf16>
    %cst_130 = arith.constant dense<0.000000e+00> : vector<160x256xf32>
    %249 = tpu.matmul %247, %248, %cst_130 {dimension_numbers = #tpu.dot_dimension_numbers<[1], [0], [0], [1], [0, 0, 1, 1], [], []>} : vector<160x48xbf16>, vector<48x256xbf16>, vector<160x256xf32> -> vector<160x256xf32>
    %250 = arith.addf %245, %249 : vector<160x256xf32>
    %c0_131 = arith.constant 0 : index
    %c0_132 = arith.constant 0 : index
    %251 = vector.load %arg13[%c0_131, %c0_132] : memref<1x256xf32, #tpu.memory_space<vmem>>, vector<1x256xf32>
    %252 = vector.shape_cast %251 : vector<1x256xf32> to vector<256xf32>
    %253 = vector.shape_cast %252 : vector<256xf32> to vector<1x256xf32>
    %254 = vector.broadcast %253 : vector<1x256xf32> to vector<160x256xf32>
    %255 = arith.addf %250, %254 : vector<160x256xf32>
    %cst_133 = arith.constant 0.000000e+00 : f32
    %256 = vector.broadcast %cst_133 : f32 to vector<160x256xf32>
    %257 = arith.maximumf %255, %256 : vector<160x256xf32>
    %258 = vector.shape_cast %257 : vector<160x256xf32> to vector<10x16x256xf32>
    %c0_134 = arith.constant 0 : index
    %c8_135 = arith.constant 8 : index
    %c0_136 = arith.constant 0 : index
    %259 = vector.load %arg21[%c0_134, %c8_135, %c0_136] : memref<10x32x256xf32, #tpu.memory_space<vmem>>, vector<10x16x256xf32>
    tpu.vector_store %arg21[%c0_134, %c8_135, %c0_136], %258 {strides = array<i32>} : memref<10x32x256xf32, #tpu.memory_space<vmem>>, vector<10x16x256xf32>,
    %c0_i32_137 = arith.constant 0 : i32
    %260 = arith.cmpi eq, %arg1, %c0_i32_137 : i32
    %261 = arith.extui %260 : i1 to i32
    %c0_i32_138 = arith.constant 0 : i32
    %262 = arith.cmpi ne, %261, %c0_i32_138 : i32
    scf.if %262 {
      %cst_191 = arith.constant 0.000000e+00 : f32
      %356 = vector.broadcast %cst_191 : f32 to vector<1x32x256xf32>
      %c0_192 = arith.constant 0 : index
      %c0_193 = arith.constant 0 : index
      %c0_194 = arith.constant 0 : index
      %357 = vector.load %arg21[%c0_192, %c0_193, %c0_194] : memref<10x32x256xf32, #tpu.memory_space<vmem>>, vector<1x32x256xf32>
      tpu.vector_store %arg21[%c0_192, %c0_193, %c0_194], %356 {strides = array<i32>} : memref<10x32x256xf32, #tpu.memory_space<vmem>>, vector<1x32x256xf32>,
    } else {
    }
    %c1_i32_139 = arith.constant 1 : i32
    %263 = arith.cmpi eq, %arg1, %c1_i32_139 : i32
    %264 = arith.extui %263 : i1 to i32
    %c0_i32_140 = arith.constant 0 : i32
    %265 = arith.cmpi ne, %264, %c0_i32_140 : i32
    scf.if %265 {
      %cst_191 = arith.constant 0.000000e+00 : f32
      %356 = vector.broadcast %cst_191 : f32 to vector<1x32x256xf32>
      %c9_192 = arith.constant 9 : index
      %c0_193 = arith.constant 0 : index
      %c0_194 = arith.constant 0 : index
      %357 = vector.load %arg21[%c9_192, %c0_193, %c0_194] : memref<10x32x256xf32, #tpu.memory_space<vmem>>, vector<1x32x256xf32>
      tpu.vector_store %arg21[%c9_192, %c0_193, %c0_194], %356 {strides = array<i32>} : memref<10x32x256xf32, #tpu.memory_space<vmem>>, vector<1x32x256xf32>,
    } else {
    }
    %cst_141 = arith.constant 0.000000e+00 : f32
    %266 = vector.broadcast %cst_141 : f32 to vector<10x8x256xf32>
    %c0_142 = arith.constant 0 : index
    %c0_143 = arith.constant 0 : index
    %c0_144 = arith.constant 0 : index
    %267 = vector.load %arg21[%c0_142, %c0_143, %c0_144] : memref<10x32x256xf32, #tpu.memory_space<vmem>>, vector<10x8x256xf32>
    tpu.vector_store %arg21[%c0_142, %c0_143, %c0_144], %266 {strides = array<i32>} : memref<10x32x256xf32, #tpu.memory_space<vmem>>, vector<10x8x256xf32>,
    %cst_145 = arith.constant 0.000000e+00 : f32
    %268 = vector.broadcast %cst_145 : f32 to vector<10x8x256xf32>
    %c0_146 = arith.constant 0 : index
    %c24_147 = arith.constant 24 : index
    %c0_148 = arith.constant 0 : index
    %269 = vector.load %arg21[%c0_146, %c24_147, %c0_148] : memref<10x32x256xf32, #tpu.memory_space<vmem>>, vector<10x8x256xf32>
    tpu.vector_store %arg21[%c0_146, %c24_147, %c0_148], %268 {strides = array<i32>} : memref<10x32x256xf32, #tpu.memory_space<vmem>>, vector<10x8x256xf32>,
    %c0_149 = arith.constant 0 : index
    %c0_150 = arith.constant 0 : index
    %270 = vector.load %arg14[%c0_149, %c0_150] : memref<9x256xf32, #tpu.memory_space<vmem>>, vector<9x256xf32>
    %c0_151 = arith.constant 0 : index
    %c0_152 = arith.constant 0 : index
    %271 = vector.load %arg15[%c0_151, %c0_152] : memref<1x256xf32, #tpu.memory_space<vmem>>, vector<1x256xf32>
    %272 = vector.shape_cast %271 : vector<1x256xf32> to vector<256xf32>
    %c0_153 = arith.constant 0 : index
    %c7_154 = arith.constant 7 : index
    %c0_155 = arith.constant 0 : index
    %273 = vector.load %arg21[%c0_153, %c7_154, %c0_155] : memref<10x32x256xf32, #tpu.memory_space<vmem>>, vector<8x16x256xf32>
    %274 = vector.extract_strided_slice %270 {offsets = [0, 0], sizes = [1, 256], strides = [1, 1]} : vector<9x256xf32> to vector<1x256xf32>
    %275 = vector.shape_cast %274 : vector<1x256xf32> to vector<256xf32>
    %276 = vector.shape_cast %275 : vector<256xf32> to vector<1x1x256xf32>
    %277 = vector.broadcast %276 : vector<1x1x256xf32> to vector<8x16x256xf32>
    %278 = arith.mulf %273, %277 : vector<8x16x256xf32>
    %c0_156 = arith.constant 0 : index
    %c8_157 = arith.constant 8 : index
    %c0_158 = arith.constant 0 : index
    %279 = vector.load %arg21[%c0_156, %c8_157, %c0_158] : memref<10x32x256xf32, #tpu.memory_space<vmem>>, vector<8x16x256xf32>
    %280 = vector.extract_strided_slice %270 {offsets = [1, 0], sizes = [1, 256], strides = [1, 1]} : vector<9x256xf32> to vector<1x256xf32>
    %281 = vector.shape_cast %280 : vector<1x256xf32> to vector<256xf32>
    %282 = vector.shape_cast %281 : vector<256xf32> to vector<1x1x256xf32>
    %283 = vector.broadcast %282 : vector<1x1x256xf32> to vector<8x16x256xf32>
    %284 = arith.mulf %279, %283 : vector<8x16x256xf32>
    %285 = arith.addf %278, %284 : vector<8x16x256xf32>
    %c0_159 = arith.constant 0 : index
    %c9_160 = arith.constant 9 : index
    %c0_161 = arith.constant 0 : index
    %286 = vector.load %arg21[%c0_159, %c9_160, %c0_161] : memref<10x32x256xf32, #tpu.memory_space<vmem>>, vector<8x16x256xf32>
    %287 = vector.extract_strided_slice %270 {offsets = [2, 0], sizes = [1, 256], strides = [1, 1]} : vector<9x256xf32> to vector<1x256xf32>
    %288 = vector.shape_cast %287 : vector<1x256xf32> to vector<256xf32>
    %289 = vector.shape_cast %288 : vector<256xf32> to vector<1x1x256xf32>
    %290 = vector.broadcast %289 : vector<1x1x256xf32> to vector<8x16x256xf32>
    %291 = arith.mulf %286, %290 : vector<8x16x256xf32>
    %292 = arith.addf %285, %291 : vector<8x16x256xf32>
    %c1_162 = arith.constant 1 : index
    %c7_163 = arith.constant 7 : index
    %c0_164 = arith.constant 0 : index
    %293 = vector.load %arg21[%c1_162, %c7_163, %c0_164] : memref<10x32x256xf32, #tpu.memory_space<vmem>>, vector<8x16x256xf32>
    %294 = vector.extract_strided_slice %270 {offsets = [3, 0], sizes = [1, 256], strides = [1, 1]} : vector<9x256xf32> to vector<1x256xf32>
    %295 = vector.shape_cast %294 : vector<1x256xf32> to vector<256xf32>
    %296 = vector.shape_cast %295 : vector<256xf32> to vector<1x1x256xf32>
    %297 = vector.broadcast %296 : vector<1x1x256xf32> to vector<8x16x256xf32>
    %298 = arith.mulf %293, %297 : vector<8x16x256xf32>
    %299 = arith.addf %292, %298 : vector<8x16x256xf32>
    %c1_165 = arith.constant 1 : index
    %c8_166 = arith.constant 8 : index
    %c0_167 = arith.constant 0 : index
    %300 = vector.load %arg21[%c1_165, %c8_166, %c0_167] : memref<10x32x256xf32, #tpu.memory_space<vmem>>, vector<8x16x256xf32>
    %301 = vector.extract_strided_slice %270 {offsets = [4, 0], sizes = [1, 256], strides = [1, 1]} : vector<9x256xf32> to vector<1x256xf32>
    %302 = vector.shape_cast %301 : vector<1x256xf32> to vector<256xf32>
    %303 = vector.shape_cast %302 : vector<256xf32> to vector<1x1x256xf32>
    %304 = vector.broadcast %303 : vector<1x1x256xf32> to vector<8x16x256xf32>
    %305 = arith.mulf %300, %304 : vector<8x16x256xf32>
    %306 = arith.addf %299, %305 : vector<8x16x256xf32>
    %c1_168 = arith.constant 1 : index
    %c9_169 = arith.constant 9 : index
    %c0_170 = arith.constant 0 : index
    %307 = vector.load %arg21[%c1_168, %c9_169, %c0_170] : memref<10x32x256xf32, #tpu.memory_space<vmem>>, vector<8x16x256xf32>
    %308 = vector.extract_strided_slice %270 {offsets = [5, 0], sizes = [1, 256], strides = [1, 1]} : vector<9x256xf32> to vector<1x256xf32>
    %309 = vector.shape_cast %308 : vector<1x256xf32> to vector<256xf32>
    %310 = vector.shape_cast %309 : vector<256xf32> to vector<1x1x256xf32>
    %311 = vector.broadcast %310 : vector<1x1x256xf32> to vector<8x16x256xf32>
    %312 = arith.mulf %307, %311 : vector<8x16x256xf32>
    %313 = arith.addf %306, %312 : vector<8x16x256xf32>
    %c2_171 = arith.constant 2 : index
    %c7_172 = arith.constant 7 : index
    %c0_173 = arith.constant 0 : index
    %314 = vector.load %arg21[%c2_171, %c7_172, %c0_173] : memref<10x32x256xf32, #tpu.memory_space<vmem>>, vector<8x16x256xf32>
    %315 = vector.extract_strided_slice %270 {offsets = [6, 0], sizes = [1, 256], strides = [1, 1]} : vector<9x256xf32> to vector<1x256xf32>
    %316 = vector.shape_cast %315 : vector<1x256xf32> to vector<256xf32>
    %317 = vector.shape_cast %316 : vector<256xf32> to vector<1x1x256xf32>
    %318 = vector.broadcast %317 : vector<1x1x256xf32> to vector<8x16x256xf32>
    %319 = arith.mulf %314, %318 : vector<8x16x256xf32>
    %320 = arith.addf %313, %319 : vector<8x16x256xf32>
    %c2_174 = arith.constant 2 : index
    %c8_175 = arith.constant 8 : index
    %c0_176 = arith.constant 0 : index
    %321 = vector.load %arg21[%c2_174, %c8_175, %c0_176] : memref<10x32x256xf32, #tpu.memory_space<vmem>>, vector<8x16x256xf32>
    %322 = vector.extract_strided_slice %270 {offsets = [7, 0], sizes = [1, 256], strides = [1, 1]} : vector<9x256xf32> to vector<1x256xf32>
    %323 = vector.shape_cast %322 : vector<1x256xf32> to vector<256xf32>
    %324 = vector.shape_cast %323 : vector<256xf32> to vector<1x1x256xf32>
    %325 = vector.broadcast %324 : vector<1x1x256xf32> to vector<8x16x256xf32>
    %326 = arith.mulf %321, %325 : vector<8x16x256xf32>
    %327 = arith.addf %320, %326 : vector<8x16x256xf32>
    %c2_177 = arith.constant 2 : index
    %c9_178 = arith.constant 9 : index
    %c0_179 = arith.constant 0 : index
    %328 = vector.load %arg21[%c2_177, %c9_178, %c0_179] : memref<10x32x256xf32, #tpu.memory_space<vmem>>, vector<8x16x256xf32>
    %329 = vector.extract_strided_slice %270 {offsets = [8, 0], sizes = [1, 256], strides = [1, 1]} : vector<9x256xf32> to vector<1x256xf32>
    %330 = vector.shape_cast %329 : vector<1x256xf32> to vector<256xf32>
    %331 = vector.shape_cast %330 : vector<256xf32> to vector<1x1x256xf32>
    %332 = vector.broadcast %331 : vector<1x1x256xf32> to vector<8x16x256xf32>
    %333 = arith.mulf %328, %332 : vector<8x16x256xf32>
    %334 = arith.addf %327, %333 : vector<8x16x256xf32>
    %335 = vector.shape_cast %272 : vector<256xf32> to vector<1x1x256xf32>
    %336 = vector.broadcast %335 : vector<1x1x256xf32> to vector<8x16x256xf32>
    %337 = arith.addf %334, %336 : vector<8x16x256xf32>
    %cst_180 = arith.constant 0.000000e+00 : f32
    %338 = vector.broadcast %cst_180 : f32 to vector<8x16x256xf32>
    %339 = arith.maximumf %337, %338 : vector<8x16x256xf32>
    %340 = vector.shape_cast %339 : vector<8x16x256xf32> to vector<128x256xf32>
    %341 = arith.truncf %340 : vector<128x256xf32> to vector<128x256xbf16>
    %c0_181 = arith.constant 0 : index
    %c0_182 = arith.constant 0 : index
    %342 = vector.load %arg16[%c0_181, %c0_182] : memref<256x256xbf16, #tpu.memory_space<vmem>>, vector<256x256xbf16>
    %cst_183 = arith.constant dense<0.000000e+00> : vector<128x256xf32>
    %343 = tpu.matmul %341, %342, %cst_183 {dimension_numbers = #tpu.dot_dimension_numbers<[1], [0], [0], [1], [0, 0, 1, 1], [], []>} : vector<128x256xbf16>, vector<256x256xbf16>, vector<128x256xf32> -> vector<128x256xf32>
    %c0_184 = arith.constant 0 : index
    %c0_185 = arith.constant 0 : index
    %344 = vector.load %arg17[%c0_184, %c0_185] : memref<1x256xf32, #tpu.memory_space<vmem>>, vector<1x256xf32>
    %345 = vector.shape_cast %344 : vector<1x256xf32> to vector<256xf32>
    %346 = vector.shape_cast %345 : vector<256xf32> to vector<1x256xf32>
    %347 = vector.broadcast %346 : vector<1x256xf32> to vector<128x256xf32>
    %348 = arith.addf %343, %347 : vector<128x256xf32>
    %cst_186 = arith.constant 0.000000e+00 : f32
    %349 = vector.broadcast %cst_186 : f32 to vector<128x256xf32>
    %350 = arith.maximumf %348, %349 : vector<128x256xf32>
    %351 = vector.shape_cast %350 : vector<128x256xf32> to vector<8x16x256xf32>
    %352 = arith.truncf %351 : vector<8x16x256xf32> to vector<8x16x256xbf16>
    %c0_187 = arith.constant 0 : index
    %c0_188 = arith.constant 0 : index
    %c0_189 = arith.constant 0 : index
    %c0_190 = arith.constant 0 : index
    %353 = vector.load %arg18[%c0_187, %c0_188, %c0_189, %c0_190] : memref<1x8x16x256xbf16, #tpu.memory_space<vmem>>, vector<1x8x16x256xbf16>
    %354 = vector.shape_cast %353 : vector<1x8x16x256xbf16> to vector<8x16x256xbf16>
    %355 = vector.shape_cast %352 : vector<8x16x256xbf16> to vector<1x8x16x256xbf16>
    tpu.vector_store %arg18[%c0_187, %c0_188, %c0_189, %c0_190], %355 {strides = array<i32>} : memref<1x8x16x256xbf16, #tpu.memory_space<vmem>>, vector<1x8x16x256xbf16>,
    return
  }
  func.func @transform_0(%arg0: i32, %arg1: i32) -> (i32, i32, i32, i32) {
    %c0_i32 = arith.constant 0 : i32
    %c0_i32_0 = arith.constant 0 : i32
    %c0_i32_1 = arith.constant 0 : i32
    %c0_i32_2 = arith.constant 0 : i32
    return %arg0, %c0_i32, %c0_i32_0, %c0_i32_1 : i32, i32, i32, i32
  }
  func.func @transform_1(%arg0: i32, %arg1: i32) -> (i32, i32, i32, i32) {
    %c0_i32 = arith.constant 0 : i32
    %c0_i32_0 = arith.constant 0 : i32
    %c0_i32_1 = arith.constant 0 : i32
    %c0_i32_2 = arith.constant 0 : i32
    return %arg0, %c0_i32, %c0_i32_0, %c0_i32_1 : i32, i32, i32, i32
  }
  func.func @transform_2(%arg0: i32, %arg1: i32) -> (i32, i32) {
    %c0_i32 = arith.constant 0 : i32
    %c0_i32_0 = arith.constant 0 : i32
    %c0_i32_1 = arith.constant 0 : i32
    return %c0_i32, %c0_i32_0 : i32, i32
  }
  func.func @transform_3(%arg0: i32, %arg1: i32) -> (i32, i32) {
    %c0_i32 = arith.constant 0 : i32
    %c0_i32_0 = arith.constant 0 : i32
    %c0_i32_1 = arith.constant 0 : i32
    return %c0_i32, %c0_i32_0 : i32, i32
  }
  func.func @transform_4(%arg0: i32, %arg1: i32) -> (i32, i32) {
    %c0_i32 = arith.constant 0 : i32
    %c0_i32_0 = arith.constant 0 : i32
    %c0_i32_1 = arith.constant 0 : i32
    return %c0_i32, %c0_i32_0 : i32, i32
  }
  func.func @transform_5(%arg0: i32, %arg1: i32) -> (i32, i32) {
    %c0_i32 = arith.constant 0 : i32
    %c0_i32_0 = arith.constant 0 : i32
    %c0_i32_1 = arith.constant 0 : i32
    return %c0_i32, %c0_i32_0 : i32, i32
  }
  func.func @transform_6(%arg0: i32, %arg1: i32) -> (i32, i32) {
    %c0_i32 = arith.constant 0 : i32
    %c0_i32_0 = arith.constant 0 : i32
    %c0_i32_1 = arith.constant 0 : i32
    return %c0_i32, %c0_i32_0 : i32, i32
  }
  func.func @transform_7(%arg0: i32, %arg1: i32) -> (i32, i32) {
    %c0_i32 = arith.constant 0 : i32
    %c0_i32_0 = arith.constant 0 : i32
    %c0_i32_1 = arith.constant 0 : i32
    return %c0_i32, %c0_i32_0 : i32, i32
  }
  func.func @transform_8(%arg0: i32, %arg1: i32) -> (i32, i32) {
    %c0_i32 = arith.constant 0 : i32
    %c0_i32_0 = arith.constant 0 : i32
    %c0_i32_1 = arith.constant 0 : i32
    return %c0_i32, %c0_i32_0 : i32, i32
  }
  func.func @transform_9(%arg0: i32, %arg1: i32) -> (i32, i32) {
    %c0_i32 = arith.constant 0 : i32
    %c0_i32_0 = arith.constant 0 : i32
    %c0_i32_1 = arith.constant 0 : i32
    return %c0_i32, %c0_i32_0 : i32, i32
  }
  func.func @transform_10(%arg0: i32, %arg1: i32) -> (i32, i32) {
    %c0_i32 = arith.constant 0 : i32
    %c0_i32_0 = arith.constant 0 : i32
    %c0_i32_1 = arith.constant 0 : i32
    return %c0_i32, %c0_i32_0 : i32, i32
  }
  func.func @transform_11(%arg0: i32, %arg1: i32) -> (i32, i32) {
    %c0_i32 = arith.constant 0 : i32
    %c0_i32_0 = arith.constant 0 : i32
    %c0_i32_1 = arith.constant 0 : i32
    return %c0_i32, %c0_i32_0 : i32, i32
  }
  func.func @transform_12(%arg0: i32, %arg1: i32) -> (i32, i32) {
    %c0_i32 = arith.constant 0 : i32
    %c0_i32_0 = arith.constant 0 : i32
    %c0_i32_1 = arith.constant 0 : i32
    return %c0_i32, %c0_i32_0 : i32, i32
  }
  func.func @transform_13(%arg0: i32, %arg1: i32) -> (i32, i32) {
    %c0_i32 = arith.constant 0 : i32
    %c0_i32_0 = arith.constant 0 : i32
    %c0_i32_1 = arith.constant 0 : i32
    return %c0_i32, %c0_i32_0 : i32, i32
  }
  func.func @transform_14(%arg0: i32, %arg1: i32) -> (i32, i32) {
    %c0_i32 = arith.constant 0 : i32
    %c0_i32_0 = arith.constant 0 : i32
    %c0_i32_1 = arith.constant 0 : i32
    return %c0_i32, %c0_i32_0 : i32, i32
  }
  func.func @transform_15(%arg0: i32, %arg1: i32) -> (i32, i32) {
    %c0_i32 = arith.constant 0 : i32
    %c0_i32_0 = arith.constant 0 : i32
    %c0_i32_1 = arith.constant 0 : i32
    return %c0_i32, %c0_i32_0 : i32, i32
  }
  func.func @transform_16(%arg0: i32, %arg1: i32) -> (i32, i32, i32, i32) {
    %c0_i32 = arith.constant 0 : i32
    %c0_i32_0 = arith.constant 0 : i32
    %c0_i32_1 = arith.constant 0 : i32
    return %arg0, %arg1, %c0_i32, %c0_i32_0 : i32, i32, i32, i32
  }
}

</mosaic_0001>

<llo_original>
// kernel: decoder_spp_forward.1
$region0: #{decoder_spp_forward.1}
  #allocation0 [shape = 'u32[]', space=smem, size = 0x4, offset = 0x4, fixed_abs, tag = 'smem constant byte address 0x4 - core index']
  #allocation1 [shape = 'u32[72,128]{1,0:T(1,128)}', space=vmem, size = 0x9000, scoped, tag = 'internal scratch']
  #allocation2 [shape = 'f32[12,32,256]{2,1,0:T(8,128)}', space=vmem, size = 0x60000, scoped, tag = 'scratch operand']
  #allocation3 [shape = 'f32[12,32,48]{2,1,0:T(8,128)}', space=vmem, size = 0x30000, scoped, tag = 'scratch operand']
  #allocation4 [shape = 'f32[10,32,256]{2,1,0:T(8,128)}', space=vmem, size = 0x50000, scoped, tag = 'scratch operand']
  %s0 = inlined_call_operand.vmem [shape: bf16[2,20,8,256], index: 0, kind: input, shape index: {}]
  %s1 = inlined_call_operand.vmem [shape: bf16[2,20,16,256], index: 1, kind: input, shape index: {}]
  %s2 = inlined_call_operand.vmem [shape: bf16[32,8], index: 2, kind: input, shape index: {}]
  %s3 = inlined_call_operand.vmem [shape: bf16[256,48], index: 3, kind: input, shape index: {}]
  %s4 = inlined_call_operand.vmem [shape: f32[1,48], index: 4, kind: input, shape index: {}]
  %s5 = inlined_call_operand.vmem [shape: f32[9,256], index: 5, kind: input, shape index: {}]
  %s6 = inlined_call_operand.vmem [shape: f32[1,256], index: 6, kind: input, shape index: {}]
  %s7 = inlined_call_operand.vmem [shape: f32[9,48], index: 7, kind: input, shape index: {}]
  %s8 = inlined_call_operand.vmem [shape: f32[1,48], index: 8, kind: input, shape index: {}]
  %s9 = inlined_call_operand.vmem [shape: bf16[256,256], index: 9, kind: input, shape index: {}]
  %s10 = inlined_call_operand.vmem [shape: bf16[48,256], index: 10, kind: input, shape index: {}]
  %s11 = inlined_call_operand.vmem [shape: f32[1,256], index: 11, kind: input, shape index: {}]
  %s12 = inlined_call_operand.vmem [shape: f32[9,256], index: 12, kind: input, shape index: {}]
  %s13 = inlined_call_operand.vmem [shape: f32[1,256], index: 13, kind: input, shape index: {}]
  %s14 = inlined_call_operand.vmem [shape: bf16[256,256], index: 14, kind: input, shape index: {}]
  %s15 = inlined_call_operand.vmem [shape: f32[1,256], index: 15, kind: input, shape index: {}]
  %s16 = inlined_call_operand.vmem [shape: bf16[2,16,16,256], index: 16, kind: output, shape index: {}]
  %s17 = sld [smem:[#allocation0]]
  $region113: #{decoder_spp_forward.1} parent=0
    _
  %s19 = ssub.s32 1, %s17
  %s20 = scalar_select 0, %s19, %s17
  loop: start=0, step=1, limit=6
  $region2: #{decoder_spp_forward.1} parent=0 // loop_pre_header
    _
  $region3: #{decoder_spp_forward.1} parent=0 // loop_header
    %s22 = sphi 0, %s26
    %p23 = scmp.ge.s32.totalorder %s22, 6
    %s29 = sphi 0, %s41
    %s30 = sphi 0, %s37
    %s31 = sphi 0, %s29
    %s32 = sphi 0, %s30
    %s33 = sphi 0, %s31
    %s34 = sphi 0, %s32
    %s44 = sphi 0, %s46
    %s47 = sphi 0, %s44
    %s48 = sphi 0, %s47
    %s64 = sphi 0, %s48
    %s70 = sphi 0, %s72
    %s73 = sphi 0, %s70
    %s74 = sphi 0, %s73
    %s90 = sphi 0, %s74
    %s94 = sphi 0, %s94
    %s96 = sphi 0, %s94
    %s97 = sphi 0, %s96
    %s111 = sphi 0, %s97
    %s115 = sphi 0, %s115
    %s117 = sphi 0, %s115
    %s118 = sphi 0, %s117
    %s132 = sphi 0, %s118
    %s136 = sphi 0, %s136
    %s138 = sphi 0, %s136
    %s139 = sphi 0, %s138
    %s153 = sphi 0, %s139
    %s157 = sphi 0, %s157
    %s159 = sphi 0, %s157
    %s160 = sphi 0, %s159
    %s174 = sphi 0, %s160
    %s178 = sphi 0, %s178
    %s180 = sphi 0, %s178
    %s181 = sphi 0, %s180
    %s195 = sphi 0, %s181
    %s199 = sphi 0, %s199
    %s201 = sphi 0, %s199
    %s202 = sphi 0, %s201
    %s216 = sphi 0, %s202
    %s220 = sphi 0, %s220
    %s222 = sphi 0, %s220
    %s223 = sphi 0, %s222
    %s237 = sphi 0, %s223
    %s241 = sphi 0, %s241
    %s243 = sphi 0, %s241
    %s244 = sphi 0, %s243
    %s258 = sphi 0, %s244
    %s262 = sphi 0, %s262
    %s264 = sphi 0, %s262
    %s265 = sphi 0, %s264
    %s279 = sphi 0, %s265
    %s283 = sphi 0, %s283
    %s285 = sphi 0, %s283
    %s286 = sphi 0, %s285
    %s300 = sphi 0, %s286
    %s304 = sphi 0, %s304
    %s306 = sphi 0, %s304
    %s307 = sphi 0, %s306
    %s321 = sphi 0, %s307
    %s325 = sphi 0, %s325
    %s327 = sphi 0, %s325
    %s328 = sphi 0, %s327
    %s342 = sphi 0, %s328
    %s346 = sphi 0, %s346
    %s348 = sphi 0, %s346
    %s349 = sphi 0, %s348
    %s363 = sphi 0, %s349
    %s367 = sphi 0, %s367
    %s369 = sphi 0, %s367
    %s370 = sphi 0, %s369
    %s384 = sphi 0, %s370
    %s392 = sphi 0, %s394
    %s395 = sphi 0, %s392
    %s396 = sphi 0, %s395
    %s412 = sphi 0, %s396
  $region4: #{decoder_spp_forward.1} parent=0 // loop_header_branch
    %25 = sbr.rel (%p23) target = $region8
  $region5: #{decoder_spp_forward.1} parent=0 // loop_body
    %s27 = ssub.s32 %s22, 1
    %s28 = ssub.s32 %s22, 2
    %s35 = sadd.s32 1, %s30
    %p36 = scmp.ge.s32.totalorder %s35, 2
    %s37 = scalar_select %p36, 0, %s35
    %s38 = sadd.s32 1, %s29
    %s39 = scalar_select %p36, %s38, %s29
    %p40 = scmp.ge.s32.totalorder %s39, 2
    %s41 = scalar_select %p40, 0, %s39
    %s42 = ssub.s32 %s29, %s41
    %p43 = scmp.eq.s32.totalorder %s42, 0
    %s45 = sadd.s32 %s44, 1
    %s46 = scalar_select %p43, %s44, %s45
    %p49 = pneg %p43
    %p50 = scmp.eq.s32.totalorder %s22, 3
    %p51 = por %p49, %p50
    %p52 = scmp.ne.s32.totalorder %s44, %s47
    %p53 = scmp.eq.s32.totalorder %s22, 0
    %p54 = por %p52, %p53
    %p55 = scmp.ne.s32.totalorder %s44, %s47
    %p56 = scmp.eq.s32.totalorder %s27, 3
    %p57 = por %p55, %p56
    %p58 = scmp.ne.s32.totalorder %s47, %s48
    %p59 = scmp.eq.s32.totalorder %s27, 0
    %p60 = por %p58, %p59
    %p61 = scmp.ne.s32.totalorder %s47, %s48
    %p62 = scmp.eq.s32.totalorder %s28, 3
    %p63 = por %p61, %p62
    %p65 = scmp.ne.s32.totalorder %s48, %s64
    %p66 = scmp.eq.s32.totalorder %s28, 0
    %p67 = por %p65, %p66
    %s68 = ssub.s32 %s29, %s41
    %p69 = scmp.eq.s32.totalorder %s68, 0
    %s71 = sadd.s32 %s70, 1
    %s72 = scalar_select %p69, %s70, %s71
    %p75 = pneg %p69
    %p76 = scmp.eq.s32.totalorder %s22, 3
    %p77 = por %p75, %p76
    %p78 = scmp.ne.s32.totalorder %s70, %s73
    %p79 = scmp.eq.s32.totalorder %s22, 0
    %p80 = por %p78, %p79
    %p81 = scmp.ne.s32.totalorder %s70, %s73
    %p82 = scmp.eq.s32.totalorder %s27, 3
    %p83 = por %p81, %p82
    %p84 = scmp.ne.s32.totalorder %s73, %s74
    %p85 = scmp.eq.s32.totalorder %s27, 0
    %p86 = por %p84, %p85
    %p87 = scmp.ne.s32.totalorder %s73, %s74
    %p88 = scmp.eq.s32.totalorder %s28, 3
    %p89 = por %p87, %p88
    %p91 = scmp.ne.s32.totalorder %s74, %s90
    %p92 = scmp.eq.s32.totalorder %s28, 0
    %p93 = por %p91, %p92
    %s95 = sadd.s32 %s94, 1
    %p98 = scmp.eq.s32.totalorder %s22, 3
    %p99 = scmp.ne.s32.totalorder %s94, %s96
    %p100 = scmp.eq.s32.totalorder %s22, 0
    %p101 = por %p99, %p100
    %p102 = scmp.ne.s32.totalorder %s94, %s96
    %p103 = scmp.eq.s32.totalorder %s27, 3
    %p104 = por %p102, %p103
    %p105 = scmp.ne.s32.totalorder %s96, %s97
    %p106 = scmp.eq.s32.totalorder %s27, 0
    %p107 = por %p105, %p106
    %p108 = scmp.ne.s32.totalorder %s96, %s97
    %p109 = scmp.eq.s32.totalorder %s28, 3
    %p110 = por %p108, %p109
    %p112 = scmp.ne.s32.totalorder %s97, %s111
    %p113 = scmp.eq.s32.totalorder %s28, 0
    %p114 = por %p112, %p113
    %s116 = sadd.s32 %s115, 1
    %p119 = scmp.eq.s32.totalorder %s22, 3
    %p120 = scmp.ne.s32.totalorder %s115, %s117
    %p121 = scmp.eq.s32.totalorder %s22, 0
    %p122 = por %p120, %p121
    %p123 = scmp.ne.s32.totalorder %s115, %s117
    %p124 = scmp.eq.s32.totalorder %s27, 3
    %p125 = por %p123, %p124
    %p126 = scmp.ne.s32.totalorder %s117, %s118
    %p127 = scmp.eq.s32.totalorder %s27, 0
    %p128 = por %p126, %p127
    %p129 = scmp.ne.s32.totalorder %s117, %s118
    %p130 = scmp.eq.s32.totalorder %s28, 3
    %p131 = por %p129, %p130
    %p133 = scmp.ne.s32.totalorder %s118, %s132
    %p134 = scmp.eq.s32.totalorder %s28, 0
    %p135 = por %p133, %p134
    %s137 = sadd.s32 %s136, 1
    %p140 = scmp.eq.s32.totalorder %s22, 3
    %p141 = scmp.ne.s32.totalorder %s136, %s138
    %p142 = scmp.eq.s32.totalorder %s22, 0
    %p143 = por %p141, %p142
    %p144 = scmp.ne.s32.totalorder %s136, %s138
    %p145 = scmp.eq.s32.totalorder %s27, 3
    %p146 = por %p144, %p145
    %p147 = scmp.ne.s32.totalorder %s138, %s139
    %p148 = scmp.eq.s32.totalorder %s27, 0
    %p149 = por %p147, %p148
    %p150 = scmp.ne.s32.totalorder %s138, %s139
    %p151 = scmp.eq.s32.totalorder %s28, 3
    %p152 = por %p150, %p151
    %p154 = scmp.ne.s32.totalorder %s139, %s153
    %p155 = scmp.eq.s32.totalorder %s28, 0
    %p156 = por %p154, %p155
    %s158 = sadd.s32 %s157, 1
    %p161 = scmp.eq.s32.totalorder %s22, 3
    %p162 = scmp.ne.s32.totalorder %s157, %s159
    %p163 = scmp.eq.s32.totalorder %s22, 0
    %p164 = por %p162, %p163
    %p165 = scmp.ne.s32.totalorder %s157, %s159
    %p166 = scmp.eq.s32.totalorder %s27, 3
    %p167 = por %p165, %p166
    %p168 = scmp.ne.s32.totalorder %s159, %s160
    %p169 = scmp.eq.s32.totalorder %s27, 0
    %p170 = por %p168, %p169
    %p171 = scmp.ne.s32.totalorder %s159, %s160
    %p172 = scmp.eq.s32.totalorder %s28, 3
    %p173 = por %p171, %p172
    %p175 = scmp.ne.s32.totalorder %s160, %s174
    %p176 = scmp.eq.s32.totalorder %s28, 0
    %p177 = por %p175, %p176
    %s179 = sadd.s32 %s178, 1
    %p182 = scmp.eq.s32.totalorder %s22, 3
    %p183 = scmp.ne.s32.totalorder %s178, %s180
    %p184 = scmp.eq.s32.totalorder %s22, 0
    %p185 = por %p183, %p184
    %p186 = scmp.ne.s32.totalorder %s178, %s180
    %p187 = scmp.eq.s32.totalorder %s27, 3
    %p188 = por %p186, %p187
    %p189 = scmp.ne.s32.totalorder %s180, %s181
    %p190 = scmp.eq.s32.totalorder %s27, 0
    %p191 = por %p189, %p190
    %p192 = scmp.ne.s32.totalorder %s180, %s181
    %p193 = scmp.eq.s32.totalorder %s28, 3
    %p194 = por %p192, %p193
    %p196 = scmp.ne.s32.totalorder %s181, %s195
    %p197 = scmp.eq.s32.totalorder %s28, 0
    %p198 = por %p196, %p197
    %s200 = sadd.s32 %s199, 1
    %p203 = scmp.eq.s32.totalorder %s22, 3
    %p204 = scmp.ne.s32.totalorder %s199, %s201
    %p205 = scmp.eq.s32.totalorder %s22, 0
    %p206 = por %p204, %p205
    %p207 = scmp.ne.s32.totalorder %s199, %s201
    %p208 = scmp.eq.s32.totalorder %s27, 3
    %p209 = por %p207, %p208
    %p210 = scmp.ne.s32.totalorder %s201, %s202
    %p211 = scmp.eq.s32.totalorder %s27, 0
    %p212 = por %p210, %p211
    %p213 = scmp.ne.s32.totalorder %s201, %s202
    %p214 = scmp.eq.s32.totalorder %s28, 3
    %p215 = por %p213, %p214
    %p217 = scmp.ne.s32.totalorder %s202, %s216
    %p218 = scmp.eq.s32.totalorder %s28, 0
    %p219 = por %p217, %p218
    %s221 = sadd.s32 %s220, 1
    %p224 = scmp.eq.s32.totalorder %s22, 3
    %p225 = scmp.ne.s32.totalorder %s220, %s222
    %p226 = scmp.eq.s32.totalorder %s22, 0
    %p227 = por %p225, %p226
    %p228 = scmp.ne.s32.totalorder %s220, %s222
    %p229 = scmp.eq.s32.totalorder %s27, 3
    %p230 = por %p228, %p229
    %p231 = scmp.ne.s32.totalorder %s222, %s223
    %p232 = scmp.eq.s32.totalorder %s27, 0
    %p233 = por %p231, %p232
    %p234 = scmp.ne.s32.totalorder %s222, %s223
    %p235 = scmp.eq.s32.totalorder %s28, 3
    %p236 = por %p234, %p235
    %p238 = scmp.ne.s32.totalorder %s223, %s237
    %p239 = scmp.eq.s32.totalorder %s28, 0
    %p240 = por %p238, %p239
    %s242 = sadd.s32 %s241, 1
    %p245 = scmp.eq.s32.totalorder %s22, 3
    %p246 = scmp.ne.s32.totalorder %s241, %s243
    %p247 = scmp.eq.s32.totalorder %s22, 0
    %p248 = por %p246, %p247
    %p249 = scmp.ne.s32.totalorder %s241, %s243
    %p250 = scmp.eq.s32.totalorder %s27, 3
    %p251 = por %p249, %p250
    %p252 = scmp.ne.s32.totalorder %s243, %s244
    %p253 = scmp.eq.s32.totalorder %s27, 0
    %p254 = por %p252, %p253
    %p255 = scmp.ne.s32.totalorder %s243, %s244
    %p256 = scmp.eq.s32.totalorder %s28, 3
    %p257 = por %p255, %p256
    %p259 = scmp.ne.s32.totalorder %s244, %s258
    %p260 = scmp.eq.s32.totalorder %s28, 0
    %p261 = por %p259, %p260
    %s263 = sadd.s32 %s262, 1
    %p266 = scmp.eq.s32.totalorder %s22, 3
    %p267 = scmp.ne.s32.totalorder %s262, %s264
    %p268 = scmp.eq.s32.totalorder %s22, 0
    %p269 = por %p267, %p268
    %p270 = scmp.ne.s32.totalorder %s262, %s264
    %p271 = scmp.eq.s32.totalorder %s27, 3
    %p272 = por %p270, %p271
    %p273 = scmp.ne.s32.totalorder %s264, %s265
    %p274 = scmp.eq.s32.totalorder %s27, 0
    %p275 = por %p273, %p274
    %p276 = scmp.ne.s32.totalorder %s264, %s265
    %p277 = scmp.eq.s32.totalorder %s28, 3
    %p278 = por %p276, %p277
    %p280 = scmp.ne.s32.totalorder %s265, %s279
    %p281 = scmp.eq.s32.totalorder %s28, 0
    %p282 = por %p280, %p281
    %s284 = sadd.s32 %s283, 1
    %p287 = scmp.eq.s32.totalorder %s22, 3
    %p288 = scmp.ne.s32.totalorder %s283, %s285
    %p289 = scmp.eq.s32.totalorder %s22, 0
    %p290 = por %p288, %p289
    %p291 = scmp.ne.s32.totalorder %s283, %s285
    %p292 = scmp.eq.s32.totalorder %s27, 3
    %p293 = por %p291, %p292
    %p294 = scmp.ne.s32.totalorder %s285, %s286
    %p295 = scmp.eq.s32.totalorder %s27, 0
    %p296 = por %p294, %p295
    %p297 = scmp.ne.s32.totalorder %s285, %s286
    %p298 = scmp.eq.s32.totalorder %s28, 3
    %p299 = por %p297, %p298
    %p301 = scmp.ne.s32.totalorder %s286, %s300
    %p302 = scmp.eq.s32.totalorder %s28, 0
    %p303 = por %p301, %p302
    %s305 = sadd.s32 %s304, 1
    %p308 = scmp.eq.s32.totalorder %s22, 3
    %p309 = scmp.ne.s32.totalorder %s304, %s306
    %p310 = scmp.eq.s32.totalorder %s22, 0
    %p311 = por %p309, %p310
    %p312 = scmp.ne.s32.totalorder %s304, %s306
    %p313 = scmp.eq.s32.totalorder %s27, 3
    %p314 = por %p312, %p313
    %p315 = scmp.ne.s32.totalorder %s306, %s307
    %p316 = scmp.eq.s32.totalorder %s27, 0
    %p317 = por %p315, %p316
    %p318 = scmp.ne.s32.totalorder %s306, %s307
    %p319 = scmp.eq.s32.totalorder %s28, 3
    %p320 = por %p318, %p319
    %p322 = scmp.ne.s32.totalorder %s307, %s321
    %p323 = scmp.eq.s32.totalorder %s28, 0
    %p324 = por %p322, %p323
    %s326 = sadd.s32 %s325, 1
    %p329 = scmp.eq.s32.totalorder %s22, 3
    %p330 = scmp.ne.s32.totalorder %s325, %s327
    %p331 = scmp.eq.s32.totalorder %s22, 0
    %p332 = por %p330, %p331
    %p333 = scmp.ne.s32.totalorder %s325, %s327
    %p334 = scmp.eq.s32.totalorder %s27, 3
    %p335 = por %p333, %p334
    %p336 = scmp.ne.s32.totalorder %s327, %s328
    %p337 = scmp.eq.s32.totalorder %s27, 0
    %p338 = por %p336, %p337
    %p339 = scmp.ne.s32.totalorder %s327, %s328
    %p340 = scmp.eq.s32.totalorder %s28, 3
    %p341 = por %p339, %p340
    %p343 = scmp.ne.s32.totalorder %s328, %s342
    %p344 = scmp.eq.s32.totalorder %s28, 0
    %p345 = por %p343, %p344
    %s347 = sadd.s32 %s346, 1
    %p350 = scmp.eq.s32.totalorder %s22, 3
    %p351 = scmp.ne.s32.totalorder %s346, %s348
    %p352 = scmp.eq.s32.totalorder %s22, 0
    %p353 = por %p351, %p352
    %p354 = scmp.ne.s32.totalorder %s346, %s348
    %p355 = scmp.eq.s32.totalorder %s27, 3
    %p356 = por %p354, %p355
    %p357 = scmp.ne.s32.totalorder %s348, %s349
    %p358 = scmp.eq.s32.totalorder %s27, 0
    %p359 = por %p357, %p358
    %p360 = scmp.ne.s32.totalorder %s348, %s349
    %p361 = scmp.eq.s32.totalorder %s28, 3
    %p362 = por %p360, %p361
    %p364 = scmp.ne.s32.totalorder %s349, %s363
    %p365 = scmp.eq.s32.totalorder %s28, 0
    %p366 = por %p364, %p365
    %s368 = sadd.s32 %s367, 1
    %p371 = scmp.eq.s32.totalorder %s22, 3
    %p372 = scmp.ne.s32.totalorder %s367, %s369
    %p373 = scmp.eq.s32.totalorder %s22, 0
    %p374 = por %p372, %p373
    %p375 = scmp.ne.s32.totalorder %s367, %s369
    %p376 = scmp.eq.s32.totalorder %s27, 3
    %p377 = por %p375, %p376
    %p378 = scmp.ne.s32.totalorder %s369, %s370
    %p379 = scmp.eq.s32.totalorder %s27, 0
    %p380 = por %p378, %p379
    %p381 = scmp.ne.s32.totalorder %s369, %s370
    %p382 = scmp.eq.s32.totalorder %s28, 3
    %p383 = por %p381, %p382
    %p385 = scmp.ne.s32.totalorder %s370, %s384
    %p386 = scmp.eq.s32.totalorder %s28, 0
    %p387 = por %p385, %p386
    %s388 = ssub.s32 %s29, %s41
    %s389 = ssub.s32 %s30, %s37
    %s390 = sor.u32 %s388, %s389
    %p391 = scmp.eq.s32.totalorder %s390, 0
    %s393 = sadd.s32 %s392, 1
    %s394 = scalar_select %p391, %s392, %s393
    %p397 = pneg %p391
    %p398 = scmp.eq.s32.totalorder %s22, 3
    %p399 = por %p397, %p398
    %p400 = scmp.ne.s32.totalorder %s392, %s395
    %p401 = scmp.eq.s32.totalorder %s22, 0
    %p402 = por %p400, %p401
    %p403 = scmp.ne.s32.totalorder %s392, %s395
    %p404 = scmp.eq.s32.totalorder %s27, 3
    %p405 = por %p403, %p404
    %p406 = scmp.ne.s32.totalorder %s395, %s396
    %p407 = scmp.eq.s32.totalorder %s27, 0
    %p408 = por %p406, %p407
    %p409 = scmp.ne.s32.totalorder %s395, %s396
    %p410 = scmp.eq.s32.totalorder %s28, 3
    %p411 = por %p409, %p410
    %p413 = scmp.ne.s32.totalorder %s396, %s412
    %p414 = scmp.eq.s32.totalorder %s28, 0
    %p415 = por %p413, %p414
    %p416 = scmp.le.s32.totalorder 1, %s22
    %p417 = scmp.lt.s32.totalorder %s22, 5
    %p418 = pnand %p416, %p417
    %p419 = pneg %p418
    // Predicated region
    $region9: #{decoder_spp_forward.1} parent=5 // pred_check
      _
    $region10: #{decoder_spp_forward.1} parent=5 // pred_check_branch
      %421 = sbr.rel (%p418) target = $region12
    $region11: #{decoder_spp_forward.1} parent=5 // pred_region
      %s422 = ssub.s32 %s22, 1
      // Predicated region
      $region13: #{decoder_spp_forward.1} parent=11 // pred_check
        %p423 = pneg %p107
      $region14: #{decoder_spp_forward.1} parent=11 // pred_check_branch
        %425 = sbr.rel (%p423) target = $region16
      $region15: #{decoder_spp_forward.1} parent=11 // pred_region
        _
      $region16: #{decoder_spp_forward.1} parent=11 // pred_fallthru
        _
      // Predicated region
      $region17: #{decoder_spp_forward.1} parent=11 // pred_check
        %p426 = pneg %p128
      $region18: #{decoder_spp_forward.1} parent=11 // pred_check_branch
        %428 = sbr.rel (%p426) target = $region20
      $region19: #{decoder_spp_forward.1} parent=11 // pred_region
        _
      $region20: #{decoder_spp_forward.1} parent=11 // pred_fallthru
        _
      // Predicated region
      $region21: #{decoder_spp_forward.1} parent=11 // pred_check
        %p429 = pneg %p149
      $region22: #{decoder_spp_forward.1} parent=11 // pred_check_branch
        %431 = sbr.rel (%p429) target = $region24
      $region23: #{decoder_spp_forward.1} parent=11 // pred_region
        _
      $region24: #{decoder_spp_forward.1} parent=11 // pred_fallthru
        _
      // Predicated region
      $region25: #{decoder_spp_forward.1} parent=11 // pred_check
        %p432 = pneg %p170
      $region26: #{decoder_spp_forward.1} parent=11 // pred_check_branch
        %434 = sbr.rel (%p432) target = $region28
      $region27: #{decoder_spp_forward.1} parent=11 // pred_region
        _
      $region28: #{decoder_spp_forward.1} parent=11 // pred_fallthru
        _
      // Predicated region
      $region29: #{decoder_spp_forward.1} parent=11 // pred_check
        %p435 = pneg %p191
      $region30: #{decoder_spp_forward.1} parent=11 // pred_check_branch
        %437 = sbr.rel (%p435) target = $region32
      $region31: #{decoder_spp_forward.1} parent=11 // pred_region
        _
      $region32: #{decoder_spp_forward.1} parent=11 // pred_fallthru
        _
      // Predicated region
      $region33: #{decoder_spp_forward.1} parent=11 // pred_check
        %p438 = pneg %p212
      $region34: #{decoder_spp_forward.1} parent=11 // pred_check_branch
        %440 = sbr.rel (%p438) target = $region36
      $region35: #{decoder_spp_forward.1} parent=11 // pred_region
        _
      $region36: #{decoder_spp_forward.1} parent=11 // pred_fallthru
        _
      // Predicated region
      $region37: #{decoder_spp_forward.1} parent=11 // pred_check
        %p441 = pneg %p233
      $region38: #{decoder_spp_forward.1} parent=11 // pred_check_branch
        %443 = sbr.rel (%p441) target = $region40
      $region39: #{decoder_spp_forward.1} parent=11 // pred_region
        _
      $region40: #{decoder_spp_forward.1} parent=11 // pred_fallthru
        _
      // Predicated region
      $region41: #{decoder_spp_forward.1} parent=11 // pred_check
        %p444 = pneg %p254
      $region42: #{decoder_spp_forward.1} parent=11 // pred_check_branch
        %446 = sbr.rel (%p444) target = $region44
      $region43: #{decoder_spp_forward.1} parent=11 // pred_region
        _
      $region44: #{decoder_spp_forward.1} parent=11 // pred_fallthru
        _
      // Predicated region
      $region45: #{decoder_spp_forward.1} parent=11 // pred_check
        %p447 = pneg %p275
      $region46: #{decoder_spp_forward.1} parent=11 // pred_check_branch
        %449 = sbr.rel (%p447) target = $region48
      $region47: #{decoder_spp_forward.1} parent=11 // pred_region
        _
      $region48: #{decoder_spp_forward.1} parent=11 // pred_fallthru
        _
      // Predicated region
      $region49: #{decoder_spp_forward.1} parent=11 // pred_check
        %p450 = pneg %p296
      $region50: #{decoder_spp_forward.1} parent=11 // pred_check_branch
        %452 = sbr.rel (%p450) target = $region52
      $region51: #{decoder_spp_forward.1} parent=11 // pred_region
        _
      $region52: #{decoder_spp_forward.1} parent=11 // pred_fallthru
        _
      // Predicated region
      $region53: #{decoder_spp_forward.1} parent=11 // pred_check
        %p453 = pneg %p317
      $region54: #{decoder_spp_forward.1} parent=11 // pred_check_branch
        %455 = sbr.rel (%p453) target = $region56
      $region55: #{decoder_spp_forward.1} parent=11 // pred_region
        _
      $region56: #{decoder_spp_forward.1} parent=11 // pred_fallthru
        _
      // Predicated region
      $region57: #{decoder_spp_forward.1} parent=11 // pred_check
        %p456 = pneg %p338
      $region58: #{decoder_spp_forward.1} parent=11 // pred_check_branch
        %458 = sbr.rel (%p456) target = $region60
      $region59: #{decoder_spp_forward.1} parent=11 // pred_region
        _
      $region60: #{decoder_spp_forward.1} parent=11 // pred_fallthru
        _
      // Predicated region
      $region61: #{decoder_spp_forward.1} parent=11 // pred_check
        %p459 = pneg %p359
      $region62: #{decoder_spp_forward.1} parent=11 // pred_check_branch
        %461 = sbr.rel (%p459) target = $region64
      $region63: #{decoder_spp_forward.1} parent=11 // pred_region
        _
      $region64: #{decoder_spp_forward.1} parent=11 // pred_fallthru
        _
      // Predicated region
      $region65: #{decoder_spp_forward.1} parent=11 // pred_check
        %p462 = pneg %p380
      $region66: #{decoder_spp_forward.1} parent=11 // pred_check_branch
        %464 = sbr.rel (%p462) target = $region68
      $region67: #{decoder_spp_forward.1} parent=11 // pred_region
        _
      $region68: #{decoder_spp_forward.1} parent=11 // pred_fallthru
        _
    $region12: #{decoder_spp_forward.1} parent=5 // pred_fallthru
      _
    %p465 = scmp.lt.s32.totalorder %s22, 4
    // Predicated region
    $region69: #{decoder_spp_forward.1} parent=5 // pred_check
      %p466 = pneg %p465
    $region70: #{decoder_spp_forward.1} parent=5 // pred_check_branch
      %468 = sbr.rel (%p466) target = $region72
    $region71: #{decoder_spp_forward.1} parent=5 // pred_region
      // Predicated region
      $region73: #{decoder_spp_forward.1} parent=71 // pred_check
        %p469 = pneg %p54
      $region74: #{decoder_spp_forward.1} parent=71 // pred_check_branch
        %471 = sbr.rel (%p469) target = $region76
      $region75: #{decoder_spp_forward.1} parent=71 // pred_region
        %p472 = scmp.lt.s32.totalorder %s29, 1
        %s473 = scalar_select %p472, %s29, 1
        %s474 = smul.addr %s473, 40
        %s475 = smul.addr %s474, 4
        %s476 = scalar_lea.vmem %s0, %s475
      $region76: #{decoder_spp_forward.1} parent=71 // pred_fallthru
        _
      // Predicated region
      $region77: #{decoder_spp_forward.1} parent=71 // pred_check
        %p477 = pneg %p80
      $region78: #{decoder_spp_forward.1} parent=71 // pred_check_branch
        %479 = sbr.rel (%p477) target = $region80
      $region79: #{decoder_spp_forward.1} parent=71 // pred_region
        %p480 = scmp.lt.s32.totalorder %s29, 1
        %s481 = scalar_select %p480, %s29, 1
        %s482 = smul.addr %s481, 80
        %s483 = smul.addr %s482, 4
        %s484 = scalar_lea.vmem %s1, %s483
      $region80: #{decoder_spp_forward.1} parent=71 // pred_fallthru
        _
    $region72: #{decoder_spp_forward.1} parent=5 // pred_fallthru
      _
    %p485 = scmp.le.s32.totalorder 1, %s22
    %p486 = scmp.lt.s32.totalorder %s22, 5
    %p487 = pnand %p485, %p486
    %p488 = pneg %p487
    // Predicated region
    $region81: #{decoder_spp_forward.1} parent=5 // pred_check
      _
    $region82: #{decoder_spp_forward.1} parent=5 // pred_check_branch
      %490 = sbr.rel (%p487) target = $region84
    $region83: #{decoder_spp_forward.1} parent=5 // pred_region
      %s491 = ssub.s32 %s22, 1
      %p492 = scmp.lt.s32.totalorder %s31, 1
      %s493 = scalar_select %p492, %s31, 1
      %s494 = smul.addr %s493, 40
      %s495 = smul.addr %s494, 4
      %s496 = scalar_lea.vmem %s0, %s495
      %p497 = pneg %p60
      %p498 = pneg %p57
      %p499 = scmp.lt.s32.totalorder %s31, 1
      %s500 = scalar_select %p499, %s31, 1
      %s501 = smul.addr %s500, 80
      %s502 = smul.addr %s501, 4
      %s503 = scalar_lea.vmem %s1, %s502
      %p504 = pneg %p86
      %p505 = pneg %p83
      %p506 = pneg %p107
      %p507 = pneg %p104
      %p508 = pneg %p128
      %p509 = pneg %p125
      %p510 = pneg %p149
      %p511 = pneg %p146
      %p512 = pneg %p170
      %p513 = pneg %p167
      %p514 = pneg %p191
      %p515 = pneg %p188
      %p516 = pneg %p212
      %p517 = pneg %p209
      %p518 = pneg %p233
      %p519 = pneg %p230
      %p520 = pneg %p254
      %p521 = pneg %p251
      %p522 = pneg %p275
      %p523 = pneg %p272
      %p524 = pneg %p296
      %p525 = pneg %p293
      %p526 = pneg %p317
      %p527 = pneg %p314
      %p528 = pneg %p338
      %p529 = pneg %p335
      %p530 = pneg %p359
      %p531 = pneg %p356
      %p532 = pneg %p380
      %p533 = pneg %p377
      %p534 = pneg %p408
      %p535 = pneg %p405
      %s536 = smul.u32 8, %s32
      %p537 = scmp.lt.s32.totalorder %s31, 1
      %s538 = scalar_select %p537, %s31, 1
      %p539 = scmp.lt.s32.totalorder %s536, 15
      %s540 = scalar_select %p539, %s536, 15
      %s541 = smul.addr %s540, 4
      %s542 = smul.addr %s538, 64
      %s543 = sadd.s32 %s541, %s542
      %s544 = smul.addr %s543, 4
      %s545 = scalar_lea.vmem %s16, %s544
      %p546 = scmp.lt.s32.totalorder %s31, 1
      %s547 = scalar_select %p546, %s31, 1
      %s548 = smul.addr %s547, 40
      %s549 = smul.addr %s548, 4
      %s550 = scalar_lea.vmem %s0, %s549
      %p551 = scmp.lt.s32.totalorder %s31, 1
      %s552 = scalar_select %p551, %s31, 1
      %s553 = smul.addr %s552, 80
      %s554 = smul.addr %s553, 4
      %s555 = scalar_lea.vmem %s1, %s554
      %s556 = smul.u32 8, %s32
      %p557 = scmp.lt.s32.totalorder %s31, 1
      %s558 = scalar_select %p557, %s31, 1
      %p559 = scmp.lt.s32.totalorder %s556, 15
      %s560 = scalar_select %p559, %s556, 15
      %s561 = smul.addr %s560, 4
      %s562 = smul.addr %s558, 64
      %s563 = sadd.s32 %s561, %s562
      %s564 = smul.addr %s563, 4
      %s565 = scalar_lea.vmem %s16, %s564
      %s566 = smul.u32 8, %s32
      %s568 = smul.u32 %s32, 8
      %v569 = vld [vmem:[%s2] sm:$0xf]
      %v570 = vld [vmem:[%s2 + $0x4] sm:$0xf]
      %v571 = vld [vmem:[%s2 + $0x8] sm:$0xf]
      %v572 = vld [vmem:[%s2 + $0xc] sm:$0xf]
      %s573 = smul.u32 %s568, 2
      %s574 = smul.addr %s573, 4
      %s575 = scalar_lea.vmem %s550, %s574
      %v576 = vld [vmem:[%s575] sm:$0xff]
      %v577 = vld [vmem:[%s575 + $0x8] sm:$0xff]
      %v578 = vld [vmem:[%s575 + $0x10] sm:$0xff]
      %v579 = vld [vmem:[%s575 + $0x18] sm:$0xff]
      %v580 = vld [vmem:[%s575 + $0x20] sm:$0xff]
      %v581 = vld [vmem:[%s575 + $0x28] sm:$0xff]
      %v582 = vld [vmem:[%s575 + $0x30] sm:$0xff]
      %v583 = vld [vmem:[%s575 + $0x38] sm:$0xff]
      %v584 = vld [vmem:[%s575 + $0x40] sm:$0xff]
      %v585 = vld [vmem:[%s575 + $0x48] sm:$0xff]
      %v586 = vld [vmem:[%s575 + $0x50] sm:$0xff]
      %v587 = vld [vmem:[%s575 + $0x58] sm:$0xff]
      %v592 = vunpack.c.l.b16 %v569
      %v593 = vunpack.c.l.b16 %v570
      %v594 = vunpack.c.l.b16 %v571
      %v595 = vunpack.c.l.b16 %v572
      %v596 = vpack.c.b16 %v593, %v592
      %v597 = vpack.c.b16 %v595, %v594
      %v599 = vunpack.c.l.b16 %v576
      %v600 = vunpack.c.h.b16 %v576
      %v601 = vpack.c.b16 %v599, %v599
      %v602 = vpack.c.b16 %v600, %v600
      %vm603 = vcmask 64512
      %v605 = vsel %vm603, %v596, 0
      %v608 = vsel %vm603, %v597, 0
      %vm610 = vcmask 1043456
      %v612 = vsel %vm610, %v601, 0
      %v615 = vsel %vm610, %v602, 0
      %617 = vmatpush.bf16.msra.mxu0 0
      %618 = vmatpush.bf16.msra.mxu0 0
      %619 = vmatpush.bf16.msra.mxu0 0
      %620 = vmatpush.bf16.msra.mxu0 0
      %621 = vmatpush.bf16.msra.mxu0 0
      %622 = vmatpush.bf16.msra.mxu0 0
      %623 = vmatpush.bf16.msra.mxu0 0
      %624 = vmatpush.bf16.msra.mxu0 %v612
      %625 = vmatmul.bf16.gmra.mxu0 %v605
      %v626 = vpop.f32.mrf.mxu0
      %v627 = vadd.f32 0.0, %v626
      %v628 = vpop.f32.mrf.mxu0
      %v629 = vadd.f32 0.0, %v628
      %630 = vmatmul.bf16.gmra.mxu0 %v608
      %v631 = vpop.f32.mrf.mxu0
      %v632 = vadd.f32 0.0, %v631
      %v633 = vpop.f32.mrf.mxu0
      %v634 = vadd.f32 0.0, %v633
      %635 = vdwg.mxu0
      %636 = vmatpush.bf16.msra.mxu0 0
      %637 = vmatpush.bf16.msra.mxu0 0
      %638 = vmatpush.bf16.msra.mxu0 0
      %639 = vmatpush.bf16.msra.mxu0 0
      %640 = vmatpush.bf16.msra.mxu0 0
      %641 = vmatpush.bf16.msra.mxu0 0
      %642 = vmatpush.bf16.msra.mxu0 0
      %643 = vmatpush.bf16.msra.mxu0 %v615
      %644 = vmatmul.bf16.gmra.mxu0 %v605
      %v645 = vpop.f32.mrf.mxu0
      %v646 = vadd.f32 0.0, %v645
      %v647 = vpop.f32.mrf.mxu0
      %v648 = vadd.f32 0.0, %v647
      %649 = vmatmul.bf16.gmra.mxu0 %v608
      %v650 = vpop.f32.mrf.mxu0
      %v651 = vadd.f32 0.0, %v650
      %v652 = vpop.f32.mrf.mxu0
      %v653 = vadd.f32 0.0, %v652
      %654 = vdwg.mxu0
      %655 = vst [vmem:[#allocation2] sm:$0xff] %v627
      %656 = vst [vmem:[#allocation2 + $0x8] sm:$0xff] %v646
      %657 = vst [vmem:[#allocation2 + $0x10] sm:$0xff] %v629
      %658 = vst [vmem:[#allocation2 + $0x18] sm:$0xff] %v648
      %659 = vst [vmem:[#allocation2 + $0x20] sm:$0xff] %v632
      %660 = vst [vmem:[#allocation2 + $0x28] sm:$0xff] %v651
      %661 = vst [vmem:[#allocation2 + $0x30] sm:$0xff] %v634
      %662 = vst [vmem:[#allocation2 + $0x38] sm:$0xff] %v653
      %v664 = vunpack.c.l.b16 %v577
      %v665 = vunpack.c.h.b16 %v577
      %v666 = vpack.c.b16 %v664, %v664
      %v667 = vpack.c.b16 %v665, %v665
      %v669 = vsel %vm610, %v666, 0
      %v672 = vsel %vm610, %v667, 0
      %674 = vmatpush.bf16.msra.mxu0 0
      %675 = vmatpush.bf16.msra.mxu0 0
      %676 = vmatpush.bf16.msra.mxu0 0
      %677 = vmatpush.bf16.msra.mxu0 0
      %678 = vmatpush.bf16.msra.mxu0 0
      %679 = vmatpush.bf16.msra.mxu0 0
      %680 = vmatpush.bf16.msra.mxu0 0
      %681 = vmatpush.bf16.msra.mxu0 %v669
      %682 = vmatmul.bf16.gmra.mxu0 %v605
      %v683 = vpop.f32.mrf.mxu0
      %v684 = vadd.f32 0.0, %v683
      %v685 = vpop.f32.mrf.mxu0
      %v686 = vadd.f32 0.0, %v685
      %687 = vmatmul.bf16.gmra.mxu0 %v608
      %v688 = vpop.f32.mrf.mxu0
      %v689 = vadd.f32 0.0, %v688
      %v690 = vpop.f32.mrf.mxu0
      %v691 = vadd.f32 0.0, %v690
      %692 = vdwg.mxu0
      %693 = vmatpush.bf16.msra.mxu0 0
      %694 = vmatpush.bf16.msra.mxu0 0
      %695 = vmatpush.bf16.msra.mxu0 0
      %696 = vmatpush.bf16.msra.mxu0 0
      %697 = vmatpush.bf16.msra.mxu0 0
      %698 = vmatpush.bf16.msra.mxu0 0
      %699 = vmatpush.bf16.msra.mxu0 0
      %700 = vmatpush.bf16.msra.mxu0 %v672
      %701 = vmatmul.bf16.gmra.mxu0 %v605
      %v702 = vpop.f32.mrf.mxu0
      %v703 = vadd.f32 0.0, %v702
      %v704 = vpop.f32.mrf.mxu0
      %v705 = vadd.f32 0.0, %v704
      %706 = vmatmul.bf16.gmra.mxu0 %v608
      %v707 = vpop.f32.mrf.mxu0
      %v708 = vadd.f32 0.0, %v707
      %v709 = vpop.f32.mrf.mxu0
      %v710 = vadd.f32 0.0, %v709
      %711 = vdwg.mxu0
      %s712 = scalar_lea.vmem [#allocation2], 64
      %713 = vst [vmem:[%s712] sm:$0xff] %v684
      %714 = vst [vmem:[%s712 + $0x8] sm:$0xff] %v703
      %715 = vst [vmem:[%s712 + $0x10] sm:$0xff] %v686
      %716 = vst [vmem:[%s712 + $0x18] sm:$0xff] %v705
      %717 = vst [vmem:[%s712 + $0x20] sm:$0xff] %v689
      %718 = vst [vmem:[%s712 + $0x28] sm:$0xff] %v708
      %719 = vst [vmem:[%s712 + $0x30] sm:$0xff] %v691
      %720 = vst [vmem:[%s712 + $0x38] sm:$0xff] %v710
      %v722 = vunpack.c.l.b16 %v578
      %v723 = vunpack.c.h.b16 %v578
      %v724 = vpack.c.b16 %v722, %v722
      %v725 = vpack.c.b16 %v723, %v723
      %v727 = vsel %vm610, %v724, 0
      %v730 = vsel %vm610, %v725, 0
      %732 = vmatpush.bf16.msra.mxu0 0
      %733 = vmatpush.bf16.msra.mxu0 0
      %734 = vmatpush.bf16.msra.mxu0 0
      %735 = vmatpush.bf16.msra.mxu0 0
      %736 = vmatpush.bf16.msra.mxu0 0
      %737 = vmatpush.bf16.msra.mxu0 0
      %738 = vmatpush.bf16.msra.mxu0 0
      %739 = vmatpush.bf16.msra.mxu0 %v727
      %740 = vmatmul.bf16.gmra.mxu0 %v605
      %v741 = vpop.f32.mrf.mxu0
      %v742 = vadd.f32 0.0, %v741
      %v743 = vpop.f32.mrf.mxu0
      %v744 = vadd.f32 0.0, %v743
      %745 = vmatmul.bf16.gmra.mxu0 %v608
      %v746 = vpop.f32.mrf.mxu0
      %v747 = vadd.f32 0.0, %v746
      %v748 = vpop.f32.mrf.mxu0
      %v749 = vadd.f32 0.0, %v748
      %750 = vdwg.mxu0
      %751 = vmatpush.bf16.msra.mxu0 0
      %752 = vmatpush.bf16.msra.mxu0 0
      %753 = vmatpush.bf16.msra.mxu0 0
      %754 = vmatpush.bf16.msra.mxu0 0
      %755 = vmatpush.bf16.msra.mxu0 0
      %756 = vmatpush.bf16.msra.mxu0 0
      %757 = vmatpush.bf16.msra.mxu0 0
      %758 = vmatpush.bf16.msra.mxu0 %v730
      %759 = vmatmul.bf16.gmra.mxu0 %v605
      %v760 = vpop.f32.mrf.mxu0
      %v761 = vadd.f32 0.0, %v760
      %v762 = vpop.f32.mrf.mxu0
      %v763 = vadd.f32 0.0, %v762
      %764 = vmatmul.bf16.gmra.mxu0 %v608
      %v765 = vpop.f32.mrf.mxu0
      %v766 = vadd.f32 0.0, %v765
      %v767 = vpop.f32.mrf.mxu0
      %v768 = vadd.f32 0.0, %v767
      %769 = vdwg.mxu0
      %s770 = scalar_lea.vmem [#allocation2], 128
      %771 = vst [vmem:[%s770] sm:$0xff] %v742
      %772 = vst [vmem:[%s770 + $0x8] sm:$0xff] %v761
      %773 = vst [vmem:[%s770 + $0x10] sm:$0xff] %v744
      %774 = vst [vmem:[%s770 + $0x18] sm:$0xff] %v763
      %775 = vst [vmem:[%s770 + $0x20] sm:$0xff] %v747
      %776 = vst [vmem:[%s770 + $0x28] sm:$0xff] %v766
      %777 = vst [vmem:[%s770 + $0x30] sm:$0xff] %v749
      %778 = vst [vmem:[%s770 + $0x38] sm:$0xff] %v768
      %v780 = vunpack.c.l.b16 %v579
      %v781 = vunpack.c.h.b16 %v579
      %v782 = vpack.c.b16 %v780, %v780
      %v783 = vpack.c.b16 %v781, %v781
      %v785 = vsel %vm610, %v782, 0
      %v788 = vsel %vm610, %v783, 0
      %790 = vmatpush.bf16.msra.mxu0 0
      %791 = vmatpush.bf16.msra.mxu0 0
      %792 = vmatpush.bf16.msra.mxu0 0
      %793 = vmatpush.bf16.msra.mxu0 0
      %794 = vmatpush.bf16.msra.mxu0 0
      %795 = vmatpush.bf16.msra.mxu0 0
      %796 = vmatpush.bf16.msra.mxu0 0
      %797 = vmatpush.bf16.msra.mxu0 %v785
      %798 = vmatmul.bf16.gmra.mxu0 %v605
      %v799 = vpop.f32.mrf.mxu0
      %v800 = vadd.f32 0.0, %v799
      %v801 = vpop.f32.mrf.mxu0
      %v802 = vadd.f32 0.0, %v801
      %803 = vmatmul.bf16.gmra.mxu0 %v608
      %v804 = vpop.f32.mrf.mxu0
      %v805 = vadd.f32 0.0, %v804
      %v806 = vpop.f32.mrf.mxu0
      %v807 = vadd.f32 0.0, %v806
      %808 = vdwg.mxu0
      %809 = vmatpush.bf16.msra.mxu0 0
      %810 = vmatpush.bf16.msra.mxu0 0
      %811 = vmatpush.bf16.msra.mxu0 0
      %812 = vmatpush.bf16.msra.mxu0 0
      %813 = vmatpush.bf16.msra.mxu0 0
      %814 = vmatpush.bf16.msra.mxu0 0
      %815 = vmatpush.bf16.msra.mxu0 0
      %816 = vmatpush.bf16.msra.mxu0 %v788
      %817 = vmatmul.bf16.gmra.mxu0 %v605
      %v818 = vpop.f32.mrf.mxu0
      %v819 = vadd.f32 0.0, %v818
      %v820 = vpop.f32.mrf.mxu0
      %v821 = vadd.f32 0.0, %v820
      %822 = vmatmul.bf16.gmra.mxu0 %v608
      %v823 = vpop.f32.mrf.mxu0
      %v824 = vadd.f32 0.0, %v823
      %v825 = vpop.f32.mrf.mxu0
      %v826 = vadd.f32 0.0, %v825
      %827 = vdwg.mxu0
      %s828 = scalar_lea.vmem [#allocation2], 192
      %829 = vst [vmem:[%s828] sm:$0xff] %v800
      %830 = vst [vmem:[%s828 + $0x8] sm:$0xff] %v819
      %831 = vst [vmem:[%s828 + $0x10] sm:$0xff] %v802
      %832 = vst [vmem:[%s828 + $0x18] sm:$0xff] %v821
      %833 = vst [vmem:[%s828 + $0x20] sm:$0xff] %v805
      %834 = vst [vmem:[%s828 + $0x28] sm:$0xff] %v824
      %835 = vst [vmem:[%s828 + $0x30] sm:$0xff] %v807
      %836 = vst [vmem:[%s828 + $0x38] sm:$0xff] %v826
      %v838 = vunpack.c.l.b16 %v580
      %v839 = vunpack.c.h.b16 %v580
      %v840 = vpack.c.b16 %v838, %v838
      %v841 = vpack.c.b16 %v839, %v839
      %v843 = vsel %vm610, %v840, 0
      %v846 = vsel %vm610, %v841, 0
      %848 = vmatpush.bf16.msra.mxu0 0
      %849 = vmatpush.bf16.msra.mxu0 0
      %850 = vmatpush.bf16.msra.mxu0 0
      %851 = vmatpush.bf16.msra.mxu0 0
      %852 = vmatpush.bf16.msra.mxu0 0
      %853 = vmatpush.bf16.msra.mxu0 0
      %854 = vmatpush.bf16.msra.mxu0 0
      %855 = vmatpush.bf16.msra.mxu0 %v843
      %856 = vmatmul.bf16.gmra.mxu0 %v605
      %v857 = vpop.f32.mrf.mxu0
      %v858 = vadd.f32 0.0, %v857
      %v859 = vpop.f32.mrf.mxu0
      %v860 = vadd.f32 0.0, %v859
      %861 = vmatmul.bf16.gmra.mxu0 %v608
      %v862 = vpop.f32.mrf.mxu0
      %v863 = vadd.f32 0.0, %v862
      %v864 = vpop.f32.mrf.mxu0
      %v865 = vadd.f32 0.0, %v864
      %866 = vdwg.mxu0
      %867 = vmatpush.bf16.msra.mxu0 0
      %868 = vmatpush.bf16.msra.mxu0 0
      %869 = vmatpush.bf16.msra.mxu0 0
      %870 = vmatpush.bf16.msra.mxu0 0
      %871 = vmatpush.bf16.msra.mxu0 0
      %872 = vmatpush.bf16.msra.mxu0 0
      %873 = vmatpush.bf16.msra.mxu0 0
      %874 = vmatpush.bf16.msra.mxu0 %v846
      %875 = vmatmul.bf16.gmra.mxu0 %v605
      %v876 = vpop.f32.mrf.mxu0
      %v877 = vadd.f32 0.0, %v876
      %v878 = vpop.f32.mrf.mxu0
      %v879 = vadd.f32 0.0, %v878
      %880 = vmatmul.bf16.gmra.mxu0 %v608
      %v881 = vpop.f32.mrf.mxu0
      %v882 = vadd.f32 0.0, %v881
      %v883 = vpop.f32.mrf.mxu0
      %v884 = vadd.f32 0.0, %v883
      %885 = vdwg.mxu0
      %s886 = scalar_lea.vmem [#allocation2], 256
      %887 = vst [vmem:[%s886] sm:$0xff] %v858
      %888 = vst [vmem:[%s886 + $0x8] sm:$0xff] %v877
      %889 = vst [vmem:[%s886 + $0x10] sm:$0xff] %v860
      %890 = vst [vmem:[%s886 + $0x18] sm:$0xff] %v879
      %891 = vst [vmem:[%s886 + $0x20] sm:$0xff] %v863
      %892 = vst [vmem:[%s886 + $0x28] sm:$0xff] %v882
      %893 = vst [vmem:[%s886 + $0x30] sm:$0xff] %v865
      %894 = vst [vmem:[%s886 + $0x38] sm:$0xff] %v884
      %v896 = vunpack.c.l.b16 %v581
      %v897 = vunpack.c.h.b16 %v581
      %v898 = vpack.c.b16 %v896, %v896
      %v899 = vpack.c.b16 %v897, %v897
      %v901 = vsel %vm610, %v898, 0
      %v904 = vsel %vm610, %v899, 0
      %906 = vmatpush.bf16.msra.mxu0 0
      %907 = vmatpush.bf16.msra.mxu0 0
      %908 = vmatpush.bf16.msra.mxu0 0
      %909 = vmatpush.bf16.msra.mxu0 0
      %910 = vmatpush.bf16.msra.mxu0 0
      %911 = vmatpush.bf16.msra.mxu0 0
      %912 = vmatpush.bf16.msra.mxu0 0
      %913 = vmatpush.bf16.msra.mxu0 %v901
      %914 = vmatmul.bf16.gmra.mxu0 %v605
      %v915 = vpop.f32.mrf.mxu0
      %v916 = vadd.f32 0.0, %v915
      %v917 = vpop.f32.mrf.mxu0
      %v918 = vadd.f32 0.0, %v917
      %919 = vmatmul.bf16.gmra.mxu0 %v608
      %v920 = vpop.f32.mrf.mxu0
      %v921 = vadd.f32 0.0, %v920
      %v922 = vpop.f32.mrf.mxu0
      %v923 = vadd.f32 0.0, %v922
      %924 = vdwg.mxu0
      %925 = vmatpush.bf16.msra.mxu0 0
      %926 = vmatpush.bf16.msra.mxu0 0
      %927 = vmatpush.bf16.msra.mxu0 0
      %928 = vmatpush.bf16.msra.mxu0 0
      %929 = vmatpush.bf16.msra.mxu0 0
      %930 = vmatpush.bf16.msra.mxu0 0
      %931 = vmatpush.bf16.msra.mxu0 0
      %932 = vmatpush.bf16.msra.mxu0 %v904
      %933 = vmatmul.bf16.gmra.mxu0 %v605
      %v934 = vpop.f32.mrf.mxu0
      %v935 = vadd.f32 0.0, %v934
      %v936 = vpop.f32.mrf.mxu0
      %v937 = vadd.f32 0.0, %v936
      %938 = vmatmul.bf16.gmra.mxu0 %v608
      %v939 = vpop.f32.mrf.mxu0
      %v940 = vadd.f32 0.0, %v939
      %v941 = vpop.f32.mrf.mxu0
      %v942 = vadd.f32 0.0, %v941
      %943 = vdwg.mxu0
      %s944 = scalar_lea.vmem [#allocation2], 320
      %945 = vst [vmem:[%s944] sm:$0xff] %v916
      %946 = vst [vmem:[%s944 + $0x8] sm:$0xff] %v935
      %947 = vst [vmem:[%s944 + $0x10] sm:$0xff] %v918
      %948 = vst [vmem:[%s944 + $0x18] sm:$0xff] %v937
      %949 = vst [vmem:[%s944 + $0x20] sm:$0xff] %v921
      %950 = vst [vmem:[%s944 + $0x28] sm:$0xff] %v940
      %951 = vst [vmem:[%s944 + $0x30] sm:$0xff] %v923
      %952 = vst [vmem:[%s944 + $0x38] sm:$0xff] %v942
      %v954 = vunpack.c.l.b16 %v582
      %v955 = vunpack.c.h.b16 %v582
      %v956 = vpack.c.b16 %v954, %v954
      %v957 = vpack.c.b16 %v955, %v955
      %v959 = vsel %vm610, %v956, 0
      %v962 = vsel %vm610, %v957, 0
      %964 = vmatpush.bf16.msra.mxu0 0
      %965 = vmatpush.bf16.msra.mxu0 0
      %966 = vmatpush.bf16.msra.mxu0 0
      %967 = vmatpush.bf16.msra.mxu0 0
      %968 = vmatpush.bf16.msra.mxu0 0
      %969 = vmatpush.bf16.msra.mxu0 0
      %970 = vmatpush.bf16.msra.mxu0 0
      %971 = vmatpush.bf16.msra.mxu0 %v959
      %972 = vmatmul.bf16.gmra.mxu0 %v605
      %v973 = vpop.f32.mrf.mxu0
      %v974 = vadd.f32 0.0, %v973
      %v975 = vpop.f32.mrf.mxu0
      %v976 = vadd.f32 0.0, %v975
      %977 = vmatmul.bf16.gmra.mxu0 %v608
      %v978 = vpop.f32.mrf.mxu0
      %v979 = vadd.f32 0.0, %v978
      %v980 = vpop.f32.mrf.mxu0
      %v981 = vadd.f32 0.0, %v980
      %982 = vdwg.mxu0
      %983 = vmatpush.bf16.msra.mxu0 0
      %984 = vmatpush.bf16.msra.mxu0 0
      %985 = vmatpush.bf16.msra.mxu0 0
      %986 = vmatpush.bf16.msra.mxu0 0
      %987 = vmatpush.bf16.msra.mxu0 0
      %988 = vmatpush.bf16.msra.mxu0 0
      %989 = vmatpush.bf16.msra.mxu0 0
      %990 = vmatpush.bf16.msra.mxu0 %v962
      %991 = vmatmul.bf16.gmra.mxu0 %v605
      %v992 = vpop.f32.mrf.mxu0
      %v993 = vadd.f32 0.0, %v992
      %v994 = vpop.f32.mrf.mxu0
      %v995 = vadd.f32 0.0, %v994
      %996 = vmatmul.bf16.gmra.mxu0 %v608
      %v997 = vpop.f32.mrf.mxu0
      %v998 = vadd.f32 0.0, %v997
      %v999 = vpop.f32.mrf.mxu0
      %v1000 = vadd.f32 0.0, %v999
      %1001 = vdwg.mxu0
      %s1002 = scalar_lea.vmem [#allocation2], 384
      %1003 = vst [vmem:[%s1002] sm:$0xff] %v974
      %1004 = vst [vmem:[%s1002 + $0x8] sm:$0xff] %v993
      %1005 = vst [vmem:[%s1002 + $0x10] sm:$0xff] %v976
      %1006 = vst [vmem:[%s1002 + $0x18] sm:$0xff] %v995
      %1007 = vst [vmem:[%s1002 + $0x20] sm:$0xff] %v979
      %1008 = vst [vmem:[%s1002 + $0x28] sm:$0xff] %v998
      %1009 = vst [vmem:[%s1002 + $0x30] sm:$0xff] %v981
      %1010 = vst [vmem:[%s1002 + $0x38] sm:$0xff] %v1000
      %v1012 = vunpack.c.l.b16 %v583
      %v1013 = vunpack.c.h.b16 %v583
      %v1014 = vpack.c.b16 %v1012, %v1012
      %v1015 = vpack.c.b16 %v1013, %v1013
      %v1017 = vsel %vm610, %v1014, 0
      %v1020 = vsel %vm610, %v1015, 0
      %1022 = vmatpush.bf16.msra.mxu0 0
      %1023 = vmatpush.bf16.msra.mxu0 0
      %1024 = vmatpush.bf16.msra.mxu0 0
      %1025 = vmatpush.bf16.msra.mxu0 0
      %1026 = vmatpush.bf16.msra.mxu0 0
      %1027 = vmatpush.bf16.msra.mxu0 0
      %1028 = vmatpush.bf16.msra.mxu0 0
      %1029 = vmatpush.bf16.msra.mxu0 %v1017
      %1030 = vmatmul.bf16.gmra.mxu0 %v605
      %v1031 = vpop.f32.mrf.mxu0
      %v1032 = vadd.f32 0.0, %v1031
      %v1033 = vpop.f32.mrf.mxu0
      %v1034 = vadd.f32 0.0, %v1033
      %1035 = vmatmul.bf16.gmra.mxu0 %v608
      %v1036 = vpop.f32.mrf.mxu0
      %v1037 = vadd.f32 0.0, %v1036
      %v1038 = vpop.f32.mrf.mxu0
      %v1039 = vadd.f32 0.0, %v1038
      %1040 = vdwg.mxu0
      %1041 = vmatpush.bf16.msra.mxu0 0
      %1042 = vmatpush.bf16.msra.mxu0 0
      %1043 = vmatpush.bf16.msra.mxu0 0
      %1044 = vmatpush.bf16.msra.mxu0 0
      %1045 = vmatpush.bf16.msra.mxu0 0
      %1046 = vmatpush.bf16.msra.mxu0 0
      %1047 = vmatpush.bf16.msra.mxu0 0
      %1048 = vmatpush.bf16.msra.mxu0 %v1020
      %1049 = vmatmul.bf16.gmra.mxu0 %v605
      %v1050 = vpop.f32.mrf.mxu0
      %v1051 = vadd.f32 0.0, %v1050
      %v1052 = vpop.f32.mrf.mxu0
      %v1053 = vadd.f32 0.0, %v1052
      %1054 = vmatmul.bf16.gmra.mxu0 %v608
      %v1055 = vpop.f32.mrf.mxu0
      %v1056 = vadd.f32 0.0, %v1055
      %v1057 = vpop.f32.mrf.mxu0
      %v1058 = vadd.f32 0.0, %v1057
      %1059 = vdwg.mxu0
      %s1060 = scalar_lea.vmem [#allocation2], 448
      %1061 = vst [vmem:[%s1060] sm:$0xff] %v1032
      %1062 = vst [vmem:[%s1060 + $0x8] sm:$0xff] %v1051
      %1063 = vst [vmem:[%s1060 + $0x10] sm:$0xff] %v1034
      %1064 = vst [vmem:[%s1060 + $0x18] sm:$0xff] %v1053
      %1065 = vst [vmem:[%s1060 + $0x20] sm:$0xff] %v1037
      %1066 = vst [vmem:[%s1060 + $0x28] sm:$0xff] %v1056
      %1067 = vst [vmem:[%s1060 + $0x30] sm:$0xff] %v1039
      %1068 = vst [vmem:[%s1060 + $0x38] sm:$0xff] %v1058
      %v1070 = vunpack.c.l.b16 %v584
      %v1071 = vunpack.c.h.b16 %v584
      %v1072 = vpack.c.b16 %v1070, %v1070
      %v1073 = vpack.c.b16 %v1071, %v1071
      %v1075 = vsel %vm610, %v1072, 0
      %v1078 = vsel %vm610, %v1073, 0
      %1080 = vmatpush.bf16.msra.mxu0 0
      %1081 = vmatpush.bf16.msra.mxu0 0
      %1082 = vmatpush.bf16.msra.mxu0 0
      %1083 = vmatpush.bf16.msra.mxu0 0
      %1084 = vmatpush.bf16.msra.mxu0 0
      %1085 = vmatpush.bf16.msra.mxu0 0
      %1086 = vmatpush.bf16.msra.mxu0 0
      %1087 = vmatpush.bf16.msra.mxu0 %v1075
      %1088 = vmatmul.bf16.gmra.mxu0 %v605
      %v1089 = vpop.f32.mrf.mxu0
      %v1090 = vadd.f32 0.0, %v1089
      %v1091 = vpop.f32.mrf.mxu0
      %v1092 = vadd.f32 0.0, %v1091
      %1093 = vmatmul.bf16.gmra.mxu0 %v608
      %v1094 = vpop.f32.mrf.mxu0
      %v1095 = vadd.f32 0.0, %v1094
      %v1096 = vpop.f32.mrf.mxu0
      %v1097 = vadd.f32 0.0, %v1096
      %1098 = vdwg.mxu0
      %1099 = vmatpush.bf16.msra.mxu0 0
      %1100 = vmatpush.bf16.msra.mxu0 0
      %1101 = vmatpush.bf16.msra.mxu0 0
      %1102 = vmatpush.bf16.msra.mxu0 0
      %1103 = vmatpush.bf16.msra.mxu0 0
      %1104 = vmatpush.bf16.msra.mxu0 0
      %1105 = vmatpush.bf16.msra.mxu0 0
      %1106 = vmatpush.bf16.msra.mxu0 %v1078
      %1107 = vmatmul.bf16.gmra.mxu0 %v605
      %v1108 = vpop.f32.mrf.mxu0
      %v1109 = vadd.f32 0.0, %v1108
      %v1110 = vpop.f32.mrf.mxu0
      %v1111 = vadd.f32 0.0, %v1110
      %1112 = vmatmul.bf16.gmra.mxu0 %v608
      %v1113 = vpop.f32.mrf.mxu0
      %v1114 = vadd.f32 0.0, %v1113
      %v1115 = vpop.f32.mrf.mxu0
      %v1116 = vadd.f32 0.0, %v1115
      %1117 = vdwg.mxu0
      %s1118 = scalar_lea.vmem [#allocation2], 512
      %1119 = vst [vmem:[%s1118] sm:$0xff] %v1090
      %1120 = vst [vmem:[%s1118 + $0x8] sm:$0xff] %v1109
      %1121 = vst [vmem:[%s1118 + $0x10] sm:$0xff] %v1092
      %1122 = vst [vmem:[%s1118 + $0x18] sm:$0xff] %v1111
      %1123 = vst [vmem:[%s1118 + $0x20] sm:$0xff] %v1095
      %1124 = vst [vmem:[%s1118 + $0x28] sm:$0xff] %v1114
      %1125 = vst [vmem:[%s1118 + $0x30] sm:$0xff] %v1097
      %1126 = vst [vmem:[%s1118 + $0x38] sm:$0xff] %v1116
      %v1128 = vunpack.c.l.b16 %v585
      %v1129 = vunpack.c.h.b16 %v585
      %v1130 = vpack.c.b16 %v1128, %v1128
      %v1131 = vpack.c.b16 %v1129, %v1129
      %v1133 = vsel %vm610, %v1130, 0
      %v1136 = vsel %vm610, %v1131, 0
      %1138 = vmatpush.bf16.msra.mxu0 0
      %1139 = vmatpush.bf16.msra.mxu0 0
      %1140 = vmatpush.bf16.msra.mxu0 0
      %1141 = vmatpush.bf16.msra.mxu0 0
      %1142 = vmatpush.bf16.msra.mxu0 0
      %1143 = vmatpush.bf16.msra.mxu0 0
      %1144 = vmatpush.bf16.msra.mxu0 0
      %1145 = vmatpush.bf16.msra.mxu0 %v1133
      %1146 = vmatmul.bf16.gmra.mxu0 %v605
      %v1147 = vpop.f32.mrf.mxu0
      %v1148 = vadd.f32 0.0, %v1147
      %v1149 = vpop.f32.mrf.mxu0
      %v1150 = vadd.f32 0.0, %v1149
      %1151 = vmatmul.bf16.gmra.mxu0 %v608
      %v1152 = vpop.f32.mrf.mxu0
      %v1153 = vadd.f32 0.0, %v1152
      %v1154 = vpop.f32.mrf.mxu0
      %v1155 = vadd.f32 0.0, %v1154
      %1156 = vdwg.mxu0
      %1157 = vmatpush.bf16.msra.mxu0 0
      %1158 = vmatpush.bf16.msra.mxu0 0
      %1159 = vmatpush.bf16.msra.mxu0 0
      %1160 = vmatpush.bf16.msra.mxu0 0
      %1161 = vmatpush.bf16.msra.mxu0 0
      %1162 = vmatpush.bf16.msra.mxu0 0
      %1163 = vmatpush.bf16.msra.mxu0 0
      %1164 = vmatpush.bf16.msra.mxu0 %v1136
      %1165 = vmatmul.bf16.gmra.mxu0 %v605
      %v1166 = vpop.f32.mrf.mxu0
      %v1167 = vadd.f32 0.0, %v1166
      %v1168 = vpop.f32.mrf.mxu0
      %v1169 = vadd.f32 0.0, %v1168
      %1170 = vmatmul.bf16.gmra.mxu0 %v608
      %v1171 = vpop.f32.mrf.mxu0
      %v1172 = vadd.f32 0.0, %v1171
      %v1173 = vpop.f32.mrf.mxu0
      %v1174 = vadd.f32 0.0, %v1173
      %1175 = vdwg.mxu0
      %s1176 = scalar_lea.vmem [#allocation2], 576
      %1177 = vst [vmem:[%s1176] sm:$0xff] %v1148
      %1178 = vst [vmem:[%s1176 + $0x8] sm:$0xff] %v1167
      %1179 = vst [vmem:[%s1176 + $0x10] sm:$0xff] %v1150
      %1180 = vst [vmem:[%s1176 + $0x18] sm:$0xff] %v1169
      %1181 = vst [vmem:[%s1176 + $0x20] sm:$0xff] %v1153
      %1182 = vst [vmem:[%s1176 + $0x28] sm:$0xff] %v1172
      %1183 = vst [vmem:[%s1176 + $0x30] sm:$0xff] %v1155
      %1184 = vst [vmem:[%s1176 + $0x38] sm:$0xff] %v1174
      %v1186 = vunpack.c.l.b16 %v586
      %v1187 = vunpack.c.h.b16 %v586
      %v1188 = vpack.c.b16 %v1186, %v1186
      %v1189 = vpack.c.b16 %v1187, %v1187
      %v1191 = vsel %vm610, %v1188, 0
      %v1194 = vsel %vm610, %v1189, 0
      %1196 = vmatpush.bf16.msra.mxu0 0
      %1197 = vmatpush.bf16.msra.mxu0 0
      %1198 = vmatpush.bf16.msra.mxu0 0
      %1199 = vmatpush.bf16.msra.mxu0 0
      %1200 = vmatpush.bf16.msra.mxu0 0
      %1201 = vmatpush.bf16.msra.mxu0 0
      %1202 = vmatpush.bf16.msra.mxu0 0
      %1203 = vmatpush.bf16.msra.mxu0 %v1191
      %1204 = vmatmul.bf16.gmra.mxu0 %v605
      %v1205 = vpop.f32.mrf.mxu0
      %v1206 = vadd.f32 0.0, %v1205
      %v1207 = vpop.f32.mrf.mxu0
      %v1208 = vadd.f32 0.0, %v1207
      %1209 = vmatmul.bf16.gmra.mxu0 %v608
      %v1210 = vpop.f32.mrf.mxu0
      %v1211 = vadd.f32 0.0, %v1210
      %v1212 = vpop.f32.mrf.mxu0
      %v1213 = vadd.f32 0.0, %v1212
      %1214 = vdwg.mxu0
      %1215 = vmatpush.bf16.msra.mxu0 0
      %1216 = vmatpush.bf16.msra.mxu0 0
      %1217 = vmatpush.bf16.msra.mxu0 0
      %1218 = vmatpush.bf16.msra.mxu0 0
      %1219 = vmatpush.bf16.msra.mxu0 0
      %1220 = vmatpush.bf16.msra.mxu0 0
      %1221 = vmatpush.bf16.msra.mxu0 0
      %1222 = vmatpush.bf16.msra.mxu0 %v1194
      %1223 = vmatmul.bf16.gmra.mxu0 %v605
      %v1224 = vpop.f32.mrf.mxu0
      %v1225 = vadd.f32 0.0, %v1224
      %v1226 = vpop.f32.mrf.mxu0
      %v1227 = vadd.f32 0.0, %v1226
      %1228 = vmatmul.bf16.gmra.mxu0 %v608
      %v1229 = vpop.f32.mrf.mxu0
      %v1230 = vadd.f32 0.0, %v1229
      %v1231 = vpop.f32.mrf.mxu0
      %v1232 = vadd.f32 0.0, %v1231
      %1233 = vdwg.mxu0
      %s1234 = scalar_lea.vmem [#allocation2], 640
      %1235 = vst [vmem:[%s1234] sm:$0xff] %v1206
      %1236 = vst [vmem:[%s1234 + $0x8] sm:$0xff] %v1225
      %1237 = vst [vmem:[%s1234 + $0x10] sm:$0xff] %v1208
      %1238 = vst [vmem:[%s1234 + $0x18] sm:$0xff] %v1227
      %1239 = vst [vmem:[%s1234 + $0x20] sm:$0xff] %v1211
      %1240 = vst [vmem:[%s1234 + $0x28] sm:$0xff] %v1230
      %1241 = vst [vmem:[%s1234 + $0x30] sm:$0xff] %v1213
      %1242 = vst [vmem:[%s1234 + $0x38] sm:$0xff] %v1232
      %v1244 = vunpack.c.l.b16 %v587
      %v1245 = vunpack.c.h.b16 %v587
      %v1246 = vpack.c.b16 %v1244, %v1244
      %v1247 = vpack.c.b16 %v1245, %v1245
      %v1249 = vsel %vm610, %v1246, 0
      %v1252 = vsel %vm610, %v1247, 0
      %1254 = vmatpush.bf16.msra.mxu0 0
      %1255 = vmatpush.bf16.msra.mxu0 0
      %1256 = vmatpush.bf16.msra.mxu0 0
      %1257 = vmatpush.bf16.msra.mxu0 0
      %1258 = vmatpush.bf16.msra.mxu0 0
      %1259 = vmatpush.bf16.msra.mxu0 0
      %1260 = vmatpush.bf16.msra.mxu0 0
      %1261 = vmatpush.bf16.msra.mxu0 %v1249
      %1262 = vmatmul.bf16.gmra.mxu0 %v605
      %v1263 = vpop.f32.mrf.mxu0
      %v1264 = vadd.f32 0.0, %v1263
      %v1265 = vpop.f32.mrf.mxu0
      %v1266 = vadd.f32 0.0, %v1265
      %1267 = vmatmul.bf16.gmra.mxu0 %v608
      %v1268 = vpop.f32.mrf.mxu0
      %v1269 = vadd.f32 0.0, %v1268
      %v1270 = vpop.f32.mrf.mxu0
      %v1271 = vadd.f32 0.0, %v1270
      %1272 = vdwg.mxu0
      %1273 = vmatpush.bf16.msra.mxu0 0
      %1274 = vmatpush.bf16.msra.mxu0 0
      %1275 = vmatpush.bf16.msra.mxu0 0
      %1276 = vmatpush.bf16.msra.mxu0 0
      %1277 = vmatpush.bf16.msra.mxu0 0
      %1278 = vmatpush.bf16.msra.mxu0 0
      %1279 = vmatpush.bf16.msra.mxu0 0
      %1280 = vmatpush.bf16.msra.mxu0 %v1252
      %1281 = vmatmul.bf16.gmra.mxu0 %v605
      %v1282 = vpop.f32.mrf.mxu0
      %v1283 = vadd.f32 0.0, %v1282
      %v1284 = vpop.f32.mrf.mxu0
      %v1285 = vadd.f32 0.0, %v1284
      %1286 = vmatmul.bf16.gmra.mxu0 %v608
      %v1287 = vpop.f32.mrf.mxu0
      %v1288 = vadd.f32 0.0, %v1287
      %v1289 = vpop.f32.mrf.mxu0
      %v1290 = vadd.f32 0.0, %v1289
      %1291 = vdwg.mxu0
      %s1292 = scalar_lea.vmem [#allocation2], 704
      %1293 = vst [vmem:[%s1292] sm:$0xff] %v1264
      %1294 = vst [vmem:[%s1292 + $0x8] sm:$0xff] %v1283
      %1295 = vst [vmem:[%s1292 + $0x10] sm:$0xff] %v1266
      %1296 = vst [vmem:[%s1292 + $0x18] sm:$0xff] %v1285
      %1297 = vst [vmem:[%s1292 + $0x20] sm:$0xff] %v1269
      %1298 = vst [vmem:[%s1292 + $0x28] sm:$0xff] %v1288
      %1299 = vst [vmem:[%s1292 + $0x30] sm:$0xff] %v1271
      %1300 = vst [vmem:[%s1292 + $0x38] sm:$0xff] %v1290
      %s1301 = smul.u32 %s568, 4
      %s1302 = smul.addr %s1301, 4
      %s1303 = scalar_lea.vmem %s555, %s1302
      %v1304 = vld [vmem:[%s1303] sm:$0xff]
      %v1305 = vld [vmem:[%s1303 + $0x8] sm:$0xff]
      %v1306 = vld [vmem:[%s1303 + $0x10] sm:$0xff]
      %v1307 = vld [vmem:[%s1303 + $0x18] sm:$0xff]
      %v1308 = vld [vmem:[%s1303 + $0x20] sm:$0xff]
      %v1309 = vld [vmem:[%s1303 + $0x28] sm:$0xff]
      %v1310 = vld [vmem:[%s1303 + $0x30] sm:$0xff]
      %v1311 = vld [vmem:[%s1303 + $0x38] sm:$0xff]
      %v1312 = vld [vmem:[%s1303 + $0x40] sm:$0xff]
      %v1313 = vld [vmem:[%s1303 + $0x48] sm:$0xff]
      %v1314 = vld [vmem:[%s1303 + $0x50] sm:$0xff]
      %v1315 = vld [vmem:[%s1303 + $0x58] sm:$0xff]
      %v1316 = vld [vmem:[%s1303 + $0x60] sm:$0xff]
      %v1317 = vld [vmem:[%s1303 + $0x68] sm:$0xff]
      %v1318 = vld [vmem:[%s1303 + $0x70] sm:$0xff]
      %v1319 = vld [vmem:[%s1303 + $0x78] sm:$0xff]
      %v1320 = vld [vmem:[%s1303 + $0x80] sm:$0xff]
      %v1321 = vld [vmem:[%s1303 + $0x88] sm:$0xff]
      %v1322 = vld [vmem:[%s1303 + $0x90] sm:$0xff]
      %v1323 = vld [vmem:[%s1303 + $0x98] sm:$0xff]
      %v1324 = vld [vmem:[%s1303 + $0xa0] sm:$0xff]
      %v1325 = vld [vmem:[%s1303 + $0xa8] sm:$0xff]
      %v1326 = vld [vmem:[%s1303 + $0xb0] sm:$0xff]
      %v1327 = vld [vmem:[%s1303 + $0xb8] sm:$0xff]
      %v1328 = vld [vmem:[%s3] sm:$0xf]
      %v1329 = vld [vmem:[%s3 + $0x4] sm:$0xf]
      %v1330 = vld [vmem:[%s3 + $0x8] sm:$0xf]
      %v1331 = vld [vmem:[%s3 + $0xc] sm:$0xf]
      %v1332 = vld [vmem:[%s3 + $0x10] sm:$0xf]
      %v1333 = vld [vmem:[%s3 + $0x14] sm:$0xf]
      %v1334 = vld [vmem:[%s3 + $0x18] sm:$0xf]
      %v1335 = vld [vmem:[%s3 + $0x1c] sm:$0xf]
      %v1336 = vld [vmem:[%s3 + $0x20] sm:$0xf]
      %v1337 = vld [vmem:[%s3 + $0x24] sm:$0xf]
      %v1338 = vld [vmem:[%s3 + $0x28] sm:$0xf]
      %v1339 = vld [vmem:[%s3 + $0x2c] sm:$0xf]
      %v1340 = vld [vmem:[%s3 + $0x30] sm:$0xf]
      %v1341 = vld [vmem:[%s3 + $0x34] sm:$0xf]
      %v1342 = vld [vmem:[%s3 + $0x38] sm:$0xf]
      %v1343 = vld [vmem:[%s3 + $0x3c] sm:$0xf]
      %v1344 = vld [vmem:[%s3 + $0x40] sm:$0xf]
      %v1345 = vld [vmem:[%s3 + $0x44] sm:$0xf]
      %v1346 = vld [vmem:[%s3 + $0x48] sm:$0xf]
      %v1347 = vld [vmem:[%s3 + $0x4c] sm:$0xf]
      %v1348 = vld [vmem:[%s3 + $0x50] sm:$0xf]
      %v1349 = vld [vmem:[%s3 + $0x54] sm:$0xf]
      %v1350 = vld [vmem:[%s3 + $0x58] sm:$0xf]
      %v1351 = vld [vmem:[%s3 + $0x5c] sm:$0xf]
      %v1352 = vld [vmem:[%s3 + $0x60] sm:$0xf]
      %v1353 = vld [vmem:[%s3 + $0x64] sm:$0xf]
      %v1354 = vld [vmem:[%s3 + $0x68] sm:$0xf]
      %v1355 = vld [vmem:[%s3 + $0x6c] sm:$0xf]
      %v1356 = vld [vmem:[%s3 + $0x70] sm:$0xf]
      %v1357 = vld [vmem:[%s3 + $0x74] sm:$0xf]
      %v1358 = vld [vmem:[%s3 + $0x78] sm:$0xf]
      %v1359 = vld [vmem:[%s3 + $0x7c] sm:$0xf]
      %v1360 = vld [vmem:[%s4] sm:$0x1]
      %v1362 = vperm.slane %v1360, 0
      %v1388 = vunpack.c.l.b16 %v1304
      %v1389 = vunpack.c.h.b16 %v1304
      %v1390 = vunpack.c.l.b16 %v1305
      %v1391 = vunpack.c.h.b16 %v1305
      %v1392 = vunpack.c.l.b16 %v1306
      %v1393 = vunpack.c.h.b16 %v1306
      %v1394 = vunpack.c.l.b16 %v1307
      %v1395 = vunpack.c.h.b16 %v1307
      %v1396 = vunpack.c.l.b16 %v1308
      %v1397 = vunpack.c.h.b16 %v1308
      %v1398 = vunpack.c.l.b16 %v1309
      %v1399 = vunpack.c.h.b16 %v1309
      %v1400 = vunpack.c.l.b16 %v1310
      %v1401 = vunpack.c.h.b16 %v1310
      %v1402 = vunpack.c.l.b16 %v1311
      %v1403 = vunpack.c.h.b16 %v1311
      %v1404 = vunpack.c.l.b16 %v1312
      %v1405 = vunpack.c.h.b16 %v1312
      %v1406 = vunpack.c.l.b16 %v1313
      %v1407 = vunpack.c.h.b16 %v1313
      %v1408 = vunpack.c.l.b16 %v1314
      %v1409 = vunpack.c.h.b16 %v1314
      %v1410 = vunpack.c.l.b16 %v1315
      %v1411 = vunpack.c.h.b16 %v1315
      %v1412 = vunpack.c.l.b16 %v1316
      %v1413 = vunpack.c.h.b16 %v1316
      %v1414 = vunpack.c.l.b16 %v1317
      %v1415 = vunpack.c.h.b16 %v1317
      %v1416 = vunpack.c.l.b16 %v1318
      %v1417 = vunpack.c.h.b16 %v1318
      %v1418 = vunpack.c.l.b16 %v1319
      %v1419 = vunpack.c.h.b16 %v1319
      %v1420 = vunpack.c.l.b16 %v1320
      %v1421 = vunpack.c.h.b16 %v1320
      %v1422 = vunpack.c.l.b16 %v1321
      %v1423 = vunpack.c.h.b16 %v1321
      %v1424 = vunpack.c.l.b16 %v1322
      %v1425 = vunpack.c.h.b16 %v1322
      %v1426 = vunpack.c.l.b16 %v1323
      %v1427 = vunpack.c.h.b16 %v1323
      %v1428 = vunpack.c.l.b16 %v1324
      %v1429 = vunpack.c.h.b16 %v1324
      %v1430 = vunpack.c.l.b16 %v1325
      %v1431 = vunpack.c.h.b16 %v1325
      %v1432 = vunpack.c.l.b16 %v1326
      %v1433 = vunpack.c.h.b16 %v1326
      %v1434 = vunpack.c.l.b16 %v1327
      %v1435 = vunpack.c.h.b16 %v1327
      %v1436 = vpack.c.b16 %v1390, %v1388
      %v1437 = vpack.c.b16 %v1391, %v1389
      %v1438 = vpack.c.b16 %v1394, %v1392
      %v1439 = vpack.c.b16 %v1395, %v1393
      %v1440 = vpack.c.b16 %v1398, %v1396
      %v1441 = vpack.c.b16 %v1399, %v1397
      %v1442 = vpack.c.b16 %v1402, %v1400
      %v1443 = vpack.c.b16 %v1403, %v1401
      %v1444 = vpack.c.b16 %v1406, %v1404
      %v1445 = vpack.c.b16 %v1407, %v1405
      %v1446 = vpack.c.b16 %v1410, %v1408
      %v1447 = vpack.c.b16 %v1411, %v1409
      %v1448 = vpack.c.b16 %v1414, %v1412
      %v1449 = vpack.c.b16 %v1415, %v1413
      %v1450 = vpack.c.b16 %v1418, %v1416
      %v1451 = vpack.c.b16 %v1419, %v1417
      %v1452 = vpack.c.b16 %v1422, %v1420
      %v1453 = vpack.c.b16 %v1423, %v1421
      %v1454 = vpack.c.b16 %v1426, %v1424
      %v1455 = vpack.c.b16 %v1427, %v1425
      %v1456 = vpack.c.b16 %v1430, %v1428
      %v1457 = vpack.c.b16 %v1431, %v1429
      %v1458 = vpack.c.b16 %v1434, %v1432
      %v1459 = vpack.c.b16 %v1435, %v1433
      %v1516 = vunpack.c.l.b16 %v1328
      %v1517 = vunpack.c.l.b16 %v1329
      %v1518 = vunpack.c.l.b16 %v1330
      %v1519 = vunpack.c.l.b16 %v1331
      %v1520 = vunpack.c.l.b16 %v1332
      %v1521 = vunpack.c.l.b16 %v1333
      %v1522 = vunpack.c.l.b16 %v1334
      %v1523 = vunpack.c.l.b16 %v1335
      %v1524 = vunpack.c.l.b16 %v1336
      %v1525 = vunpack.c.l.b16 %v1337
      %v1526 = vunpack.c.l.b16 %v1338
      %v1527 = vunpack.c.l.b16 %v1339
      %v1528 = vunpack.c.l.b16 %v1340
      %v1529 = vunpack.c.l.b16 %v1341
      %v1530 = vunpack.c.l.b16 %v1342
      %v1531 = vunpack.c.l.b16 %v1343
      %v1532 = vunpack.c.l.b16 %v1344
      %v1533 = vunpack.c.l.b16 %v1345
      %v1534 = vunpack.c.l.b16 %v1346
      %v1535 = vunpack.c.l.b16 %v1347
      %v1536 = vunpack.c.l.b16 %v1348
      %v1537 = vunpack.c.l.b16 %v1349
      %v1538 = vunpack.c.l.b16 %v1350
      %v1539 = vunpack.c.l.b16 %v1351
      %v1540 = vunpack.c.l.b16 %v1352
      %v1541 = vunpack.c.l.b16 %v1353
      %v1542 = vunpack.c.l.b16 %v1354
      %v1543 = vunpack.c.l.b16 %v1355
      %v1544 = vunpack.c.l.b16 %v1356
      %v1545 = vunpack.c.l.b16 %v1357
      %v1546 = vunpack.c.l.b16 %v1358
      %v1547 = vunpack.c.l.b16 %v1359
      %v1548 = vpack.c.b16 %v1517, %v1516
      %v1549 = vpack.c.b16 %v1519, %v1518
      %v1550 = vpack.c.b16 %v1521, %v1520
      %v1551 = vpack.c.b16 %v1523, %v1522
      %v1552 = vpack.c.b16 %v1525, %v1524
      %v1553 = vpack.c.b16 %v1527, %v1526
      %v1554 = vpack.c.b16 %v1529, %v1528
      %v1555 = vpack.c.b16 %v1531, %v1530
      %v1556 = vpack.c.b16 %v1533, %v1532
      %v1557 = vpack.c.b16 %v1535, %v1534
      %v1558 = vpack.c.b16 %v1537, %v1536
      %v1559 = vpack.c.b16 %v1539, %v1538
      %v1560 = vpack.c.b16 %v1541, %v1540
      %v1561 = vpack.c.b16 %v1543, %v1542
      %v1562 = vpack.c.b16 %v1545, %v1544
      %v1563 = vpack.c.b16 %v1547, %v1546
      %1580 = vmatpush.bf16.msra.mxu0 %v1555
      %1581 = vmatpush.bf16.msra.mxu0 %v1554
      %1582 = vmatpush.bf16.msra.mxu0 %v1553
      %1583 = vmatpush.bf16.msra.mxu0 %v1552
      %1584 = vmatpush.bf16.msra.mxu0 %v1551
      %1585 = vmatpush.bf16.msra.mxu0 %v1550
      %1586 = vmatpush.bf16.msra.mxu0 %v1549
      %1587 = vmatpush.bf16.msra.mxu0 %v1548
      %1588 = vmatmul.bf16.gmra.mxu0 %v1436
      %v1589 = vpop.f32.mrf.mxu0
      %v1590 = vadd.f32 %v1362, %v1589
      %v1591 = vpop.f32.mrf.mxu0
      %v1592 = vadd.f32 %v1362, %v1591
      %1593 = vmatmul.bf16.gmra.mxu0 %v1438
      %v1594 = vpop.f32.mrf.mxu0
      %v1595 = vadd.f32 %v1362, %v1594
      %v1596 = vpop.f32.mrf.mxu0
      %v1597 = vadd.f32 %v1362, %v1596
      %1598 = vmatmul.bf16.gmra.mxu0 %v1440
      %v1599 = vpop.f32.mrf.mxu0
      %v1600 = vadd.f32 %v1362, %v1599
      %v1601 = vpop.f32.mrf.mxu0
      %v1602 = vadd.f32 %v1362, %v1601
      %1603 = vmatmul.bf16.gmra.mxu0 %v1442
      %v1604 = vpop.f32.mrf.mxu0
      %v1605 = vadd.f32 %v1362, %v1604
      %v1606 = vpop.f32.mrf.mxu0
      %v1607 = vadd.f32 %v1362, %v1606
      %1608 = vmatmul.bf16.gmra.mxu0 %v1444
      %v1609 = vpop.f32.mrf.mxu0
      %v1610 = vadd.f32 %v1362, %v1609
      %v1611 = vpop.f32.mrf.mxu0
      %v1612 = vadd.f32 %v1362, %v1611
      %1613 = vmatmul.bf16.gmra.mxu0 %v1446
      %v1614 = vpop.f32.mrf.mxu0
      %v1615 = vadd.f32 %v1362, %v1614
      %v1616 = vpop.f32.mrf.mxu0
      %v1617 = vadd.f32 %v1362, %v1616
      %1618 = vmatmul.bf16.gmra.mxu0 %v1448
      %v1619 = vpop.f32.mrf.mxu0
      %v1620 = vadd.f32 %v1362, %v1619
      %v1621 = vpop.f32.mrf.mxu0
      %v1622 = vadd.f32 %v1362, %v1621
      %1623 = vmatmul.bf16.gmra.mxu0 %v1450
      %v1624 = vpop.f32.mrf.mxu0
      %v1625 = vadd.f32 %v1362, %v1624
      %v1626 = vpop.f32.mrf.mxu0
      %v1627 = vadd.f32 %v1362, %v1626
      %1628 = vmatmul.bf16.gmra.mxu0 %v1452
      %v1629 = vpop.f32.mrf.mxu0
      %v1630 = vadd.f32 %v1362, %v1629
      %v1631 = vpop.f32.mrf.mxu0
      %v1632 = vadd.f32 %v1362, %v1631
      %1633 = vmatmul.bf16.gmra.mxu0 %v1454
      %v1634 = vpop.f32.mrf.mxu0
      %v1635 = vadd.f32 %v1362, %v1634
      %v1636 = vpop.f32.mrf.mxu0
      %v1637 = vadd.f32 %v1362, %v1636
      %1638 = vmatmul.bf16.gmra.mxu0 %v1456
      %v1639 = vpop.f32.mrf.mxu0
      %v1640 = vadd.f32 %v1362, %v1639
      %v1641 = vpop.f32.mrf.mxu0
      %v1642 = vadd.f32 %v1362, %v1641
      %1643 = vmatmul.bf16.gmra.mxu0 %v1458
      %v1644 = vpop.f32.mrf.mxu0
      %v1645 = vadd.f32 %v1362, %v1644
      %v1646 = vpop.f32.mrf.mxu0
      %v1647 = vadd.f32 %v1362, %v1646
      %1648 = vdwg.mxu0
      %1649 = vmatpush.bf16.msra.mxu0 %v1563
      %1650 = vmatpush.bf16.msra.mxu0 %v1562
      %1651 = vmatpush.bf16.msra.mxu0 %v1561
      %1652 = vmatpush.bf16.msra.mxu0 %v1560
      %1653 = vmatpush.bf16.msra.mxu0 %v1559
      %1654 = vmatpush.bf16.msra.mxu0 %v1558
      %1655 = vmatpush.bf16.msra.mxu0 %v1557
      %1656 = vmatpush.bf16.msra.mxu0 %v1556
      %1657 = vmatmul.bf16.gmra.mxu0 %v1437
      %v1658 = vpop.f32.mrf.mxu0
      %v1659 = vadd.f32 %v1590, %v1658
      %v1660 = vpop.f32.mrf.mxu0
      %v1661 = vadd.f32 %v1592, %v1660
      %1662 = vmatmul.bf16.gmra.mxu0 %v1439
      %v1663 = vpop.f32.mrf.mxu0
      %v1664 = vadd.f32 %v1595, %v1663
      %v1665 = vpop.f32.mrf.mxu0
      %v1666 = vadd.f32 %v1597, %v1665
      %1667 = vmatmul.bf16.gmra.mxu0 %v1441
      %v1668 = vpop.f32.mrf.mxu0
      %v1669 = vadd.f32 %v1600, %v1668
      %v1670 = vpop.f32.mrf.mxu0
      %v1671 = vadd.f32 %v1602, %v1670
      %1672 = vmatmul.bf16.gmra.mxu0 %v1443
      %v1673 = vpop.f32.mrf.mxu0
      %v1674 = vadd.f32 %v1605, %v1673
      %v1675 = vpop.f32.mrf.mxu0
      %v1676 = vadd.f32 %v1607, %v1675
      %1677 = vmatmul.bf16.gmra.mxu0 %v1445
      %v1678 = vpop.f32.mrf.mxu0
      %v1679 = vadd.f32 %v1610, %v1678
      %v1680 = vpop.f32.mrf.mxu0
      %v1681 = vadd.f32 %v1612, %v1680
      %1682 = vmatmul.bf16.gmra.mxu0 %v1447
      %v1683 = vpop.f32.mrf.mxu0
      %v1684 = vadd.f32 %v1615, %v1683
      %v1685 = vpop.f32.mrf.mxu0
      %v1686 = vadd.f32 %v1617, %v1685
      %1687 = vmatmul.bf16.gmra.mxu0 %v1449
      %v1688 = vpop.f32.mrf.mxu0
      %v1689 = vadd.f32 %v1620, %v1688
      %v1690 = vpop.f32.mrf.mxu0
      %v1691 = vadd.f32 %v1622, %v1690
      %1692 = vmatmul.bf16.gmra.mxu0 %v1451
      %v1693 = vpop.f32.mrf.mxu0
      %v1694 = vadd.f32 %v1625, %v1693
      %v1695 = vpop.f32.mrf.mxu0
      %v1696 = vadd.f32 %v1627, %v1695
      %1697 = vmatmul.bf16.gmra.mxu0 %v1453
      %v1698 = vpop.f32.mrf.mxu0
      %v1699 = vadd.f32 %v1630, %v1698
      %v1700 = vpop.f32.mrf.mxu0
      %v1701 = vadd.f32 %v1632, %v1700
      %1702 = vmatmul.bf16.gmra.mxu0 %v1455
      %v1703 = vpop.f32.mrf.mxu0
      %v1704 = vadd.f32 %v1635, %v1703
      %v1705 = vpop.f32.mrf.mxu0
      %v1706 = vadd.f32 %v1637, %v1705
      %1707 = vmatmul.bf16.gmra.mxu0 %v1457
      %v1708 = vpop.f32.mrf.mxu0
      %v1709 = vadd.f32 %v1640, %v1708
      %v1710 = vpop.f32.mrf.mxu0
      %v1711 = vadd.f32 %v1642, %v1710
      %1712 = vmatmul.bf16.gmra.mxu0 %v1459
      %v1713 = vpop.f32.mrf.mxu0
      %v1714 = vadd.f32 %v1645, %v1713
      %v1715 = vpop.f32.mrf.mxu0
      %v1716 = vadd.f32 %v1647, %v1715
      %1717 = vdwg.mxu0
      %v1718 = vmax.f32 %v1659, 0.0
      %v1719 = vmax.f32 %v1661, 0.0
      %v1720 = vmax.f32 %v1664, 0.0
      %v1721 = vmax.f32 %v1666, 0.0
      %v1722 = vmax.f32 %v1669, 0.0
      %v1723 = vmax.f32 %v1671, 0.0
      %v1724 = vmax.f32 %v1674, 0.0
      %v1725 = vmax.f32 %v1676, 0.0
      %v1726 = vmax.f32 %v1679, 0.0
      %v1727 = vmax.f32 %v1681, 0.0
      %v1728 = vmax.f32 %v1684, 0.0
      %v1729 = vmax.f32 %v1686, 0.0
      %v1730 = vmax.f32 %v1689, 0.0
      %v1731 = vmax.f32 %v1691, 0.0
      %v1732 = vmax.f32 %v1694, 0.0
      %v1733 = vmax.f32 %v1696, 0.0
      %v1734 = vmax.f32 %v1699, 0.0
      %v1735 = vmax.f32 %v1701, 0.0
      %v1736 = vmax.f32 %v1704, 0.0
      %v1737 = vmax.f32 %v1706, 0.0
      %v1738 = vmax.f32 %v1709, 0.0
      %v1739 = vmax.f32 %v1711, 0.0
      %v1740 = vmax.f32 %v1714, 0.0
      %v1741 = vmax.f32 %v1716, 0.0
      %vm1742 = vcmask 392192
      %1743 = vst.msk [vmem:[#allocation3 + $0x8] sm:$0xff] %vm1742, %v1718
      %1744 = vst.msk [vmem:[#allocation3 + $0x10] sm:$0xff] %vm1742, %v1719
      %1745 = vst.msk [vmem:[#allocation3 + $0x28] sm:$0xff] %vm1742, %v1720
      %1746 = vst.msk [vmem:[#allocation3 + $0x30] sm:$0xff] %vm1742, %v1721
      %1747 = vst.msk [vmem:[#allocation3 + $0x48] sm:$0xff] %vm1742, %v1722
      %1748 = vst.msk [vmem:[#allocation3 + $0x50] sm:$0xff] %vm1742, %v1723
      %1749 = vst.msk [vmem:[#allocation3 + $0x68] sm:$0xff] %vm1742, %v1724
      %1750 = vst.msk [vmem:[#allocation3 + $0x70] sm:$0xff] %vm1742, %v1725
      %1751 = vst.msk [vmem:[#allocation3 + $0x88] sm:$0xff] %vm1742, %v1726
      %1752 = vst.msk [vmem:[#allocation3 + $0x90] sm:$0xff] %vm1742, %v1727
      %1753 = vst.msk [vmem:[#allocation3 + $0xa8] sm:$0xff] %vm1742, %v1728
      %1754 = vst.msk [vmem:[#allocation3 + $0xb0] sm:$0xff] %vm1742, %v1729
      %1755 = vst.msk [vmem:[#allocation3 + $0xc8] sm:$0xff] %vm1742, %v1730
      %1756 = vst.msk [vmem:[#allocation3 + $0xd0] sm:$0xff] %vm1742, %v1731
      %1757 = vst.msk [vmem:[#allocation3 + $0xe8] sm:$0xff] %vm1742, %v1732
      %1758 = vst.msk [vmem:[#allocation3 + $0xf0] sm:$0xff] %vm1742, %v1733
      %1759 = vst.msk [vmem:[#allocation3 + $0x108] sm:$0xff] %vm1742, %v1734
      %1760 = vst.msk [vmem:[#allocation3 + $0x110] sm:$0xff] %vm1742, %v1735
      %1761 = vst.msk [vmem:[#allocation3 + $0x128] sm:$0xff] %vm1742, %v1736
      %1762 = vst.msk [vmem:[#allocation3 + $0x130] sm:$0xff] %vm1742, %v1737
      %1763 = vst.msk [vmem:[#allocation3 + $0x148] sm:$0xff] %vm1742, %v1738
      %1764 = vst.msk [vmem:[#allocation3 + $0x150] sm:$0xff] %vm1742, %v1739
      %1765 = vst.msk [vmem:[#allocation3 + $0x168] sm:$0xff] %vm1742, %v1740
      %1766 = vst.msk [vmem:[#allocation3 + $0x170] sm:$0xff] %vm1742, %v1741
      %p1767 = scmp.eq.s32.totalorder %s32, 0
      // Predicated region
      $region85: #{decoder_spp_forward.1} parent=83 // pred_check
        %p1768 = pneg %p1767
      $region86: #{decoder_spp_forward.1} parent=83 // pred_check_branch
        %1770 = sbr.rel (%p1768) target = $region88
      $region87: #{decoder_spp_forward.1} parent=83 // pred_region
        %1771 = vst.msk [vmem:[#allocation3] sm:$0xff] %vm1742, 0.0
        %1772 = vst.msk [vmem:[#allocation3 + $0x8] sm:$0xff] %vm1742, 0.0
        %1773 = vst.msk [vmem:[#allocation3 + $0x10] sm:$0xff] %vm1742, 0.0
        %1774 = vst.msk [vmem:[#allocation3 + $0x18] sm:$0xff] %vm1742, 0.0
        %1775 = vst.msk [vmem:[#allocation3 + $0x20] sm:$0xff] %vm1742, 0.0
        %1776 = vst.msk [vmem:[#allocation3 + $0x28] sm:$0xff] %vm1742, 0.0
        %1777 = vst.msk [vmem:[#allocation3 + $0x30] sm:$0xff] %vm1742, 0.0
        %1778 = vst.msk [vmem:[#allocation3 + $0x38] sm:$0xff] %vm1742, 0.0
      $region88: #{decoder_spp_forward.1} parent=83 // pred_fallthru
        _
      %p1779 = scmp.eq.s32.totalorder %s32, 1
      // Predicated region
      $region89: #{decoder_spp_forward.1} parent=83 // pred_check
        %p1780 = pneg %p1779
      $region90: #{decoder_spp_forward.1} parent=83 // pred_check_branch
        %1782 = sbr.rel (%p1780) target = $region92
      $region91: #{decoder_spp_forward.1} parent=83 // pred_region
        %s1783 = scalar_lea.vmem [#allocation3], 320
        %1784 = vst.msk [vmem:[%s1783] sm:$0xff] %vm1742, 0.0
        %1785 = vst.msk [vmem:[%s1783 + $0x8] sm:$0xff] %vm1742, 0.0
        %1786 = vst.msk [vmem:[%s1783 + $0x10] sm:$0xff] %vm1742, 0.0
        %1787 = vst.msk [vmem:[%s1783 + $0x18] sm:$0xff] %vm1742, 0.0
        %1788 = vst.msk [vmem:[%s1783 + $0x20] sm:$0xff] %vm1742, 0.0
        %1789 = vst.msk [vmem:[%s1783 + $0x28] sm:$0xff] %vm1742, 0.0
        %1790 = vst.msk [vmem:[%s1783 + $0x30] sm:$0xff] %vm1742, 0.0
        %1791 = vst.msk [vmem:[%s1783 + $0x38] sm:$0xff] %vm1742, 0.0
      $region92: #{decoder_spp_forward.1} parent=83 // pred_fallthru
        _
      %1792 = vst.msk [vmem:[#allocation3] sm:$0xff] %vm1742, 0.0
      %1793 = vst.msk [vmem:[#allocation3 + $0x20] sm:$0xff] %vm1742, 0.0
      %1794 = vst.msk [vmem:[#allocation3 + $0x40] sm:$0xff] %vm1742, 0.0
      %1795 = vst.msk [vmem:[#allocation3 + $0x60] sm:$0xff] %vm1742, 0.0
      %1796 = vst.msk [vmem:[#allocation3 + $0x80] sm:$0xff] %vm1742, 0.0
      %1797 = vst.msk [vmem:[#allocation3 + $0xa0] sm:$0xff] %vm1742, 0.0
      %1798 = vst.msk [vmem:[#allocation3 + $0xc0] sm:$0xff] %vm1742, 0.0
      %1799 = vst.msk [vmem:[#allocation3 + $0xe0] sm:$0xff] %vm1742, 0.0
      %1800 = vst.msk [vmem:[#allocation3 + $0x100] sm:$0xff] %vm1742, 0.0
      %1801 = vst.msk [vmem:[#allocation3 + $0x120] sm:$0xff] %vm1742, 0.0
      %1802 = vst.msk [vmem:[#allocation3 + $0x140] sm:$0xff] %vm1742, 0.0
      %1803 = vst.msk [vmem:[#allocation3 + $0x160] sm:$0xff] %vm1742, 0.0
      %1804 = vst.msk [vmem:[#allocation3 + $0x18] sm:$0xff] %vm1742, 0.0
      %1805 = vst.msk [vmem:[#allocation3 + $0x38] sm:$0xff] %vm1742, 0.0
      %1806 = vst.msk [vmem:[#allocation3 + $0x58] sm:$0xff] %vm1742, 0.0
      %1807 = vst.msk [vmem:[#allocation3 + $0x78] sm:$0xff] %vm1742, 0.0
      %1808 = vst.msk [vmem:[#allocation3 + $0x98] sm:$0xff] %vm1742, 0.0
      %1809 = vst.msk [vmem:[#allocation3 + $0xb8] sm:$0xff] %vm1742, 0.0
      %1810 = vst.msk [vmem:[#allocation3 + $0xd8] sm:$0xff] %vm1742, 0.0
      %1811 = vst.msk [vmem:[#allocation3 + $0xf8] sm:$0xff] %vm1742, 0.0
      %1812 = vst.msk [vmem:[#allocation3 + $0x118] sm:$0xff] %vm1742, 0.0
      %1813 = vst.msk [vmem:[#allocation3 + $0x138] sm:$0xff] %vm1742, 0.0
      %1814 = vst.msk [vmem:[#allocation3 + $0x158] sm:$0xff] %vm1742, 0.0
      %1815 = vst.msk [vmem:[#allocation3 + $0x178] sm:$0xff] %vm1742, 0.0
      %v1816 = vld [vmem:[%s5] sm:$0xff]
      %v1817 = vld [vmem:[%s5 + $0x8] sm:$0xff]
      %v1818 = vld [vmem:[%s5 + $0x10] sm:$0x1]
      %v1819 = vld [vmem:[%s5 + $0x18] sm:$0x1]
      %v1820 = vld [vmem:[%s6] sm:$0x3]
      %v1821 = vld [vmem:[#allocation2] sm:$0x80]
      %v1822 = vld [vmem:[#allocation2 + $0x8] sm:$0x80]
      %v1823 = vld [vmem:[#allocation2 + $0x10] sm:$0xff]
      %v1824 = vld [vmem:[#allocation2 + $0x18] sm:$0xff]
      %v1825 = vld [vmem:[#allocation2 + $0x20] sm:$0x7f]
      %v1826 = vld [vmem:[#allocation2 + $0x28] sm:$0x7f]
      %v1827 = vld [vmem:[#allocation2 + $0x40] sm:$0x80]
      %v1828 = vld [vmem:[#allocation2 + $0x48] sm:$0x80]
      %v1829 = vld [vmem:[#allocation2 + $0x50] sm:$0xff]
      %v1830 = vld [vmem:[#allocation2 + $0x58] sm:$0xff]
      %v1831 = vld [vmem:[#allocation2 + $0x60] sm:$0x7f]
      %v1832 = vld [vmem:[#allocation2 + $0x68] sm:$0x7f]
      %v1833 = vld [vmem:[#allocation2 + $0x80] sm:$0x80]
      %v1834 = vld [vmem:[#allocation2 + $0x88] sm:$0x80]
      %v1835 = vld [vmem:[#allocation2 + $0x90] sm:$0xff]
      %v1836 = vld [vmem:[#allocation2 + $0x98] sm:$0xff]
      %v1837 = vld [vmem:[#allocation2 + $0xa0] sm:$0x7f]
      %v1838 = vld [vmem:[#allocation2 + $0xa8] sm:$0x7f]
      %v1839 = vld [vmem:[#allocation2 + $0xc0] sm:$0x80]
      %v1840 = vld [vmem:[#allocation2 + $0xc8] sm:$0x80]
      %v1841 = vld [vmem:[#allocation2 + $0xd0] sm:$0xff]
      %v1842 = vld [vmem:[#allocation2 + $0xd8] sm:$0xff]
      %v1843 = vld [vmem:[#allocation2 + $0xe0] sm:$0x7f]
      %v1844 = vld [vmem:[#allocation2 + $0xe8] sm:$0x7f]
      %v1845 = vld [vmem:[#allocation2 + $0x100] sm:$0x80]
      %v1846 = vld [vmem:[#allocation2 + $0x108] sm:$0x80]
      %v1847 = vld [vmem:[#allocation2 + $0x110] sm:$0xff]
      %v1848 = vld [vmem:[#allocation2 + $0x118] sm:$0xff]
      %v1849 = vld [vmem:[#allocation2 + $0x120] sm:$0x7f]
      %v1850 = vld [vmem:[#allocation2 + $0x128] sm:$0x7f]
      %v1851 = vld [vmem:[#allocation2 + $0x140] sm:$0x80]
      %v1852 = vld [vmem:[#allocation2 + $0x148] sm:$0x80]
      %v1853 = vld [vmem:[#allocation2 + $0x150] sm:$0xff]
      %v1854 = vld [vmem:[#allocation2 + $0x158] sm:$0xff]
      %v1855 = vld [vmem:[#allocation2 + $0x160] sm:$0x7f]
      %v1856 = vld [vmem:[#allocation2 + $0x168] sm:$0x7f]
      %v1857 = vld [vmem:[#allocation2 + $0x180] sm:$0x80]
      %v1858 = vld [vmem:[#allocation2 + $0x188] sm:$0x80]
      %v1859 = vld [vmem:[#allocation2 + $0x190] sm:$0xff]
      %v1860 = vld [vmem:[#allocation2 + $0x198] sm:$0xff]
      %v1861 = vld [vmem:[#allocation2 + $0x1a0] sm:$0x7f]
      %v1862 = vld [vmem:[#allocation2 + $0x1a8] sm:$0x7f]
      %v1863 = vld [vmem:[#allocation2 + $0x1c0] sm:$0x80]
      %v1864 = vld [vmem:[#allocation2 + $0x1c8] sm:$0x80]
      %v1865 = vld [vmem:[#allocation2 + $0x1d0] sm:$0xff]
      %v1866 = vld [vmem:[#allocation2 + $0x1d8] sm:$0xff]
      %v1867 = vld [vmem:[#allocation2 + $0x1e0] sm:$0x7f]
      %v1868 = vld [vmem:[#allocation2 + $0x1e8] sm:$0x7f]
      %v1869 = vld [vmem:[#allocation2 + $0x200] sm:$0x80]
      %v1870 = vld [vmem:[#allocation2 + $0x208] sm:$0x80]
      %v1871 = vld [vmem:[#allocation2 + $0x210] sm:$0xff]
      %v1872 = vld [vmem:[#allocation2 + $0x218] sm:$0xff]
      %v1873 = vld [vmem:[#allocation2 + $0x220] sm:$0x7f]
      %v1874 = vld [vmem:[#allocation2 + $0x228] sm:$0x7f]
      %v1875 = vld [vmem:[#allocation2 + $0x240] sm:$0x80]
      %v1876 = vld [vmem:[#allocation2 + $0x248] sm:$0x80]
      %v1877 = vld [vmem:[#allocation2 + $0x250] sm:$0xff]
      %v1878 = vld [vmem:[#allocation2 + $0x258] sm:$0xff]
      %v1879 = vld [vmem:[#allocation2 + $0x260] sm:$0x7f]
      %v1880 = vld [vmem:[#allocation2 + $0x268] sm:$0x7f]
      %v1881 = vperm.slane %v1816, 0
      %v1882 = vperm.slane %v1817, 0
      %v1883 = vmul.f32 %v1821, %v1881
      %v1884 = vmul.f32 %v1822, %v1882
      %v1885 = vmul.f32 %v1823, %v1881
      %v1886 = vmul.f32 %v1824, %v1882
      %v1887 = vmul.f32 %v1825, %v1881
      %v1888 = vmul.f32 %v1826, %v1882
      %v1889 = vmul.f32 %v1827, %v1881
      %v1890 = vmul.f32 %v1828, %v1882
      %v1891 = vmul.f32 %v1829, %v1881
      %v1892 = vmul.f32 %v1830, %v1882
      %v1893 = vmul.f32 %v1831, %v1881
      %v1894 = vmul.f32 %v1832, %v1882
      %v1895 = vmul.f32 %v1833, %v1881
      %v1896 = vmul.f32 %v1834, %v1882
      %v1897 = vmul.f32 %v1835, %v1881
      %v1898 = vmul.f32 %v1836, %v1882
      %v1899 = vmul.f32 %v1837, %v1881
      %v1900 = vmul.f32 %v1838, %v1882
      %v1901 = vmul.f32 %v1839, %v1881
      %v1902 = vmul.f32 %v1840, %v1882
      %v1903 = vmul.f32 %v1841, %v1881
      %v1904 = vmul.f32 %v1842, %v1882
      %v1905 = vmul.f32 %v1843, %v1881
      %v1906 = vmul.f32 %v1844, %v1882
      %v1907 = vmul.f32 %v1845, %v1881
      %v1908 = vmul.f32 %v1846, %v1882
      %v1909 = vmul.f32 %v1847, %v1881
      %v1910 = vmul.f32 %v1848, %v1882
      %v1911 = vmul.f32 %v1849, %v1881
      %v1912 = vmul.f32 %v1850, %v1882
      %v1913 = vmul.f32 %v1851, %v1881
      %v1914 = vmul.f32 %v1852, %v1882
      %v1915 = vmul.f32 %v1853, %v1881
      %v1916 = vmul.f32 %v1854, %v1882
      %v1917 = vmul.f32 %v1855, %v1881
      %v1918 = vmul.f32 %v1856, %v1882
      %v1919 = vmul.f32 %v1857, %v1881
      %v1920 = vmul.f32 %v1858, %v1882
      %v1921 = vmul.f32 %v1859, %v1881
      %v1922 = vmul.f32 %v1860, %v1882
      %v1923 = vmul.f32 %v1861, %v1881
      %v1924 = vmul.f32 %v1862, %v1882
      %v1925 = vmul.f32 %v1863, %v1881
      %v1926 = vmul.f32 %v1864, %v1882
      %v1927 = vmul.f32 %v1865, %v1881
      %v1928 = vmul.f32 %v1866, %v1882
      %v1929 = vmul.f32 %v1867, %v1881
      %v1930 = vmul.f32 %v1868, %v1882
      %v1931 = vmul.f32 %v1869, %v1881
      %v1932 = vmul.f32 %v1870, %v1882
      %v1933 = vmul.f32 %v1871, %v1881
      %v1934 = vmul.f32 %v1872, %v1882
      %v1935 = vmul.f32 %v1873, %v1881
      %v1936 = vmul.f32 %v1874, %v1882
      %v1937 = vmul.f32 %v1875, %v1881
      %v1938 = vmul.f32 %v1876, %v1882
      %v1939 = vmul.f32 %v1877, %v1881
      %v1940 = vmul.f32 %v1878, %v1882
      %v1941 = vmul.f32 %v1879, %v1881
      %v1942 = vmul.f32 %v1880, %v1882
      %v1943 = vld [vmem:[#allocation2 + $0x20] sm:$0xff]
      %v1944 = vld [vmem:[#allocation2 + $0x28] sm:$0xff]
      %v1945 = vld [vmem:[#allocation2 + $0x60] sm:$0xff]
      %v1946 = vld [vmem:[#allocation2 + $0x68] sm:$0xff]
      %v1947 = vld [vmem:[#allocation2 + $0xa0] sm:$0xff]
      %v1948 = vld [vmem:[#allocation2 + $0xa8] sm:$0xff]
      %v1949 = vld [vmem:[#allocation2 + $0xe0] sm:$0xff]
      %v1950 = vld [vmem:[#allocation2 + $0xe8] sm:$0xff]
      %v1951 = vld [vmem:[#allocation2 + $0x120] sm:$0xff]
      %v1952 = vld [vmem:[#allocation2 + $0x128] sm:$0xff]
      %v1953 = vld [vmem:[#allocation2 + $0x160] sm:$0xff]
      %v1954 = vld [vmem:[#allocation2 + $0x168] sm:$0xff]
      %v1955 = vld [vmem:[#allocation2 + $0x1a0] sm:$0xff]
      %v1956 = vld [vmem:[#allocation2 + $0x1a8] sm:$0xff]
      %v1957 = vld [vmem:[#allocation2 + $0x1e0] sm:$0xff]
      %v1958 = vld [vmem:[#allocation2 + $0x1e8] sm:$0xff]
      %v1959 = vld [vmem:[#allocation2 + $0x220] sm:$0xff]
      %v1960 = vld [vmem:[#allocation2 + $0x228] sm:$0xff]
      %v1961 = vld [vmem:[#allocation2 + $0x260] sm:$0xff]
      %v1962 = vld [vmem:[#allocation2 + $0x268] sm:$0xff]
      %v1963 = vperm.slane %v1816, 1
      %v1964 = vperm.slane %v1817, 1
      %v1965 = vmul.f32 %v1823, %v1963
      %v1966 = vmul.f32 %v1824, %v1964
      %v1967 = vmul.f32 %v1943, %v1963
      %v1968 = vmul.f32 %v1944, %v1964
      %v1969 = vmul.f32 %v1829, %v1963
      %v1970 = vmul.f32 %v1830, %v1964
      %v1971 = vmul.f32 %v1945, %v1963
      %v1972 = vmul.f32 %v1946, %v1964
      %v1973 = vmul.f32 %v1835, %v1963
      %v1974 = vmul.f32 %v1836, %v1964
      %v1975 = vmul.f32 %v1947, %v1963
      %v1976 = vmul.f32 %v1948, %v1964
      %v1977 = vmul.f32 %v1841, %v1963
      %v1978 = vmul.f32 %v1842, %v1964
      %v1979 = vmul.f32 %v1949, %v1963
      %v1980 = vmul.f32 %v1950, %v1964
      %v1981 = vmul.f32 %v1847, %v1963
      %v1982 = vmul.f32 %v1848, %v1964
      %v1983 = vmul.f32 %v1951, %v1963
      %v1984 = vmul.f32 %v1952, %v1964
      %v1985 = vmul.f32 %v1853, %v1963
      %v1986 = vmul.f32 %v1854, %v1964
      %v1987 = vmul.f32 %v1953, %v1963
      %v1988 = vmul.f32 %v1954, %v1964
      %v1989 = vmul.f32 %v1859, %v1963
      %v1990 = vmul.f32 %v1860, %v1964
      %v1991 = vmul.f32 %v1955, %v1963
      %v1992 = vmul.f32 %v1956, %v1964
      %v1993 = vmul.f32 %v1865, %v1963
      %v1994 = vmul.f32 %v1866, %v1964
      %v1995 = vmul.f32 %v1957, %v1963
      %v1996 = vmul.f32 %v1958, %v1964
      %v1997 = vmul.f32 %v1871, %v1963
      %v1998 = vmul.f32 %v1872, %v1964
      %v1999 = vmul.f32 %v1959, %v1963
      %v2000 = vmul.f32 %v1960, %v1964
      %v2001 = vmul.f32 %v1877, %v1963
      %v2002 = vmul.f32 %v1878, %v1964
      %v2003 = vmul.f32 %v1961, %v1963
      %v2004 = vmul.f32 %v1962, %v1964
      %vm2045 = vcmask 1046528
      %v2046 = vrot.slane %v1965, 1
      %v2047 = vrot.slane %v1966, 1
      %v2048 = vrot.slane %v1967, 1
      %v2049 = vsel %vm2045, %v2046, %v2048
      %v2050 = vrot.slane %v1968, 1
      %v2051 = vsel %vm2045, %v2047, %v2050
      %v2052 = vrot.slane %v1969, 1
      %v2053 = vrot.slane %v1970, 1
      %v2054 = vrot.slane %v1971, 1
      %v2055 = vsel %vm2045, %v2052, %v2054
      %v2056 = vrot.slane %v1972, 1
      %v2057 = vsel %vm2045, %v2053, %v2056
      %v2058 = vrot.slane %v1973, 1
      %v2059 = vrot.slane %v1974, 1
      %v2060 = vrot.slane %v1975, 1
      %v2061 = vsel %vm2045, %v2058, %v2060
      %v2062 = vrot.slane %v1976, 1
      %v2063 = vsel %vm2045, %v2059, %v2062
      %v2064 = vrot.slane %v1977, 1
      %v2065 = vrot.slane %v1978, 1
      %v2066 = vrot.slane %v1979, 1
      %v2067 = vsel %vm2045, %v2064, %v2066
      %v2068 = vrot.slane %v1980, 1
      %v2069 = vsel %vm2045, %v2065, %v2068
      %v2070 = vrot.slane %v1981, 1
      %v2071 = vrot.slane %v1982, 1
      %v2072 = vrot.slane %v1983, 1
      %v2073 = vsel %vm2045, %v2070, %v2072
      %v2074 = vrot.slane %v1984, 1
      %v2075 = vsel %vm2045, %v2071, %v2074
      %v2076 = vrot.slane %v1985, 1
      %v2077 = vrot.slane %v1986, 1
      %v2078 = vrot.slane %v1987, 1
      %v2079 = vsel %vm2045, %v2076, %v2078
      %v2080 = vrot.slane %v1988, 1
      %v2081 = vsel %vm2045, %v2077, %v2080
      %v2082 = vrot.slane %v1989, 1
      %v2083 = vrot.slane %v1990, 1
      %v2084 = vrot.slane %v1991, 1
      %v2085 = vsel %vm2045, %v2082, %v2084
      %v2086 = vrot.slane %v1992, 1
      %v2087 = vsel %vm2045, %v2083, %v2086
      %v2088 = vrot.slane %v1993, 1
      %v2089 = vrot.slane %v1994, 1
      %v2090 = vrot.slane %v1995, 1
      %v2091 = vsel %vm2045, %v2088, %v2090
      %v2092 = vrot.slane %v1996, 1
      %v2093 = vsel %vm2045, %v2089, %v2092
      %v2094 = vrot.slane %v1997, 1
      %v2095 = vrot.slane %v1998, 1
      %v2096 = vrot.slane %v1999, 1
      %v2097 = vsel %vm2045, %v2094, %v2096
      %v2098 = vrot.slane %v2000, 1
      %v2099 = vsel %vm2045, %v2095, %v2098
      %v2100 = vrot.slane %v2001, 1
      %v2101 = vrot.slane %v2002, 1
      %v2102 = vrot.slane %v2003, 1
      %v2103 = vsel %vm2045, %v2100, %v2102
      %v2104 = vrot.slane %v2004, 1
      %v2105 = vsel %vm2045, %v2101, %v2104
      %v2166 = vadd.f32 %v1883, %v2046
      %v2167 = vadd.f32 %v1884, %v2047
      %v2168 = vadd.f32 %v1885, %v2049
      %v2169 = vadd.f32 %v1886, %v2051
      %v2170 = vadd.f32 %v1887, %v2048
      %v2171 = vadd.f32 %v1888, %v2050
      %v2172 = vadd.f32 %v1889, %v2052
      %v2173 = vadd.f32 %v1890, %v2053
      %v2174 = vadd.f32 %v1891, %v2055
      %v2175 = vadd.f32 %v1892, %v2057
      %v2176 = vadd.f32 %v1893, %v2054
      %v2177 = vadd.f32 %v1894, %v2056
      %v2178 = vadd.f32 %v1895, %v2058
      %v2179 = vadd.f32 %v1896, %v2059
      %v2180 = vadd.f32 %v1897, %v2061
      %v2181 = vadd.f32 %v1898, %v2063
      %v2182 = vadd.f32 %v1899, %v2060
      %v2183 = vadd.f32 %v1900, %v2062
      %v2184 = vadd.f32 %v1901, %v2064
      %v2185 = vadd.f32 %v1902, %v2065
      %v2186 = vadd.f32 %v1903, %v2067
      %v2187 = vadd.f32 %v1904, %v2069
      %v2188 = vadd.f32 %v1905, %v2066
      %v2189 = vadd.f32 %v1906, %v2068
      %v2190 = vadd.f32 %v1907, %v2070
      %v2191 = vadd.f32 %v1908, %v2071
      %v2192 = vadd.f32 %v1909, %v2073
      %v2193 = vadd.f32 %v1910, %v2075
      %v2194 = vadd.f32 %v1911, %v2072
      %v2195 = vadd.f32 %v1912, %v2074
      %v2196 = vadd.f32 %v1913, %v2076
      %v2197 = vadd.f32 %v1914, %v2077
      %v2198 = vadd.f32 %v1915, %v2079
      %v2199 = vadd.f32 %v1916, %v2081
      %v2200 = vadd.f32 %v1917, %v2078
      %v2201 = vadd.f32 %v1918, %v2080
      %v2202 = vadd.f32 %v1919, %v2082
      %v2203 = vadd.f32 %v1920, %v2083
      %v2204 = vadd.f32 %v1921, %v2085
      %v2205 = vadd.f32 %v1922, %v2087
      %v2206 = vadd.f32 %v1923, %v2084
      %v2207 = vadd.f32 %v1924, %v2086
      %v2208 = vadd.f32 %v1925, %v2088
      %v2209 = vadd.f32 %v1926, %v2089
      %v2210 = vadd.f32 %v1927, %v2091
      %v2211 = vadd.f32 %v1928, %v2093
      %v2212 = vadd.f32 %v1929, %v2090
      %v2213 = vadd.f32 %v1930, %v2092
      %v2214 = vadd.f32 %v1931, %v2094
      %v2215 = vadd.f32 %v1932, %v2095
      %v2216 = vadd.f32 %v1933, %v2097
      %v2217 = vadd.f32 %v1934, %v2099
      %v2218 = vadd.f32 %v1935, %v2096
      %v2219 = vadd.f32 %v1936, %v2098
      %v2220 = vadd.f32 %v1937, %v2100
      %v2221 = vadd.f32 %v1938, %v2101
      %v2222 = vadd.f32 %v1939, %v2103
      %v2223 = vadd.f32 %v1940, %v2105
      %v2224 = vadd.f32 %v1941, %v2102
      %v2225 = vadd.f32 %v1942, %v2104
      %v2226 = vld [vmem:[#allocation2 + $0x10] sm:$0xfe]
      %v2227 = vld [vmem:[#allocation2 + $0x18] sm:$0xfe]
      %v2228 = vld [vmem:[#allocation2 + $0x30] sm:$0x1]
      %v2229 = vld [vmem:[#allocation2 + $0x38] sm:$0x1]
      %v2230 = vld [vmem:[#allocation2 + $0x50] sm:$0xfe]
      %v2231 = vld [vmem:[#allocation2 + $0x58] sm:$0xfe]
      %v2232 = vld [vmem:[#allocation2 + $0x70] sm:$0x1]
      %v2233 = vld [vmem:[#allocation2 + $0x78] sm:$0x1]
      %v2234 = vld [vmem:[#allocation2 + $0x90] sm:$0xfe]
      %v2235 = vld [vmem:[#allocation2 + $0x98] sm:$0xfe]
      %v2236 = vld [vmem:[#allocation2 + $0xb0] sm:$0x1]
      %v2237 = vld [vmem:[#allocation2 + $0xb8] sm:$0x1]
      %v2238 = vld [vmem:[#allocation2 + $0xd0] sm:$0xfe]
      %v2239 = vld [vmem:[#allocation2 + $0xd8] sm:$0xfe]
      %v2240 = vld [vmem:[#allocation2 + $0xf0] sm:$0x1]
      %v2241 = vld [vmem:[#allocation2 + $0xf8] sm:$0x1]
      %v2242 = vld [vmem:[#allocation2 + $0x110] sm:$0xfe]
      %v2243 = vld [vmem:[#allocation2 + $0x118] sm:$0xfe]
      %v2244 = vld [vmem:[#allocation2 + $0x130] sm:$0x1]
      %v2245 = vld [vmem:[#allocation2 + $0x138] sm:$0x1]
      %v2246 = vld [vmem:[#allocation2 + $0x150] sm:$0xfe]
      %v2247 = vld [vmem:[#allocation2 + $0x158] sm:$0xfe]
      %v2248 = vld [vmem:[#allocation2 + $0x170] sm:$0x1]
      %v2249 = vld [vmem:[#allocation2 + $0x178] sm:$0x1]
      %v2250 = vld [vmem:[#allocation2 + $0x190] sm:$0xfe]
      %v2251 = vld [vmem:[#allocation2 + $0x198] sm:$0xfe]
      %v2252 = vld [vmem:[#allocation2 + $0x1b0] sm:$0x1]
      %v2253 = vld [vmem:[#allocation2 + $0x1b8] sm:$0x1]
      %v2254 = vld [vmem:[#allocation2 + $0x1d0] sm:$0xfe]
      %v2255 = vld [vmem:[#allocation2 + $0x1d8] sm:$0xfe]
      %v2256 = vld [vmem:[#allocation2 + $0x1f0] sm:$0x1]
      %v2257 = vld [vmem:[#allocation2 + $0x1f8] sm:$0x1]
      %v2258 = vld [vmem:[#allocation2 + $0x210] sm:$0xfe]
      %v2259 = vld [vmem:[#allocation2 + $0x218] sm:$0xfe]
      %v2260 = vld [vmem:[#allocation2 + $0x230] sm:$0x1]
      %v2261 = vld [vmem:[#allocation2 + $0x238] sm:$0x1]
      %v2262 = vld [vmem:[#allocation2 + $0x250] sm:$0xfe]
      %v2263 = vld [vmem:[#allocation2 + $0x258] sm:$0xfe]
      %v2264 = vld [vmem:[#allocation2 + $0x270] sm:$0x1]
      %v2265 = vld [vmem:[#allocation2 + $0x278] sm:$0x1]
      %v2266 = vperm.slane %v1816, 2
      %v2267 = vperm.slane %v1817, 2
      %v2268 = vmul.f32 %v2226, %v2266
      %v2269 = vmul.f32 %v2227, %v2267
      %v2270 = vmul.f32 %v1943, %v2266
      %v2271 = vmul.f32 %v1944, %v2267
      %v2272 = vmul.f32 %v2228, %v2266
      %v2273 = vmul.f32 %v2229, %v2267
      %v2274 = vmul.f32 %v2230, %v2266
      %v2275 = vmul.f32 %v2231, %v2267
      %v2276 = vmul.f32 %v1945, %v2266
      %v2277 = vmul.f32 %v1946, %v2267
      %v2278 = vmul.f32 %v2232, %v2266
      %v2279 = vmul.f32 %v2233, %v2267
      %v2280 = vmul.f32 %v2234, %v2266
      %v2281 = vmul.f32 %v2235, %v2267
      %v2282 = vmul.f32 %v1947, %v2266
      %v2283 = vmul.f32 %v1948, %v2267
      %v2284 = vmul.f32 %v2236, %v2266
      %v2285 = vmul.f32 %v2237, %v2267
      %v2286 = vmul.f32 %v2238, %v2266
      %v2287 = vmul.f32 %v2239, %v2267
      %v2288 = vmul.f32 %v1949, %v2266
      %v2289 = vmul.f32 %v1950, %v2267
      %v2290 = vmul.f32 %v2240, %v2266
      %v2291 = vmul.f32 %v2241, %v2267
      %v2292 = vmul.f32 %v2242, %v2266
      %v2293 = vmul.f32 %v2243, %v2267
      %v2294 = vmul.f32 %v1951, %v2266
      %v2295 = vmul.f32 %v1952, %v2267
      %v2296 = vmul.f32 %v2244, %v2266
      %v2297 = vmul.f32 %v2245, %v2267
      %v2298 = vmul.f32 %v2246, %v2266
      %v2299 = vmul.f32 %v2247, %v2267
      %v2300 = vmul.f32 %v1953, %v2266
      %v2301 = vmul.f32 %v1954, %v2267
      %v2302 = vmul.f32 %v2248, %v2266
      %v2303 = vmul.f32 %v2249, %v2267
      %v2304 = vmul.f32 %v2250, %v2266
      %v2305 = vmul.f32 %v2251, %v2267
      %v2306 = vmul.f32 %v1955, %v2266
      %v2307 = vmul.f32 %v1956, %v2267
      %v2308 = vmul.f32 %v2252, %v2266
      %v2309 = vmul.f32 %v2253, %v2267
      %v2310 = vmul.f32 %v2254, %v2266
      %v2311 = vmul.f32 %v2255, %v2267
      %v2312 = vmul.f32 %v1957, %v2266
      %v2313 = vmul.f32 %v1958, %v2267
      %v2314 = vmul.f32 %v2256, %v2266
      %v2315 = vmul.f32 %v2257, %v2267
      %v2316 = vmul.f32 %v2258, %v2266
      %v2317 = vmul.f32 %v2259, %v2267
      %v2318 = vmul.f32 %v1959, %v2266
      %v2319 = vmul.f32 %v1960, %v2267
      %v2320 = vmul.f32 %v2260, %v2266
      %v2321 = vmul.f32 %v2261, %v2267
      %v2322 = vmul.f32 %v2262, %v2266
      %v2323 = vmul.f32 %v2263, %v2267
      %v2324 = vmul.f32 %v1961, %v2266
      %v2325 = vmul.f32 %v1962, %v2267
      %v2326 = vmul.f32 %v2264, %v2266
      %v2327 = vmul.f32 %v2265, %v2267
      %vm2388 = vcmask 1045504
      %v2389 = vrot.slane %v2268, 2
      %v2390 = vrot.slane %v2269, 2
      %v2391 = vrot.slane %v2270, 2
      %v2392 = vsel %vm2388, %v2389, %v2391
      %v2393 = vrot.slane %v2271, 2
      %v2394 = vsel %vm2388, %v2390, %v2393
      %v2395 = vrot.slane %v2272, 2
      %v2396 = vsel %vm2388, %v2391, %v2395
      %v2397 = vrot.slane %v2273, 2
      %v2398 = vsel %vm2388, %v2393, %v2397
      %v2399 = vrot.slane %v2274, 2
      %v2400 = vrot.slane %v2275, 2
      %v2401 = vrot.slane %v2276, 2
      %v2402 = vsel %vm2388, %v2399, %v2401
      %v2403 = vrot.slane %v2277, 2
      %v2404 = vsel %vm2388, %v2400, %v2403
      %v2405 = vrot.slane %v2278, 2
      %v2406 = vsel %vm2388, %v2401, %v2405
      %v2407 = vrot.slane %v2279, 2
      %v2408 = vsel %vm2388, %v2403, %v2407
      %v2409 = vrot.slane %v2280, 2
      %v2410 = vrot.slane %v2281, 2
      %v2411 = vrot.slane %v2282, 2
      %v2412 = vsel %vm2388, %v2409, %v2411
      %v2413 = vrot.slane %v2283, 2
      %v2414 = vsel %vm2388, %v2410, %v2413
      %v2415 = vrot.slane %v2284, 2
      %v2416 = vsel %vm2388, %v2411, %v2415
      %v2417 = vrot.slane %v2285, 2
      %v2418 = vsel %vm2388, %v2413, %v2417
      %v2419 = vrot.slane %v2286, 2
      %v2420 = vrot.slane %v2287, 2
      %v2421 = vrot.slane %v2288, 2
      %v2422 = vsel %vm2388, %v2419, %v2421
      %v2423 = vrot.slane %v2289, 2
      %v2424 = vsel %vm2388, %v2420, %v2423
      %v2425 = vrot.slane %v2290, 2
      %v2426 = vsel %vm2388, %v2421, %v2425
      %v2427 = vrot.slane %v2291, 2
      %v2428 = vsel %vm2388, %v2423, %v2427
      %v2429 = vrot.slane %v2292, 2
      %v2430 = vrot.slane %v2293, 2
      %v2431 = vrot.slane %v2294, 2
      %v2432 = vsel %vm2388, %v2429, %v2431
      %v2433 = vrot.slane %v2295, 2
      %v2434 = vsel %vm2388, %v2430, %v2433
      %v2435 = vrot.slane %v2296, 2
      %v2436 = vsel %vm2388, %v2431, %v2435
      %v2437 = vrot.slane %v2297, 2
      %v2438 = vsel %vm2388, %v2433, %v2437
      %v2439 = vrot.slane %v2298, 2
      %v2440 = vrot.slane %v2299, 2
      %v2441 = vrot.slane %v2300, 2
      %v2442 = vsel %vm2388, %v2439, %v2441
      %v2443 = vrot.slane %v2301, 2
      %v2444 = vsel %vm2388, %v2440, %v2443
      %v2445 = vrot.slane %v2302, 2
      %v2446 = vsel %vm2388, %v2441, %v2445
      %v2447 = vrot.slane %v2303, 2
      %v2448 = vsel %vm2388, %v2443, %v2447
      %v2449 = vrot.slane %v2304, 2
      %v2450 = vrot.slane %v2305, 2
      %v2451 = vrot.slane %v2306, 2
      %v2452 = vsel %vm2388, %v2449, %v2451
      %v2453 = vrot.slane %v2307, 2
      %v2454 = vsel %vm2388, %v2450, %v2453
      %v2455 = vrot.slane %v2308, 2
      %v2456 = vsel %vm2388, %v2451, %v2455
      %v2457 = vrot.slane %v2309, 2
      %v2458 = vsel %vm2388, %v2453, %v2457
      %v2459 = vrot.slane %v2310, 2
      %v2460 = vrot.slane %v2311, 2
      %v2461 = vrot.slane %v2312, 2
      %v2462 = vsel %vm2388, %v2459, %v2461
      %v2463 = vrot.slane %v2313, 2
      %v2464 = vsel %vm2388, %v2460, %v2463
      %v2465 = vrot.slane %v2314, 2
      %v2466 = vsel %vm2388, %v2461, %v2465
      %v2467 = vrot.slane %v2315, 2
      %v2468 = vsel %vm2388, %v2463, %v2467
      %v2469 = vrot.slane %v2316, 2
      %v2470 = vrot.slane %v2317, 2
      %v2471 = vrot.slane %v2318, 2
      %v2472 = vsel %vm2388, %v2469, %v2471
      %v2473 = vrot.slane %v2319, 2
      %v2474 = vsel %vm2388, %v2470, %v2473
      %v2475 = vrot.slane %v2320, 2
      %v2476 = vsel %vm2388, %v2471, %v2475
      %v2477 = vrot.slane %v2321, 2
      %v2478 = vsel %vm2388, %v2473, %v2477
      %v2479 = vrot.slane %v2322, 2
      %v2480 = vrot.slane %v2323, 2
      %v2481 = vrot.slane %v2324, 2
      %v2482 = vsel %vm2388, %v2479, %v2481
      %v2483 = vrot.slane %v2325, 2
      %v2484 = vsel %vm2388, %v2480, %v2483
      %v2485 = vrot.slane %v2326, 2
      %v2486 = vsel %vm2388, %v2481, %v2485
      %v2487 = vrot.slane %v2327, 2
      %v2488 = vsel %vm2388, %v2483, %v2487
      %v2549 = vadd.f32 %v2166, %v2389
      %v2550 = vadd.f32 %v2167, %v2390
      %v2551 = vadd.f32 %v2168, %v2392
      %v2552 = vadd.f32 %v2169, %v2394
      %v2553 = vadd.f32 %v2170, %v2396
      %v2554 = vadd.f32 %v2171, %v2398
      %v2555 = vadd.f32 %v2172, %v2399
      %v2556 = vadd.f32 %v2173, %v2400
      %v2557 = vadd.f32 %v2174, %v2402
      %v2558 = vadd.f32 %v2175, %v2404
      %v2559 = vadd.f32 %v2176, %v2406
      %v2560 = vadd.f32 %v2177, %v2408
      %v2561 = vadd.f32 %v2178, %v2409
      %v2562 = vadd.f32 %v2179, %v2410
      %v2563 = vadd.f32 %v2180, %v2412
      %v2564 = vadd.f32 %v2181, %v2414
      %v2565 = vadd.f32 %v2182, %v2416
      %v2566 = vadd.f32 %v2183, %v2418
      %v2567 = vadd.f32 %v2184, %v2419
      %v2568 = vadd.f32 %v2185, %v2420
      %v2569 = vadd.f32 %v2186, %v2422
      %v2570 = vadd.f32 %v2187, %v2424
      %v2571 = vadd.f32 %v2188, %v2426
      %v2572 = vadd.f32 %v2189, %v2428
      %v2573 = vadd.f32 %v2190, %v2429
      %v2574 = vadd.f32 %v2191, %v2430
      %v2575 = vadd.f32 %v2192, %v2432
      %v2576 = vadd.f32 %v2193, %v2434
      %v2577 = vadd.f32 %v2194, %v2436
      %v2578 = vadd.f32 %v2195, %v2438
      %v2579 = vadd.f32 %v2196, %v2439
      %v2580 = vadd.f32 %v2197, %v2440
      %v2581 = vadd.f32 %v2198, %v2442
      %v2582 = vadd.f32 %v2199, %v2444
      %v2583 = vadd.f32 %v2200, %v2446
      %v2584 = vadd.f32 %v2201, %v2448
      %v2585 = vadd.f32 %v2202, %v2449
      %v2586 = vadd.f32 %v2203, %v2450
      %v2587 = vadd.f32 %v2204, %v2452
      %v2588 = vadd.f32 %v2205, %v2454
      %v2589 = vadd.f32 %v2206, %v2456
      %v2590 = vadd.f32 %v2207, %v2458
      %v2591 = vadd.f32 %v2208, %v2459
      %v2592 = vadd.f32 %v2209, %v2460
      %v2593 = vadd.f32 %v2210, %v2462
      %v2594 = vadd.f32 %v2211, %v2464
      %v2595 = vadd.f32 %v2212, %v2466
      %v2596 = vadd.f32 %v2213, %v2468
      %v2597 = vadd.f32 %v2214, %v2469
      %v2598 = vadd.f32 %v2215, %v2470
      %v2599 = vadd.f32 %v2216, %v2472
      %v2600 = vadd.f32 %v2217, %v2474
      %v2601 = vadd.f32 %v2218, %v2476
      %v2602 = vadd.f32 %v2219, %v2478
      %v2603 = vadd.f32 %v2220, %v2479
      %v2604 = vadd.f32 %v2221, %v2480
      %v2605 = vadd.f32 %v2222, %v2482
      %v2606 = vadd.f32 %v2223, %v2484
      %v2607 = vadd.f32 %v2224, %v2486
      %v2608 = vadd.f32 %v2225, %v2488
      %v2609 = vld [vmem:[%s712] sm:$0x80]
      %v2610 = vld [vmem:[%s712 + $0x8] sm:$0x80]
      %v2611 = vld [vmem:[%s712 + $0x10] sm:$0xff]
      %v2612 = vld [vmem:[%s712 + $0x18] sm:$0xff]
      %v2613 = vld [vmem:[%s712 + $0x20] sm:$0x7f]
      %v2614 = vld [vmem:[%s712 + $0x28] sm:$0x7f]
      %v2615 = vld [vmem:[%s712 + $0x40] sm:$0x80]
      %v2616 = vld [vmem:[%s712 + $0x48] sm:$0x80]
      %v2617 = vld [vmem:[%s712 + $0x50] sm:$0xff]
      %v2618 = vld [vmem:[%s712 + $0x58] sm:$0xff]
      %v2619 = vld [vmem:[%s712 + $0x60] sm:$0x7f]
      %v2620 = vld [vmem:[%s712 + $0x68] sm:$0x7f]
      %v2621 = vld [vmem:[%s712 + $0x80] sm:$0x80]
      %v2622 = vld [vmem:[%s712 + $0x88] sm:$0x80]
      %v2623 = vld [vmem:[%s712 + $0x90] sm:$0xff]
      %v2624 = vld [vmem:[%s712 + $0x98] sm:$0xff]
      %v2625 = vld [vmem:[%s712 + $0xa0] sm:$0x7f]
      %v2626 = vld [vmem:[%s712 + $0xa8] sm:$0x7f]
      %v2627 = vld [vmem:[%s712 + $0xc0] sm:$0x80]
      %v2628 = vld [vmem:[%s712 + $0xc8] sm:$0x80]
      %v2629 = vld [vmem:[%s712 + $0xd0] sm:$0xff]
      %v2630 = vld [vmem:[%s712 + $0xd8] sm:$0xff]
      %v2631 = vld [vmem:[%s712 + $0xe0] sm:$0x7f]
      %v2632 = vld [vmem:[%s712 + $0xe8] sm:$0x7f]
      %v2633 = vld [vmem:[%s712 + $0x100] sm:$0x80]
      %v2634 = vld [vmem:[%s712 + $0x108] sm:$0x80]
      %v2635 = vld [vmem:[%s712 + $0x110] sm:$0xff]
      %v2636 = vld [vmem:[%s712 + $0x118] sm:$0xff]
      %v2637 = vld [vmem:[%s712 + $0x120] sm:$0x7f]
      %v2638 = vld [vmem:[%s712 + $0x128] sm:$0x7f]
      %v2639 = vld [vmem:[%s712 + $0x140] sm:$0x80]
      %v2640 = vld [vmem:[%s712 + $0x148] sm:$0x80]
      %v2641 = vld [vmem:[%s712 + $0x150] sm:$0xff]
      %v2642 = vld [vmem:[%s712 + $0x158] sm:$0xff]
      %v2643 = vld [vmem:[%s712 + $0x160] sm:$0x7f]
      %v2644 = vld [vmem:[%s712 + $0x168] sm:$0x7f]
      %v2645 = vld [vmem:[%s712 + $0x180] sm:$0x80]
      %v2646 = vld [vmem:[%s712 + $0x188] sm:$0x80]
      %v2647 = vld [vmem:[%s712 + $0x190] sm:$0xff]
      %v2648 = vld [vmem:[%s712 + $0x198] sm:$0xff]
      %v2649 = vld [vmem:[%s712 + $0x1a0] sm:$0x7f]
      %v2650 = vld [vmem:[%s712 + $0x1a8] sm:$0x7f]
      %v2651 = vld [vmem:[%s712 + $0x1c0] sm:$0x80]
      %v2652 = vld [vmem:[%s712 + $0x1c8] sm:$0x80]
      %v2653 = vld [vmem:[%s712 + $0x1d0] sm:$0xff]
      %v2654 = vld [vmem:[%s712 + $0x1d8] sm:$0xff]
      %v2655 = vld [vmem:[%s712 + $0x1e0] sm:$0x7f]
      %v2656 = vld [vmem:[%s712 + $0x1e8] sm:$0x7f]
      %v2657 = vld [vmem:[%s712 + $0x200] sm:$0x80]
      %v2658 = vld [vmem:[%s712 + $0x208] sm:$0x80]
      %v2659 = vld [vmem:[%s712 + $0x210] sm:$0xff]
      %v2660 = vld [vmem:[%s712 + $0x218] sm:$0xff]
      %v2661 = vld [vmem:[%s712 + $0x220] sm:$0x7f]
      %v2662 = vld [vmem:[%s712 + $0x228] sm:$0x7f]
      %v2663 = vld [vmem:[%s712 + $0x240] sm:$0x80]
      %v2664 = vld [vmem:[%s712 + $0x248] sm:$0x80]
      %v2665 = vld [vmem:[%s712 + $0x250] sm:$0xff]
      %v2666 = vld [vmem:[%s712 + $0x258] sm:$0xff]
      %v2667 = vld [vmem:[%s712 + $0x260] sm:$0x7f]
      %v2668 = vld [vmem:[%s712 + $0x268] sm:$0x7f]
      %v2669 = vperm.slane %v1816, 3
      %v2670 = vperm.slane %v1817, 3
      %v2671 = vmul.f32 %v2609, %v2669
      %v2672 = vmul.f32 %v2610, %v2670
      %v2673 = vmul.f32 %v2611, %v2669
      %v2674 = vmul.f32 %v2612, %v2670
      %v2675 = vmul.f32 %v2613, %v2669
      %v2676 = vmul.f32 %v2614, %v2670
      %v2677 = vmul.f32 %v2615, %v2669
      %v2678 = vmul.f32 %v2616, %v2670
      %v2679 = vmul.f32 %v2617, %v2669
      %v2680 = vmul.f32 %v2618, %v2670
      %v2681 = vmul.f32 %v2619, %v2669
      %v2682 = vmul.f32 %v2620, %v2670
      %v2683 = vmul.f32 %v2621, %v2669
      %v2684 = vmul.f32 %v2622, %v2670
      %v2685 = vmul.f32 %v2623, %v2669
      %v2686 = vmul.f32 %v2624, %v2670
      %v2687 = vmul.f32 %v2625, %v2669
      %v2688 = vmul.f32 %v2626, %v2670
      %v2689 = vmul.f32 %v2627, %v2669
      %v2690 = vmul.f32 %v2628, %v2670
      %v2691 = vmul.f32 %v2629, %v2669
      %v2692 = vmul.f32 %v2630, %v2670
      %v2693 = vmul.f32 %v2631, %v2669
      %v2694 = vmul.f32 %v2632, %v2670
      %v2695 = vmul.f32 %v2633, %v2669
      %v2696 = vmul.f32 %v2634, %v2670
      %v2697 = vmul.f32 %v2635, %v2669
      %v2698 = vmul.f32 %v2636, %v2670
      %v2699 = vmul.f32 %v2637, %v2669
      %v2700 = vmul.f32 %v2638, %v2670
      %v2701 = vmul.f32 %v2639, %v2669
      %v2702 = vmul.f32 %v2640, %v2670
      %v2703 = vmul.f32 %v2641, %v2669
      %v2704 = vmul.f32 %v2642, %v2670
      %v2705 = vmul.f32 %v2643, %v2669
      %v2706 = vmul.f32 %v2644, %v2670
      %v2707 = vmul.f32 %v2645, %v2669
      %v2708 = vmul.f32 %v2646, %v2670
      %v2709 = vmul.f32 %v2647, %v2669
      %v2710 = vmul.f32 %v2648, %v2670
      %v2711 = vmul.f32 %v2649, %v2669
      %v2712 = vmul.f32 %v2650, %v2670
      %v2713 = vmul.f32 %v2651, %v2669
      %v2714 = vmul.f32 %v2652, %v2670
      %v2715 = vmul.f32 %v2653, %v2669
      %v2716 = vmul.f32 %v2654, %v2670
      %v2717 = vmul.f32 %v2655, %v2669
      %v2718 = vmul.f32 %v2656, %v2670
      %v2719 = vmul.f32 %v2657, %v2669
      %v2720 = vmul.f32 %v2658, %v2670
      %v2721 = vmul.f32 %v2659, %v2669
      %v2722 = vmul.f32 %v2660, %v2670
      %v2723 = vmul.f32 %v2661, %v2669
      %v2724 = vmul.f32 %v2662, %v2670
      %v2725 = vmul.f32 %v2663, %v2669
      %v2726 = vmul.f32 %v2664, %v2670
      %v2727 = vmul.f32 %v2665, %v2669
      %v2728 = vmul.f32 %v2666, %v2670
      %v2729 = vmul.f32 %v2667, %v2669
      %v2730 = vmul.f32 %v2668, %v2670
      %v2731 = vadd.f32 %v2549, %v2671
      %v2732 = vadd.f32 %v2550, %v2672
      %v2733 = vadd.f32 %v2551, %v2673
      %v2734 = vadd.f32 %v2552, %v2674
      %v2735 = vadd.f32 %v2553, %v2675
      %v2736 = vadd.f32 %v2554, %v2676
      %v2737 = vadd.f32 %v2555, %v2677
      %v2738 = vadd.f32 %v2556, %v2678
      %v2739 = vadd.f32 %v2557, %v2679
      %v2740 = vadd.f32 %v2558, %v2680
      %v2741 = vadd.f32 %v2559, %v2681
      %v2742 = vadd.f32 %v2560, %v2682
      %v2743 = vadd.f32 %v2561, %v2683
      %v2744 = vadd.f32 %v2562, %v2684
      %v2745 = vadd.f32 %v2563, %v2685
      %v2746 = vadd.f32 %v2564, %v2686
      %v2747 = vadd.f32 %v2565, %v2687
      %v2748 = vadd.f32 %v2566, %v2688
      %v2749 = vadd.f32 %v2567, %v2689
      %v2750 = vadd.f32 %v2568, %v2690
      %v2751 = vadd.f32 %v2569, %v2691
      %v2752 = vadd.f32 %v2570, %v2692
      %v2753 = vadd.f32 %v2571, %v2693
      %v2754 = vadd.f32 %v2572, %v2694
      %v2755 = vadd.f32 %v2573, %v2695
      %v2756 = vadd.f32 %v2574, %v2696
      %v2757 = vadd.f32 %v2575, %v2697
      %v2758 = vadd.f32 %v2576, %v2698
      %v2759 = vadd.f32 %v2577, %v2699
      %v2760 = vadd.f32 %v2578, %v2700
      %v2761 = vadd.f32 %v2579, %v2701
      %v2762 = vadd.f32 %v2580, %v2702
      %v2763 = vadd.f32 %v2581, %v2703
      %v2764 = vadd.f32 %v2582, %v2704
      %v2765 = vadd.f32 %v2583, %v2705
      %v2766 = vadd.f32 %v2584, %v2706
      %v2767 = vadd.f32 %v2585, %v2707
      %v2768 = vadd.f32 %v2586, %v2708
      %v2769 = vadd.f32 %v2587, %v2709
      %v2770 = vadd.f32 %v2588, %v2710
      %v2771 = vadd.f32 %v2589, %v2711
      %v2772 = vadd.f32 %v2590, %v2712
      %v2773 = vadd.f32 %v2591, %v2713
      %v2774 = vadd.f32 %v2592, %v2714
      %v2775 = vadd.f32 %v2593, %v2715
      %v2776 = vadd.f32 %v2594, %v2716
      %v2777 = vadd.f32 %v2595, %v2717
      %v2778 = vadd.f32 %v2596, %v2718
      %v2779 = vadd.f32 %v2597, %v2719
      %v2780 = vadd.f32 %v2598, %v2720
      %v2781 = vadd.f32 %v2599, %v2721
      %v2782 = vadd.f32 %v2600, %v2722
      %v2783 = vadd.f32 %v2601, %v2723
      %v2784 = vadd.f32 %v2602, %v2724
      %v2785 = vadd.f32 %v2603, %v2725
      %v2786 = vadd.f32 %v2604, %v2726
      %v2787 = vadd.f32 %v2605, %v2727
      %v2788 = vadd.f32 %v2606, %v2728
      %v2789 = vadd.f32 %v2607, %v2729
      %v2790 = vadd.f32 %v2608, %v2730
      %v2791 = vld [vmem:[%s712 + $0x20] sm:$0xff]
      %v2792 = vld [vmem:[%s712 + $0x28] sm:$0xff]
      %v2793 = vld [vmem:[%s712 + $0x60] sm:$0xff]
      %v2794 = vld [vmem:[%s712 + $0x68] sm:$0xff]
      %v2795 = vld [vmem:[%s712 + $0xa0] sm:$0xff]
      %v2796 = vld [vmem:[%s712 + $0xa8] sm:$0xff]
      %v2797 = vld [vmem:[%s712 + $0xe0] sm:$0xff]
      %v2798 = vld [vmem:[%s712 + $0xe8] sm:$0xff]
      %v2799 = vld [vmem:[%s712 + $0x120] sm:$0xff]
      %v2800 = vld [vmem:[%s712 + $0x128] sm:$0xff]
      %v2801 = vld [vmem:[%s712 + $0x160] sm:$0xff]
      %v2802 = vld [vmem:[%s712 + $0x168] sm:$0xff]
      %v2803 = vld [vmem:[%s712 + $0x1a0] sm:$0xff]
      %v2804 = vld [vmem:[%s712 + $0x1a8] sm:$0xff]
      %v2805 = vld [vmem:[%s712 + $0x1e0] sm:$0xff]
      %v2806 = vld [vmem:[%s712 + $0x1e8] sm:$0xff]
      %v2807 = vld [vmem:[%s712 + $0x220] sm:$0xff]
      %v2808 = vld [vmem:[%s712 + $0x228] sm:$0xff]
      %v2809 = vld [vmem:[%s712 + $0x260] sm:$0xff]
      %v2810 = vld [vmem:[%s712 + $0x268] sm:$0xff]
      %v2811 = vperm.slane %v1816, 4
      %v2812 = vperm.slane %v1817, 4
      %v2813 = vmul.f32 %v2611, %v2811
      %v2814 = vmul.f32 %v2612, %v2812
      %v2815 = vmul.f32 %v2791, %v2811
      %v2816 = vmul.f32 %v2792, %v2812
      %v2817 = vmul.f32 %v2617, %v2811
      %v2818 = vmul.f32 %v2618, %v2812
      %v2819 = vmul.f32 %v2793, %v2811
      %v2820 = vmul.f32 %v2794, %v2812
      %v2821 = vmul.f32 %v2623, %v2811
      %v2822 = vmul.f32 %v2624, %v2812
      %v2823 = vmul.f32 %v2795, %v2811
      %v2824 = vmul.f32 %v2796, %v2812
      %v2825 = vmul.f32 %v2629, %v2811
      %v2826 = vmul.f32 %v2630, %v2812
      %v2827 = vmul.f32 %v2797, %v2811
      %v2828 = vmul.f32 %v2798, %v2812
      %v2829 = vmul.f32 %v2635, %v2811
      %v2830 = vmul.f32 %v2636, %v2812
      %v2831 = vmul.f32 %v2799, %v2811
      %v2832 = vmul.f32 %v2800, %v2812
      %v2833 = vmul.f32 %v2641, %v2811
      %v2834 = vmul.f32 %v2642, %v2812
      %v2835 = vmul.f32 %v2801, %v2811
      %v2836 = vmul.f32 %v2802, %v2812
      %v2837 = vmul.f32 %v2647, %v2811
      %v2838 = vmul.f32 %v2648, %v2812
      %v2839 = vmul.f32 %v2803, %v2811
      %v2840 = vmul.f32 %v2804, %v2812
      %v2841 = vmul.f32 %v2653, %v2811
      %v2842 = vmul.f32 %v2654, %v2812
      %v2843 = vmul.f32 %v2805, %v2811
      %v2844 = vmul.f32 %v2806, %v2812
      %v2845 = vmul.f32 %v2659, %v2811
      %v2846 = vmul.f32 %v2660, %v2812
      %v2847 = vmul.f32 %v2807, %v2811
      %v2848 = vmul.f32 %v2808, %v2812
      %v2849 = vmul.f32 %v2665, %v2811
      %v2850 = vmul.f32 %v2666, %v2812
      %v2851 = vmul.f32 %v2809, %v2811
      %v2852 = vmul.f32 %v2810, %v2812
      %v2893 = vrot.slane %v2813, 1
      %v2894 = vrot.slane %v2814, 1
      %v2895 = vrot.slane %v2815, 1
      %v2896 = vsel %vm2045, %v2893, %v2895
      %v2897 = vrot.slane %v2816, 1
      %v2898 = vsel %vm2045, %v2894, %v2897
      %v2899 = vrot.slane %v2817, 1
      %v2900 = vrot.slane %v2818, 1
      %v2901 = vrot.slane %v2819, 1
      %v2902 = vsel %vm2045, %v2899, %v2901
      %v2903 = vrot.slane %v2820, 1
      %v2904 = vsel %vm2045, %v2900, %v2903
      %v2905 = vrot.slane %v2821, 1
      %v2906 = vrot.slane %v2822, 1
      %v2907 = vrot.slane %v2823, 1
      %v2908 = vsel %vm2045, %v2905, %v2907
      %v2909 = vrot.slane %v2824, 1
      %v2910 = vsel %vm2045, %v2906, %v2909
      %v2911 = vrot.slane %v2825, 1
      %v2912 = vrot.slane %v2826, 1
      %v2913 = vrot.slane %v2827, 1
      %v2914 = vsel %vm2045, %v2911, %v2913
      %v2915 = vrot.slane %v2828, 1
      %v2916 = vsel %vm2045, %v2912, %v2915
      %v2917 = vrot.slane %v2829, 1
      %v2918 = vrot.slane %v2830, 1
      %v2919 = vrot.slane %v2831, 1
      %v2920 = vsel %vm2045, %v2917, %v2919
      %v2921 = vrot.slane %v2832, 1
      %v2922 = vsel %vm2045, %v2918, %v2921
      %v2923 = vrot.slane %v2833, 1
      %v2924 = vrot.slane %v2834, 1
      %v2925 = vrot.slane %v2835, 1
      %v2926 = vsel %vm2045, %v2923, %v2925
      %v2927 = vrot.slane %v2836, 1
      %v2928 = vsel %vm2045, %v2924, %v2927
      %v2929 = vrot.slane %v2837, 1
      %v2930 = vrot.slane %v2838, 1
      %v2931 = vrot.slane %v2839, 1
      %v2932 = vsel %vm2045, %v2929, %v2931
      %v2933 = vrot.slane %v2840, 1
      %v2934 = vsel %vm2045, %v2930, %v2933
      %v2935 = vrot.slane %v2841, 1
      %v2936 = vrot.slane %v2842, 1
      %v2937 = vrot.slane %v2843, 1
      %v2938 = vsel %vm2045, %v2935, %v2937
      %v2939 = vrot.slane %v2844, 1
      %v2940 = vsel %vm2045, %v2936, %v2939
      %v2941 = vrot.slane %v2845, 1
      %v2942 = vrot.slane %v2846, 1
      %v2943 = vrot.slane %v2847, 1
      %v2944 = vsel %vm2045, %v2941, %v2943
      %v2945 = vrot.slane %v2848, 1
      %v2946 = vsel %vm2045, %v2942, %v2945
      %v2947 = vrot.slane %v2849, 1
      %v2948 = vrot.slane %v2850, 1
      %v2949 = vrot.slane %v2851, 1
      %v2950 = vsel %vm2045, %v2947, %v2949
      %v2951 = vrot.slane %v2852, 1
      %v2952 = vsel %vm2045, %v2948, %v2951
      %v3013 = vadd.f32 %v2731, %v2893
      %v3014 = vadd.f32 %v2732, %v2894
      %v3015 = vadd.f32 %v2733, %v2896
      %v3016 = vadd.f32 %v2734, %v2898
      %v3017 = vadd.f32 %v2735, %v2895
      %v3018 = vadd.f32 %v2736, %v2897
      %v3019 = vadd.f32 %v2737, %v2899
      %v3020 = vadd.f32 %v2738, %v2900
      %v3021 = vadd.f32 %v2739, %v2902
      %v3022 = vadd.f32 %v2740, %v2904
      %v3023 = vadd.f32 %v2741, %v2901
      %v3024 = vadd.f32 %v2742, %v2903
      %v3025 = vadd.f32 %v2743, %v2905
      %v3026 = vadd.f32 %v2744, %v2906
      %v3027 = vadd.f32 %v2745, %v2908
      %v3028 = vadd.f32 %v2746, %v2910
      %v3029 = vadd.f32 %v2747, %v2907
      %v3030 = vadd.f32 %v2748, %v2909
      %v3031 = vadd.f32 %v2749, %v2911
      %v3032 = vadd.f32 %v2750, %v2912
      %v3033 = vadd.f32 %v2751, %v2914
      %v3034 = vadd.f32 %v2752, %v2916
      %v3035 = vadd.f32 %v2753, %v2913
      %v3036 = vadd.f32 %v2754, %v2915
      %v3037 = vadd.f32 %v2755, %v2917
      %v3038 = vadd.f32 %v2756, %v2918
      %v3039 = vadd.f32 %v2757, %v2920
      %v3040 = vadd.f32 %v2758, %v2922
      %v3041 = vadd.f32 %v2759, %v2919
      %v3042 = vadd.f32 %v2760, %v2921
      %v3043 = vadd.f32 %v2761, %v2923
      %v3044 = vadd.f32 %v2762, %v2924
      %v3045 = vadd.f32 %v2763, %v2926
      %v3046 = vadd.f32 %v2764, %v2928
      %v3047 = vadd.f32 %v2765, %v2925
      %v3048 = vadd.f32 %v2766, %v2927
      %v3049 = vadd.f32 %v2767, %v2929
      %v3050 = vadd.f32 %v2768, %v2930
      %v3051 = vadd.f32 %v2769, %v2932
      %v3052 = vadd.f32 %v2770, %v2934
      %v3053 = vadd.f32 %v2771, %v2931
      %v3054 = vadd.f32 %v2772, %v2933
      %v3055 = vadd.f32 %v2773, %v2935
      %v3056 = vadd.f32 %v2774, %v2936
      %v3057 = vadd.f32 %v2775, %v2938
      %v3058 = vadd.f32 %v2776, %v2940
      %v3059 = vadd.f32 %v2777, %v2937
      %v3060 = vadd.f32 %v2778, %v2939
      %v3061 = vadd.f32 %v2779, %v2941
      %v3062 = vadd.f32 %v2780, %v2942
      %v3063 = vadd.f32 %v2781, %v2944
      %v3064 = vadd.f32 %v2782, %v2946
      %v3065 = vadd.f32 %v2783, %v2943
      %v3066 = vadd.f32 %v2784, %v2945
      %v3067 = vadd.f32 %v2785, %v2947
      %v3068 = vadd.f32 %v2786, %v2948
      %v3069 = vadd.f32 %v2787, %v2950
      %v3070 = vadd.f32 %v2788, %v2952
      %v3071 = vadd.f32 %v2789, %v2949
      %v3072 = vadd.f32 %v2790, %v2951
      %v3073 = vld [vmem:[%s712 + $0x10] sm:$0xfe]
      %v3074 = vld [vmem:[%s712 + $0x18] sm:$0xfe]
      %v3075 = vld [vmem:[%s712 + $0x30] sm:$0x1]
      %v3076 = vld [vmem:[%s712 + $0x38] sm:$0x1]
      %v3077 = vld [vmem:[%s712 + $0x50] sm:$0xfe]
      %v3078 = vld [vmem:[%s712 + $0x58] sm:$0xfe]
      %v3079 = vld [vmem:[%s712 + $0x70] sm:$0x1]
      %v3080 = vld [vmem:[%s712 + $0x78] sm:$0x1]
      %v3081 = vld [vmem:[%s712 + $0x90] sm:$0xfe]
      %v3082 = vld [vmem:[%s712 + $0x98] sm:$0xfe]
      %v3083 = vld [vmem:[%s712 + $0xb0] sm:$0x1]
      %v3084 = vld [vmem:[%s712 + $0xb8] sm:$0x1]
      %v3085 = vld [vmem:[%s712 + $0xd0] sm:$0xfe]
      %v3086 = vld [vmem:[%s712 + $0xd8] sm:$0xfe]
      %v3087 = vld [vmem:[%s712 + $0xf0] sm:$0x1]
      %v3088 = vld [vmem:[%s712 + $0xf8] sm:$0x1]
      %v3089 = vld [vmem:[%s712 + $0x110] sm:$0xfe]
      %v3090 = vld [vmem:[%s712 + $0x118] sm:$0xfe]
      %v3091 = vld [vmem:[%s712 + $0x130] sm:$0x1]
      %v3092 = vld [vmem:[%s712 + $0x138] sm:$0x1]
      %v3093 = vld [vmem:[%s712 + $0x150] sm:$0xfe]
      %v3094 = vld [vmem:[%s712 + $0x158] sm:$0xfe]
      %v3095 = vld [vmem:[%s712 + $0x170] sm:$0x1]
      %v3096 = vld [vmem:[%s712 + $0x178] sm:$0x1]
      %v3097 = vld [vmem:[%s712 + $0x190] sm:$0xfe]
      %v3098 = vld [vmem:[%s712 + $0x198] sm:$0xfe]
      %v3099 = vld [vmem:[%s712 + $0x1b0] sm:$0x1]
      %v3100 = vld [vmem:[%s712 + $0x1b8] sm:$0x1]
      %v3101 = vld [vmem:[%s712 + $0x1d0] sm:$0xfe]
      %v3102 = vld [vmem:[%s712 + $0x1d8] sm:$0xfe]
      %v3103 = vld [vmem:[%s712 + $0x1f0] sm:$0x1]
      %v3104 = vld [vmem:[%s712 + $0x1f8] sm:$0x1]
      %v3105 = vld [vmem:[%s712 + $0x210] sm:$0xfe]
      %v3106 = vld [vmem:[%s712 + $0x218] sm:$0xfe]
      %v3107 = vld [vmem:[%s712 + $0x230] sm:$0x1]
      %v3108 = vld [vmem:[%s712 + $0x238] sm:$0x1]
      %v3109 = vld [vmem:[%s712 + $0x250] sm:$0xfe]
      %v3110 = vld [vmem:[%s712 + $0x258] sm:$0xfe]
      %v3111 = vld [vmem:[%s712 + $0x270] sm:$0x1]
      %v3112 = vld [vmem:[%s712 + $0x278] sm:$0x1]
      %v3113 = vperm.slane %v1816, 5
      %v3114 = vperm.slane %v1817, 5
      %v3115 = vmul.f32 %v3073, %v3113
      %v3116 = vmul.f32 %v3074, %v3114
      %v3117 = vmul.f32 %v2791, %v3113
      %v3118 = vmul.f32 %v2792, %v3114
      %v3119 = vmul.f32 %v3075, %v3113
      %v3120 = vmul.f32 %v3076, %v3114
      %v3121 = vmul.f32 %v3077, %v3113
      %v3122 = vmul.f32 %v3078, %v3114
      %v3123 = vmul.f32 %v2793, %v3113
      %v3124 = vmul.f32 %v2794, %v3114
      %v3125 = vmul.f32 %v3079, %v3113
      %v3126 = vmul.f32 %v3080, %v3114
      %v3127 = vmul.f32 %v3081, %v3113
      %v3128 = vmul.f32 %v3082, %v3114
      %v3129 = vmul.f32 %v2795, %v3113
      %v3130 = vmul.f32 %v2796, %v3114
      %v3131 = vmul.f32 %v3083, %v3113
      %v3132 = vmul.f32 %v3084, %v3114
      %v3133 = vmul.f32 %v3085, %v3113
      %v3134 = vmul.f32 %v3086, %v3114
      %v3135 = vmul.f32 %v2797, %v3113
      %v3136 = vmul.f32 %v2798, %v3114
      %v3137 = vmul.f32 %v3087, %v3113
      %v3138 = vmul.f32 %v3088, %v3114
      %v3139 = vmul.f32 %v3089, %v3113
      %v3140 = vmul.f32 %v3090, %v3114
      %v3141 = vmul.f32 %v2799, %v3113
      %v3142 = vmul.f32 %v2800, %v3114
      %v3143 = vmul.f32 %v3091, %v3113
      %v3144 = vmul.f32 %v3092, %v3114
      %v3145 = vmul.f32 %v3093, %v3113
      %v3146 = vmul.f32 %v3094, %v3114
      %v3147 = vmul.f32 %v2801, %v3113
      %v3148 = vmul.f32 %v2802, %v3114
      %v3149 = vmul.f32 %v3095, %v3113
      %v3150 = vmul.f32 %v3096, %v3114
      %v3151 = vmul.f32 %v3097, %v3113
      %v3152 = vmul.f32 %v3098, %v3114
      %v3153 = vmul.f32 %v2803, %v3113
      %v3154 = vmul.f32 %v2804, %v3114
      %v3155 = vmul.f32 %v3099, %v3113
      %v3156 = vmul.f32 %v3100, %v3114
      %v3157 = vmul.f32 %v3101, %v3113
      %v3158 = vmul.f32 %v3102, %v3114
      %v3159 = vmul.f32 %v2805, %v3113
      %v3160 = vmul.f32 %v2806, %v3114
      %v3161 = vmul.f32 %v3103, %v3113
      %v3162 = vmul.f32 %v3104, %v3114
      %v3163 = vmul.f32 %v3105, %v3113
      %v3164 = vmul.f32 %v3106, %v3114
      %v3165 = vmul.f32 %v2807, %v3113
      %v3166 = vmul.f32 %v2808, %v3114
      %v3167 = vmul.f32 %v3107, %v3113
      %v3168 = vmul.f32 %v3108, %v3114
      %v3169 = vmul.f32 %v3109, %v3113
      %v3170 = vmul.f32 %v3110, %v3114
      %v3171 = vmul.f32 %v2809, %v3113
      %v3172 = vmul.f32 %v2810, %v3114
      %v3173 = vmul.f32 %v3111, %v3113
      %v3174 = vmul.f32 %v3112, %v3114
      %v3235 = vrot.slane %v3115, 2
      %v3236 = vrot.slane %v3116, 2
      %v3237 = vrot.slane %v3117, 2
      %v3238 = vsel %vm2388, %v3235, %v3237
      %v3239 = vrot.slane %v3118, 2
      %v3240 = vsel %vm2388, %v3236, %v3239
      %v3241 = vrot.slane %v3119, 2
      %v3242 = vsel %vm2388, %v3237, %v3241
      %v3243 = vrot.slane %v3120, 2
      %v3244 = vsel %vm2388, %v3239, %v3243
      %v3245 = vrot.slane %v3121, 2
      %v3246 = vrot.slane %v3122, 2
      %v3247 = vrot.slane %v3123, 2
      %v3248 = vsel %vm2388, %v3245, %v3247
      %v3249 = vrot.slane %v3124, 2
      %v3250 = vsel %vm2388, %v3246, %v3249
      %v3251 = vrot.slane %v3125, 2
      %v3252 = vsel %vm2388, %v3247, %v3251
      %v3253 = vrot.slane %v3126, 2
      %v3254 = vsel %vm2388, %v3249, %v3253
      %v3255 = vrot.slane %v3127, 2
      %v3256 = vrot.slane %v3128, 2
      %v3257 = vrot.slane %v3129, 2
      %v3258 = vsel %vm2388, %v3255, %v3257
      %v3259 = vrot.slane %v3130, 2
      %v3260 = vsel %vm2388, %v3256, %v3259
      %v3261 = vrot.slane %v3131, 2
      %v3262 = vsel %vm2388, %v3257, %v3261
      %v3263 = vrot.slane %v3132, 2
      %v3264 = vsel %vm2388, %v3259, %v3263
      %v3265 = vrot.slane %v3133, 2
      %v3266 = vrot.slane %v3134, 2
      %v3267 = vrot.slane %v3135, 2
      %v3268 = vsel %vm2388, %v3265, %v3267
      %v3269 = vrot.slane %v3136, 2
      %v3270 = vsel %vm2388, %v3266, %v3269
      %v3271 = vrot.slane %v3137, 2
      %v3272 = vsel %vm2388, %v3267, %v3271
      %v3273 = vrot.slane %v3138, 2
      %v3274 = vsel %vm2388, %v3269, %v3273
      %v3275 = vrot.slane %v3139, 2
      %v3276 = vrot.slane %v3140, 2
      %v3277 = vrot.slane %v3141, 2
      %v3278 = vsel %vm2388, %v3275, %v3277
      %v3279 = vrot.slane %v3142, 2
      %v3280 = vsel %vm2388, %v3276, %v3279
      %v3281 = vrot.slane %v3143, 2
      %v3282 = vsel %vm2388, %v3277, %v3281
      %v3283 = vrot.slane %v3144, 2
      %v3284 = vsel %vm2388, %v3279, %v3283
      %v3285 = vrot.slane %v3145, 2
      %v3286 = vrot.slane %v3146, 2
      %v3287 = vrot.slane %v3147, 2
      %v3288 = vsel %vm2388, %v3285, %v3287
      %v3289 = vrot.slane %v3148, 2
      %v3290 = vsel %vm2388, %v3286, %v3289
      %v3291 = vrot.slane %v3149, 2
      %v3292 = vsel %vm2388, %v3287, %v3291
      %v3293 = vrot.slane %v3150, 2
      %v3294 = vsel %vm2388, %v3289, %v3293
      %v3295 = vrot.slane %v3151, 2
      %v3296 = vrot.slane %v3152, 2
      %v3297 = vrot.slane %v3153, 2
      %v3298 = vsel %vm2388, %v3295, %v3297
      %v3299 = vrot.slane %v3154, 2
      %v3300 = vsel %vm2388, %v3296, %v3299
      %v3301 = vrot.slane %v3155, 2
      %v3302 = vsel %vm2388, %v3297, %v3301
      %v3303 = vrot.slane %v3156, 2
      %v3304 = vsel %vm2388, %v3299, %v3303
      %v3305 = vrot.slane %v3157, 2
      %v3306 = vrot.slane %v3158, 2
      %v3307 = vrot.slane %v3159, 2
      %v3308 = vsel %vm2388, %v3305, %v3307
      %v3309 = vrot.slane %v3160, 2
      %v3310 = vsel %vm2388, %v3306, %v3309
      %v3311 = vrot.slane %v3161, 2
      %v3312 = vsel %vm2388, %v3307, %v3311
      %v3313 = vrot.slane %v3162, 2
      %v3314 = vsel %vm2388, %v3309, %v3313
      %v3315 = vrot.slane %v3163, 2
      %v3316 = vrot.slane %v3164, 2
      %v3317 = vrot.slane %v3165, 2
      %v3318 = vsel %vm2388, %v3315, %v3317
      %v3319 = vrot.slane %v3166, 2
      %v3320 = vsel %vm2388, %v3316, %v3319
      %v3321 = vrot.slane %v3167, 2
      %v3322 = vsel %vm2388, %v3317, %v3321
      %v3323 = vrot.slane %v3168, 2
      %v3324 = vsel %vm2388, %v3319, %v3323
      %v3325 = vrot.slane %v3169, 2
      %v3326 = vrot.slane %v3170, 2
      %v3327 = vrot.slane %v3171, 2
      %v3328 = vsel %vm2388, %v3325, %v3327
      %v3329 = vrot.slane %v3172, 2
      %v3330 = vsel %vm2388, %v3326, %v3329
      %v3331 = vrot.slane %v3173, 2
      %v3332 = vsel %vm2388, %v3327, %v3331
      %v3333 = vrot.slane %v3174, 2
      %v3334 = vsel %vm2388, %v3329, %v3333
      %v3395 = vadd.f32 %v3013, %v3235
      %v3396 = vadd.f32 %v3014, %v3236
      %v3397 = vadd.f32 %v3015, %v3238
      %v3398 = vadd.f32 %v3016, %v3240
      %v3399 = vadd.f32 %v3017, %v3242
      %v3400 = vadd.f32 %v3018, %v3244
      %v3401 = vadd.f32 %v3019, %v3245
      %v3402 = vadd.f32 %v3020, %v3246
      %v3403 = vadd.f32 %v3021, %v3248
      %v3404 = vadd.f32 %v3022, %v3250
      %v3405 = vadd.f32 %v3023, %v3252
      %v3406 = vadd.f32 %v3024, %v3254
      %v3407 = vadd.f32 %v3025, %v3255
      %v3408 = vadd.f32 %v3026, %v3256
      %v3409 = vadd.f32 %v3027, %v3258
      %v3410 = vadd.f32 %v3028, %v3260
      %v3411 = vadd.f32 %v3029, %v3262
      %v3412 = vadd.f32 %v3030, %v3264
      %v3413 = vadd.f32 %v3031, %v3265
      %v3414 = vadd.f32 %v3032, %v3266
      %v3415 = vadd.f32 %v3033, %v3268
      %v3416 = vadd.f32 %v3034, %v3270
      %v3417 = vadd.f32 %v3035, %v3272
      %v3418 = vadd.f32 %v3036, %v3274
      %v3419 = vadd.f32 %v3037, %v3275
      %v3420 = vadd.f32 %v3038, %v3276
      %v3421 = vadd.f32 %v3039, %v3278
      %v3422 = vadd.f32 %v3040, %v3280
      %v3423 = vadd.f32 %v3041, %v3282
      %v3424 = vadd.f32 %v3042, %v3284
      %v3425 = vadd.f32 %v3043, %v3285
      %v3426 = vadd.f32 %v3044, %v3286
      %v3427 = vadd.f32 %v3045, %v3288
      %v3428 = vadd.f32 %v3046, %v3290
      %v3429 = vadd.f32 %v3047, %v3292
      %v3430 = vadd.f32 %v3048, %v3294
      %v3431 = vadd.f32 %v3049, %v3295
      %v3432 = vadd.f32 %v3050, %v3296
      %v3433 = vadd.f32 %v3051, %v3298
      %v3434 = vadd.f32 %v3052, %v3300
      %v3435 = vadd.f32 %v3053, %v3302
      %v3436 = vadd.f32 %v3054, %v3304
      %v3437 = vadd.f32 %v3055, %v3305
      %v3438 = vadd.f32 %v3056, %v3306
      %v3439 = vadd.f32 %v3057, %v3308
      %v3440 = vadd.f32 %v3058, %v3310
      %v3441 = vadd.f32 %v3059, %v3312
      %v3442 = vadd.f32 %v3060, %v3314
      %v3443 = vadd.f32 %v3061, %v3315
      %v3444 = vadd.f32 %v3062, %v3316
      %v3445 = vadd.f32 %v3063, %v3318
      %v3446 = vadd.f32 %v3064, %v3320
      %v3447 = vadd.f32 %v3065, %v3322
      %v3448 = vadd.f32 %v3066, %v3324
      %v3449 = vadd.f32 %v3067, %v3325
      %v3450 = vadd.f32 %v3068, %v3326
      %v3451 = vadd.f32 %v3069, %v3328
      %v3452 = vadd.f32 %v3070, %v3330
      %v3453 = vadd.f32 %v3071, %v3332
      %v3454 = vadd.f32 %v3072, %v3334
      %v3455 = vld [vmem:[%s770] sm:$0x80]
      %v3456 = vld [vmem:[%s770 + $0x8] sm:$0x80]
      %v3457 = vld [vmem:[%s770 + $0x10] sm:$0xff]
      %v3458 = vld [vmem:[%s770 + $0x18] sm:$0xff]
      %v3459 = vld [vmem:[%s770 + $0x20] sm:$0x7f]
      %v3460 = vld [vmem:[%s770 + $0x28] sm:$0x7f]
      %v3461 = vld [vmem:[%s770 + $0x40] sm:$0x80]
      %v3462 = vld [vmem:[%s770 + $0x48] sm:$0x80]
      %v3463 = vld [vmem:[%s770 + $0x50] sm:$0xff]
      %v3464 = vld [vmem:[%s770 + $0x58] sm:$0xff]
      %v3465 = vld [vmem:[%s770 + $0x60] sm:$0x7f]
      %v3466 = vld [vmem:[%s770 + $0x68] sm:$0x7f]
      %v3467 = vld [vmem:[%s770 + $0x80] sm:$0x80]
      %v3468 = vld [vmem:[%s770 + $0x88] sm:$0x80]
      %v3469 = vld [vmem:[%s770 + $0x90] sm:$0xff]
      %v3470 = vld [vmem:[%s770 + $0x98] sm:$0xff]
      %v3471 = vld [vmem:[%s770 + $0xa0] sm:$0x7f]
      %v3472 = vld [vmem:[%s770 + $0xa8] sm:$0x7f]
      %v3473 = vld [vmem:[%s770 + $0xc0] sm:$0x80]
      %v3474 = vld [vmem:[%s770 + $0xc8] sm:$0x80]
      %v3475 = vld [vmem:[%s770 + $0xd0] sm:$0xff]
      %v3476 = vld [vmem:[%s770 + $0xd8] sm:$0xff]
      %v3477 = vld [vmem:[%s770 + $0xe0] sm:$0x7f]
      %v3478 = vld [vmem:[%s770 + $0xe8] sm:$0x7f]
      %v3479 = vld [vmem:[%s770 + $0x100] sm:$0x80]
      %v3480 = vld [vmem:[%s770 + $0x108] sm:$0x80]
      %v3481 = vld [vmem:[%s770 + $0x110] sm:$0xff]
      %v3482 = vld [vmem:[%s770 + $0x118] sm:$0xff]
      %v3483 = vld [vmem:[%s770 + $0x120] sm:$0x7f]
      %v3484 = vld [vmem:[%s770 + $0x128] sm:$0x7f]
      %v3485 = vld [vmem:[%s770 + $0x140] sm:$0x80]
      %v3486 = vld [vmem:[%s770 + $0x148] sm:$0x80]
      %v3487 = vld [vmem:[%s770 + $0x150] sm:$0xff]
      %v3488 = vld [vmem:[%s770 + $0x158] sm:$0xff]
      %v3489 = vld [vmem:[%s770 + $0x160] sm:$0x7f]
      %v3490 = vld [vmem:[%s770 + $0x168] sm:$0x7f]
      %v3491 = vld [vmem:[%s770 + $0x180] sm:$0x80]
      %v3492 = vld [vmem:[%s770 + $0x188] sm:$0x80]
      %v3493 = vld [vmem:[%s770 + $0x190] sm:$0xff]
      %v3494 = vld [vmem:[%s770 + $0x198] sm:$0xff]
      %v3495 = vld [vmem:[%s770 + $0x1a0] sm:$0x7f]
      %v3496 = vld [vmem:[%s770 + $0x1a8] sm:$0x7f]
      %v3497 = vld [vmem:[%s770 + $0x1c0] sm:$0x80]
      %v3498 = vld [vmem:[%s770 + $0x1c8] sm:$0x80]
      %v3499 = vld [vmem:[%s770 + $0x1d0] sm:$0xff]
      %v3500 = vld [vmem:[%s770 + $0x1d8] sm:$0xff]
      %v3501 = vld [vmem:[%s770 + $0x1e0] sm:$0x7f]
      %v3502 = vld [vmem:[%s770 + $0x1e8] sm:$0x7f]
      %v3503 = vld [vmem:[%s770 + $0x200] sm:$0x80]
      %v3504 = vld [vmem:[%s770 + $0x208] sm:$0x80]
      %v3505 = vld [vmem:[%s770 + $0x210] sm:$0xff]
      %v3506 = vld [vmem:[%s770 + $0x218] sm:$0xff]
      %v3507 = vld [vmem:[%s770 + $0x220] sm:$0x7f]
      %v3508 = vld [vmem:[%s770 + $0x228] sm:$0x7f]
      %v3509 = vld [vmem:[%s770 + $0x240] sm:$0x80]
      %v3510 = vld [vmem:[%s770 + $0x248] sm:$0x80]
      %v3511 = vld [vmem:[%s770 + $0x250] sm:$0xff]
      %v3512 = vld [vmem:[%s770 + $0x258] sm:$0xff]
      %v3513 = vld [vmem:[%s770 + $0x260] sm:$0x7f]
      %v3514 = vld [vmem:[%s770 + $0x268] sm:$0x7f]
      %v3515 = vperm.slane %v1816, 6
      %v3516 = vperm.slane %v1817, 6
      %v3517 = vmul.f32 %v3455, %v3515
      %v3518 = vmul.f32 %v3456, %v3516
      %v3519 = vmul.f32 %v3457, %v3515
      %v3520 = vmul.f32 %v3458, %v3516
      %v3521 = vmul.f32 %v3459, %v3515
      %v3522 = vmul.f32 %v3460, %v3516
      %v3523 = vmul.f32 %v3461, %v3515
      %v3524 = vmul.f32 %v3462, %v3516
      %v3525 = vmul.f32 %v3463, %v3515
      %v3526 = vmul.f32 %v3464, %v3516
      %v3527 = vmul.f32 %v3465, %v3515
      %v3528 = vmul.f32 %v3466, %v3516
      %v3529 = vmul.f32 %v3467, %v3515
      %v3530 = vmul.f32 %v3468, %v3516
      %v3531 = vmul.f32 %v3469, %v3515
      %v3532 = vmul.f32 %v3470, %v3516
      %v3533 = vmul.f32 %v3471, %v3515
      %v3534 = vmul.f32 %v3472, %v3516
      %v3535 = vmul.f32 %v3473, %v3515
      %v3536 = vmul.f32 %v3474, %v3516
      %v3537 = vmul.f32 %v3475, %v3515
      %v3538 = vmul.f32 %v3476, %v3516
      %v3539 = vmul.f32 %v3477, %v3515
      %v3540 = vmul.f32 %v3478, %v3516
      %v3541 = vmul.f32 %v3479, %v3515
      %v3542 = vmul.f32 %v3480, %v3516
      %v3543 = vmul.f32 %v3481, %v3515
      %v3544 = vmul.f32 %v3482, %v3516
      %v3545 = vmul.f32 %v3483, %v3515
      %v3546 = vmul.f32 %v3484, %v3516
      %v3547 = vmul.f32 %v3485, %v3515
      %v3548 = vmul.f32 %v3486, %v3516
      %v3549 = vmul.f32 %v3487, %v3515
      %v3550 = vmul.f32 %v3488, %v3516
      %v3551 = vmul.f32 %v3489, %v3515
      %v3552 = vmul.f32 %v3490, %v3516
      %v3553 = vmul.f32 %v3491, %v3515
      %v3554 = vmul.f32 %v3492, %v3516
      %v3555 = vmul.f32 %v3493, %v3515
      %v3556 = vmul.f32 %v3494, %v3516
      %v3557 = vmul.f32 %v3495, %v3515
      %v3558 = vmul.f32 %v3496, %v3516
      %v3559 = vmul.f32 %v3497, %v3515
      %v3560 = vmul.f32 %v3498, %v3516
      %v3561 = vmul.f32 %v3499, %v3515
      %v3562 = vmul.f32 %v3500, %v3516
      %v3563 = vmul.f32 %v3501, %v3515
      %v3564 = vmul.f32 %v3502, %v3516
      %v3565 = vmul.f32 %v3503, %v3515
      %v3566 = vmul.f32 %v3504, %v3516
      %v3567 = vmul.f32 %v3505, %v3515
      %v3568 = vmul.f32 %v3506, %v3516
      %v3569 = vmul.f32 %v3507, %v3515
      %v3570 = vmul.f32 %v3508, %v3516
      %v3571 = vmul.f32 %v3509, %v3515
      %v3572 = vmul.f32 %v3510, %v3516
      %v3573 = vmul.f32 %v3511, %v3515
      %v3574 = vmul.f32 %v3512, %v3516
      %v3575 = vmul.f32 %v3513, %v3515
      %v3576 = vmul.f32 %v3514, %v3516
      %v3577 = vadd.f32 %v3395, %v3517
      %v3578 = vadd.f32 %v3396, %v3518
      %v3579 = vadd.f32 %v3397, %v3519
      %v3580 = vadd.f32 %v3398, %v3520
      %v3581 = vadd.f32 %v3399, %v3521
      %v3582 = vadd.f32 %v3400, %v3522
      %v3583 = vadd.f32 %v3401, %v3523
      %v3584 = vadd.f32 %v3402, %v3524
      %v3585 = vadd.f32 %v3403, %v3525
      %v3586 = vadd.f32 %v3404, %v3526
      %v3587 = vadd.f32 %v3405, %v3527
      %v3588 = vadd.f32 %v3406, %v3528
      %v3589 = vadd.f32 %v3407, %v3529
      %v3590 = vadd.f32 %v3408, %v3530
      %v3591 = vadd.f32 %v3409, %v3531
      %v3592 = vadd.f32 %v3410, %v3532
      %v3593 = vadd.f32 %v3411, %v3533
      %v3594 = vadd.f32 %v3412, %v3534
      %v3595 = vadd.f32 %v3413, %v3535
      %v3596 = vadd.f32 %v3414, %v3536
      %v3597 = vadd.f32 %v3415, %v3537
      %v3598 = vadd.f32 %v3416, %v3538
      %v3599 = vadd.f32 %v3417, %v3539
      %v3600 = vadd.f32 %v3418, %v3540
      %v3601 = vadd.f32 %v3419, %v3541
      %v3602 = vadd.f32 %v3420, %v3542
      %v3603 = vadd.f32 %v3421, %v3543
      %v3604 = vadd.f32 %v3422, %v3544
      %v3605 = vadd.f32 %v3423, %v3545
      %v3606 = vadd.f32 %v3424, %v3546
      %v3607 = vadd.f32 %v3425, %v3547
      %v3608 = vadd.f32 %v3426, %v3548
      %v3609 = vadd.f32 %v3427, %v3549
      %v3610 = vadd.f32 %v3428, %v3550
      %v3611 = vadd.f32 %v3429, %v3551
      %v3612 = vadd.f32 %v3430, %v3552
      %v3613 = vadd.f32 %v3431, %v3553
      %v3614 = vadd.f32 %v3432, %v3554
      %v3615 = vadd.f32 %v3433, %v3555
      %v3616 = vadd.f32 %v3434, %v3556
      %v3617 = vadd.f32 %v3435, %v3557
      %v3618 = vadd.f32 %v3436, %v3558
      %v3619 = vadd.f32 %v3437, %v3559
      %v3620 = vadd.f32 %v3438, %v3560
      %v3621 = vadd.f32 %v3439, %v3561
      %v3622 = vadd.f32 %v3440, %v3562
      %v3623 = vadd.f32 %v3441, %v3563
      %v3624 = vadd.f32 %v3442, %v3564
      %v3625 = vadd.f32 %v3443, %v3565
      %v3626 = vadd.f32 %v3444, %v3566
      %v3627 = vadd.f32 %v3445, %v3567
      %v3628 = vadd.f32 %v3446, %v3568
      %v3629 = vadd.f32 %v3447, %v3569
      %v3630 = vadd.f32 %v3448, %v3570
      %v3631 = vadd.f32 %v3449, %v3571
      %v3632 = vadd.f32 %v3450, %v3572
      %v3633 = vadd.f32 %v3451, %v3573
      %v3634 = vadd.f32 %v3452, %v3574
      %v3635 = vadd.f32 %v3453, %v3575
      %v3636 = vadd.f32 %v3454, %v3576
      %v3637 = vld [vmem:[%s770 + $0x20] sm:$0xff]
      %v3638 = vld [vmem:[%s770 + $0x28] sm:$0xff]
      %v3639 = vld [vmem:[%s770 + $0x60] sm:$0xff]
      %v3640 = vld [vmem:[%s770 + $0x68] sm:$0xff]
      %v3641 = vld [vmem:[%s770 + $0xa0] sm:$0xff]
      %v3642 = vld [vmem:[%s770 + $0xa8] sm:$0xff]
      %v3643 = vld [vmem:[%s770 + $0xe0] sm:$0xff]
      %v3644 = vld [vmem:[%s770 + $0xe8] sm:$0xff]
      %v3645 = vld [vmem:[%s770 + $0x120] sm:$0xff]
      %v3646 = vld [vmem:[%s770 + $0x128] sm:$0xff]
      %v3647 = vld [vmem:[%s770 + $0x160] sm:$0xff]
      %v3648 = vld [vmem:[%s770 + $0x168] sm:$0xff]
      %v3649 = vld [vmem:[%s770 + $0x1a0] sm:$0xff]
      %v3650 = vld [vmem:[%s770 + $0x1a8] sm:$0xff]
      %v3651 = vld [vmem:[%s770 + $0x1e0] sm:$0xff]
      %v3652 = vld [vmem:[%s770 + $0x1e8] sm:$0xff]
      %v3653 = vld [vmem:[%s770 + $0x220] sm:$0xff]
      %v3654 = vld [vmem:[%s770 + $0x228] sm:$0xff]
      %v3655 = vld [vmem:[%s770 + $0x260] sm:$0xff]
      %v3656 = vld [vmem:[%s770 + $0x268] sm:$0xff]
      %v3657 = vperm.slane %v1816, 7
      %v3658 = vperm.slane %v1817, 7
      %v3659 = vmul.f32 %v3457, %v3657
      %v3660 = vmul.f32 %v3458, %v3658
      %v3661 = vmul.f32 %v3637, %v3657
      %v3662 = vmul.f32 %v3638, %v3658
      %v3663 = vmul.f32 %v3463, %v3657
      %v3664 = vmul.f32 %v3464, %v3658
      %v3665 = vmul.f32 %v3639, %v3657
      %v3666 = vmul.f32 %v3640, %v3658
      %v3667 = vmul.f32 %v3469, %v3657
      %v3668 = vmul.f32 %v3470, %v3658
      %v3669 = vmul.f32 %v3641, %v3657
      %v3670 = vmul.f32 %v3642, %v3658
      %v3671 = vmul.f32 %v3475, %v3657
      %v3672 = vmul.f32 %v3476, %v3658
      %v3673 = vmul.f32 %v3643, %v3657
      %v3674 = vmul.f32 %v3644, %v3658
      %v3675 = vmul.f32 %v3481, %v3657
      %v3676 = vmul.f32 %v3482, %v3658
      %v3677 = vmul.f32 %v3645, %v3657
      %v3678 = vmul.f32 %v3646, %v3658
      %v3679 = vmul.f32 %v3487, %v3657
      %v3680 = vmul.f32 %v3488, %v3658
      %v3681 = vmul.f32 %v3647, %v3657
      %v3682 = vmul.f32 %v3648, %v3658
      %v3683 = vmul.f32 %v3493, %v3657
      %v3684 = vmul.f32 %v3494, %v3658
      %v3685 = vmul.f32 %v3649, %v3657
      %v3686 = vmul.f32 %v3650, %v3658
      %v3687 = vmul.f32 %v3499, %v3657
      %v3688 = vmul.f32 %v3500, %v3658
      %v3689 = vmul.f32 %v3651, %v3657
      %v3690 = vmul.f32 %v3652, %v3658
      %v3691 = vmul.f32 %v3505, %v3657
      %v3692 = vmul.f32 %v3506, %v3658
      %v3693 = vmul.f32 %v3653, %v3657
      %v3694 = vmul.f32 %v3654, %v3658
      %v3695 = vmul.f32 %v3511, %v3657
      %v3696 = vmul.f32 %v3512, %v3658
      %v3697 = vmul.f32 %v3655, %v3657
      %v3698 = vmul.f32 %v3656, %v3658
      %v3739 = vrot.slane %v3659, 1
      %v3740 = vrot.slane %v3660, 1
      %v3741 = vrot.slane %v3661, 1
      %v3742 = vsel %vm2045, %v3739, %v3741
      %v3743 = vrot.slane %v3662, 1
      %v3744 = vsel %vm2045, %v3740, %v3743
      %v3745 = vrot.slane %v3663, 1
      %v3746 = vrot.slane %v3664, 1
      %v3747 = vrot.slane %v3665, 1
      %v3748 = vsel %vm2045, %v3745, %v3747
      %v3749 = vrot.slane %v3666, 1
      %v3750 = vsel %vm2045, %v3746, %v3749
      %v3751 = vrot.slane %v3667, 1
      %v3752 = vrot.slane %v3668, 1
      %v3753 = vrot.slane %v3669, 1
      %v3754 = vsel %vm2045, %v3751, %v3753
      %v3755 = vrot.slane %v3670, 1
      %v3756 = vsel %vm2045, %v3752, %v3755
      %v3757 = vrot.slane %v3671, 1
      %v3758 = vrot.slane %v3672, 1
      %v3759 = vrot.slane %v3673, 1
      %v3760 = vsel %vm2045, %v3757, %v3759
      %v3761 = vrot.slane %v3674, 1
      %v3762 = vsel %vm2045, %v3758, %v3761
      %v3763 = vrot.slane %v3675, 1
      %v3764 = vrot.slane %v3676, 1
      %v3765 = vrot.slane %v3677, 1
      %v3766 = vsel %vm2045, %v3763, %v3765
      %v3767 = vrot.slane %v3678, 1
      %v3768 = vsel %vm2045, %v3764, %v3767
      %v3769 = vrot.slane %v3679, 1
      %v3770 = vrot.slane %v3680, 1
      %v3771 = vrot.slane %v3681, 1
      %v3772 = vsel %vm2045, %v3769, %v3771
      %v3773 = vrot.slane %v3682, 1
      %v3774 = vsel %vm2045, %v3770, %v3773
      %v3775 = vrot.slane %v3683, 1
      %v3776 = vrot.slane %v3684, 1
      %v3777 = vrot.slane %v3685, 1
      %v3778 = vsel %vm2045, %v3775, %v3777
      %v3779 = vrot.slane %v3686, 1
      %v3780 = vsel %vm2045, %v3776, %v3779
      %v3781 = vrot.slane %v3687, 1
      %v3782 = vrot.slane %v3688, 1
      %v3783 = vrot.slane %v3689, 1
      %v3784 = vsel %vm2045, %v3781, %v3783
      %v3785 = vrot.slane %v3690, 1
      %v3786 = vsel %vm2045, %v3782, %v3785
      %v3787 = vrot.slane %v3691, 1
      %v3788 = vrot.slane %v3692, 1
      %v3789 = vrot.slane %v3693, 1
      %v3790 = vsel %vm2045, %v3787, %v3789
      %v3791 = vrot.slane %v3694, 1
      %v3792 = vsel %vm2045, %v3788, %v3791
      %v3793 = vrot.slane %v3695, 1
      %v3794 = vrot.slane %v3696, 1
      %v3795 = vrot.slane %v3697, 1
      %v3796 = vsel %vm2045, %v3793, %v3795
      %v3797 = vrot.slane %v3698, 1
      %v3798 = vsel %vm2045, %v3794, %v3797
      %v3859 = vadd.f32 %v3577, %v3739
      %v3860 = vadd.f32 %v3578, %v3740
      %v3861 = vadd.f32 %v3579, %v3742
      %v3862 = vadd.f32 %v3580, %v3744
      %v3863 = vadd.f32 %v3581, %v3741
      %v3864 = vadd.f32 %v3582, %v3743
      %v3865 = vadd.f32 %v3583, %v3745
      %v3866 = vadd.f32 %v3584, %v3746
      %v3867 = vadd.f32 %v3585, %v3748
      %v3868 = vadd.f32 %v3586, %v3750
      %v3869 = vadd.f32 %v3587, %v3747
      %v3870 = vadd.f32 %v3588, %v3749
      %v3871 = vadd.f32 %v3589, %v3751
      %v3872 = vadd.f32 %v3590, %v3752
      %v3873 = vadd.f32 %v3591, %v3754
      %v3874 = vadd.f32 %v3592, %v3756
      %v3875 = vadd.f32 %v3593, %v3753
      %v3876 = vadd.f32 %v3594, %v3755
      %v3877 = vadd.f32 %v3595, %v3757
      %v3878 = vadd.f32 %v3596, %v3758
      %v3879 = vadd.f32 %v3597, %v3760
      %v3880 = vadd.f32 %v3598, %v3762
      %v3881 = vadd.f32 %v3599, %v3759
      %v3882 = vadd.f32 %v3600, %v3761
      %v3883 = vadd.f32 %v3601, %v3763
      %v3884 = vadd.f32 %v3602, %v3764
      %v3885 = vadd.f32 %v3603, %v3766
      %v3886 = vadd.f32 %v3604, %v3768
      %v3887 = vadd.f32 %v3605, %v3765
      %v3888 = vadd.f32 %v3606, %v3767
      %v3889 = vadd.f32 %v3607, %v3769
      %v3890 = vadd.f32 %v3608, %v3770
      %v3891 = vadd.f32 %v3609, %v3772
      %v3892 = vadd.f32 %v3610, %v3774
      %v3893 = vadd.f32 %v3611, %v3771
      %v3894 = vadd.f32 %v3612, %v3773
      %v3895 = vadd.f32 %v3613, %v3775
      %v3896 = vadd.f32 %v3614, %v3776
      %v3897 = vadd.f32 %v3615, %v3778
      %v3898 = vadd.f32 %v3616, %v3780
      %v3899 = vadd.f32 %v3617, %v3777
      %v3900 = vadd.f32 %v3618, %v3779
      %v3901 = vadd.f32 %v3619, %v3781
      %v3902 = vadd.f32 %v3620, %v3782
      %v3903 = vadd.f32 %v3621, %v3784
      %v3904 = vadd.f32 %v3622, %v3786
      %v3905 = vadd.f32 %v3623, %v3783
      %v3906 = vadd.f32 %v3624, %v3785
      %v3907 = vadd.f32 %v3625, %v3787
      %v3908 = vadd.f32 %v3626, %v3788
      %v3909 = vadd.f32 %v3627, %v3790
      %v3910 = vadd.f32 %v3628, %v3792
      %v3911 = vadd.f32 %v3629, %v3789
      %v3912 = vadd.f32 %v3630, %v3791
      %v3913 = vadd.f32 %v3631, %v3793
      %v3914 = vadd.f32 %v3632, %v3794
      %v3915 = vadd.f32 %v3633, %v3796
      %v3916 = vadd.f32 %v3634, %v3798
      %v3917 = vadd.f32 %v3635, %v3795
      %v3918 = vadd.f32 %v3636, %v3797
      %v3919 = vld [vmem:[%s770 + $0x10] sm:$0xfe]
      %v3920 = vld [vmem:[%s770 + $0x18] sm:$0xfe]
      %v3921 = vld [vmem:[%s770 + $0x30] sm:$0x1]
      %v3922 = vld [vmem:[%s770 + $0x38] sm:$0x1]
      %v3923 = vld [vmem:[%s770 + $0x50] sm:$0xfe]
      %v3924 = vld [vmem:[%s770 + $0x58] sm:$0xfe]
      %v3925 = vld [vmem:[%s770 + $0x70] sm:$0x1]
      %v3926 = vld [vmem:[%s770 + $0x78] sm:$0x1]
      %v3927 = vld [vmem:[%s770 + $0x90] sm:$0xfe]
      %v3928 = vld [vmem:[%s770 + $0x98] sm:$0xfe]
      %v3929 = vld [vmem:[%s770 + $0xb0] sm:$0x1]
      %v3930 = vld [vmem:[%s770 + $0xb8] sm:$0x1]
      %v3931 = vld [vmem:[%s770 + $0xd0] sm:$0xfe]
      %v3932 = vld [vmem:[%s770 + $0xd8] sm:$0xfe]
      %v3933 = vld [vmem:[%s770 + $0xf0] sm:$0x1]
      %v3934 = vld [vmem:[%s770 + $0xf8] sm:$0x1]
      %v3935 = vld [vmem:[%s770 + $0x110] sm:$0xfe]
      %v3936 = vld [vmem:[%s770 + $0x118] sm:$0xfe]
      %v3937 = vld [vmem:[%s770 + $0x130] sm:$0x1]
      %v3938 = vld [vmem:[%s770 + $0x138] sm:$0x1]
      %v3939 = vld [vmem:[%s770 + $0x150] sm:$0xfe]
      %v3940 = vld [vmem:[%s770 + $0x158] sm:$0xfe]
      %v3941 = vld [vmem:[%s770 + $0x170] sm:$0x1]
      %v3942 = vld [vmem:[%s770 + $0x178] sm:$0x1]
      %v3943 = vld [vmem:[%s770 + $0x190] sm:$0xfe]
      %v3944 = vld [vmem:[%s770 + $0x198] sm:$0xfe]
      %v3945 = vld [vmem:[%s770 + $0x1b0] sm:$0x1]
      %v3946 = vld [vmem:[%s770 + $0x1b8] sm:$0x1]
      %v3947 = vld [vmem:[%s770 + $0x1d0] sm:$0xfe]
      %v3948 = vld [vmem:[%s770 + $0x1d8] sm:$0xfe]
      %v3949 = vld [vmem:[%s770 + $0x1f0] sm:$0x1]
      %v3950 = vld [vmem:[%s770 + $0x1f8] sm:$0x1]
      %v3951 = vld [vmem:[%s770 + $0x210] sm:$0xfe]
      %v3952 = vld [vmem:[%s770 + $0x218] sm:$0xfe]
      %v3953 = vld [vmem:[%s770 + $0x230] sm:$0x1]
      %v3954 = vld [vmem:[%s770 + $0x238] sm:$0x1]
      %v3955 = vld [vmem:[%s770 + $0x250] sm:$0xfe]
      %v3956 = vld [vmem:[%s770 + $0x258] sm:$0xfe]
      %v3957 = vld [vmem:[%s770 + $0x270] sm:$0x1]
      %v3958 = vld [vmem:[%s770 + $0x278] sm:$0x1]
      %v3959 = vperm.slane %v1818, 0
      %v3960 = vperm.slane %v1819, 0
      %v3961 = vmul.f32 %v3919, %v3959
      %v3962 = vmul.f32 %v3920, %v3960
      %v3963 = vmul.f32 %v3637, %v3959
      %v3964 = vmul.f32 %v3638, %v3960
      %v3965 = vmul.f32 %v3921, %v3959
      %v3966 = vmul.f32 %v3922, %v3960
      %v3967 = vmul.f32 %v3923, %v3959
      %v3968 = vmul.f32 %v3924, %v3960
      %v3969 = vmul.f32 %v3639, %v3959
      %v3970 = vmul.f32 %v3640, %v3960
      %v3971 = vmul.f32 %v3925, %v3959
      %v3972 = vmul.f32 %v3926, %v3960
      %v3973 = vmul.f32 %v3927, %v3959
      %v3974 = vmul.f32 %v3928, %v3960
      %v3975 = vmul.f32 %v3641, %v3959
      %v3976 = vmul.f32 %v3642, %v3960
      %v3977 = vmul.f32 %v3929, %v3959
      %v3978 = vmul.f32 %v3930, %v3960
      %v3979 = vmul.f32 %v3931, %v3959
      %v3980 = vmul.f32 %v3932, %v3960
      %v3981 = vmul.f32 %v3643, %v3959
      %v3982 = vmul.f32 %v3644, %v3960
      %v3983 = vmul.f32 %v3933, %v3959
      %v3984 = vmul.f32 %v3934, %v3960
      %v3985 = vmul.f32 %v3935, %v3959
      %v3986 = vmul.f32 %v3936, %v3960
      %v3987 = vmul.f32 %v3645, %v3959
      %v3988 = vmul.f32 %v3646, %v3960
      %v3989 = vmul.f32 %v3937, %v3959
      %v3990 = vmul.f32 %v3938, %v3960
      %v3991 = vmul.f32 %v3939, %v3959
      %v3992 = vmul.f32 %v3940, %v3960
      %v3993 = vmul.f32 %v3647, %v3959
      %v3994 = vmul.f32 %v3648, %v3960
      %v3995 = vmul.f32 %v3941, %v3959
      %v3996 = vmul.f32 %v3942, %v3960
      %v3997 = vmul.f32 %v3943, %v3959
      %v3998 = vmul.f32 %v3944, %v3960
      %v3999 = vmul.f32 %v3649, %v3959
      %v4000 = vmul.f32 %v3650, %v3960
      %v4001 = vmul.f32 %v3945, %v3959
      %v4002 = vmul.f32 %v3946, %v3960
      %v4003 = vmul.f32 %v3947, %v3959
      %v4004 = vmul.f32 %v3948, %v3960
      %v4005 = vmul.f32 %v3651, %v3959
      %v4006 = vmul.f32 %v3652, %v3960
      %v4007 = vmul.f32 %v3949, %v3959
      %v4008 = vmul.f32 %v3950, %v3960
      %v4009 = vmul.f32 %v3951, %v3959
      %v4010 = vmul.f32 %v3952, %v3960
      %v4011 = vmul.f32 %v3653, %v3959
      %v4012 = vmul.f32 %v3654, %v3960
      %v4013 = vmul.f32 %v3953, %v3959
      %v4014 = vmul.f32 %v3954, %v3960
      %v4015 = vmul.f32 %v3955, %v3959
      %v4016 = vmul.f32 %v3956, %v3960
      %v4017 = vmul.f32 %v3655, %v3959
      %v4018 = vmul.f32 %v3656, %v3960
      %v4019 = vmul.f32 %v3957, %v3959
      %v4020 = vmul.f32 %v3958, %v3960
      %v4081 = vrot.slane %v3961, 2
      %v4082 = vrot.slane %v3962, 2
      %v4083 = vrot.slane %v3963, 2
      %v4084 = vsel %vm2388, %v4081, %v4083
      %v4085 = vrot.slane %v3964, 2
      %v4086 = vsel %vm2388, %v4082, %v4085
      %v4087 = vrot.slane %v3965, 2
      %v4088 = vsel %vm2388, %v4083, %v4087
      %v4089 = vrot.slane %v3966, 2
      %v4090 = vsel %vm2388, %v4085, %v4089
      %v4091 = vrot.slane %v3967, 2
      %v4092 = vrot.slane %v3968, 2
      %v4093 = vrot.slane %v3969, 2
      %v4094 = vsel %vm2388, %v4091, %v4093
      %v4095 = vrot.slane %v3970, 2
      %v4096 = vsel %vm2388, %v4092, %v4095
      %v4097 = vrot.slane %v3971, 2
      %v4098 = vsel %vm2388, %v4093, %v4097
      %v4099 = vrot.slane %v3972, 2
      %v4100 = vsel %vm2388, %v4095, %v4099
      %v4101 = vrot.slane %v3973, 2
      %v4102 = vrot.slane %v3974, 2
      %v4103 = vrot.slane %v3975, 2
      %v4104 = vsel %vm2388, %v4101, %v4103
      %v4105 = vrot.slane %v3976, 2
      %v4106 = vsel %vm2388, %v4102, %v4105
      %v4107 = vrot.slane %v3977, 2
      %v4108 = vsel %vm2388, %v4103, %v4107
      %v4109 = vrot.slane %v3978, 2
      %v4110 = vsel %vm2388, %v4105, %v4109
      %v4111 = vrot.slane %v3979, 2
      %v4112 = vrot.slane %v3980, 2
      %v4113 = vrot.slane %v3981, 2
      %v4114 = vsel %vm2388, %v4111, %v4113
      %v4115 = vrot.slane %v3982, 2
      %v4116 = vsel %vm2388, %v4112, %v4115
      %v4117 = vrot.slane %v3983, 2
      %v4118 = vsel %vm2388, %v4113, %v4117
      %v4119 = vrot.slane %v3984, 2
      %v4120 = vsel %vm2388, %v4115, %v4119
      %v4121 = vrot.slane %v3985, 2
      %v4122 = vrot.slane %v3986, 2
      %v4123 = vrot.slane %v3987, 2
      %v4124 = vsel %vm2388, %v4121, %v4123
      %v4125 = vrot.slane %v3988, 2
      %v4126 = vsel %vm2388, %v4122, %v4125
      %v4127 = vrot.slane %v3989, 2
      %v4128 = vsel %vm2388, %v4123, %v4127
      %v4129 = vrot.slane %v3990, 2
      %v4130 = vsel %vm2388, %v4125, %v4129
      %v4131 = vrot.slane %v3991, 2
      %v4132 = vrot.slane %v3992, 2
      %v4133 = vrot.slane %v3993, 2
      %v4134 = vsel %vm2388, %v4131, %v4133
      %v4135 = vrot.slane %v3994, 2
      %v4136 = vsel %vm2388, %v4132, %v4135
      %v4137 = vrot.slane %v3995, 2
      %v4138 = vsel %vm2388, %v4133, %v4137
      %v4139 = vrot.slane %v3996, 2
      %v4140 = vsel %vm2388, %v4135, %v4139
      %v4141 = vrot.slane %v3997, 2
      %v4142 = vrot.slane %v3998, 2
      %v4143 = vrot.slane %v3999, 2
      %v4144 = vsel %vm2388, %v4141, %v4143
      %v4145 = vrot.slane %v4000, 2
      %v4146 = vsel %vm2388, %v4142, %v4145
      %v4147 = vrot.slane %v4001, 2
      %v4148 = vsel %vm2388, %v4143, %v4147
      %v4149 = vrot.slane %v4002, 2
      %v4150 = vsel %vm2388, %v4145, %v4149
      %v4151 = vrot.slane %v4003, 2
      %v4152 = vrot.slane %v4004, 2
      %v4153 = vrot.slane %v4005, 2
      %v4154 = vsel %vm2388, %v4151, %v4153
      %v4155 = vrot.slane %v4006, 2
      %v4156 = vsel %vm2388, %v4152, %v4155
      %v4157 = vrot.slane %v4007, 2
      %v4158 = vsel %vm2388, %v4153, %v4157
      %v4159 = vrot.slane %v4008, 2
      %v4160 = vsel %vm2388, %v4155, %v4159
      %v4161 = vrot.slane %v4009, 2
      %v4162 = vrot.slane %v4010, 2
      %v4163 = vrot.slane %v4011, 2
      %v4164 = vsel %vm2388, %v4161, %v4163
      %v4165 = vrot.slane %v4012, 2
      %v4166 = vsel %vm2388, %v4162, %v4165
      %v4167 = vrot.slane %v4013, 2
      %v4168 = vsel %vm2388, %v4163, %v4167
      %v4169 = vrot.slane %v4014, 2
      %v4170 = vsel %vm2388, %v4165, %v4169
      %v4171 = vrot.slane %v4015, 2
      %v4172 = vrot.slane %v4016, 2
      %v4173 = vrot.slane %v4017, 2
      %v4174 = vsel %vm2388, %v4171, %v4173
      %v4175 = vrot.slane %v4018, 2
      %v4176 = vsel %vm2388, %v4172, %v4175
      %v4177 = vrot.slane %v4019, 2
      %v4178 = vsel %vm2388, %v4173, %v4177
      %v4179 = vrot.slane %v4020, 2
      %v4180 = vsel %vm2388, %v4175, %v4179
      %v4241 = vadd.f32 %v3859, %v4081
      %v4242 = vadd.f32 %v3860, %v4082
      %v4243 = vadd.f32 %v3861, %v4084
      %v4244 = vadd.f32 %v3862, %v4086
      %v4245 = vadd.f32 %v3863, %v4088
      %v4246 = vadd.f32 %v3864, %v4090
      %v4247 = vadd.f32 %v3865, %v4091
      %v4248 = vadd.f32 %v3866, %v4092
      %v4249 = vadd.f32 %v3867, %v4094
      %v4250 = vadd.f32 %v3868, %v4096
      %v4251 = vadd.f32 %v3869, %v4098
      %v4252 = vadd.f32 %v3870, %v4100
      %v4253 = vadd.f32 %v3871, %v4101
      %v4254 = vadd.f32 %v3872, %v4102
      %v4255 = vadd.f32 %v3873, %v4104
      %v4256 = vadd.f32 %v3874, %v4106
      %v4257 = vadd.f32 %v3875, %v4108
      %v4258 = vadd.f32 %v3876, %v4110
      %v4259 = vadd.f32 %v3877, %v4111
      %v4260 = vadd.f32 %v3878, %v4112
      %v4261 = vadd.f32 %v3879, %v4114
      %v4262 = vadd.f32 %v3880, %v4116
      %v4263 = vadd.f32 %v3881, %v4118
      %v4264 = vadd.f32 %v3882, %v4120
      %v4265 = vadd.f32 %v3883, %v4121
      %v4266 = vadd.f32 %v3884, %v4122
      %v4267 = vadd.f32 %v3885, %v4124
      %v4268 = vadd.f32 %v3886, %v4126
      %v4269 = vadd.f32 %v3887, %v4128
      %v4270 = vadd.f32 %v3888, %v4130
      %v4271 = vadd.f32 %v3889, %v4131
      %v4272 = vadd.f32 %v3890, %v4132
      %v4273 = vadd.f32 %v3891, %v4134
      %v4274 = vadd.f32 %v3892, %v4136
      %v4275 = vadd.f32 %v3893, %v4138
      %v4276 = vadd.f32 %v3894, %v4140
      %v4277 = vadd.f32 %v3895, %v4141
      %v4278 = vadd.f32 %v3896, %v4142
      %v4279 = vadd.f32 %v3897, %v4144
      %v4280 = vadd.f32 %v3898, %v4146
      %v4281 = vadd.f32 %v3899, %v4148
      %v4282 = vadd.f32 %v3900, %v4150
      %v4283 = vadd.f32 %v3901, %v4151
      %v4284 = vadd.f32 %v3902, %v4152
      %v4285 = vadd.f32 %v3903, %v4154
      %v4286 = vadd.f32 %v3904, %v4156
      %v4287 = vadd.f32 %v3905, %v4158
      %v4288 = vadd.f32 %v3906, %v4160
      %v4289 = vadd.f32 %v3907, %v4161
      %v4290 = vadd.f32 %v3908, %v4162
      %v4291 = vadd.f32 %v3909, %v4164
      %v4292 = vadd.f32 %v3910, %v4166
      %v4293 = vadd.f32 %v3911, %v4168
      %v4294 = vadd.f32 %v3912, %v4170
      %v4295 = vadd.f32 %v3913, %v4171
      %v4296 = vadd.f32 %v3914, %v4172
      %v4297 = vadd.f32 %v3915, %v4174
      %v4298 = vadd.f32 %v3916, %v4176
      %v4299 = vadd.f32 %v3917, %v4178
      %v4300 = vadd.f32 %v3918, %v4180
      %v4302 = vperm.slane %v1820, 0
      %v4303 = vperm.slane %v1820, 1
      %v4306 = vadd.f32 %v4241, %v4302
      %v4307 = vadd.f32 %v4242, %v4303
      %v4308 = vadd.f32 %v4243, %v4302
      %v4309 = vadd.f32 %v4244, %v4303
      %v4310 = vadd.f32 %v4245, %v4302
      %v4311 = vadd.f32 %v4246, %v4303
      %v4312 = vadd.f32 %v4247, %v4302
      %v4313 = vadd.f32 %v4248, %v4303
      %v4314 = vadd.f32 %v4249, %v4302
      %v4315 = vadd.f32 %v4250, %v4303
      %v4316 = vadd.f32 %v4251, %v4302
      %v4317 = vadd.f32 %v4252, %v4303
      %v4318 = vadd.f32 %v4253, %v4302
      %v4319 = vadd.f32 %v4254, %v4303
      %v4320 = vadd.f32 %v4255, %v4302
      %v4321 = vadd.f32 %v4256, %v4303
      %v4322 = vadd.f32 %v4257, %v4302
      %v4323 = vadd.f32 %v4258, %v4303
      %v4324 = vadd.f32 %v4259, %v4302
      %v4325 = vadd.f32 %v4260, %v4303
      %v4326 = vadd.f32 %v4261, %v4302
      %v4327 = vadd.f32 %v4262, %v4303
      %v4328 = vadd.f32 %v4263, %v4302
      %v4329 = vadd.f32 %v4264, %v4303
      %v4330 = vadd.f32 %v4265, %v4302
      %v4331 = vadd.f32 %v4266, %v4303
      %v4332 = vadd.f32 %v4267, %v4302
      %v4333 = vadd.f32 %v4268, %v4303
      %v4334 = vadd.f32 %v4269, %v4302
      %v4335 = vadd.f32 %v4270, %v4303
      %v4336 = vadd.f32 %v4271, %v4302
      %v4337 = vadd.f32 %v4272, %v4303
      %v4338 = vadd.f32 %v4273, %v4302
      %v4339 = vadd.f32 %v4274, %v4303
      %v4340 = vadd.f32 %v4275, %v4302
      %v4341 = vadd.f32 %v4276, %v4303
      %v4342 = vadd.f32 %v4277, %v4302
      %v4343 = vadd.f32 %v4278, %v4303
      %v4344 = vadd.f32 %v4279, %v4302
      %v4345 = vadd.f32 %v4280, %v4303
      %v4346 = vadd.f32 %v4281, %v4302
      %v4347 = vadd.f32 %v4282, %v4303
      %v4348 = vadd.f32 %v4283, %v4302
      %v4349 = vadd.f32 %v4284, %v4303
      %v4350 = vadd.f32 %v4285, %v4302
      %v4351 = vadd.f32 %v4286, %v4303
      %v4352 = vadd.f32 %v4287, %v4302
      %v4353 = vadd.f32 %v4288, %v4303
      %v4354 = vadd.f32 %v4289, %v4302
      %v4355 = vadd.f32 %v4290, %v4303
      %v4356 = vadd.f32 %v4291, %v4302
      %v4357 = vadd.f32 %v4292, %v4303
      %v4358 = vadd.f32 %v4293, %v4302
      %v4359 = vadd.f32 %v4294, %v4303
      %v4360 = vadd.f32 %v4295, %v4302
      %v4361 = vadd.f32 %v4296, %v4303
      %v4362 = vadd.f32 %v4297, %v4302
      %v4363 = vadd.f32 %v4298, %v4303
      %v4364 = vadd.f32 %v4299, %v4302
      %v4365 = vadd.f32 %v4300, %v4303
      %v4366 = vmax.f32 %v4306, 0.0
      %v4367 = vmax.f32 %v4307, 0.0
      %v4368 = vmax.f32 %v4308, 0.0
      %v4369 = vmax.f32 %v4309, 0.0
      %v4370 = vmax.f32 %v4310, 0.0
      %v4371 = vmax.f32 %v4311, 0.0
      %v4372 = vmax.f32 %v4312, 0.0
      %v4373 = vmax.f32 %v4313, 0.0
      %v4374 = vmax.f32 %v4314, 0.0
      %v4375 = vmax.f32 %v4315, 0.0
      %v4376 = vmax.f32 %v4316, 0.0
      %v4377 = vmax.f32 %v4317, 0.0
      %v4378 = vmax.f32 %v4318, 0.0
      %v4379 = vmax.f32 %v4319, 0.0
      %v4380 = vmax.f32 %v4320, 0.0
      %v4381 = vmax.f32 %v4321, 0.0
      %v4382 = vmax.f32 %v4322, 0.0
      %v4383 = vmax.f32 %v4323, 0.0
      %v4384 = vmax.f32 %v4324, 0.0
      %v4385 = vmax.f32 %v4325, 0.0
      %v4386 = vmax.f32 %v4326, 0.0
      %v4387 = vmax.f32 %v4327, 0.0
      %v4388 = vmax.f32 %v4328, 0.0
      %v4389 = vmax.f32 %v4329, 0.0
      %v4390 = vmax.f32 %v4330, 0.0
      %v4391 = vmax.f32 %v4331, 0.0
      %v4392 = vmax.f32 %v4332, 0.0
      %v4393 = vmax.f32 %v4333, 0.0
      %v4394 = vmax.f32 %v4334, 0.0
      %v4395 = vmax.f32 %v4335, 0.0
      %v4396 = vmax.f32 %v4336, 0.0
      %v4397 = vmax.f32 %v4337, 0.0
      %v4398 = vmax.f32 %v4338, 0.0
      %v4399 = vmax.f32 %v4339, 0.0
      %v4400 = vmax.f32 %v4340, 0.0
      %v4401 = vmax.f32 %v4341, 0.0
      %v4402 = vmax.f32 %v4342, 0.0
      %v4403 = vmax.f32 %v4343, 0.0
      %v4404 = vmax.f32 %v4344, 0.0
      %v4405 = vmax.f32 %v4345, 0.0
      %v4406 = vmax.f32 %v4346, 0.0
      %v4407 = vmax.f32 %v4347, 0.0
      %v4408 = vmax.f32 %v4348, 0.0
      %v4409 = vmax.f32 %v4349, 0.0
      %v4410 = vmax.f32 %v4350, 0.0
      %v4411 = vmax.f32 %v4351, 0.0
      %v4412 = vmax.f32 %v4352, 0.0
      %v4413 = vmax.f32 %v4353, 0.0
      %v4414 = vmax.f32 %v4354, 0.0
      %v4415 = vmax.f32 %v4355, 0.0
      %v4416 = vmax.f32 %v4356, 0.0
      %v4417 = vmax.f32 %v4357, 0.0
      %v4418 = vmax.f32 %v4358, 0.0
      %v4419 = vmax.f32 %v4359, 0.0
      %v4420 = vmax.f32 %v4360, 0.0
      %v4421 = vmax.f32 %v4361, 0.0
      %v4422 = vmax.f32 %v4362, 0.0
      %v4423 = vmax.f32 %v4363, 0.0
      %v4424 = vmax.f32 %v4364, 0.0
      %v4425 = vmax.f32 %v4365, 0.0
      %v4426 = vld [vmem:[%s7] sm:$0xff]
      %v4427 = vld [vmem:[%s7 + $0x8] sm:$0x1]
      %v4428 = vld [vmem:[%s8] sm:$0x1]
      %v4429 = vld [vmem:[#allocation3 + $0x7] sm:$0xff]
      %v4430 = vld [vmem:[#allocation3 + $0xf] sm:$0xff]
      %v4431 = vld [vmem:[#allocation3 + $0x27] sm:$0xff]
      %v4432 = vld [vmem:[#allocation3 + $0x2f] sm:$0xff]
      %v4433 = vld [vmem:[#allocation3 + $0x47] sm:$0xff]
      %v4434 = vld [vmem:[#allocation3 + $0x4f] sm:$0xff]
      %v4435 = vld [vmem:[#allocation3 + $0x67] sm:$0xff]
      %v4436 = vld [vmem:[#allocation3 + $0x6f] sm:$0xff]
      %v4437 = vld [vmem:[#allocation3 + $0x87] sm:$0xff]
      %v4438 = vld [vmem:[#allocation3 + $0x8f] sm:$0xff]
      %v4439 = vld [vmem:[#allocation3 + $0xa7] sm:$0xff]
      %v4440 = vld [vmem:[#allocation3 + $0xaf] sm:$0xff]
      %v4441 = vld [vmem:[#allocation3 + $0xc7] sm:$0xff]
      %v4442 = vld [vmem:[#allocation3 + $0xcf] sm:$0xff]
      %v4443 = vld [vmem:[#allocation3 + $0xe7] sm:$0xff]
      %v4444 = vld [vmem:[#allocation3 + $0xef] sm:$0xff]
      %v4445 = vld [vmem:[#allocation3 + $0x107] sm:$0xff]
      %v4446 = vld [vmem:[#allocation3 + $0x10f] sm:$0xff]
      %v4447 = vld [vmem:[#allocation3 + $0x127] sm:$0xff]
      %v4448 = vld [vmem:[#allocation3 + $0x12f] sm:$0xff]
      %v4449 = vperm.slane %v4426, 0
      %v4450 = vmul.f32 %v4429, %v4449
      %v4451 = vmul.f32 %v4430, %v4449
      %v4452 = vmul.f32 %v4431, %v4449
      %v4453 = vmul.f32 %v4432, %v4449
      %v4454 = vmul.f32 %v4433, %v4449
      %v4455 = vmul.f32 %v4434, %v4449
      %v4456 = vmul.f32 %v4435, %v4449
      %v4457 = vmul.f32 %v4436, %v4449
      %v4458 = vmul.f32 %v4437, %v4449
      %v4459 = vmul.f32 %v4438, %v4449
      %v4460 = vmul.f32 %v4439, %v4449
      %v4461 = vmul.f32 %v4440, %v4449
      %v4462 = vmul.f32 %v4441, %v4449
      %v4463 = vmul.f32 %v4442, %v4449
      %v4464 = vmul.f32 %v4443, %v4449
      %v4465 = vmul.f32 %v4444, %v4449
      %v4466 = vmul.f32 %v4445, %v4449
      %v4467 = vmul.f32 %v4446, %v4449
      %v4468 = vmul.f32 %v4447, %v4449
      %v4469 = vmul.f32 %v4448, %v4449
      %v4470 = vld [vmem:[#allocation3 + $0x8] sm:$0xff]
      %v4471 = vld [vmem:[#allocation3 + $0x10] sm:$0xff]
      %v4472 = vld [vmem:[#allocation3 + $0x28] sm:$0xff]
      %v4473 = vld [vmem:[#allocation3 + $0x30] sm:$0xff]
      %v4474 = vld [vmem:[#allocation3 + $0x48] sm:$0xff]
      %v4475 = vld [vmem:[#allocation3 + $0x50] sm:$0xff]
      %v4476 = vld [vmem:[#allocation3 + $0x68] sm:$0xff]
      %v4477 = vld [vmem:[#allocation3 + $0x70] sm:$0xff]
      %v4478 = vld [vmem:[#allocation3 + $0x88] sm:$0xff]
      %v4479 = vld [vmem:[#allocation3 + $0x90] sm:$0xff]
      %v4480 = vld [vmem:[#allocation3 + $0xa8] sm:$0xff]
      %v4481 = vld [vmem:[#allocation3 + $0xb0] sm:$0xff]
      %v4482 = vld [vmem:[#allocation3 + $0xc8] sm:$0xff]
      %v4483 = vld [vmem:[#allocation3 + $0xd0] sm:$0xff]
      %v4484 = vld [vmem:[#allocation3 + $0xe8] sm:$0xff]
      %v4485 = vld [vmem:[#allocation3 + $0xf0] sm:$0xff]
      %v4486 = vld [vmem:[#allocation3 + $0x108] sm:$0xff]
      %v4487 = vld [vmem:[#allocation3 + $0x110] sm:$0xff]
      %v4488 = vld [vmem:[#allocation3 + $0x128] sm:$0xff]
      %v4489 = vld [vmem:[#allocation3 + $0x130] sm:$0xff]
      %v4490 = vperm.slane %v4426, 1
      %v4491 = vmul.f32 %v4470, %v4490
      %v4492 = vmul.f32 %v4471, %v4490
      %v4493 = vmul.f32 %v4472, %v4490
      %v4494 = vmul.f32 %v4473, %v4490
      %v4495 = vmul.f32 %v4474, %v4490
      %v4496 = vmul.f32 %v4475, %v4490
      %v4497 = vmul.f32 %v4476, %v4490
      %v4498 = vmul.f32 %v4477, %v4490
      %v4499 = vmul.f32 %v4478, %v4490
      %v4500 = vmul.f32 %v4479, %v4490
      %v4501 = vmul.f32 %v4480, %v4490
      %v4502 = vmul.f32 %v4481, %v4490
      %v4503 = vmul.f32 %v4482, %v4490
      %v4504 = vmul.f32 %v4483, %v4490
      %v4505 = vmul.f32 %v4484, %v4490
      %v4506 = vmul.f32 %v4485, %v4490
      %v4507 = vmul.f32 %v4486, %v4490
      %v4508 = vmul.f32 %v4487, %v4490
      %v4509 = vmul.f32 %v4488, %v4490
      %v4510 = vmul.f32 %v4489, %v4490
      %v4511 = vadd.f32 %v4450, %v4491
      %v4512 = vadd.f32 %v4451, %v4492
      %v4513 = vadd.f32 %v4452, %v4493
      %v4514 = vadd.f32 %v4453, %v4494
      %v4515 = vadd.f32 %v4454, %v4495
      %v4516 = vadd.f32 %v4455, %v4496
      %v4517 = vadd.f32 %v4456, %v4497
      %v4518 = vadd.f32 %v4457, %v4498
      %v4519 = vadd.f32 %v4458, %v4499
      %v4520 = vadd.f32 %v4459, %v4500
      %v4521 = vadd.f32 %v4460, %v4501
      %v4522 = vadd.f32 %v4461, %v4502
      %v4523 = vadd.f32 %v4462, %v4503
      %v4524 = vadd.f32 %v4463, %v4504
      %v4525 = vadd.f32 %v4464, %v4505
      %v4526 = vadd.f32 %v4465, %v4506
      %v4527 = vadd.f32 %v4466, %v4507
      %v4528 = vadd.f32 %v4467, %v4508
      %v4529 = vadd.f32 %v4468, %v4509
      %v4530 = vadd.f32 %v4469, %v4510
      %v4531 = vld [vmem:[#allocation3 + $0x9] sm:$0xff]
      %v4532 = vld [vmem:[#allocation3 + $0x11] sm:$0xff]
      %v4533 = vld [vmem:[#allocation3 + $0x29] sm:$0xff]
      %v4534 = vld [vmem:[#allocation3 + $0x31] sm:$0xff]
      %v4535 = vld [vmem:[#allocation3 + $0x49] sm:$0xff]
      %v4536 = vld [vmem:[#allocation3 + $0x51] sm:$0xff]
      %v4537 = vld [vmem:[#allocation3 + $0x69] sm:$0xff]
      %v4538 = vld [vmem:[#allocation3 + $0x71] sm:$0xff]
      %v4539 = vld [vmem:[#allocation3 + $0x89] sm:$0xff]
      %v4540 = vld [vmem:[#allocation3 + $0x91] sm:$0xff]
      %v4541 = vld [vmem:[#allocation3 + $0xa9] sm:$0xff]
      %v4542 = vld [vmem:[#allocation3 + $0xb1] sm:$0xff]
      %v4543 = vld [vmem:[#allocation3 + $0xc9] sm:$0xff]
      %v4544 = vld [vmem:[#allocation3 + $0xd1] sm:$0xff]
      %v4545 = vld [vmem:[#allocation3 + $0xe9] sm:$0xff]
      %v4546 = vld [vmem:[#allocation3 + $0xf1] sm:$0xff]
      %v4547 = vld [vmem:[#allocation3 + $0x109] sm:$0xff]
      %v4548 = vld [vmem:[#allocation3 + $0x111] sm:$0xff]
      %v4549 = vld [vmem:[#allocation3 + $0x129] sm:$0xff]
      %v4550 = vld [vmem:[#allocation3 + $0x131] sm:$0xff]
      %v4551 = vperm.slane %v4426, 2
      %v4552 = vmul.f32 %v4531, %v4551
      %v4553 = vmul.f32 %v4532, %v4551
      %v4554 = vmul.f32 %v4533, %v4551
      %v4555 = vmul.f32 %v4534, %v4551
      %v4556 = vmul.f32 %v4535, %v4551
      %v4557 = vmul.f32 %v4536, %v4551
      %v4558 = vmul.f32 %v4537, %v4551
      %v4559 = vmul.f32 %v4538, %v4551
      %v4560 = vmul.f32 %v4539, %v4551
      %v4561 = vmul.f32 %v4540, %v4551
      %v4562 = vmul.f32 %v4541, %v4551
      %v4563 = vmul.f32 %v4542, %v4551
      %v4564 = vmul.f32 %v4543, %v4551
      %v4565 = vmul.f32 %v4544, %v4551
      %v4566 = vmul.f32 %v4545, %v4551
      %v4567 = vmul.f32 %v4546, %v4551
      %v4568 = vmul.f32 %v4547, %v4551
      %v4569 = vmul.f32 %v4548, %v4551
      %v4570 = vmul.f32 %v4549, %v4551
      %v4571 = vmul.f32 %v4550, %v4551
      %v4572 = vadd.f32 %v4511, %v4552
      %v4573 = vadd.f32 %v4512, %v4553
      %v4574 = vadd.f32 %v4513, %v4554
      %v4575 = vadd.f32 %v4514, %v4555
      %v4576 = vadd.f32 %v4515, %v4556
      %v4577 = vadd.f32 %v4516, %v4557
      %v4578 = vadd.f32 %v4517, %v4558
      %v4579 = vadd.f32 %v4518, %v4559
      %v4580 = vadd.f32 %v4519, %v4560
      %v4581 = vadd.f32 %v4520, %v4561
      %v4582 = vadd.f32 %v4521, %v4562
      %v4583 = vadd.f32 %v4522, %v4563
      %v4584 = vadd.f32 %v4523, %v4564
      %v4585 = vadd.f32 %v4524, %v4565
      %v4586 = vadd.f32 %v4525, %v4566
      %v4587 = vadd.f32 %v4526, %v4567
      %v4588 = vadd.f32 %v4527, %v4568
      %v4589 = vadd.f32 %v4528, %v4569
      %v4590 = vadd.f32 %v4529, %v4570
      %v4591 = vadd.f32 %v4530, %v4571
      %s4592 = scalar_lea.vmem [#allocation3], 32
      %v4593 = vld [vmem:[%s4592 + $0x7] sm:$0xff]
      %v4594 = vld [vmem:[%s4592 + $0xf] sm:$0xff]
      %v4595 = vld [vmem:[%s4592 + $0x27] sm:$0xff]
      %v4596 = vld [vmem:[%s4592 + $0x2f] sm:$0xff]
      %v4597 = vld [vmem:[%s4592 + $0x47] sm:$0xff]
      %v4598 = vld [vmem:[%s4592 + $0x4f] sm:$0xff]
      %v4599 = vld [vmem:[%s4592 + $0x67] sm:$0xff]
      %v4600 = vld [vmem:[%s4592 + $0x6f] sm:$0xff]
      %v4601 = vld [vmem:[%s4592 + $0x87] sm:$0xff]
      %v4602 = vld [vmem:[%s4592 + $0x8f] sm:$0xff]
      %v4603 = vld [vmem:[%s4592 + $0xa7] sm:$0xff]
      %v4604 = vld [vmem:[%s4592 + $0xaf] sm:$0xff]
      %v4605 = vld [vmem:[%s4592 + $0xc7] sm:$0xff]
      %v4606 = vld [vmem:[%s4592 + $0xcf] sm:$0xff]
      %v4607 = vld [vmem:[%s4592 + $0xe7] sm:$0xff]
      %v4608 = vld [vmem:[%s4592 + $0xef] sm:$0xff]
      %v4609 = vld [vmem:[%s4592 + $0x107] sm:$0xff]
      %v4610 = vld [vmem:[%s4592 + $0x10f] sm:$0xff]
      %v4611 = vld [vmem:[%s4592 + $0x127] sm:$0xff]
      %v4612 = vld [vmem:[%s4592 + $0x12f] sm:$0xff]
      %v4613 = vperm.slane %v4426, 3
      %v4614 = vmul.f32 %v4593, %v4613
      %v4615 = vmul.f32 %v4594, %v4613
      %v4616 = vmul.f32 %v4595, %v4613
      %v4617 = vmul.f32 %v4596, %v4613
      %v4618 = vmul.f32 %v4597, %v4613
      %v4619 = vmul.f32 %v4598, %v4613
      %v4620 = vmul.f32 %v4599, %v4613
      %v4621 = vmul.f32 %v4600, %v4613
      %v4622 = vmul.f32 %v4601, %v4613
      %v4623 = vmul.f32 %v4602, %v4613
      %v4624 = vmul.f32 %v4603, %v4613
      %v4625 = vmul.f32 %v4604, %v4613
      %v4626 = vmul.f32 %v4605, %v4613
      %v4627 = vmul.f32 %v4606, %v4613
      %v4628 = vmul.f32 %v4607, %v4613
      %v4629 = vmul.f32 %v4608, %v4613
      %v4630 = vmul.f32 %v4609, %v4613
      %v4631 = vmul.f32 %v4610, %v4613
      %v4632 = vmul.f32 %v4611, %v4613
      %v4633 = vmul.f32 %v4612, %v4613
      %v4634 = vadd.f32 %v4572, %v4614
      %v4635 = vadd.f32 %v4573, %v4615
      %v4636 = vadd.f32 %v4574, %v4616
      %v4637 = vadd.f32 %v4575, %v4617
      %v4638 = vadd.f32 %v4576, %v4618
      %v4639 = vadd.f32 %v4577, %v4619
      %v4640 = vadd.f32 %v4578, %v4620
      %v4641 = vadd.f32 %v4579, %v4621
      %v4642 = vadd.f32 %v4580, %v4622
      %v4643 = vadd.f32 %v4581, %v4623
      %v4644 = vadd.f32 %v4582, %v4624
      %v4645 = vadd.f32 %v4583, %v4625
      %v4646 = vadd.f32 %v4584, %v4626
      %v4647 = vadd.f32 %v4585, %v4627
      %v4648 = vadd.f32 %v4586, %v4628
      %v4649 = vadd.f32 %v4587, %v4629
      %v4650 = vadd.f32 %v4588, %v4630
      %v4651 = vadd.f32 %v4589, %v4631
      %v4652 = vadd.f32 %v4590, %v4632
      %v4653 = vadd.f32 %v4591, %v4633
      %v4654 = vld [vmem:[%s4592 + $0x8] sm:$0xff]
      %v4655 = vld [vmem:[%s4592 + $0x10] sm:$0xff]
      %v4656 = vld [vmem:[%s4592 + $0x28] sm:$0xff]
      %v4657 = vld [vmem:[%s4592 + $0x30] sm:$0xff]
      %v4658 = vld [vmem:[%s4592 + $0x48] sm:$0xff]
      %v4659 = vld [vmem:[%s4592 + $0x50] sm:$0xff]
      %v4660 = vld [vmem:[%s4592 + $0x68] sm:$0xff]
      %v4661 = vld [vmem:[%s4592 + $0x70] sm:$0xff]
      %v4662 = vld [vmem:[%s4592 + $0x88] sm:$0xff]
      %v4663 = vld [vmem:[%s4592 + $0x90] sm:$0xff]
      %v4664 = vld [vmem:[%s4592 + $0xa8] sm:$0xff]
      %v4665 = vld [vmem:[%s4592 + $0xb0] sm:$0xff]
      %v4666 = vld [vmem:[%s4592 + $0xc8] sm:$0xff]
      %v4667 = vld [vmem:[%s4592 + $0xd0] sm:$0xff]
      %v4668 = vld [vmem:[%s4592 + $0xe8] sm:$0xff]
      %v4669 = vld [vmem:[%s4592 + $0xf0] sm:$0xff]
      %v4670 = vld [vmem:[%s4592 + $0x108] sm:$0xff]
      %v4671 = vld [vmem:[%s4592 + $0x110] sm:$0xff]
      %v4672 = vld [vmem:[%s4592 + $0x128] sm:$0xff]
      %v4673 = vld [vmem:[%s4592 + $0x130] sm:$0xff]
      %v4674 = vperm.slane %v4426, 4
      %v4675 = vmul.f32 %v4654, %v4674
      %v4676 = vmul.f32 %v4655, %v4674
      %v4677 = vmul.f32 %v4656, %v4674
      %v4678 = vmul.f32 %v4657, %v4674
      %v4679 = vmul.f32 %v4658, %v4674
      %v4680 = vmul.f32 %v4659, %v4674
      %v4681 = vmul.f32 %v4660, %v4674
      %v4682 = vmul.f32 %v4661, %v4674
      %v4683 = vmul.f32 %v4662, %v4674
      %v4684 = vmul.f32 %v4663, %v4674
      %v4685 = vmul.f32 %v4664, %v4674
      %v4686 = vmul.f32 %v4665, %v4674
      %v4687 = vmul.f32 %v4666, %v4674
      %v4688 = vmul.f32 %v4667, %v4674
      %v4689 = vmul.f32 %v4668, %v4674
      %v4690 = vmul.f32 %v4669, %v4674
      %v4691 = vmul.f32 %v4670, %v4674
      %v4692 = vmul.f32 %v4671, %v4674
      %v4693 = vmul.f32 %v4672, %v4674
      %v4694 = vmul.f32 %v4673, %v4674
      %v4695 = vadd.f32 %v4634, %v4675
      %v4696 = vadd.f32 %v4635, %v4676
      %v4697 = vadd.f32 %v4636, %v4677
      %v4698 = vadd.f32 %v4637, %v4678
      %v4699 = vadd.f32 %v4638, %v4679
      %v4700 = vadd.f32 %v4639, %v4680
      %v4701 = vadd.f32 %v4640, %v4681
      %v4702 = vadd.f32 %v4641, %v4682
      %v4703 = vadd.f32 %v4642, %v4683
      %v4704 = vadd.f32 %v4643, %v4684
      %v4705 = vadd.f32 %v4644, %v4685
      %v4706 = vadd.f32 %v4645, %v4686
      %v4707 = vadd.f32 %v4646, %v4687
      %v4708 = vadd.f32 %v4647, %v4688
      %v4709 = vadd.f32 %v4648, %v4689
      %v4710 = vadd.f32 %v4649, %v4690
      %v4711 = vadd.f32 %v4650, %v4691
      %v4712 = vadd.f32 %v4651, %v4692
      %v4713 = vadd.f32 %v4652, %v4693
      %v4714 = vadd.f32 %v4653, %v4694
      %v4715 = vld [vmem:[%s4592 + $0x9] sm:$0xff]
      %v4716 = vld [vmem:[%s4592 + $0x11] sm:$0xff]
      %v4717 = vld [vmem:[%s4592 + $0x29] sm:$0xff]
      %v4718 = vld [vmem:[%s4592 + $0x31] sm:$0xff]
      %v4719 = vld [vmem:[%s4592 + $0x49] sm:$0xff]
      %v4720 = vld [vmem:[%s4592 + $0x51] sm:$0xff]
      %v4721 = vld [vmem:[%s4592 + $0x69] sm:$0xff]
      %v4722 = vld [vmem:[%s4592 + $0x71] sm:$0xff]
      %v4723 = vld [vmem:[%s4592 + $0x89] sm:$0xff]
      %v4724 = vld [vmem:[%s4592 + $0x91] sm:$0xff]
      %v4725 = vld [vmem:[%s4592 + $0xa9] sm:$0xff]
      %v4726 = vld [vmem:[%s4592 + $0xb1] sm:$0xff]
      %v4727 = vld [vmem:[%s4592 + $0xc9] sm:$0xff]
      %v4728 = vld [vmem:[%s4592 + $0xd1] sm:$0xff]
      %v4729 = vld [vmem:[%s4592 + $0xe9] sm:$0xff]
      %v4730 = vld [vmem:[%s4592 + $0xf1] sm:$0xff]
      %v4731 = vld [vmem:[%s4592 + $0x109] sm:$0xff]
      %v4732 = vld [vmem:[%s4592 + $0x111] sm:$0xff]
      %v4733 = vld [vmem:[%s4592 + $0x129] sm:$0xff]
      %v4734 = vld [vmem:[%s4592 + $0x131] sm:$0xff]
      %v4735 = vperm.slane %v4426, 5
      %v4736 = vmul.f32 %v4715, %v4735
      %v4737 = vmul.f32 %v4716, %v4735
      %v4738 = vmul.f32 %v4717, %v4735
      %v4739 = vmul.f32 %v4718, %v4735
      %v4740 = vmul.f32 %v4719, %v4735
      %v4741 = vmul.f32 %v4720, %v4735
      %v4742 = vmul.f32 %v4721, %v4735
      %v4743 = vmul.f32 %v4722, %v4735
      %v4744 = vmul.f32 %v4723, %v4735
      %v4745 = vmul.f32 %v4724, %v4735
      %v4746 = vmul.f32 %v4725, %v4735
      %v4747 = vmul.f32 %v4726, %v4735
      %v4748 = vmul.f32 %v4727, %v4735
      %v4749 = vmul.f32 %v4728, %v4735
      %v4750 = vmul.f32 %v4729, %v4735
      %v4751 = vmul.f32 %v4730, %v4735
      %v4752 = vmul.f32 %v4731, %v4735
      %v4753 = vmul.f32 %v4732, %v4735
      %v4754 = vmul.f32 %v4733, %v4735
      %v4755 = vmul.f32 %v4734, %v4735
      %v4756 = vadd.f32 %v4695, %v4736
      %v4757 = vadd.f32 %v4696, %v4737
      %v4758 = vadd.f32 %v4697, %v4738
      %v4759 = vadd.f32 %v4698, %v4739
      %v4760 = vadd.f32 %v4699, %v4740
      %v4761 = vadd.f32 %v4700, %v4741
      %v4762 = vadd.f32 %v4701, %v4742
      %v4763 = vadd.f32 %v4702, %v4743
      %v4764 = vadd.f32 %v4703, %v4744
      %v4765 = vadd.f32 %v4704, %v4745
      %v4766 = vadd.f32 %v4705, %v4746
      %v4767 = vadd.f32 %v4706, %v4747
      %v4768 = vadd.f32 %v4707, %v4748
      %v4769 = vadd.f32 %v4708, %v4749
      %v4770 = vadd.f32 %v4709, %v4750
      %v4771 = vadd.f32 %v4710, %v4751
      %v4772 = vadd.f32 %v4711, %v4752
      %v4773 = vadd.f32 %v4712, %v4753
      %v4774 = vadd.f32 %v4713, %v4754
      %v4775 = vadd.f32 %v4714, %v4755
      %s4776 = scalar_lea.vmem [#allocation3], 64
      %v4777 = vld [vmem:[%s4776 + $0x7] sm:$0xff]
      %v4778 = vld [vmem:[%s4776 + $0xf] sm:$0xff]
      %v4779 = vld [vmem:[%s4776 + $0x27] sm:$0xff]
      %v4780 = vld [vmem:[%s4776 + $0x2f] sm:$0xff]
      %v4781 = vld [vmem:[%s4776 + $0x47] sm:$0xff]
      %v4782 = vld [vmem:[%s4776 + $0x4f] sm:$0xff]
      %v4783 = vld [vmem:[%s4776 + $0x67] sm:$0xff]
      %v4784 = vld [vmem:[%s4776 + $0x6f] sm:$0xff]
      %v4785 = vld [vmem:[%s4776 + $0x87] sm:$0xff]
      %v4786 = vld [vmem:[%s4776 + $0x8f] sm:$0xff]
      %v4787 = vld [vmem:[%s4776 + $0xa7] sm:$0xff]
      %v4788 = vld [vmem:[%s4776 + $0xaf] sm:$0xff]
      %v4789 = vld [vmem:[%s4776 + $0xc7] sm:$0xff]
      %v4790 = vld [vmem:[%s4776 + $0xcf] sm:$0xff]
      %v4791 = vld [vmem:[%s4776 + $0xe7] sm:$0xff]
      %v4792 = vld [vmem:[%s4776 + $0xef] sm:$0xff]
      %v4793 = vld [vmem:[%s4776 + $0x107] sm:$0xff]
      %v4794 = vld [vmem:[%s4776 + $0x10f] sm:$0xff]
      %v4795 = vld [vmem:[%s4776 + $0x127] sm:$0xff]
      %v4796 = vld [vmem:[%s4776 + $0x12f] sm:$0xff]
      %v4797 = vperm.slane %v4426, 6
      %v4798 = vmul.f32 %v4777, %v4797
      %v4799 = vmul.f32 %v4778, %v4797
      %v4800 = vmul.f32 %v4779, %v4797
      %v4801 = vmul.f32 %v4780, %v4797
      %v4802 = vmul.f32 %v4781, %v4797
      %v4803 = vmul.f32 %v4782, %v4797
      %v4804 = vmul.f32 %v4783, %v4797
      %v4805 = vmul.f32 %v4784, %v4797
      %v4806 = vmul.f32 %v4785, %v4797
      %v4807 = vmul.f32 %v4786, %v4797
      %v4808 = vmul.f32 %v4787, %v4797
      %v4809 = vmul.f32 %v4788, %v4797
      %v4810 = vmul.f32 %v4789, %v4797
      %v4811 = vmul.f32 %v4790, %v4797
      %v4812 = vmul.f32 %v4791, %v4797
      %v4813 = vmul.f32 %v4792, %v4797
      %v4814 = vmul.f32 %v4793, %v4797
      %v4815 = vmul.f32 %v4794, %v4797
      %v4816 = vmul.f32 %v4795, %v4797
      %v4817 = vmul.f32 %v4796, %v4797
      %v4818 = vadd.f32 %v4756, %v4798
      %v4819 = vadd.f32 %v4757, %v4799
      %v4820 = vadd.f32 %v4758, %v4800
      %v4821 = vadd.f32 %v4759, %v4801
      %v4822 = vadd.f32 %v4760, %v4802
      %v4823 = vadd.f32 %v4761, %v4803
      %v4824 = vadd.f32 %v4762, %v4804
      %v4825 = vadd.f32 %v4763, %v4805
      %v4826 = vadd.f32 %v4764, %v4806
      %v4827 = vadd.f32 %v4765, %v4807
      %v4828 = vadd.f32 %v4766, %v4808
      %v4829 = vadd.f32 %v4767, %v4809
      %v4830 = vadd.f32 %v4768, %v4810
      %v4831 = vadd.f32 %v4769, %v4811
      %v4832 = vadd.f32 %v4770, %v4812
      %v4833 = vadd.f32 %v4771, %v4813
      %v4834 = vadd.f32 %v4772, %v4814
      %v4835 = vadd.f32 %v4773, %v4815
      %v4836 = vadd.f32 %v4774, %v4816
      %v4837 = vadd.f32 %v4775, %v4817
      %v4838 = vld [vmem:[%s4776 + $0x8] sm:$0xff]
      %v4839 = vld [vmem:[%s4776 + $0x10] sm:$0xff]
      %v4840 = vld [vmem:[%s4776 + $0x28] sm:$0xff]
      %v4841 = vld [vmem:[%s4776 + $0x30] sm:$0xff]
      %v4842 = vld [vmem:[%s4776 + $0x48] sm:$0xff]
      %v4843 = vld [vmem:[%s4776 + $0x50] sm:$0xff]
      %v4844 = vld [vmem:[%s4776 + $0x68] sm:$0xff]
      %v4845 = vld [vmem:[%s4776 + $0x70] sm:$0xff]
      %v4846 = vld [vmem:[%s4776 + $0x88] sm:$0xff]
      %v4847 = vld [vmem:[%s4776 + $0x90] sm:$0xff]
      %v4848 = vld [vmem:[%s4776 + $0xa8] sm:$0xff]
      %v4849 = vld [vmem:[%s4776 + $0xb0] sm:$0xff]
      %v4850 = vld [vmem:[%s4776 + $0xc8] sm:$0xff]
      %v4851 = vld [vmem:[%s4776 + $0xd0] sm:$0xff]
      %v4852 = vld [vmem:[%s4776 + $0xe8] sm:$0xff]
      %v4853 = vld [vmem:[%s4776 + $0xf0] sm:$0xff]
      %v4854 = vld [vmem:[%s4776 + $0x108] sm:$0xff]
      %v4855 = vld [vmem:[%s4776 + $0x110] sm:$0xff]
      %v4856 = vld [vmem:[%s4776 + $0x128] sm:$0xff]
      %v4857 = vld [vmem:[%s4776 + $0x130] sm:$0xff]
      %v4858 = vperm.slane %v4426, 7
      %v4859 = vmul.f32 %v4838, %v4858
      %v4860 = vmul.f32 %v4839, %v4858
      %v4861 = vmul.f32 %v4840, %v4858
      %v4862 = vmul.f32 %v4841, %v4858
      %v4863 = vmul.f32 %v4842, %v4858
      %v4864 = vmul.f32 %v4843, %v4858
      %v4865 = vmul.f32 %v4844, %v4858
      %v4866 = vmul.f32 %v4845, %v4858
      %v4867 = vmul.f32 %v4846, %v4858
      %v4868 = vmul.f32 %v4847, %v4858
      %v4869 = vmul.f32 %v4848, %v4858
      %v4870 = vmul.f32 %v4849, %v4858
      %v4871 = vmul.f32 %v4850, %v4858
      %v4872 = vmul.f32 %v4851, %v4858
      %v4873 = vmul.f32 %v4852, %v4858
      %v4874 = vmul.f32 %v4853, %v4858
      %v4875 = vmul.f32 %v4854, %v4858
      %v4876 = vmul.f32 %v4855, %v4858
      %v4877 = vmul.f32 %v4856, %v4858
      %v4878 = vmul.f32 %v4857, %v4858
      %v4879 = vadd.f32 %v4818, %v4859
      %v4880 = vadd.f32 %v4819, %v4860
      %v4881 = vadd.f32 %v4820, %v4861
      %v4882 = vadd.f32 %v4821, %v4862
      %v4883 = vadd.f32 %v4822, %v4863
      %v4884 = vadd.f32 %v4823, %v4864
      %v4885 = vadd.f32 %v4824, %v4865
      %v4886 = vadd.f32 %v4825, %v4866
      %v4887 = vadd.f32 %v4826, %v4867
      %v4888 = vadd.f32 %v4827, %v4868
      %v4889 = vadd.f32 %v4828, %v4869
      %v4890 = vadd.f32 %v4829, %v4870
      %v4891 = vadd.f32 %v4830, %v4871
      %v4892 = vadd.f32 %v4831, %v4872
      %v4893 = vadd.f32 %v4832, %v4873
      %v4894 = vadd.f32 %v4833, %v4874
      %v4895 = vadd.f32 %v4834, %v4875
      %v4896 = vadd.f32 %v4835, %v4876
      %v4897 = vadd.f32 %v4836, %v4877
      %v4898 = vadd.f32 %v4837, %v4878
      %v4899 = vld [vmem:[%s4776 + $0x9] sm:$0xff]
      %v4900 = vld [vmem:[%s4776 + $0x11] sm:$0xff]
      %v4901 = vld [vmem:[%s4776 + $0x29] sm:$0xff]
      %v4902 = vld [vmem:[%s4776 + $0x31] sm:$0xff]
      %v4903 = vld [vmem:[%s4776 + $0x49] sm:$0xff]
      %v4904 = vld [vmem:[%s4776 + $0x51] sm:$0xff]
      %v4905 = vld [vmem:[%s4776 + $0x69] sm:$0xff]
      %v4906 = vld [vmem:[%s4776 + $0x71] sm:$0xff]
      %v4907 = vld [vmem:[%s4776 + $0x89] sm:$0xff]
      %v4908 = vld [vmem:[%s4776 + $0x91] sm:$0xff]
      %v4909 = vld [vmem:[%s4776 + $0xa9] sm:$0xff]
      %v4910 = vld [vmem:[%s4776 + $0xb1] sm:$0xff]
      %v4911 = vld [vmem:[%s4776 + $0xc9] sm:$0xff]
      %v4912 = vld [vmem:[%s4776 + $0xd1] sm:$0xff]
      %v4913 = vld [vmem:[%s4776 + $0xe9] sm:$0xff]
      %v4914 = vld [vmem:[%s4776 + $0xf1] sm:$0xff]
      %v4915 = vld [vmem:[%s4776 + $0x109] sm:$0xff]
      %v4916 = vld [vmem:[%s4776 + $0x111] sm:$0xff]
      %v4917 = vld [vmem:[%s4776 + $0x129] sm:$0xff]
      %v4918 = vld [vmem:[%s4776 + $0x131] sm:$0xff]
      %v4919 = vperm.slane %v4427, 0
      %v4920 = vmul.f32 %v4899, %v4919
      %v4921 = vmul.f32 %v4900, %v4919
      %v4922 = vmul.f32 %v4901, %v4919
      %v4923 = vmul.f32 %v4902, %v4919
      %v4924 = vmul.f32 %v4903, %v4919
      %v4925 = vmul.f32 %v4904, %v4919
      %v4926 = vmul.f32 %v4905, %v4919
      %v4927 = vmul.f32 %v4906, %v4919
      %v4928 = vmul.f32 %v4907, %v4919
      %v4929 = vmul.f32 %v4908, %v4919
      %v4930 = vmul.f32 %v4909, %v4919
      %v4931 = vmul.f32 %v4910, %v4919
      %v4932 = vmul.f32 %v4911, %v4919
      %v4933 = vmul.f32 %v4912, %v4919
      %v4934 = vmul.f32 %v4913, %v4919
      %v4935 = vmul.f32 %v4914, %v4919
      %v4936 = vmul.f32 %v4915, %v4919
      %v4937 = vmul.f32 %v4916, %v4919
      %v4938 = vmul.f32 %v4917, %v4919
      %v4939 = vmul.f32 %v4918, %v4919
      %v4940 = vadd.f32 %v4879, %v4920
      %v4941 = vadd.f32 %v4880, %v4921
      %v4942 = vadd.f32 %v4881, %v4922
      %v4943 = vadd.f32 %v4882, %v4923
      %v4944 = vadd.f32 %v4883, %v4924
      %v4945 = vadd.f32 %v4884, %v4925
      %v4946 = vadd.f32 %v4885, %v4926
      %v4947 = vadd.f32 %v4886, %v4927
      %v4948 = vadd.f32 %v4887, %v4928
      %v4949 = vadd.f32 %v4888, %v4929
      %v4950 = vadd.f32 %v4889, %v4930
      %v4951 = vadd.f32 %v4890, %v4931
      %v4952 = vadd.f32 %v4891, %v4932
      %v4953 = vadd.f32 %v4892, %v4933
      %v4954 = vadd.f32 %v4893, %v4934
      %v4955 = vadd.f32 %v4894, %v4935
      %v4956 = vadd.f32 %v4895, %v4936
      %v4957 = vadd.f32 %v4896, %v4937
      %v4958 = vadd.f32 %v4897, %v4938
      %v4959 = vadd.f32 %v4898, %v4939
      %v4961 = vperm.slane %v4428, 0
      %v4963 = vadd.f32 %v4940, %v4961
      %v4964 = vadd.f32 %v4941, %v4961
      %v4965 = vadd.f32 %v4942, %v4961
      %v4966 = vadd.f32 %v4943, %v4961
      %v4967 = vadd.f32 %v4944, %v4961
      %v4968 = vadd.f32 %v4945, %v4961
      %v4969 = vadd.f32 %v4946, %v4961
      %v4970 = vadd.f32 %v4947, %v4961
      %v4971 = vadd.f32 %v4948, %v4961
      %v4972 = vadd.f32 %v4949, %v4961
      %v4973 = vadd.f32 %v4950, %v4961
      %v4974 = vadd.f32 %v4951, %v4961
      %v4975 = vadd.f32 %v4952, %v4961
      %v4976 = vadd.f32 %v4953, %v4961
      %v4977 = vadd.f32 %v4954, %v4961
      %v4978 = vadd.f32 %v4955, %v4961
      %v4979 = vadd.f32 %v4956, %v4961
      %v4980 = vadd.f32 %v4957, %v4961
      %v4981 = vadd.f32 %v4958, %v4961
      %v4982 = vadd.f32 %v4959, %v4961
      %v4983 = vmax.f32 %v4963, 0.0
      %v4984 = vmax.f32 %v4964, 0.0
      %v4985 = vmax.f32 %v4965, 0.0
      %v4986 = vmax.f32 %v4966, 0.0
      %v4987 = vmax.f32 %v4967, 0.0
      %v4988 = vmax.f32 %v4968, 0.0
      %v4989 = vmax.f32 %v4969, 0.0
      %v4990 = vmax.f32 %v4970, 0.0
      %v4991 = vmax.f32 %v4971, 0.0
      %v4992 = vmax.f32 %v4972, 0.0
      %v4993 = vmax.f32 %v4973, 0.0
      %v4994 = vmax.f32 %v4974, 0.0
      %v4995 = vmax.f32 %v4975, 0.0
      %v4996 = vmax.f32 %v4976, 0.0
      %v4997 = vmax.f32 %v4977, 0.0
      %v4998 = vmax.f32 %v4978, 0.0
      %v4999 = vmax.f32 %v4979, 0.0
      %v5000 = vmax.f32 %v4980, 0.0
      %v5001 = vmax.f32 %v4981, 0.0
      %v5002 = vmax.f32 %v4982, 0.0
      %vm5063 = vcmask 1040384
      %v5064 = vrot.slane %v4366, 7
      %v5065 = vrot.slane %v4368, 7
      %v5066 = vsel %vm5063, %v5064, %v5065
      %v5067 = vrot.slane %v4367, 7
      %v5068 = vrot.slane %v4369, 7
      %v5069 = vsel %vm5063, %v5067, %v5068
      %v5070 = vrot.slane %v4370, 7
      %v5071 = vsel %vm5063, %v5065, %v5070
      %v5072 = vrot.slane %v4371, 7
      %v5073 = vsel %vm5063, %v5068, %v5072
      %v5074 = vrot.slane %v4372, 7
      %v5075 = vrot.slane %v4374, 7
      %v5076 = vsel %vm5063, %v5074, %v5075
      %v5077 = vrot.slane %v4373, 7
      %v5078 = vrot.slane %v4375, 7
      %v5079 = vsel %vm5063, %v5077, %v5078
      %v5080 = vrot.slane %v4376, 7
      %v5081 = vsel %vm5063, %v5075, %v5080
      %v5082 = vrot.slane %v4377, 7
      %v5083 = vsel %vm5063, %v5078, %v5082
      %v5084 = vrot.slane %v4378, 7
      %v5085 = vrot.slane %v4380, 7
      %v5086 = vsel %vm5063, %v5084, %v5085
      %v5087 = vrot.slane %v4379, 7
      %v5088 = vrot.slane %v4381, 7
      %v5089 = vsel %vm5063, %v5087, %v5088
      %v5090 = vrot.slane %v4382, 7
      %v5091 = vsel %vm5063, %v5085, %v5090
      %v5092 = vrot.slane %v4383, 7
      %v5093 = vsel %vm5063, %v5088, %v5092
      %v5094 = vrot.slane %v4384, 7
      %v5095 = vrot.slane %v4386, 7
      %v5096 = vsel %vm5063, %v5094, %v5095
      %v5097 = vrot.slane %v4385, 7
      %v5098 = vrot.slane %v4387, 7
      %v5099 = vsel %vm5063, %v5097, %v5098
      %v5100 = vrot.slane %v4388, 7
      %v5101 = vsel %vm5063, %v5095, %v5100
      %v5102 = vrot.slane %v4389, 7
      %v5103 = vsel %vm5063, %v5098, %v5102
      %v5104 = vrot.slane %v4390, 7
      %v5105 = vrot.slane %v4392, 7
      %v5106 = vsel %vm5063, %v5104, %v5105
      %v5107 = vrot.slane %v4391, 7
      %v5108 = vrot.slane %v4393, 7
      %v5109 = vsel %vm5063, %v5107, %v5108
      %v5110 = vrot.slane %v4394, 7
      %v5111 = vsel %vm5063, %v5105, %v5110
      %v5112 = vrot.slane %v4395, 7
      %v5113 = vsel %vm5063, %v5108, %v5112
      %v5114 = vrot.slane %v4396, 7
      %v5115 = vrot.slane %v4398, 7
      %v5116 = vsel %vm5063, %v5114, %v5115
      %v5117 = vrot.slane %v4397, 7
      %v5118 = vrot.slane %v4399, 7
      %v5119 = vsel %vm5063, %v5117, %v5118
      %v5120 = vrot.slane %v4400, 7
      %v5121 = vsel %vm5063, %v5115, %v5120
      %v5122 = vrot.slane %v4401, 7
      %v5123 = vsel %vm5063, %v5118, %v5122
      %v5124 = vrot.slane %v4402, 7
      %v5125 = vrot.slane %v4404, 7
      %v5126 = vsel %vm5063, %v5124, %v5125
      %v5127 = vrot.slane %v4403, 7
      %v5128 = vrot.slane %v4405, 7
      %v5129 = vsel %vm5063, %v5127, %v5128
      %v5130 = vrot.slane %v4406, 7
      %v5131 = vsel %vm5063, %v5125, %v5130
      %v5132 = vrot.slane %v4407, 7
      %v5133 = vsel %vm5063, %v5128, %v5132
      %v5134 = vrot.slane %v4408, 7
      %v5135 = vrot.slane %v4410, 7
      %v5136 = vsel %vm5063, %v5134, %v5135
      %v5137 = vrot.slane %v4409, 7
      %v5138 = vrot.slane %v4411, 7
      %v5139 = vsel %vm5063, %v5137, %v5138
      %v5140 = vrot.slane %v4412, 7
      %v5141 = vsel %vm5063, %v5135, %v5140
      %v5142 = vrot.slane %v4413, 7
      %v5143 = vsel %vm5063, %v5138, %v5142
      %v5144 = vrot.slane %v4414, 7
      %v5145 = vrot.slane %v4416, 7
      %v5146 = vsel %vm5063, %v5144, %v5145
      %v5147 = vrot.slane %v4415, 7
      %v5148 = vrot.slane %v4417, 7
      %v5149 = vsel %vm5063, %v5147, %v5148
      %v5150 = vrot.slane %v4418, 7
      %v5151 = vsel %vm5063, %v5145, %v5150
      %v5152 = vrot.slane %v4419, 7
      %v5153 = vsel %vm5063, %v5148, %v5152
      %v5154 = vrot.slane %v4420, 7
      %v5155 = vrot.slane %v4422, 7
      %v5156 = vsel %vm5063, %v5154, %v5155
      %v5157 = vrot.slane %v4421, 7
      %v5158 = vrot.slane %v4423, 7
      %v5159 = vsel %vm5063, %v5157, %v5158
      %v5160 = vrot.slane %v4424, 7
      %v5161 = vsel %vm5063, %v5155, %v5160
      %v5162 = vrot.slane %v4425, 7
      %v5163 = vsel %vm5063, %v5158, %v5162
      %v5204 = vpack.c.bf16 %v5071, %v5066
      %v5205 = vpack.c.bf16 %v5073, %v5069
      %v5206 = vpack.c.bf16 %v5081, %v5076
      %v5207 = vpack.c.bf16 %v5083, %v5079
      %v5208 = vpack.c.bf16 %v5091, %v5086
      %v5209 = vpack.c.bf16 %v5093, %v5089
      %v5210 = vpack.c.bf16 %v5101, %v5096
      %v5211 = vpack.c.bf16 %v5103, %v5099
      %v5212 = vpack.c.bf16 %v5111, %v5106
      %v5213 = vpack.c.bf16 %v5113, %v5109
      %v5214 = vpack.c.bf16 %v5121, %v5116
      %v5215 = vpack.c.bf16 %v5123, %v5119
      %v5216 = vpack.c.bf16 %v5131, %v5126
      %v5217 = vpack.c.bf16 %v5133, %v5129
      %v5218 = vpack.c.bf16 %v5141, %v5136
      %v5219 = vpack.c.bf16 %v5143, %v5139
      %v5220 = vpack.c.bf16 %v5151, %v5146
      %v5221 = vpack.c.bf16 %v5153, %v5149
      %v5222 = vpack.c.bf16 %v5161, %v5156
      %v5223 = vpack.c.bf16 %v5163, %v5159
      %v5224 = vld [vmem:[%s9] sm:$0xff]
      %v5225 = vld [vmem:[%s9 + $0x8] sm:$0xff]
      %v5226 = vld [vmem:[%s9 + $0x10] sm:$0xff]
      %v5227 = vld [vmem:[%s9 + $0x18] sm:$0xff]
      %v5228 = vld [vmem:[%s9 + $0x20] sm:$0xff]
      %v5229 = vld [vmem:[%s9 + $0x28] sm:$0xff]
      %v5230 = vld [vmem:[%s9 + $0x30] sm:$0xff]
      %v5231 = vld [vmem:[%s9 + $0x38] sm:$0xff]
      %v5232 = vld [vmem:[%s9 + $0x40] sm:$0xff]
      %v5233 = vld [vmem:[%s9 + $0x48] sm:$0xff]
      %v5234 = vld [vmem:[%s9 + $0x50] sm:$0xff]
      %v5235 = vld [vmem:[%s9 + $0x58] sm:$0xff]
      %v5236 = vld [vmem:[%s9 + $0x60] sm:$0xff]
      %v5237 = vld [vmem:[%s9 + $0x68] sm:$0xff]
      %v5238 = vld [vmem:[%s9 + $0x70] sm:$0xff]
      %v5239 = vld [vmem:[%s9 + $0x78] sm:$0xff]
      %v5240 = vld [vmem:[%s9 + $0x80] sm:$0xff]
      %v5241 = vld [vmem:[%s9 + $0x88] sm:$0xff]
      %v5242 = vld [vmem:[%s9 + $0x90] sm:$0xff]
      %v5243 = vld [vmem:[%s9 + $0x98] sm:$0xff]
      %v5244 = vld [vmem:[%s9 + $0xa0] sm:$0xff]
      %v5245 = vld [vmem:[%s9 + $0xa8] sm:$0xff]
      %v5246 = vld [vmem:[%s9 + $0xb0] sm:$0xff]
      %v5247 = vld [vmem:[%s9 + $0xb8] sm:$0xff]
      %v5248 = vld [vmem:[%s9 + $0xc0] sm:$0xff]
      %v5249 = vld [vmem:[%s9 + $0xc8] sm:$0xff]
      %v5250 = vld [vmem:[%s9 + $0xd0] sm:$0xff]
      %v5251 = vld [vmem:[%s9 + $0xd8] sm:$0xff]
      %v5252 = vld [vmem:[%s9 + $0xe0] sm:$0xff]
      %v5253 = vld [vmem:[%s9 + $0xe8] sm:$0xff]
      %v5254 = vld [vmem:[%s9 + $0xf0] sm:$0xff]
      %v5255 = vld [vmem:[%s9 + $0xf8] sm:$0xff]
      %v5256 = vpack.c.bf16 %v4984, %v4983
      %v5257 = vpack.c.bf16 %v4986, %v4985
      %v5258 = vpack.c.bf16 %v4988, %v4987
      %v5259 = vpack.c.bf16 %v4990, %v4989
      %v5260 = vpack.c.bf16 %v4992, %v4991
      %v5261 = vpack.c.bf16 %v4994, %v4993
      %v5262 = vpack.c.bf16 %v4996, %v4995
      %v5263 = vpack.c.bf16 %v4998, %v4997
      %v5264 = vpack.c.bf16 %v5000, %v4999
      %v5265 = vpack.c.bf16 %v5002, %v5001
      %v5266 = vld [vmem:[%s10] sm:$0xff]
      %v5267 = vld [vmem:[%s10 + $0x8] sm:$0xff]
      %v5268 = vld [vmem:[%s10 + $0x10] sm:$0xff]
      %v5269 = vld [vmem:[%s10 + $0x18] sm:$0xff]
      %v5270 = vld [vmem:[%s10 + $0x20] sm:$0xff]
      %v5271 = vld [vmem:[%s10 + $0x28] sm:$0xff]
      %v5278 = vunpack.c.l.b16 %v5266
      %v5279 = vunpack.c.h.b16 %v5266
      %v5280 = vunpack.c.l.b16 %v5267
      %v5281 = vunpack.c.h.b16 %v5267
      %v5282 = vunpack.c.l.b16 %v5268
      %v5283 = vunpack.c.h.b16 %v5268
      %v5284 = vunpack.c.l.b16 %v5269
      %v5285 = vunpack.c.h.b16 %v5269
      %v5286 = vunpack.c.l.b16 %v5270
      %v5287 = vunpack.c.h.b16 %v5270
      %v5288 = vunpack.c.l.b16 %v5271
      %v5289 = vunpack.c.h.b16 %v5271
      %v5290 = vpack.c.b16 %v5280, %v5278
      %v5291 = vpack.c.b16 %v5281, %v5279
      %v5292 = vpack.c.b16 %v5284, %v5282
      %v5293 = vpack.c.b16 %v5285, %v5283
      %v5294 = vpack.c.b16 %v5288, %v5286
      %v5295 = vpack.c.b16 %v5289, %v5287
      %v5303 = vsel %vm1742, %v5256, 0
      %v5306 = vsel %vm1742, %v5257, 0
      %v5309 = vsel %vm1742, %v5258, 0
      %v5312 = vsel %vm1742, %v5259, 0
      %v5315 = vsel %vm1742, %v5260, 0
      %v5318 = vsel %vm1742, %v5261, 0
      %v5321 = vsel %vm1742, %v5262, 0
      %v5324 = vsel %vm1742, %v5263, 0
      %v5327 = vsel %vm1742, %v5264, 0
      %v5330 = vsel %vm1742, %v5265, 0
      %5332 = vmatpush.bf16.msra.mxu0 0
      %5333 = vmatpush.bf16.msra.mxu0 0
      %5334 = vmatpush.bf16.msra.mxu0 0
      %5335 = vmatpush.bf16.msra.mxu0 0
      %5336 = vmatpush.bf16.msra.mxu0 0
      %5337 = vmatpush.bf16.msra.mxu0 %v5294
      %5338 = vmatpush.bf16.msra.mxu0 %v5292
      %5339 = vmatpush.bf16.msra.mxu0 %v5290
      %5340 = vmatmul.bf16.gmra.mxu0 %v5303
      %v5341 = vpop.f32.mrf.mxu0
      %v5342 = vadd.f32 0.0, %v5341
      %v5343 = vpop.f32.mrf.mxu0
      %v5344 = vadd.f32 0.0, %v5343
      %5345 = vmatmul.bf16.gmra.mxu0 %v5306
      %v5346 = vpop.f32.mrf.mxu0
      %v5347 = vadd.f32 0.0, %v5346
      %v5348 = vpop.f32.mrf.mxu0
      %v5349 = vadd.f32 0.0, %v5348
      %5350 = vmatmul.bf16.gmra.mxu0 %v5309
      %v5351 = vpop.f32.mrf.mxu0
      %v5352 = vadd.f32 0.0, %v5351
      %v5353 = vpop.f32.mrf.mxu0
      %v5354 = vadd.f32 0.0, %v5353
      %5355 = vmatmul.bf16.gmra.mxu0 %v5312
      %v5356 = vpop.f32.mrf.mxu0
      %v5357 = vadd.f32 0.0, %v5356
      %v5358 = vpop.f32.mrf.mxu0
      %v5359 = vadd.f32 0.0, %v5358
      %5360 = vmatmul.bf16.gmra.mxu0 %v5315
      %v5361 = vpop.f32.mrf.mxu0
      %v5362 = vadd.f32 0.0, %v5361
      %v5363 = vpop.f32.mrf.mxu0
      %v5364 = vadd.f32 0.0, %v5363
      %5365 = vmatmul.bf16.gmra.mxu0 %v5318
      %v5366 = vpop.f32.mrf.mxu0
      %v5367 = vadd.f32 0.0, %v5366
      %v5368 = vpop.f32.mrf.mxu0
      %v5369 = vadd.f32 0.0, %v5368
      %5370 = vmatmul.bf16.gmra.mxu0 %v5321
      %v5371 = vpop.f32.mrf.mxu0
      %v5372 = vadd.f32 0.0, %v5371
      %v5373 = vpop.f32.mrf.mxu0
      %v5374 = vadd.f32 0.0, %v5373
      %5375 = vmatmul.bf16.gmra.mxu0 %v5324
      %v5376 = vpop.f32.mrf.mxu0
      %v5377 = vadd.f32 0.0, %v5376
      %v5378 = vpop.f32.mrf.mxu0
      %v5379 = vadd.f32 0.0, %v5378
      %5380 = vmatmul.bf16.gmra.mxu0 %v5327
      %v5381 = vpop.f32.mrf.mxu0
      %v5382 = vadd.f32 0.0, %v5381
      %v5383 = vpop.f32.mrf.mxu0
      %v5384 = vadd.f32 0.0, %v5383
      %5385 = vmatmul.bf16.gmra.mxu0 %v5330
      %v5386 = vpop.f32.mrf.mxu0
      %v5387 = vadd.f32 0.0, %v5386
      %v5388 = vpop.f32.mrf.mxu0
      %v5389 = vadd.f32 0.0, %v5388
      %5390 = vdwg.mxu0
      %5391 = vmatpush.bf16.msra.mxu0 0
      %5392 = vmatpush.bf16.msra.mxu0 0
      %5393 = vmatpush.bf16.msra.mxu0 0
      %5394 = vmatpush.bf16.msra.mxu0 0
      %5395 = vmatpush.bf16.msra.mxu0 0
      %5396 = vmatpush.bf16.msra.mxu0 %v5295
      %5397 = vmatpush.bf16.msra.mxu0 %v5293
      %5398 = vmatpush.bf16.msra.mxu0 %v5291
      %5399 = vmatmul.bf16.gmra.mxu0 %v5303
      %v5400 = vpop.f32.mrf.mxu0
      %v5401 = vadd.f32 0.0, %v5400
      %v5402 = vpop.f32.mrf.mxu0
      %v5403 = vadd.f32 0.0, %v5402
      %5404 = vmatmul.bf16.gmra.mxu0 %v5306
      %v5405 = vpop.f32.mrf.mxu0
      %v5406 = vadd.f32 0.0, %v5405
      %v5407 = vpop.f32.mrf.mxu0
      %v5408 = vadd.f32 0.0, %v5407
      %5409 = vmatmul.bf16.gmra.mxu0 %v5309
      %v5410 = vpop.f32.mrf.mxu0
      %v5411 = vadd.f32 0.0, %v5410
      %v5412 = vpop.f32.mrf.mxu0
      %v5413 = vadd.f32 0.0, %v5412
      %5414 = vmatmul.bf16.gmra.mxu0 %v5312
      %v5415 = vpop.f32.mrf.mxu0
      %v5416 = vadd.f32 0.0, %v5415
      %v5417 = vpop.f32.mrf.mxu0
      %v5418 = vadd.f32 0.0, %v5417
      %5419 = vmatmul.bf16.gmra.mxu0 %v5315
      %v5420 = vpop.f32.mrf.mxu0
      %v5421 = vadd.f32 0.0, %v5420
      %v5422 = vpop.f32.mrf.mxu0
      %v5423 = vadd.f32 0.0, %v5422
      %5424 = vmatmul.bf16.gmra.mxu0 %v5318
      %v5425 = vpop.f32.mrf.mxu0
      %v5426 = vadd.f32 0.0, %v5425
      %v5427 = vpop.f32.mrf.mxu0
      %v5428 = vadd.f32 0.0, %v5427
      %5429 = vmatmul.bf16.gmra.mxu0 %v5321
      %v5430 = vpop.f32.mrf.mxu0
      %v5431 = vadd.f32 0.0, %v5430
      %v5432 = vpop.f32.mrf.mxu0
      %v5433 = vadd.f32 0.0, %v5432
      %5434 = vmatmul.bf16.gmra.mxu0 %v5324
      %v5435 = vpop.f32.mrf.mxu0
      %v5436 = vadd.f32 0.0, %v5435
      %v5437 = vpop.f32.mrf.mxu0
      %v5438 = vadd.f32 0.0, %v5437
      %5439 = vmatmul.bf16.gmra.mxu0 %v5327
      %v5440 = vpop.f32.mrf.mxu0
      %v5441 = vadd.f32 0.0, %v5440
      %v5442 = vpop.f32.mrf.mxu0
      %v5443 = vadd.f32 0.0, %v5442
      %5444 = vmatmul.bf16.gmra.mxu0 %v5330
      %v5445 = vpop.f32.mrf.mxu0
      %v5446 = vadd.f32 0.0, %v5445
      %v5447 = vpop.f32.mrf.mxu0
      %v5448 = vadd.f32 0.0, %v5447
      %5449 = vdwg.mxu0
      %v5482 = vunpack.c.l.b16 %v5224
      %v5483 = vunpack.c.h.b16 %v5224
      %v5484 = vunpack.c.l.b16 %v5225
      %v5485 = vunpack.c.h.b16 %v5225
      %v5486 = vunpack.c.l.b16 %v5226
      %v5487 = vunpack.c.h.b16 %v5226
      %v5488 = vunpack.c.l.b16 %v5227
      %v5489 = vunpack.c.h.b16 %v5227
      %v5490 = vunpack.c.l.b16 %v5228
      %v5491 = vunpack.c.h.b16 %v5228
      %v5492 = vunpack.c.l.b16 %v5229
      %v5493 = vunpack.c.h.b16 %v5229
      %v5494 = vunpack.c.l.b16 %v5230
      %v5495 = vunpack.c.h.b16 %v5230
      %v5496 = vunpack.c.l.b16 %v5231
      %v5497 = vunpack.c.h.b16 %v5231
      %v5498 = vunpack.c.l.b16 %v5232
      %v5499 = vunpack.c.h.b16 %v5232
      %v5500 = vunpack.c.l.b16 %v5233
      %v5501 = vunpack.c.h.b16 %v5233
      %v5502 = vunpack.c.l.b16 %v5234
      %v5503 = vunpack.c.h.b16 %v5234
      %v5504 = vunpack.c.l.b16 %v5235
      %v5505 = vunpack.c.h.b16 %v5235
      %v5506 = vunpack.c.l.b16 %v5236
      %v5507 = vunpack.c.h.b16 %v5236
      %v5508 = vunpack.c.l.b16 %v5237
      %v5509 = vunpack.c.h.b16 %v5237
      %v5510 = vunpack.c.l.b16 %v5238
      %v5511 = vunpack.c.h.b16 %v5238
      %v5512 = vunpack.c.l.b16 %v5239
      %v5513 = vunpack.c.h.b16 %v5239
      %v5514 = vunpack.c.l.b16 %v5240
      %v5515 = vunpack.c.h.b16 %v5240
      %v5516 = vunpack.c.l.b16 %v5241
      %v5517 = vunpack.c.h.b16 %v5241
      %v5518 = vunpack.c.l.b16 %v5242
      %v5519 = vunpack.c.h.b16 %v5242
      %v5520 = vunpack.c.l.b16 %v5243
      %v5521 = vunpack.c.h.b16 %v5243
      %v5522 = vunpack.c.l.b16 %v5244
      %v5523 = vunpack.c.h.b16 %v5244
      %v5524 = vunpack.c.l.b16 %v5245
      %v5525 = vunpack.c.h.b16 %v5245
      %v5526 = vunpack.c.l.b16 %v5246
      %v5527 = vunpack.c.h.b16 %v5246
      %v5528 = vunpack.c.l.b16 %v5247
      %v5529 = vunpack.c.h.b16 %v5247
      %v5530 = vunpack.c.l.b16 %v5248
      %v5531 = vunpack.c.h.b16 %v5248
      %v5532 = vunpack.c.l.b16 %v5249
      %v5533 = vunpack.c.h.b16 %v5249
      %v5534 = vunpack.c.l.b16 %v5250
      %v5535 = vunpack.c.h.b16 %v5250
      %v5536 = vunpack.c.l.b16 %v5251
      %v5537 = vunpack.c.h.b16 %v5251
      %v5538 = vunpack.c.l.b16 %v5252
      %v5539 = vunpack.c.h.b16 %v5252
      %v5540 = vunpack.c.l.b16 %v5253
      %v5541 = vunpack.c.h.b16 %v5253
      %v5542 = vunpack.c.l.b16 %v5254
      %v5543 = vunpack.c.h.b16 %v5254
      %v5544 = vunpack.c.l.b16 %v5255
      %v5545 = vunpack.c.h.b16 %v5255
      %v5546 = vpack.c.b16 %v5484, %v5482
      %v5547 = vpack.c.b16 %v5485, %v5483
      %v5548 = vpack.c.b16 %v5488, %v5486
      %v5549 = vpack.c.b16 %v5489, %v5487
      %v5550 = vpack.c.b16 %v5492, %v5490
      %v5551 = vpack.c.b16 %v5493, %v5491
      %v5552 = vpack.c.b16 %v5496, %v5494
      %v5553 = vpack.c.b16 %v5497, %v5495
      %v5554 = vpack.c.b16 %v5500, %v5498
      %v5555 = vpack.c.b16 %v5501, %v5499
      %v5556 = vpack.c.b16 %v5504, %v5502
      %v5557 = vpack.c.b16 %v5505, %v5503
      %v5558 = vpack.c.b16 %v5508, %v5506
      %v5559 = vpack.c.b16 %v5509, %v5507
      %v5560 = vpack.c.b16 %v5512, %v5510
      %v5561 = vpack.c.b16 %v5513, %v5511
      %v5562 = vpack.c.b16 %v5516, %v5514
      %v5563 = vpack.c.b16 %v5517, %v5515
      %v5564 = vpack.c.b16 %v5520, %v5518
      %v5565 = vpack.c.b16 %v5521, %v5519
      %v5566 = vpack.c.b16 %v5524, %v5522
      %v5567 = vpack.c.b16 %v5525, %v5523
      %v5568 = vpack.c.b16 %v5528, %v5526
      %v5569 = vpack.c.b16 %v5529, %v5527
      %v5570 = vpack.c.b16 %v5532, %v5530
      %v5571 = vpack.c.b16 %v5533, %v5531
      %v5572 = vpack.c.b16 %v5536, %v5534
      %v5573 = vpack.c.b16 %v5537, %v5535
      %v5574 = vpack.c.b16 %v5540, %v5538
      %v5575 = vpack.c.b16 %v5541, %v5539
      %v5576 = vpack.c.b16 %v5544, %v5542
      %v5577 = vpack.c.b16 %v5545, %v5543
      %5610 = vmatpush.bf16.msra.mxu0 %v5560
      %5611 = vmatpush.bf16.msra.mxu0 %v5558
      %5612 = vmatpush.bf16.msra.mxu0 %v5556
      %5613 = vmatpush.bf16.msra.mxu0 %v5554
      %5614 = vmatpush.bf16.msra.mxu0 %v5552
      %5615 = vmatpush.bf16.msra.mxu0 %v5550
      %5616 = vmatpush.bf16.msra.mxu0 %v5548
      %5617 = vmatpush.bf16.msra.mxu0 %v5546
      %5618 = vmatmul.bf16.gmra.mxu0 %v5204
      %v5619 = vpop.f32.mrf.mxu0
      %v5620 = vadd.f32 %v5342, %v5619
      %v5621 = vpop.f32.mrf.mxu0
      %v5622 = vadd.f32 %v5344, %v5621
      %5623 = vmatmul.bf16.gmra.mxu0 %v5206
      %v5624 = vpop.f32.mrf.mxu0
      %v5625 = vadd.f32 %v5347, %v5624
      %v5626 = vpop.f32.mrf.mxu0
      %v5627 = vadd.f32 %v5349, %v5626
      %5628 = vmatmul.bf16.gmra.mxu0 %v5208
      %v5629 = vpop.f32.mrf.mxu0
      %v5630 = vadd.f32 %v5352, %v5629
      %v5631 = vpop.f32.mrf.mxu0
      %v5632 = vadd.f32 %v5354, %v5631
      %5633 = vmatmul.bf16.gmra.mxu0 %v5210
      %v5634 = vpop.f32.mrf.mxu0
      %v5635 = vadd.f32 %v5357, %v5634
      %v5636 = vpop.f32.mrf.mxu0
      %v5637 = vadd.f32 %v5359, %v5636
      %5638 = vmatmul.bf16.gmra.mxu0 %v5212
      %v5639 = vpop.f32.mrf.mxu0
      %v5640 = vadd.f32 %v5362, %v5639
      %v5641 = vpop.f32.mrf.mxu0
      %v5642 = vadd.f32 %v5364, %v5641
      %5643 = vmatmul.bf16.gmra.mxu0 %v5214
      %v5644 = vpop.f32.mrf.mxu0
      %v5645 = vadd.f32 %v5367, %v5644
      %v5646 = vpop.f32.mrf.mxu0
      %v5647 = vadd.f32 %v5369, %v5646
      %5648 = vmatmul.bf16.gmra.mxu0 %v5216
      %v5649 = vpop.f32.mrf.mxu0
      %v5650 = vadd.f32 %v5372, %v5649
      %v5651 = vpop.f32.mrf.mxu0
      %v5652 = vadd.f32 %v5374, %v5651
      %5653 = vmatmul.bf16.gmra.mxu0 %v5218
      %v5654 = vpop.f32.mrf.mxu0
      %v5655 = vadd.f32 %v5377, %v5654
      %v5656 = vpop.f32.mrf.mxu0
      %v5657 = vadd.f32 %v5379, %v5656
      %5658 = vmatmul.bf16.gmra.mxu0 %v5220
      %v5659 = vpop.f32.mrf.mxu0
      %v5660 = vadd.f32 %v5382, %v5659
      %v5661 = vpop.f32.mrf.mxu0
      %v5662 = vadd.f32 %v5384, %v5661
      %5663 = vmatmul.bf16.gmra.mxu0 %v5222
      %v5664 = vpop.f32.mrf.mxu0
      %v5665 = vadd.f32 %v5387, %v5664
      %v5666 = vpop.f32.mrf.mxu0
      %v5667 = vadd.f32 %v5389, %v5666
      %5668 = vdwg.mxu0
      %5669 = vmatpush.bf16.msra.mxu0 %v5576
      %5670 = vmatpush.bf16.msra.mxu0 %v5574
      %5671 = vmatpush.bf16.msra.mxu0 %v5572
      %5672 = vmatpush.bf16.msra.mxu0 %v5570
      %5673 = vmatpush.bf16.msra.mxu0 %v5568
      %5674 = vmatpush.bf16.msra.mxu0 %v5566
      %5675 = vmatpush.bf16.msra.mxu0 %v5564
      %5676 = vmatpush.bf16.msra.mxu0 %v5562
      %5677 = vmatmul.bf16.gmra.mxu0 %v5205
      %v5678 = vpop.f32.mrf.mxu0
      %v5679 = vadd.f32 %v5620, %v5678
      %v5680 = vpop.f32.mrf.mxu0
      %v5681 = vadd.f32 %v5622, %v5680
      %5682 = vmatmul.bf16.gmra.mxu0 %v5207
      %v5683 = vpop.f32.mrf.mxu0
      %v5684 = vadd.f32 %v5625, %v5683
      %v5685 = vpop.f32.mrf.mxu0
      %v5686 = vadd.f32 %v5627, %v5685
      %5687 = vmatmul.bf16.gmra.mxu0 %v5209
      %v5688 = vpop.f32.mrf.mxu0
      %v5689 = vadd.f32 %v5630, %v5688
      %v5690 = vpop.f32.mrf.mxu0
      %v5691 = vadd.f32 %v5632, %v5690
      %5692 = vmatmul.bf16.gmra.mxu0 %v5211
      %v5693 = vpop.f32.mrf.mxu0
      %v5694 = vadd.f32 %v5635, %v5693
      %v5695 = vpop.f32.mrf.mxu0
      %v5696 = vadd.f32 %v5637, %v5695
      %5697 = vmatmul.bf16.gmra.mxu0 %v5213
      %v5698 = vpop.f32.mrf.mxu0
      %v5699 = vadd.f32 %v5640, %v5698
      %v5700 = vpop.f32.mrf.mxu0
      %v5701 = vadd.f32 %v5642, %v5700
      %5702 = vmatmul.bf16.gmra.mxu0 %v5215
      %v5703 = vpop.f32.mrf.mxu0
      %v5704 = vadd.f32 %v5645, %v5703
      %v5705 = vpop.f32.mrf.mxu0
      %v5706 = vadd.f32 %v5647, %v5705
      %5707 = vmatmul.bf16.gmra.mxu0 %v5217
      %v5708 = vpop.f32.mrf.mxu0
      %v5709 = vadd.f32 %v5650, %v5708
      %v5710 = vpop.f32.mrf.mxu0
      %v5711 = vadd.f32 %v5652, %v5710
      %5712 = vmatmul.bf16.gmra.mxu0 %v5219
      %v5713 = vpop.f32.mrf.mxu0
      %v5714 = vadd.f32 %v5655, %v5713
      %v5715 = vpop.f32.mrf.mxu0
      %v5716 = vadd.f32 %v5657, %v5715
      %5717 = vmatmul.bf16.gmra.mxu0 %v5221
      %v5718 = vpop.f32.mrf.mxu0
      %v5719 = vadd.f32 %v5660, %v5718
      %v5720 = vpop.f32.mrf.mxu0
      %v5721 = vadd.f32 %v5662, %v5720
      %5722 = vmatmul.bf16.gmra.mxu0 %v5223
      %v5723 = vpop.f32.mrf.mxu0
      %v5724 = vadd.f32 %v5665, %v5723
      %v5725 = vpop.f32.mrf.mxu0
      %v5726 = vadd.f32 %v5667, %v5725
      %5727 = vdwg.mxu0
      %5728 = vmatpush.bf16.msra.mxu0 %v5561
      %5729 = vmatpush.bf16.msra.mxu0 %v5559
      %5730 = vmatpush.bf16.msra.mxu0 %v5557
      %5731 = vmatpush.bf16.msra.mxu0 %v5555
      %5732 = vmatpush.bf16.msra.mxu0 %v5553
      %5733 = vmatpush.bf16.msra.mxu0 %v5551
      %5734 = vmatpush.bf16.msra.mxu0 %v5549
      %5735 = vmatpush.bf16.msra.mxu0 %v5547
      %5736 = vmatmul.bf16.gmra.mxu0 %v5204
      %v5737 = vpop.f32.mrf.mxu0
      %v5738 = vadd.f32 %v5401, %v5737
      %v5739 = vpop.f32.mrf.mxu0
      %v5740 = vadd.f32 %v5403, %v5739
      %5741 = vmatmul.bf16.gmra.mxu0 %v5206
      %v5742 = vpop.f32.mrf.mxu0
      %v5743 = vadd.f32 %v5406, %v5742
      %v5744 = vpop.f32.mrf.mxu0
      %v5745 = vadd.f32 %v5408, %v5744
      %5746 = vmatmul.bf16.gmra.mxu0 %v5208
      %v5747 = vpop.f32.mrf.mxu0
      %v5748 = vadd.f32 %v5411, %v5747
      %v5749 = vpop.f32.mrf.mxu0
      %v5750 = vadd.f32 %v5413, %v5749
      %5751 = vmatmul.bf16.gmra.mxu0 %v5210
      %v5752 = vpop.f32.mrf.mxu0
      %v5753 = vadd.f32 %v5416, %v5752
      %v5754 = vpop.f32.mrf.mxu0
      %v5755 = vadd.f32 %v5418, %v5754
      %5756 = vmatmul.bf16.gmra.mxu0 %v5212
      %v5757 = vpop.f32.mrf.mxu0
      %v5758 = vadd.f32 %v5421, %v5757
      %v5759 = vpop.f32.mrf.mxu0
      %v5760 = vadd.f32 %v5423, %v5759
      %5761 = vmatmul.bf16.gmra.mxu0 %v5214
      %v5762 = vpop.f32.mrf.mxu0
      %v5763 = vadd.f32 %v5426, %v5762
      %v5764 = vpop.f32.mrf.mxu0
      %v5765 = vadd.f32 %v5428, %v5764
      %5766 = vmatmul.bf16.gmra.mxu0 %v5216
      %v5767 = vpop.f32.mrf.mxu0
      %v5768 = vadd.f32 %v5431, %v5767
      %v5769 = vpop.f32.mrf.mxu0
      %v5770 = vadd.f32 %v5433, %v5769
      %5771 = vmatmul.bf16.gmra.mxu0 %v5218
      %v5772 = vpop.f32.mrf.mxu0
      %v5773 = vadd.f32 %v5436, %v5772
      %v5774 = vpop.f32.mrf.mxu0
      %v5775 = vadd.f32 %v5438, %v5774
      %5776 = vmatmul.bf16.gmra.mxu0 %v5220
      %v5777 = vpop.f32.mrf.mxu0
      %v5778 = vadd.f32 %v5441, %v5777
      %v5779 = vpop.f32.mrf.mxu0
      %v5780 = vadd.f32 %v5443, %v5779
      %5781 = vmatmul.bf16.gmra.mxu0 %v5222
      %v5782 = vpop.f32.mrf.mxu0
      %v5783 = vadd.f32 %v5446, %v5782
      %v5784 = vpop.f32.mrf.mxu0
      %v5785 = vadd.f32 %v5448, %v5784
      %5786 = vdwg.mxu0
      %5787 = vmatpush.bf16.msra.mxu0 %v5577
      %5788 = vmatpush.bf16.msra.mxu0 %v5575
      %5789 = vmatpush.bf16.msra.mxu0 %v5573
      %5790 = vmatpush.bf16.msra.mxu0 %v5571
      %5791 = vmatpush.bf16.msra.mxu0 %v5569
      %5792 = vmatpush.bf16.msra.mxu0 %v5567
      %5793 = vmatpush.bf16.msra.mxu0 %v5565
      %5794 = vmatpush.bf16.msra.mxu0 %v5563
      %5795 = vmatmul.bf16.gmra.mxu0 %v5205
      %v5796 = vpop.f32.mrf.mxu0
      %v5797 = vadd.f32 %v5738, %v5796
      %v5798 = vpop.f32.mrf.mxu0
      %v5799 = vadd.f32 %v5740, %v5798
      %5800 = vmatmul.bf16.gmra.mxu0 %v5207
      %v5801 = vpop.f32.mrf.mxu0
      %v5802 = vadd.f32 %v5743, %v5801
      %v5803 = vpop.f32.mrf.mxu0
      %v5804 = vadd.f32 %v5745, %v5803
      %5805 = vmatmul.bf16.gmra.mxu0 %v5209
      %v5806 = vpop.f32.mrf.mxu0
      %v5807 = vadd.f32 %v5748, %v5806
      %v5808 = vpop.f32.mrf.mxu0
      %v5809 = vadd.f32 %v5750, %v5808
      %5810 = vmatmul.bf16.gmra.mxu0 %v5211
      %v5811 = vpop.f32.mrf.mxu0
      %v5812 = vadd.f32 %v5753, %v5811
      %v5813 = vpop.f32.mrf.mxu0
      %v5814 = vadd.f32 %v5755, %v5813
      %5815 = vmatmul.bf16.gmra.mxu0 %v5213
      %v5816 = vpop.f32.mrf.mxu0
      %v5817 = vadd.f32 %v5758, %v5816
      %v5818 = vpop.f32.mrf.mxu0
      %v5819 = vadd.f32 %v5760, %v5818
      %5820 = vmatmul.bf16.gmra.mxu0 %v5215
      %v5821 = vpop.f32.mrf.mxu0
      %v5822 = vadd.f32 %v5763, %v5821
      %v5823 = vpop.f32.mrf.mxu0
      %v5824 = vadd.f32 %v5765, %v5823
      %5825 = vmatmul.bf16.gmra.mxu0 %v5217
      %v5826 = vpop.f32.mrf.mxu0
      %v5827 = vadd.f32 %v5768, %v5826
      %v5828 = vpop.f32.mrf.mxu0
      %v5829 = vadd.f32 %v5770, %v5828
      %5830 = vmatmul.bf16.gmra.mxu0 %v5219
      %v5831 = vpop.f32.mrf.mxu0
      %v5832 = vadd.f32 %v5773, %v5831
      %v5833 = vpop.f32.mrf.mxu0
      %v5834 = vadd.f32 %v5775, %v5833
      %5835 = vmatmul.bf16.gmra.mxu0 %v5221
      %v5836 = vpop.f32.mrf.mxu0
      %v5837 = vadd.f32 %v5778, %v5836
      %v5838 = vpop.f32.mrf.mxu0
      %v5839 = vadd.f32 %v5780, %v5838
      %5840 = vmatmul.bf16.gmra.mxu0 %v5223
      %v5841 = vpop.f32.mrf.mxu0
      %v5842 = vadd.f32 %v5783, %v5841
      %v5843 = vpop.f32.mrf.mxu0
      %v5844 = vadd.f32 %v5785, %v5843
      %5845 = vdwg.mxu0
      %v5846 = vld [vmem:[%s11] sm:$0x3]
      %v5848 = vperm.slane %v5846, 0
      %v5849 = vperm.slane %v5846, 1
      %v5852 = vadd.f32 %v5679, %v5848
      %v5853 = vadd.f32 %v5797, %v5849
      %v5854 = vadd.f32 %v5681, %v5848
      %v5855 = vadd.f32 %v5799, %v5849
      %v5856 = vadd.f32 %v5684, %v5848
      %v5857 = vadd.f32 %v5802, %v5849
      %v5858 = vadd.f32 %v5686, %v5848
      %v5859 = vadd.f32 %v5804, %v5849
      %v5860 = vadd.f32 %v5689, %v5848
      %v5861 = vadd.f32 %v5807, %v5849
      %v5862 = vadd.f32 %v5691, %v5848
      %v5863 = vadd.f32 %v5809, %v5849
      %v5864 = vadd.f32 %v5694, %v5848
      %v5865 = vadd.f32 %v5812, %v5849
      %v5866 = vadd.f32 %v5696, %v5848
      %v5867 = vadd.f32 %v5814, %v5849
      %v5868 = vadd.f32 %v5699, %v5848
      %v5869 = vadd.f32 %v5817, %v5849
      %v5870 = vadd.f32 %v5701, %v5848
      %v5871 = vadd.f32 %v5819, %v5849
      %v5872 = vadd.f32 %v5704, %v5848
      %v5873 = vadd.f32 %v5822, %v5849
      %v5874 = vadd.f32 %v5706, %v5848
      %v5875 = vadd.f32 %v5824, %v5849
      %v5876 = vadd.f32 %v5709, %v5848
      %v5877 = vadd.f32 %v5827, %v5849
      %v5878 = vadd.f32 %v5711, %v5848
      %v5879 = vadd.f32 %v5829, %v5849
      %v5880 = vadd.f32 %v5714, %v5848
      %v5881 = vadd.f32 %v5832, %v5849
      %v5882 = vadd.f32 %v5716, %v5848
      %v5883 = vadd.f32 %v5834, %v5849
      %v5884 = vadd.f32 %v5719, %v5848
      %v5885 = vadd.f32 %v5837, %v5849
      %v5886 = vadd.f32 %v5721, %v5848
      %v5887 = vadd.f32 %v5839, %v5849
      %v5888 = vadd.f32 %v5724, %v5848
      %v5889 = vadd.f32 %v5842, %v5849
      %v5890 = vadd.f32 %v5726, %v5848
      %v5891 = vadd.f32 %v5844, %v5849
      %v5892 = vmax.f32 %v5852, 0.0
      %v5893 = vmax.f32 %v5853, 0.0
      %v5894 = vmax.f32 %v5854, 0.0
      %v5895 = vmax.f32 %v5855, 0.0
      %v5896 = vmax.f32 %v5856, 0.0
      %v5897 = vmax.f32 %v5857, 0.0
      %v5898 = vmax.f32 %v5858, 0.0
      %v5899 = vmax.f32 %v5859, 0.0
      %v5900 = vmax.f32 %v5860, 0.0
      %v5901 = vmax.f32 %v5861, 0.0
      %v5902 = vmax.f32 %v5862, 0.0
      %v5903 = vmax.f32 %v5863, 0.0
      %v5904 = vmax.f32 %v5864, 0.0
      %v5905 = vmax.f32 %v5865, 0.0
      %v5906 = vmax.f32 %v5866, 0.0
      %v5907 = vmax.f32 %v5867, 0.0
      %v5908 = vmax.f32 %v5868, 0.0
      %v5909 = vmax.f32 %v5869, 0.0
      %v5910 = vmax.f32 %v5870, 0.0
      %v5911 = vmax.f32 %v5871, 0.0
      %v5912 = vmax.f32 %v5872, 0.0
      %v5913 = vmax.f32 %v5873, 0.0
      %v5914 = vmax.f32 %v5874, 0.0
      %v5915 = vmax.f32 %v5875, 0.0
      %v5916 = vmax.f32 %v5876, 0.0
      %v5917 = vmax.f32 %v5877, 0.0
      %v5918 = vmax.f32 %v5878, 0.0
      %v5919 = vmax.f32 %v5879, 0.0
      %v5920 = vmax.f32 %v5880, 0.0
      %v5921 = vmax.f32 %v5881, 0.0
      %v5922 = vmax.f32 %v5882, 0.0
      %v5923 = vmax.f32 %v5883, 0.0
      %v5924 = vmax.f32 %v5884, 0.0
      %v5925 = vmax.f32 %v5885, 0.0
      %v5926 = vmax.f32 %v5886, 0.0
      %v5927 = vmax.f32 %v5887, 0.0
      %v5928 = vmax.f32 %v5888, 0.0
      %v5929 = vmax.f32 %v5889, 0.0
      %v5930 = vmax.f32 %v5890, 0.0
      %v5931 = vmax.f32 %v5891, 0.0
      %5932 = vst [vmem:[#allocation4 + $0x10] sm:$0xff] %v5892
      %5933 = vst [vmem:[#allocation4 + $0x18] sm:$0xff] %v5893
      %5934 = vst [vmem:[#allocation4 + $0x20] sm:$0xff] %v5894
      %5935 = vst [vmem:[#allocation4 + $0x28] sm:$0xff] %v5895
      %5936 = vst [vmem:[#allocation4 + $0x50] sm:$0xff] %v5896
      %5937 = vst [vmem:[#allocation4 + $0x58] sm:$0xff] %v5897
      %5938 = vst [vmem:[#allocation4 + $0x60] sm:$0xff] %v5898
      %5939 = vst [vmem:[#allocation4 + $0x68] sm:$0xff] %v5899
      %5940 = vst [vmem:[#allocation4 + $0x90] sm:$0xff] %v5900
      %5941 = vst [vmem:[#allocation4 + $0x98] sm:$0xff] %v5901
      %5942 = vst [vmem:[#allocation4 + $0xa0] sm:$0xff] %v5902
      %5943 = vst [vmem:[#allocation4 + $0xa8] sm:$0xff] %v5903
      %5944 = vst [vmem:[#allocation4 + $0xd0] sm:$0xff] %v5904
      %5945 = vst [vmem:[#allocation4 + $0xd8] sm:$0xff] %v5905
      %5946 = vst [vmem:[#allocation4 + $0xe0] sm:$0xff] %v5906
      %5947 = vst [vmem:[#allocation4 + $0xe8] sm:$0xff] %v5907
      %5948 = vst [vmem:[#allocation4 + $0x110] sm:$0xff] %v5908
      %5949 = vst [vmem:[#allocation4 + $0x118] sm:$0xff] %v5909
      %5950 = vst [vmem:[#allocation4 + $0x120] sm:$0xff] %v5910
      %5951 = vst [vmem:[#allocation4 + $0x128] sm:$0xff] %v5911
      %5952 = vst [vmem:[#allocation4 + $0x150] sm:$0xff] %v5912
      %5953 = vst [vmem:[#allocation4 + $0x158] sm:$0xff] %v5913
      %5954 = vst [vmem:[#allocation4 + $0x160] sm:$0xff] %v5914
      %5955 = vst [vmem:[#allocation4 + $0x168] sm:$0xff] %v5915
      %5956 = vst [vmem:[#allocation4 + $0x190] sm:$0xff] %v5916
      %5957 = vst [vmem:[#allocation4 + $0x198] sm:$0xff] %v5917
      %5958 = vst [vmem:[#allocation4 + $0x1a0] sm:$0xff] %v5918
      %5959 = vst [vmem:[#allocation4 + $0x1a8] sm:$0xff] %v5919
      %5960 = vst [vmem:[#allocation4 + $0x1d0] sm:$0xff] %v5920
      %5961 = vst [vmem:[#allocation4 + $0x1d8] sm:$0xff] %v5921
      %5962 = vst [vmem:[#allocation4 + $0x1e0] sm:$0xff] %v5922
      %5963 = vst [vmem:[#allocation4 + $0x1e8] sm:$0xff] %v5923
      %5964 = vst [vmem:[#allocation4 + $0x210] sm:$0xff] %v5924
      %5965 = vst [vmem:[#allocation4 + $0x218] sm:$0xff] %v5925
      %5966 = vst [vmem:[#allocation4 + $0x220] sm:$0xff] %v5926
      %5967 = vst [vmem:[#allocation4 + $0x228] sm:$0xff] %v5927
      %5968 = vst [vmem:[#allocation4 + $0x250] sm:$0xff] %v5928
      %5969 = vst [vmem:[#allocation4 + $0x258] sm:$0xff] %v5929
      %5970 = vst [vmem:[#allocation4 + $0x260] sm:$0xff] %v5930
      %5971 = vst [vmem:[#allocation4 + $0x268] sm:$0xff] %v5931
      // Predicated region
      $region93: #{decoder_spp_forward.1} parent=83 // pred_check
        %p5972 = pneg %p1767
      $region94: #{decoder_spp_forward.1} parent=83 // pred_check_branch
        %5974 = sbr.rel (%p5972) target = $region96
      $region95: #{decoder_spp_forward.1} parent=83 // pred_region
        %5975 = vst [vmem:[#allocation4] sm:$0xff] 0.0
        %5976 = vst [vmem:[#allocation4 + $0x8] sm:$0xff] 0.0
        %5977 = vst [vmem:[#allocation4 + $0x10] sm:$0xff] 0.0
        %5978 = vst [vmem:[#allocation4 + $0x18] sm:$0xff] 0.0
        %5979 = vst [vmem:[#allocation4 + $0x20] sm:$0xff] 0.0
        %5980 = vst [vmem:[#allocation4 + $0x28] sm:$0xff] 0.0
        %5981 = vst [vmem:[#allocation4 + $0x30] sm:$0xff] 0.0
        %5982 = vst [vmem:[#allocation4 + $0x38] sm:$0xff] 0.0
      $region96: #{decoder_spp_forward.1} parent=83 // pred_fallthru
        _
      // Predicated region
      $region97: #{decoder_spp_forward.1} parent=83 // pred_check
        %p5983 = pneg %p1779
      $region98: #{decoder_spp_forward.1} parent=83 // pred_check_branch
        %5985 = sbr.rel (%p5983) target = $region100
      $region99: #{decoder_spp_forward.1} parent=83 // pred_region
        %s5986 = scalar_lea.vmem [#allocation4], 576
        %5987 = vst [vmem:[%s5986] sm:$0xff] 0.0
        %5988 = vst [vmem:[%s5986 + $0x8] sm:$0xff] 0.0
        %5989 = vst [vmem:[%s5986 + $0x10] sm:$0xff] 0.0
        %5990 = vst [vmem:[%s5986 + $0x18] sm:$0xff] 0.0
        %5991 = vst [vmem:[%s5986 + $0x20] sm:$0xff] 0.0
        %5992 = vst [vmem:[%s5986 + $0x28] sm:$0xff] 0.0
        %5993 = vst [vmem:[%s5986 + $0x30] sm:$0xff] 0.0
        %5994 = vst [vmem:[%s5986 + $0x38] sm:$0xff] 0.0
      $region100: #{decoder_spp_forward.1} parent=83 // pred_fallthru
        _
      %5995 = vst [vmem:[#allocation4] sm:$0xff] 0.0
      %5996 = vst [vmem:[#allocation4 + $0x8] sm:$0xff] 0.0
      %5997 = vst [vmem:[#allocation4 + $0x40] sm:$0xff] 0.0
      %5998 = vst [vmem:[#allocation4 + $0x48] sm:$0xff] 0.0
      %5999 = vst [vmem:[#allocation4 + $0x80] sm:$0xff] 0.0
      %6000 = vst [vmem:[#allocation4 + $0x88] sm:$0xff] 0.0
      %6001 = vst [vmem:[#allocation4 + $0xc0] sm:$0xff] 0.0
      %6002 = vst [vmem:[#allocation4 + $0xc8] sm:$0xff] 0.0
      %6003 = vst [vmem:[#allocation4 + $0x100] sm:$0xff] 0.0
      %6004 = vst [vmem:[#allocation4 + $0x108] sm:$0xff] 0.0
      %6005 = vst [vmem:[#allocation4 + $0x140] sm:$0xff] 0.0
      %6006 = vst [vmem:[#allocation4 + $0x148] sm:$0xff] 0.0
      %6007 = vst [vmem:[#allocation4 + $0x180] sm:$0xff] 0.0
      %6008 = vst [vmem:[#allocation4 + $0x188] sm:$0xff] 0.0
      %6009 = vst [vmem:[#allocation4 + $0x1c0] sm:$0xff] 0.0
      %6010 = vst [vmem:[#allocation4 + $0x1c8] sm:$0xff] 0.0
      %6011 = vst [vmem:[#allocation4 + $0x200] sm:$0xff] 0.0
      %6012 = vst [vmem:[#allocation4 + $0x208] sm:$0xff] 0.0
      %6013 = vst [vmem:[#allocation4 + $0x240] sm:$0xff] 0.0
      %6014 = vst [vmem:[#allocation4 + $0x248] sm:$0xff] 0.0
      %6015 = vst [vmem:[#allocation4 + $0x30] sm:$0xff] 0.0
      %6016 = vst [vmem:[#allocation4 + $0x38] sm:$0xff] 0.0
      %6017 = vst [vmem:[#allocation4 + $0x70] sm:$0xff] 0.0
      %6018 = vst [vmem:[#allocation4 + $0x78] sm:$0xff] 0.0
      %6019 = vst [vmem:[#allocation4 + $0xb0] sm:$0xff] 0.0
      %6020 = vst [vmem:[#allocation4 + $0xb8] sm:$0xff] 0.0
      %6021 = vst [vmem:[#allocation4 + $0xf0] sm:$0xff] 0.0
      %6022 = vst [vmem:[#allocation4 + $0xf8] sm:$0xff] 0.0
      %6023 = vst [vmem:[#allocation4 + $0x130] sm:$0xff] 0.0
      %6024 = vst [vmem:[#allocation4 + $0x138] sm:$0xff] 0.0
      %6025 = vst [vmem:[#allocation4 + $0x170] sm:$0xff] 0.0
      %6026 = vst [vmem:[#allocation4 + $0x178] sm:$0xff] 0.0
      %6027 = vst [vmem:[#allocation4 + $0x1b0] sm:$0xff] 0.0
      %6028 = vst [vmem:[#allocation4 + $0x1b8] sm:$0xff] 0.0
      %6029 = vst [vmem:[#allocation4 + $0x1f0] sm:$0xff] 0.0
      %6030 = vst [vmem:[#allocation4 + $0x1f8] sm:$0xff] 0.0
      %6031 = vst [vmem:[#allocation4 + $0x230] sm:$0xff] 0.0
      %6032 = vst [vmem:[#allocation4 + $0x238] sm:$0xff] 0.0
      %6033 = vst [vmem:[#allocation4 + $0x270] sm:$0xff] 0.0
      %6034 = vst [vmem:[#allocation4 + $0x278] sm:$0xff] 0.0
      %v6035 = vld [vmem:[%s12] sm:$0xff]
      %v6036 = vld [vmem:[%s12 + $0x8] sm:$0xff]
      %v6037 = vld [vmem:[%s12 + $0x10] sm:$0x1]
      %v6038 = vld [vmem:[%s12 + $0x18] sm:$0x1]
      %v6039 = vld [vmem:[%s13] sm:$0x3]
      %v6040 = vld [vmem:[#allocation4] sm:$0x80]
      %v6041 = vld [vmem:[#allocation4 + $0x8] sm:$0x80]
      %v6042 = vld [vmem:[#allocation4 + $0x10] sm:$0xff]
      %v6043 = vld [vmem:[#allocation4 + $0x18] sm:$0xff]
      %v6044 = vld [vmem:[#allocation4 + $0x20] sm:$0x7f]
      %v6045 = vld [vmem:[#allocation4 + $0x28] sm:$0x7f]
      %v6046 = vld [vmem:[#allocation4 + $0x40] sm:$0x80]
      %v6047 = vld [vmem:[#allocation4 + $0x48] sm:$0x80]
      %v6048 = vld [vmem:[#allocation4 + $0x50] sm:$0xff]
      %v6049 = vld [vmem:[#allocation4 + $0x58] sm:$0xff]
      %v6050 = vld [vmem:[#allocation4 + $0x60] sm:$0x7f]
      %v6051 = vld [vmem:[#allocation4 + $0x68] sm:$0x7f]
      %v6052 = vld [vmem:[#allocation4 + $0x80] sm:$0x80]
      %v6053 = vld [vmem:[#allocation4 + $0x88] sm:$0x80]
      %v6054 = vld [vmem:[#allocation4 + $0x90] sm:$0xff]
      %v6055 = vld [vmem:[#allocation4 + $0x98] sm:$0xff]
      %v6056 = vld [vmem:[#allocation4 + $0xa0] sm:$0x7f]
      %v6057 = vld [vmem:[#allocation4 + $0xa8] sm:$0x7f]
      %v6058 = vld [vmem:[#allocation4 + $0xc0] sm:$0x80]
      %v6059 = vld [vmem:[#allocation4 + $0xc8] sm:$0x80]
      %v6060 = vld [vmem:[#allocation4 + $0xd0] sm:$0xff]
      %v6061 = vld [vmem:[#allocation4 + $0xd8] sm:$0xff]
      %v6062 = vld [vmem:[#allocation4 + $0xe0] sm:$0x7f]
      %v6063 = vld [vmem:[#allocation4 + $0xe8] sm:$0x7f]
      %v6064 = vld [vmem:[#allocation4 + $0x100] sm:$0x80]
      %v6065 = vld [vmem:[#allocation4 + $0x108] sm:$0x80]
      %v6066 = vld [vmem:[#allocation4 + $0x110] sm:$0xff]
      %v6067 = vld [vmem:[#allocation4 + $0x118] sm:$0xff]
      %v6068 = vld [vmem:[#allocation4 + $0x120] sm:$0x7f]
      %v6069 = vld [vmem:[#allocation4 + $0x128] sm:$0x7f]
      %v6070 = vld [vmem:[#allocation4 + $0x140] sm:$0x80]
      %v6071 = vld [vmem:[#allocation4 + $0x148] sm:$0x80]
      %v6072 = vld [vmem:[#allocation4 + $0x150] sm:$0xff]
      %v6073 = vld [vmem:[#allocation4 + $0x158] sm:$0xff]
      %v6074 = vld [vmem:[#allocation4 + $0x160] sm:$0x7f]
      %v6075 = vld [vmem:[#allocation4 + $0x168] sm:$0x7f]
      %v6076 = vld [vmem:[#allocation4 + $0x180] sm:$0x80]
      %v6077 = vld [vmem:[#allocation4 + $0x188] sm:$0x80]
      %v6078 = vld [vmem:[#allocation4 + $0x190] sm:$0xff]
      %v6079 = vld [vmem:[#allocation4 + $0x198] sm:$0xff]
      %v6080 = vld [vmem:[#allocation4 + $0x1a0] sm:$0x7f]
      %v6081 = vld [vmem:[#allocation4 + $0x1a8] sm:$0x7f]
      %v6082 = vld [vmem:[#allocation4 + $0x1c0] sm:$0x80]
      %v6083 = vld [vmem:[#allocation4 + $0x1c8] sm:$0x80]
      %v6084 = vld [vmem:[#allocation4 + $0x1d0] sm:$0xff]
      %v6085 = vld [vmem:[#allocation4 + $0x1d8] sm:$0xff]
      %v6086 = vld [vmem:[#allocation4 + $0x1e0] sm:$0x7f]
      %v6087 = vld [vmem:[#allocation4 + $0x1e8] sm:$0x7f]
      %v6088 = vperm.slane %v6035, 0
      %v6089 = vperm.slane %v6036, 0
      %v6090 = vmul.f32 %v6040, %v6088
      %v6091 = vmul.f32 %v6041, %v6089
      %v6092 = vmul.f32 %v6042, %v6088
      %v6093 = vmul.f32 %v6043, %v6089
      %v6094 = vmul.f32 %v6044, %v6088
      %v6095 = vmul.f32 %v6045, %v6089
      %v6096 = vmul.f32 %v6046, %v6088
      %v6097 = vmul.f32 %v6047, %v6089
      %v6098 = vmul.f32 %v6048, %v6088
      %v6099 = vmul.f32 %v6049, %v6089
      %v6100 = vmul.f32 %v6050, %v6088
      %v6101 = vmul.f32 %v6051, %v6089
      %v6102 = vmul.f32 %v6052, %v6088
      %v6103 = vmul.f32 %v6053, %v6089
      %v6104 = vmul.f32 %v6054, %v6088
      %v6105 = vmul.f32 %v6055, %v6089
      %v6106 = vmul.f32 %v6056, %v6088
      %v6107 = vmul.f32 %v6057, %v6089
      %v6108 = vmul.f32 %v6058, %v6088
      %v6109 = vmul.f32 %v6059, %v6089
      %v6110 = vmul.f32 %v6060, %v6088
      %v6111 = vmul.f32 %v6061, %v6089
      %v6112 = vmul.f32 %v6062, %v6088
      %v6113 = vmul.f32 %v6063, %v6089
      %v6114 = vmul.f32 %v6064, %v6088
      %v6115 = vmul.f32 %v6065, %v6089
      %v6116 = vmul.f32 %v6066, %v6088
      %v6117 = vmul.f32 %v6067, %v6089
      %v6118 = vmul.f32 %v6068, %v6088
      %v6119 = vmul.f32 %v6069, %v6089
      %v6120 = vmul.f32 %v6070, %v6088
      %v6121 = vmul.f32 %v6071, %v6089
      %v6122 = vmul.f32 %v6072, %v6088
      %v6123 = vmul.f32 %v6073, %v6089
      %v6124 = vmul.f32 %v6074, %v6088
      %v6125 = vmul.f32 %v6075, %v6089
      %v6126 = vmul.f32 %v6076, %v6088
      %v6127 = vmul.f32 %v6077, %v6089
      %v6128 = vmul.f32 %v6078, %v6088
      %v6129 = vmul.f32 %v6079, %v6089
      %v6130 = vmul.f32 %v6080, %v6088
      %v6131 = vmul.f32 %v6081, %v6089
      %v6132 = vmul.f32 %v6082, %v6088
      %v6133 = vmul.f32 %v6083, %v6089
      %v6134 = vmul.f32 %v6084, %v6088
      %v6135 = vmul.f32 %v6085, %v6089
      %v6136 = vmul.f32 %v6086, %v6088
      %v6137 = vmul.f32 %v6087, %v6089
      %v6138 = vld [vmem:[#allocation4 + $0x20] sm:$0xff]
      %v6139 = vld [vmem:[#allocation4 + $0x28] sm:$0xff]
      %v6140 = vld [vmem:[#allocation4 + $0x60] sm:$0xff]
      %v6141 = vld [vmem:[#allocation4 + $0x68] sm:$0xff]
      %v6142 = vld [vmem:[#allocation4 + $0xa0] sm:$0xff]
      %v6143 = vld [vmem:[#allocation4 + $0xa8] sm:$0xff]
      %v6144 = vld [vmem:[#allocation4 + $0xe0] sm:$0xff]
      %v6145 = vld [vmem:[#allocation4 + $0xe8] sm:$0xff]
      %v6146 = vld [vmem:[#allocation4 + $0x120] sm:$0xff]
      %v6147 = vld [vmem:[#allocation4 + $0x128] sm:$0xff]
      %v6148 = vld [vmem:[#allocation4 + $0x160] sm:$0xff]
      %v6149 = vld [vmem:[#allocation4 + $0x168] sm:$0xff]
      %v6150 = vld [vmem:[#allocation4 + $0x1a0] sm:$0xff]
      %v6151 = vld [vmem:[#allocation4 + $0x1a8] sm:$0xff]
      %v6152 = vld [vmem:[#allocation4 + $0x1e0] sm:$0xff]
      %v6153 = vld [vmem:[#allocation4 + $0x1e8] sm:$0xff]
      %v6154 = vperm.slane %v6035, 1
      %v6155 = vperm.slane %v6036, 1
      %v6156 = vmul.f32 %v6042, %v6154
      %v6157 = vmul.f32 %v6043, %v6155
      %v6158 = vmul.f32 %v6138, %v6154
      %v6159 = vmul.f32 %v6139, %v6155
      %v6160 = vmul.f32 %v6048, %v6154
      %v6161 = vmul.f32 %v6049, %v6155
      %v6162 = vmul.f32 %v6140, %v6154
      %v6163 = vmul.f32 %v6141, %v6155
      %v6164 = vmul.f32 %v6054, %v6154
      %v6165 = vmul.f32 %v6055, %v6155
      %v6166 = vmul.f32 %v6142, %v6154
      %v6167 = vmul.f32 %v6143, %v6155
      %v6168 = vmul.f32 %v6060, %v6154
      %v6169 = vmul.f32 %v6061, %v6155
      %v6170 = vmul.f32 %v6144, %v6154
      %v6171 = vmul.f32 %v6145, %v6155
      %v6172 = vmul.f32 %v6066, %v6154
      %v6173 = vmul.f32 %v6067, %v6155
      %v6174 = vmul.f32 %v6146, %v6154
      %v6175 = vmul.f32 %v6147, %v6155
      %v6176 = vmul.f32 %v6072, %v6154
      %v6177 = vmul.f32 %v6073, %v6155
      %v6178 = vmul.f32 %v6148, %v6154
      %v6179 = vmul.f32 %v6149, %v6155
      %v6180 = vmul.f32 %v6078, %v6154
      %v6181 = vmul.f32 %v6079, %v6155
      %v6182 = vmul.f32 %v6150, %v6154
      %v6183 = vmul.f32 %v6151, %v6155
      %v6184 = vmul.f32 %v6084, %v6154
      %v6185 = vmul.f32 %v6085, %v6155
      %v6186 = vmul.f32 %v6152, %v6154
      %v6187 = vmul.f32 %v6153, %v6155
      %v6220 = vrot.slane %v6156, 1
      %v6221 = vrot.slane %v6157, 1
      %v6222 = vrot.slane %v6158, 1
      %v6223 = vsel %vm2045, %v6220, %v6222
      %v6224 = vrot.slane %v6159, 1
      %v6225 = vsel %vm2045, %v6221, %v6224
      %v6226 = vrot.slane %v6160, 1
      %v6227 = vrot.slane %v6161, 1
      %v6228 = vrot.slane %v6162, 1
      %v6229 = vsel %vm2045, %v6226, %v6228
      %v6230 = vrot.slane %v6163, 1
      %v6231 = vsel %vm2045, %v6227, %v6230
      %v6232 = vrot.slane %v6164, 1
      %v6233 = vrot.slane %v6165, 1
      %v6234 = vrot.slane %v6166, 1
      %v6235 = vsel %vm2045, %v6232, %v6234
      %v6236 = vrot.slane %v6167, 1
      %v6237 = vsel %vm2045, %v6233, %v6236
      %v6238 = vrot.slane %v6168, 1
      %v6239 = vrot.slane %v6169, 1
      %v6240 = vrot.slane %v6170, 1
      %v6241 = vsel %vm2045, %v6238, %v6240
      %v6242 = vrot.slane %v6171, 1
      %v6243 = vsel %vm2045, %v6239, %v6242
      %v6244 = vrot.slane %v6172, 1
      %v6245 = vrot.slane %v6173, 1
      %v6246 = vrot.slane %v6174, 1
      %v6247 = vsel %vm2045, %v6244, %v6246
      %v6248 = vrot.slane %v6175, 1
      %v6249 = vsel %vm2045, %v6245, %v6248
      %v6250 = vrot.slane %v6176, 1
      %v6251 = vrot.slane %v6177, 1
      %v6252 = vrot.slane %v6178, 1
      %v6253 = vsel %vm2045, %v6250, %v6252
      %v6254 = vrot.slane %v6179, 1
      %v6255 = vsel %vm2045, %v6251, %v6254
      %v6256 = vrot.slane %v6180, 1
      %v6257 = vrot.slane %v6181, 1
      %v6258 = vrot.slane %v6182, 1
      %v6259 = vsel %vm2045, %v6256, %v6258
      %v6260 = vrot.slane %v6183, 1
      %v6261 = vsel %vm2045, %v6257, %v6260
      %v6262 = vrot.slane %v6184, 1
      %v6263 = vrot.slane %v6185, 1
      %v6264 = vrot.slane %v6186, 1
      %v6265 = vsel %vm2045, %v6262, %v6264
      %v6266 = vrot.slane %v6187, 1
      %v6267 = vsel %vm2045, %v6263, %v6266
      %v6316 = vadd.f32 %v6090, %v6220
      %v6317 = vadd.f32 %v6091, %v6221
      %v6318 = vadd.f32 %v6092, %v6223
      %v6319 = vadd.f32 %v6093, %v6225
      %v6320 = vadd.f32 %v6094, %v6222
      %v6321 = vadd.f32 %v6095, %v6224
      %v6322 = vadd.f32 %v6096, %v6226
      %v6323 = vadd.f32 %v6097, %v6227
      %v6324 = vadd.f32 %v6098, %v6229
      %v6325 = vadd.f32 %v6099, %v6231
      %v6326 = vadd.f32 %v6100, %v6228
      %v6327 = vadd.f32 %v6101, %v6230
      %v6328 = vadd.f32 %v6102, %v6232
      %v6329 = vadd.f32 %v6103, %v6233
      %v6330 = vadd.f32 %v6104, %v6235
      %v6331 = vadd.f32 %v6105, %v6237
      %v6332 = vadd.f32 %v6106, %v6234
      %v6333 = vadd.f32 %v6107, %v6236
      %v6334 = vadd.f32 %v6108, %v6238
      %v6335 = vadd.f32 %v6109, %v6239
      %v6336 = vadd.f32 %v6110, %v6241
      %v6337 = vadd.f32 %v6111, %v6243
      %v6338 = vadd.f32 %v6112, %v6240
      %v6339 = vadd.f32 %v6113, %v6242
      %v6340 = vadd.f32 %v6114, %v6244
      %v6341 = vadd.f32 %v6115, %v6245
      %v6342 = vadd.f32 %v6116, %v6247
      %v6343 = vadd.f32 %v6117, %v6249
      %v6344 = vadd.f32 %v6118, %v6246
      %v6345 = vadd.f32 %v6119, %v6248
      %v6346 = vadd.f32 %v6120, %v6250
      %v6347 = vadd.f32 %v6121, %v6251
      %v6348 = vadd.f32 %v6122, %v6253
      %v6349 = vadd.f32 %v6123, %v6255
      %v6350 = vadd.f32 %v6124, %v6252
      %v6351 = vadd.f32 %v6125, %v6254
      %v6352 = vadd.f32 %v6126, %v6256
      %v6353 = vadd.f32 %v6127, %v6257
      %v6354 = vadd.f32 %v6128, %v6259
      %v6355 = vadd.f32 %v6129, %v6261
      %v6356 = vadd.f32 %v6130, %v6258
      %v6357 = vadd.f32 %v6131, %v6260
      %v6358 = vadd.f32 %v6132, %v6262
      %v6359 = vadd.f32 %v6133, %v6263
      %v6360 = vadd.f32 %v6134, %v6265
      %v6361 = vadd.f32 %v6135, %v6267
      %v6362 = vadd.f32 %v6136, %v6264
      %v6363 = vadd.f32 %v6137, %v6266
      %v6364 = vld [vmem:[#allocation4 + $0x10] sm:$0xfe]
      %v6365 = vld [vmem:[#allocation4 + $0x18] sm:$0xfe]
      %v6366 = vld [vmem:[#allocation4 + $0x30] sm:$0x1]
      %v6367 = vld [vmem:[#allocation4 + $0x38] sm:$0x1]
      %v6368 = vld [vmem:[#allocation4 + $0x50] sm:$0xfe]
      %v6369 = vld [vmem:[#allocation4 + $0x58] sm:$0xfe]
      %v6370 = vld [vmem:[#allocation4 + $0x70] sm:$0x1]
      %v6371 = vld [vmem:[#allocation4 + $0x78] sm:$0x1]
      %v6372 = vld [vmem:[#allocation4 + $0x90] sm:$0xfe]
      %v6373 = vld [vmem:[#allocation4 + $0x98] sm:$0xfe]
      %v6374 = vld [vmem:[#allocation4 + $0xb0] sm:$0x1]
      %v6375 = vld [vmem:[#allocation4 + $0xb8] sm:$0x1]
      %v6376 = vld [vmem:[#allocation4 + $0xd0] sm:$0xfe]
      %v6377 = vld [vmem:[#allocation4 + $0xd8] sm:$0xfe]
      %v6378 = vld [vmem:[#allocation4 + $0xf0] sm:$0x1]
      %v6379 = vld [vmem:[#allocation4 + $0xf8] sm:$0x1]
      %v6380 = vld [vmem:[#allocation4 + $0x110] sm:$0xfe]
      %v6381 = vld [vmem:[#allocation4 + $0x118] sm:$0xfe]
      %v6382 = vld [vmem:[#allocation4 + $0x130] sm:$0x1]
      %v6383 = vld [vmem:[#allocation4 + $0x138] sm:$0x1]
      %v6384 = vld [vmem:[#allocation4 + $0x150] sm:$0xfe]
      %v6385 = vld [vmem:[#allocation4 + $0x158] sm:$0xfe]
      %v6386 = vld [vmem:[#allocation4 + $0x170] sm:$0x1]
      %v6387 = vld [vmem:[#allocation4 + $0x178] sm:$0x1]
      %v6388 = vld [vmem:[#allocation4 + $0x190] sm:$0xfe]
      %v6389 = vld [vmem:[#allocation4 + $0x198] sm:$0xfe]
      %v6390 = vld [vmem:[#allocation4 + $0x1b0] sm:$0x1]
      %v6391 = vld [vmem:[#allocation4 + $0x1b8] sm:$0x1]
      %v6392 = vld [vmem:[#allocation4 + $0x1d0] sm:$0xfe]
      %v6393 = vld [vmem:[#allocation4 + $0x1d8] sm:$0xfe]
      %v6394 = vld [vmem:[#allocation4 + $0x1f0] sm:$0x1]
      %v6395 = vld [vmem:[#allocation4 + $0x1f8] sm:$0x1]
      %v6396 = vperm.slane %v6035, 2
      %v6397 = vperm.slane %v6036, 2
      %v6398 = vmul.f32 %v6364, %v6396
      %v6399 = vmul.f32 %v6365, %v6397
      %v6400 = vmul.f32 %v6138, %v6396
      %v6401 = vmul.f32 %v6139, %v6397
      %v6402 = vmul.f32 %v6366, %v6396
      %v6403 = vmul.f32 %v6367, %v6397
      %v6404 = vmul.f32 %v6368, %v6396
      %v6405 = vmul.f32 %v6369, %v6397
      %v6406 = vmul.f32 %v6140, %v6396
      %v6407 = vmul.f32 %v6141, %v6397
      %v6408 = vmul.f32 %v6370, %v6396
      %v6409 = vmul.f32 %v6371, %v6397
      %v6410 = vmul.f32 %v6372, %v6396
      %v6411 = vmul.f32 %v6373, %v6397
      %v6412 = vmul.f32 %v6142, %v6396
      %v6413 = vmul.f32 %v6143, %v6397
      %v6414 = vmul.f32 %v6374, %v6396
      %v6415 = vmul.f32 %v6375, %v6397
      %v6416 = vmul.f32 %v6376, %v6396
      %v6417 = vmul.f32 %v6377, %v6397
      %v6418 = vmul.f32 %v6144, %v6396
      %v6419 = vmul.f32 %v6145, %v6397
      %v6420 = vmul.f32 %v6378, %v6396
      %v6421 = vmul.f32 %v6379, %v6397
      %v6422 = vmul.f32 %v6380, %v6396
      %v6423 = vmul.f32 %v6381, %v6397
      %v6424 = vmul.f32 %v6146, %v6396
      %v6425 = vmul.f32 %v6147, %v6397
      %v6426 = vmul.f32 %v6382, %v6396
      %v6427 = vmul.f32 %v6383, %v6397
      %v6428 = vmul.f32 %v6384, %v6396
      %v6429 = vmul.f32 %v6385, %v6397
      %v6430 = vmul.f32 %v6148, %v6396
      %v6431 = vmul.f32 %v6149, %v6397
      %v6432 = vmul.f32 %v6386, %v6396
      %v6433 = vmul.f32 %v6387, %v6397
      %v6434 = vmul.f32 %v6388, %v6396
      %v6435 = vmul.f32 %v6389, %v6397
      %v6436 = vmul.f32 %v6150, %v6396
      %v6437 = vmul.f32 %v6151, %v6397
      %v6438 = vmul.f32 %v6390, %v6396
      %v6439 = vmul.f32 %v6391, %v6397
      %v6440 = vmul.f32 %v6392, %v6396
      %v6441 = vmul.f32 %v6393, %v6397
      %v6442 = vmul.f32 %v6152, %v6396
      %v6443 = vmul.f32 %v6153, %v6397
      %v6444 = vmul.f32 %v6394, %v6396
      %v6445 = vmul.f32 %v6395, %v6397
      %v6494 = vrot.slane %v6398, 2
      %v6495 = vrot.slane %v6399, 2
      %v6496 = vrot.slane %v6400, 2
      %v6497 = vsel %vm2388, %v6494, %v6496
      %v6498 = vrot.slane %v6401, 2
      %v6499 = vsel %vm2388, %v6495, %v6498
      %v6500 = vrot.slane %v6402, 2
      %v6501 = vsel %vm2388, %v6496, %v6500
      %v6502 = vrot.slane %v6403, 2
      %v6503 = vsel %vm2388, %v6498, %v6502
      %v6504 = vrot.slane %v6404, 2
      %v6505 = vrot.slane %v6405, 2
      %v6506 = vrot.slane %v6406, 2
      %v6507 = vsel %vm2388, %v6504, %v6506
      %v6508 = vrot.slane %v6407, 2
      %v6509 = vsel %vm2388, %v6505, %v6508
      %v6510 = vrot.slane %v6408, 2
      %v6511 = vsel %vm2388, %v6506, %v6510
      %v6512 = vrot.slane %v6409, 2
      %v6513 = vsel %vm2388, %v6508, %v6512
      %v6514 = vrot.slane %v6410, 2
      %v6515 = vrot.slane %v6411, 2
      %v6516 = vrot.slane %v6412, 2
      %v6517 = vsel %vm2388, %v6514, %v6516
      %v6518 = vrot.slane %v6413, 2
      %v6519 = vsel %vm2388, %v6515, %v6518
      %v6520 = vrot.slane %v6414, 2
      %v6521 = vsel %vm2388, %v6516, %v6520
      %v6522 = vrot.slane %v6415, 2
      %v6523 = vsel %vm2388, %v6518, %v6522
      %v6524 = vrot.slane %v6416, 2
      %v6525 = vrot.slane %v6417, 2
      %v6526 = vrot.slane %v6418, 2
      %v6527 = vsel %vm2388, %v6524, %v6526
      %v6528 = vrot.slane %v6419, 2
      %v6529 = vsel %vm2388, %v6525, %v6528
      %v6530 = vrot.slane %v6420, 2
      %v6531 = vsel %vm2388, %v6526, %v6530
      %v6532 = vrot.slane %v6421, 2
      %v6533 = vsel %vm2388, %v6528, %v6532
      %v6534 = vrot.slane %v6422, 2
      %v6535 = vrot.slane %v6423, 2
      %v6536 = vrot.slane %v6424, 2
      %v6537 = vsel %vm2388, %v6534, %v6536
      %v6538 = vrot.slane %v6425, 2
      %v6539 = vsel %vm2388, %v6535, %v6538
      %v6540 = vrot.slane %v6426, 2
      %v6541 = vsel %vm2388, %v6536, %v6540
      %v6542 = vrot.slane %v6427, 2
      %v6543 = vsel %vm2388, %v6538, %v6542
      %v6544 = vrot.slane %v6428, 2
      %v6545 = vrot.slane %v6429, 2
      %v6546 = vrot.slane %v6430, 2
      %v6547 = vsel %vm2388, %v6544, %v6546
      %v6548 = vrot.slane %v6431, 2
      %v6549 = vsel %vm2388, %v6545, %v6548
      %v6550 = vrot.slane %v6432, 2
      %v6551 = vsel %vm2388, %v6546, %v6550
      %v6552 = vrot.slane %v6433, 2
      %v6553 = vsel %vm2388, %v6548, %v6552
      %v6554 = vrot.slane %v6434, 2
      %v6555 = vrot.slane %v6435, 2
      %v6556 = vrot.slane %v6436, 2
      %v6557 = vsel %vm2388, %v6554, %v6556
      %v6558 = vrot.slane %v6437, 2
      %v6559 = vsel %vm2388, %v6555, %v6558
      %v6560 = vrot.slane %v6438, 2
      %v6561 = vsel %vm2388, %v6556, %v6560
      %v6562 = vrot.slane %v6439, 2
      %v6563 = vsel %vm2388, %v6558, %v6562
      %v6564 = vrot.slane %v6440, 2
      %v6565 = vrot.slane %v6441, 2
      %v6566 = vrot.slane %v6442, 2
      %v6567 = vsel %vm2388, %v6564, %v6566
      %v6568 = vrot.slane %v6443, 2
      %v6569 = vsel %vm2388, %v6565, %v6568
      %v6570 = vrot.slane %v6444, 2
      %v6571 = vsel %vm2388, %v6566, %v6570
      %v6572 = vrot.slane %v6445, 2
      %v6573 = vsel %vm2388, %v6568, %v6572
      %v6622 = vadd.f32 %v6316, %v6494
      %v6623 = vadd.f32 %v6317, %v6495
      %v6624 = vadd.f32 %v6318, %v6497
      %v6625 = vadd.f32 %v6319, %v6499
      %v6626 = vadd.f32 %v6320, %v6501
      %v6627 = vadd.f32 %v6321, %v6503
      %v6628 = vadd.f32 %v6322, %v6504
      %v6629 = vadd.f32 %v6323, %v6505
      %v6630 = vadd.f32 %v6324, %v6507
      %v6631 = vadd.f32 %v6325, %v6509
      %v6632 = vadd.f32 %v6326, %v6511
      %v6633 = vadd.f32 %v6327, %v6513
      %v6634 = vadd.f32 %v6328, %v6514
      %v6635 = vadd.f32 %v6329, %v6515
      %v6636 = vadd.f32 %v6330, %v6517
      %v6637 = vadd.f32 %v6331, %v6519
      %v6638 = vadd.f32 %v6332, %v6521
      %v6639 = vadd.f32 %v6333, %v6523
      %v6640 = vadd.f32 %v6334, %v6524
      %v6641 = vadd.f32 %v6335, %v6525
      %v6642 = vadd.f32 %v6336, %v6527
      %v6643 = vadd.f32 %v6337, %v6529
      %v6644 = vadd.f32 %v6338, %v6531
      %v6645 = vadd.f32 %v6339, %v6533
      %v6646 = vadd.f32 %v6340, %v6534
      %v6647 = vadd.f32 %v6341, %v6535
      %v6648 = vadd.f32 %v6342, %v6537
      %v6649 = vadd.f32 %v6343, %v6539
      %v6650 = vadd.f32 %v6344, %v6541
      %v6651 = vadd.f32 %v6345, %v6543
      %v6652 = vadd.f32 %v6346, %v6544
      %v6653 = vadd.f32 %v6347, %v6545
      %v6654 = vadd.f32 %v6348, %v6547
      %v6655 = vadd.f32 %v6349, %v6549
      %v6656 = vadd.f32 %v6350, %v6551
      %v6657 = vadd.f32 %v6351, %v6553
      %v6658 = vadd.f32 %v6352, %v6554
      %v6659 = vadd.f32 %v6353, %v6555
      %v6660 = vadd.f32 %v6354, %v6557
      %v6661 = vadd.f32 %v6355, %v6559
      %v6662 = vadd.f32 %v6356, %v6561
      %v6663 = vadd.f32 %v6357, %v6563
      %v6664 = vadd.f32 %v6358, %v6564
      %v6665 = vadd.f32 %v6359, %v6565
      %v6666 = vadd.f32 %v6360, %v6567
      %v6667 = vadd.f32 %v6361, %v6569
      %v6668 = vadd.f32 %v6362, %v6571
      %v6669 = vadd.f32 %v6363, %v6573
      %s6670 = scalar_lea.vmem [#allocation4], 64
      %v6671 = vld [vmem:[%s6670] sm:$0x80]
      %v6672 = vld [vmem:[%s6670 + $0x8] sm:$0x80]
      %v6673 = vld [vmem:[%s6670 + $0x10] sm:$0xff]
      %v6674 = vld [vmem:[%s6670 + $0x18] sm:$0xff]
      %v6675 = vld [vmem:[%s6670 + $0x20] sm:$0x7f]
      %v6676 = vld [vmem:[%s6670 + $0x28] sm:$0x7f]
      %v6677 = vld [vmem:[%s6670 + $0x40] sm:$0x80]
      %v6678 = vld [vmem:[%s6670 + $0x48] sm:$0x80]
      %v6679 = vld [vmem:[%s6670 + $0x50] sm:$0xff]
      %v6680 = vld [vmem:[%s6670 + $0x58] sm:$0xff]
      %v6681 = vld [vmem:[%s6670 + $0x60] sm:$0x7f]
      %v6682 = vld [vmem:[%s6670 + $0x68] sm:$0x7f]
      %v6683 = vld [vmem:[%s6670 + $0x80] sm:$0x80]
      %v6684 = vld [vmem:[%s6670 + $0x88] sm:$0x80]
      %v6685 = vld [vmem:[%s6670 + $0x90] sm:$0xff]
      %v6686 = vld [vmem:[%s6670 + $0x98] sm:$0xff]
      %v6687 = vld [vmem:[%s6670 + $0xa0] sm:$0x7f]
      %v6688 = vld [vmem:[%s6670 + $0xa8] sm:$0x7f]
      %v6689 = vld [vmem:[%s6670 + $0xc0] sm:$0x80]
      %v6690 = vld [vmem:[%s6670 + $0xc8] sm:$0x80]
      %v6691 = vld [vmem:[%s6670 + $0xd0] sm:$0xff]
      %v6692 = vld [vmem:[%s6670 + $0xd8] sm:$0xff]
      %v6693 = vld [vmem:[%s6670 + $0xe0] sm:$0x7f]
      %v6694 = vld [vmem:[%s6670 + $0xe8] sm:$0x7f]
      %v6695 = vld [vmem:[%s6670 + $0x100] sm:$0x80]
      %v6696 = vld [vmem:[%s6670 + $0x108] sm:$0x80]
      %v6697 = vld [vmem:[%s6670 + $0x110] sm:$0xff]
      %v6698 = vld [vmem:[%s6670 + $0x118] sm:$0xff]
      %v6699 = vld [vmem:[%s6670 + $0x120] sm:$0x7f]
      %v6700 = vld [vmem:[%s6670 + $0x128] sm:$0x7f]
      %v6701 = vld [vmem:[%s6670 + $0x140] sm:$0x80]
      %v6702 = vld [vmem:[%s6670 + $0x148] sm:$0x80]
      %v6703 = vld [vmem:[%s6670 + $0x150] sm:$0xff]
      %v6704 = vld [vmem:[%s6670 + $0x158] sm:$0xff]
      %v6705 = vld [vmem:[%s6670 + $0x160] sm:$0x7f]
      %v6706 = vld [vmem:[%s6670 + $0x168] sm:$0x7f]
      %v6707 = vld [vmem:[%s6670 + $0x180] sm:$0x80]
      %v6708 = vld [vmem:[%s6670 + $0x188] sm:$0x80]
      %v6709 = vld [vmem:[%s6670 + $0x190] sm:$0xff]
      %v6710 = vld [vmem:[%s6670 + $0x198] sm:$0xff]
      %v6711 = vld [vmem:[%s6670 + $0x1a0] sm:$0x7f]
      %v6712 = vld [vmem:[%s6670 + $0x1a8] sm:$0x7f]
      %v6713 = vld [vmem:[%s6670 + $0x1c0] sm:$0x80]
      %v6714 = vld [vmem:[%s6670 + $0x1c8] sm:$0x80]
      %v6715 = vld [vmem:[%s6670 + $0x1d0] sm:$0xff]
      %v6716 = vld [vmem:[%s6670 + $0x1d8] sm:$0xff]
      %v6717 = vld [vmem:[%s6670 + $0x1e0] sm:$0x7f]
      %v6718 = vld [vmem:[%s6670 + $0x1e8] sm:$0x7f]
      %v6719 = vperm.slane %v6035, 3
      %v6720 = vperm.slane %v6036, 3
      %v6721 = vmul.f32 %v6671, %v6719
      %v6722 = vmul.f32 %v6672, %v6720
      %v6723 = vmul.f32 %v6673, %v6719
      %v6724 = vmul.f32 %v6674, %v6720
      %v6725 = vmul.f32 %v6675, %v6719
      %v6726 = vmul.f32 %v6676, %v6720
      %v6727 = vmul.f32 %v6677, %v6719
      %v6728 = vmul.f32 %v6678, %v6720
      %v6729 = vmul.f32 %v6679, %v6719
      %v6730 = vmul.f32 %v6680, %v6720
      %v6731 = vmul.f32 %v6681, %v6719
      %v6732 = vmul.f32 %v6682, %v6720
      %v6733 = vmul.f32 %v6683, %v6719
      %v6734 = vmul.f32 %v6684, %v6720
      %v6735 = vmul.f32 %v6685, %v6719
      %v6736 = vmul.f32 %v6686, %v6720
      %v6737 = vmul.f32 %v6687, %v6719
      %v6738 = vmul.f32 %v6688, %v6720
      %v6739 = vmul.f32 %v6689, %v6719
      %v6740 = vmul.f32 %v6690, %v6720
      %v6741 = vmul.f32 %v6691, %v6719
      %v6742 = vmul.f32 %v6692, %v6720
      %v6743 = vmul.f32 %v6693, %v6719
      %v6744 = vmul.f32 %v6694, %v6720
      %v6745 = vmul.f32 %v6695, %v6719
      %v6746 = vmul.f32 %v6696, %v6720
      %v6747 = vmul.f32 %v6697, %v6719
      %v6748 = vmul.f32 %v6698, %v6720
      %v6749 = vmul.f32 %v6699, %v6719
      %v6750 = vmul.f32 %v6700, %v6720
      %v6751 = vmul.f32 %v6701, %v6719
      %v6752 = vmul.f32 %v6702, %v6720
      %v6753 = vmul.f32 %v6703, %v6719
      %v6754 = vmul.f32 %v6704, %v6720
      %v6755 = vmul.f32 %v6705, %v6719
      %v6756 = vmul.f32 %v6706, %v6720
      %v6757 = vmul.f32 %v6707, %v6719
      %v6758 = vmul.f32 %v6708, %v6720
      %v6759 = vmul.f32 %v6709, %v6719
      %v6760 = vmul.f32 %v6710, %v6720
      %v6761 = vmul.f32 %v6711, %v6719
      %v6762 = vmul.f32 %v6712, %v6720
      %v6763 = vmul.f32 %v6713, %v6719
      %v6764 = vmul.f32 %v6714, %v6720
      %v6765 = vmul.f32 %v6715, %v6719
      %v6766 = vmul.f32 %v6716, %v6720
      %v6767 = vmul.f32 %v6717, %v6719
      %v6768 = vmul.f32 %v6718, %v6720
      %v6769 = vadd.f32 %v6622, %v6721
      %v6770 = vadd.f32 %v6623, %v6722
      %v6771 = vadd.f32 %v6624, %v6723
      %v6772 = vadd.f32 %v6625, %v6724
      %v6773 = vadd.f32 %v6626, %v6725
      %v6774 = vadd.f32 %v6627, %v6726
      %v6775 = vadd.f32 %v6628, %v6727
      %v6776 = vadd.f32 %v6629, %v6728
      %v6777 = vadd.f32 %v6630, %v6729
      %v6778 = vadd.f32 %v6631, %v6730
      %v6779 = vadd.f32 %v6632, %v6731
      %v6780 = vadd.f32 %v6633, %v6732
      %v6781 = vadd.f32 %v6634, %v6733
      %v6782 = vadd.f32 %v6635, %v6734
      %v6783 = vadd.f32 %v6636, %v6735
      %v6784 = vadd.f32 %v6637, %v6736
      %v6785 = vadd.f32 %v6638, %v6737
      %v6786 = vadd.f32 %v6639, %v6738
      %v6787 = vadd.f32 %v6640, %v6739
      %v6788 = vadd.f32 %v6641, %v6740
      %v6789 = vadd.f32 %v6642, %v6741
      %v6790 = vadd.f32 %v6643, %v6742
      %v6791 = vadd.f32 %v6644, %v6743
      %v6792 = vadd.f32 %v6645, %v6744
      %v6793 = vadd.f32 %v6646, %v6745
      %v6794 = vadd.f32 %v6647, %v6746
      %v6795 = vadd.f32 %v6648, %v6747
      %v6796 = vadd.f32 %v6649, %v6748
      %v6797 = vadd.f32 %v6650, %v6749
      %v6798 = vadd.f32 %v6651, %v6750
      %v6799 = vadd.f32 %v6652, %v6751
      %v6800 = vadd.f32 %v6653, %v6752
      %v6801 = vadd.f32 %v6654, %v6753
      %v6802 = vadd.f32 %v6655, %v6754
      %v6803 = vadd.f32 %v6656, %v6755
      %v6804 = vadd.f32 %v6657, %v6756
      %v6805 = vadd.f32 %v6658, %v6757
      %v6806 = vadd.f32 %v6659, %v6758
      %v6807 = vadd.f32 %v6660, %v6759
      %v6808 = vadd.f32 %v6661, %v6760
      %v6809 = vadd.f32 %v6662, %v6761
      %v6810 = vadd.f32 %v6663, %v6762
      %v6811 = vadd.f32 %v6664, %v6763
      %v6812 = vadd.f32 %v6665, %v6764
      %v6813 = vadd.f32 %v6666, %v6765
      %v6814 = vadd.f32 %v6667, %v6766
      %v6815 = vadd.f32 %v6668, %v6767
      %v6816 = vadd.f32 %v6669, %v6768
      %v6817 = vld [vmem:[%s6670 + $0x20] sm:$0xff]
      %v6818 = vld [vmem:[%s6670 + $0x28] sm:$0xff]
      %v6819 = vld [vmem:[%s6670 + $0x60] sm:$0xff]
      %v6820 = vld [vmem:[%s6670 + $0x68] sm:$0xff]
      %v6821 = vld [vmem:[%s6670 + $0xa0] sm:$0xff]
      %v6822 = vld [vmem:[%s6670 + $0xa8] sm:$0xff]
      %v6823 = vld [vmem:[%s6670 + $0xe0] sm:$0xff]
      %v6824 = vld [vmem:[%s6670 + $0xe8] sm:$0xff]
      %v6825 = vld [vmem:[%s6670 + $0x120] sm:$0xff]
      %v6826 = vld [vmem:[%s6670 + $0x128] sm:$0xff]
      %v6827 = vld [vmem:[%s6670 + $0x160] sm:$0xff]
      %v6828 = vld [vmem:[%s6670 + $0x168] sm:$0xff]
      %v6829 = vld [vmem:[%s6670 + $0x1a0] sm:$0xff]
      %v6830 = vld [vmem:[%s6670 + $0x1a8] sm:$0xff]
      %v6831 = vld [vmem:[%s6670 + $0x1e0] sm:$0xff]
      %v6832 = vld [vmem:[%s6670 + $0x1e8] sm:$0xff]
      %v6833 = vperm.slane %v6035, 4
      %v6834 = vperm.slane %v6036, 4
      %v6835 = vmul.f32 %v6673, %v6833
      %v6836 = vmul.f32 %v6674, %v6834
      %v6837 = vmul.f32 %v6817, %v6833
      %v6838 = vmul.f32 %v6818, %v6834
      %v6839 = vmul.f32 %v6679, %v6833
      %v6840 = vmul.f32 %v6680, %v6834
      %v6841 = vmul.f32 %v6819, %v6833
      %v6842 = vmul.f32 %v6820, %v6834
      %v6843 = vmul.f32 %v6685, %v6833
      %v6844 = vmul.f32 %v6686, %v6834
      %v6845 = vmul.f32 %v6821, %v6833
      %v6846 = vmul.f32 %v6822, %v6834
      %v6847 = vmul.f32 %v6691, %v6833
      %v6848 = vmul.f32 %v6692, %v6834
      %v6849 = vmul.f32 %v6823, %v6833
      %v6850 = vmul.f32 %v6824, %v6834
      %v6851 = vmul.f32 %v6697, %v6833
      %v6852 = vmul.f32 %v6698, %v6834
      %v6853 = vmul.f32 %v6825, %v6833
      %v6854 = vmul.f32 %v6826, %v6834
      %v6855 = vmul.f32 %v6703, %v6833
      %v6856 = vmul.f32 %v6704, %v6834
      %v6857 = vmul.f32 %v6827, %v6833
      %v6858 = vmul.f32 %v6828, %v6834
      %v6859 = vmul.f32 %v6709, %v6833
      %v6860 = vmul.f32 %v6710, %v6834
      %v6861 = vmul.f32 %v6829, %v6833
      %v6862 = vmul.f32 %v6830, %v6834
      %v6863 = vmul.f32 %v6715, %v6833
      %v6864 = vmul.f32 %v6716, %v6834
      %v6865 = vmul.f32 %v6831, %v6833
      %v6866 = vmul.f32 %v6832, %v6834
      %v6899 = vrot.slane %v6835, 1
      %v6900 = vrot.slane %v6836, 1
      %v6901 = vrot.slane %v6837, 1
      %v6902 = vsel %vm2045, %v6899, %v6901
      %v6903 = vrot.slane %v6838, 1
      %v6904 = vsel %vm2045, %v6900, %v6903
      %v6905 = vrot.slane %v6839, 1
      %v6906 = vrot.slane %v6840, 1
      %v6907 = vrot.slane %v6841, 1
      %v6908 = vsel %vm2045, %v6905, %v6907
      %v6909 = vrot.slane %v6842, 1
      %v6910 = vsel %vm2045, %v6906, %v6909
      %v6911 = vrot.slane %v6843, 1
      %v6912 = vrot.slane %v6844, 1
      %v6913 = vrot.slane %v6845, 1
      %v6914 = vsel %vm2045, %v6911, %v6913
      %v6915 = vrot.slane %v6846, 1
      %v6916 = vsel %vm2045, %v6912, %v6915
      %v6917 = vrot.slane %v6847, 1
      %v6918 = vrot.slane %v6848, 1
      %v6919 = vrot.slane %v6849, 1
      %v6920 = vsel %vm2045, %v6917, %v6919
      %v6921 = vrot.slane %v6850, 1
      %v6922 = vsel %vm2045, %v6918, %v6921
      %v6923 = vrot.slane %v6851, 1
      %v6924 = vrot.slane %v6852, 1
      %v6925 = vrot.slane %v6853, 1
      %v6926 = vsel %vm2045, %v6923, %v6925
      %v6927 = vrot.slane %v6854, 1
      %v6928 = vsel %vm2045, %v6924, %v6927
      %v6929 = vrot.slane %v6855, 1
      %v6930 = vrot.slane %v6856, 1
      %v6931 = vrot.slane %v6857, 1
      %v6932 = vsel %vm2045, %v6929, %v6931
      %v6933 = vrot.slane %v6858, 1
      %v6934 = vsel %vm2045, %v6930, %v6933
      %v6935 = vrot.slane %v6859, 1
      %v6936 = vrot.slane %v6860, 1
      %v6937 = vrot.slane %v6861, 1
      %v6938 = vsel %vm2045, %v6935, %v6937
      %v6939 = vrot.slane %v6862, 1
      %v6940 = vsel %vm2045, %v6936, %v6939
      %v6941 = vrot.slane %v6863, 1
      %v6942 = vrot.slane %v6864, 1
      %v6943 = vrot.slane %v6865, 1
      %v6944 = vsel %vm2045, %v6941, %v6943
      %v6945 = vrot.slane %v6866, 1
      %v6946 = vsel %vm2045, %v6942, %v6945
      %v6995 = vadd.f32 %v6769, %v6899
      %v6996 = vadd.f32 %v6770, %v6900
      %v6997 = vadd.f32 %v6771, %v6902
      %v6998 = vadd.f32 %v6772, %v6904
      %v6999 = vadd.f32 %v6773, %v6901
      %v7000 = vadd.f32 %v6774, %v6903
      %v7001 = vadd.f32 %v6775, %v6905
      %v7002 = vadd.f32 %v6776, %v6906
      %v7003 = vadd.f32 %v6777, %v6908
      %v7004 = vadd.f32 %v6778, %v6910
      %v7005 = vadd.f32 %v6779, %v6907
      %v7006 = vadd.f32 %v6780, %v6909
      %v7007 = vadd.f32 %v6781, %v6911
      %v7008 = vadd.f32 %v6782, %v6912
      %v7009 = vadd.f32 %v6783, %v6914
      %v7010 = vadd.f32 %v6784, %v6916
      %v7011 = vadd.f32 %v6785, %v6913
      %v7012 = vadd.f32 %v6786, %v6915
      %v7013 = vadd.f32 %v6787, %v6917
      %v7014 = vadd.f32 %v6788, %v6918
      %v7015 = vadd.f32 %v6789, %v6920
      %v7016 = vadd.f32 %v6790, %v6922
      %v7017 = vadd.f32 %v6791, %v6919
      %v7018 = vadd.f32 %v6792, %v6921
      %v7019 = vadd.f32 %v6793, %v6923
      %v7020 = vadd.f32 %v6794, %v6924
      %v7021 = vadd.f32 %v6795, %v6926
      %v7022 = vadd.f32 %v6796, %v6928
      %v7023 = vadd.f32 %v6797, %v6925
      %v7024 = vadd.f32 %v6798, %v6927
      %v7025 = vadd.f32 %v6799, %v6929
      %v7026 = vadd.f32 %v6800, %v6930
      %v7027 = vadd.f32 %v6801, %v6932
      %v7028 = vadd.f32 %v6802, %v6934
      %v7029 = vadd.f32 %v6803, %v6931
      %v7030 = vadd.f32 %v6804, %v6933
      %v7031 = vadd.f32 %v6805, %v6935
      %v7032 = vadd.f32 %v6806, %v6936
      %v7033 = vadd.f32 %v6807, %v6938
      %v7034 = vadd.f32 %v6808, %v6940
      %v7035 = vadd.f32 %v6809, %v6937
      %v7036 = vadd.f32 %v6810, %v6939
      %v7037 = vadd.f32 %v6811, %v6941
      %v7038 = vadd.f32 %v6812, %v6942
      %v7039 = vadd.f32 %v6813, %v6944
      %v7040 = vadd.f32 %v6814, %v6946
      %v7041 = vadd.f32 %v6815, %v6943
      %v7042 = vadd.f32 %v6816, %v6945
      %v7043 = vld [vmem:[%s6670 + $0x10] sm:$0xfe]
      %v7044 = vld [vmem:[%s6670 + $0x18] sm:$0xfe]
      %v7045 = vld [vmem:[%s6670 + $0x30] sm:$0x1]
      %v7046 = vld [vmem:[%s6670 + $0x38] sm:$0x1]
      %v7047 = vld [vmem:[%s6670 + $0x50] sm:$0xfe]
      %v7048 = vld [vmem:[%s6670 + $0x58] sm:$0xfe]
      %v7049 = vld [vmem:[%s6670 + $0x70] sm:$0x1]
      %v7050 = vld [vmem:[%s6670 + $0x78] sm:$0x1]
      %v7051 = vld [vmem:[%s6670 + $0x90] sm:$0xfe]
      %v7052 = vld [vmem:[%s6670 + $0x98] sm:$0xfe]
      %v7053 = vld [vmem:[%s6670 + $0xb0] sm:$0x1]
      %v7054 = vld [vmem:[%s6670 + $0xb8] sm:$0x1]
      %v7055 = vld [vmem:[%s6670 + $0xd0] sm:$0xfe]
      %v7056 = vld [vmem:[%s6670 + $0xd8] sm:$0xfe]
      %v7057 = vld [vmem:[%s6670 + $0xf0] sm:$0x1]
      %v7058 = vld [vmem:[%s6670 + $0xf8] sm:$0x1]
      %v7059 = vld [vmem:[%s6670 + $0x110] sm:$0xfe]
      %v7060 = vld [vmem:[%s6670 + $0x118] sm:$0xfe]
      %v7061 = vld [vmem:[%s6670 + $0x130] sm:$0x1]
      %v7062 = vld [vmem:[%s6670 + $0x138] sm:$0x1]
      %v7063 = vld [vmem:[%s6670 + $0x150] sm:$0xfe]
      %v7064 = vld [vmem:[%s6670 + $0x158] sm:$0xfe]
      %v7065 = vld [vmem:[%s6670 + $0x170] sm:$0x1]
      %v7066 = vld [vmem:[%s6670 + $0x178] sm:$0x1]
      %v7067 = vld [vmem:[%s6670 + $0x190] sm:$0xfe]
      %v7068 = vld [vmem:[%s6670 + $0x198] sm:$0xfe]
      %v7069 = vld [vmem:[%s6670 + $0x1b0] sm:$0x1]
      %v7070 = vld [vmem:[%s6670 + $0x1b8] sm:$0x1]
      %v7071 = vld [vmem:[%s6670 + $0x1d0] sm:$0xfe]
      %v7072 = vld [vmem:[%s6670 + $0x1d8] sm:$0xfe]
      %v7073 = vld [vmem:[%s6670 + $0x1f0] sm:$0x1]
      %v7074 = vld [vmem:[%s6670 + $0x1f8] sm:$0x1]
      %v7075 = vperm.slane %v6035, 5
      %v7076 = vperm.slane %v6036, 5
      %v7077 = vmul.f32 %v7043, %v7075
      %v7078 = vmul.f32 %v7044, %v7076
      %v7079 = vmul.f32 %v6817, %v7075
      %v7080 = vmul.f32 %v6818, %v7076
      %v7081 = vmul.f32 %v7045, %v7075
      %v7082 = vmul.f32 %v7046, %v7076
      %v7083 = vmul.f32 %v7047, %v7075
      %v7084 = vmul.f32 %v7048, %v7076
      %v7085 = vmul.f32 %v6819, %v7075
      %v7086 = vmul.f32 %v6820, %v7076
      %v7087 = vmul.f32 %v7049, %v7075
      %v7088 = vmul.f32 %v7050, %v7076
      %v7089 = vmul.f32 %v7051, %v7075
      %v7090 = vmul.f32 %v7052, %v7076
      %v7091 = vmul.f32 %v6821, %v7075
      %v7092 = vmul.f32 %v6822, %v7076
      %v7093 = vmul.f32 %v7053, %v7075
      %v7094 = vmul.f32 %v7054, %v7076
      %v7095 = vmul.f32 %v7055, %v7075
      %v7096 = vmul.f32 %v7056, %v7076
      %v7097 = vmul.f32 %v6823, %v7075
      %v7098 = vmul.f32 %v6824, %v7076
      %v7099 = vmul.f32 %v7057, %v7075
      %v7100 = vmul.f32 %v7058, %v7076
      %v7101 = vmul.f32 %v7059, %v7075
      %v7102 = vmul.f32 %v7060, %v7076
      %v7103 = vmul.f32 %v6825, %v7075
      %v7104 = vmul.f32 %v6826, %v7076
      %v7105 = vmul.f32 %v7061, %v7075
      %v7106 = vmul.f32 %v7062, %v7076
      %v7107 = vmul.f32 %v7063, %v7075
      %v7108 = vmul.f32 %v7064, %v7076
      %v7109 = vmul.f32 %v6827, %v7075
      %v7110 = vmul.f32 %v6828, %v7076
      %v7111 = vmul.f32 %v7065, %v7075
      %v7112 = vmul.f32 %v7066, %v7076
      %v7113 = vmul.f32 %v7067, %v7075
      %v7114 = vmul.f32 %v7068, %v7076
      %v7115 = vmul.f32 %v6829, %v7075
      %v7116 = vmul.f32 %v6830, %v7076
      %v7117 = vmul.f32 %v7069, %v7075
      %v7118 = vmul.f32 %v7070, %v7076
      %v7119 = vmul.f32 %v7071, %v7075
      %v7120 = vmul.f32 %v7072, %v7076
      %v7121 = vmul.f32 %v6831, %v7075
      %v7122 = vmul.f32 %v6832, %v7076
      %v7123 = vmul.f32 %v7073, %v7075
      %v7124 = vmul.f32 %v7074, %v7076
      %v7173 = vrot.slane %v7077, 2
      %v7174 = vrot.slane %v7078, 2
      %v7175 = vrot.slane %v7079, 2
      %v7176 = vsel %vm2388, %v7173, %v7175
      %v7177 = vrot.slane %v7080, 2
      %v7178 = vsel %vm2388, %v7174, %v7177
      %v7179 = vrot.slane %v7081, 2
      %v7180 = vsel %vm2388, %v7175, %v7179
      %v7181 = vrot.slane %v7082, 2
      %v7182 = vsel %vm2388, %v7177, %v7181
      %v7183 = vrot.slane %v7083, 2
      %v7184 = vrot.slane %v7084, 2
      %v7185 = vrot.slane %v7085, 2
      %v7186 = vsel %vm2388, %v7183, %v7185
      %v7187 = vrot.slane %v7086, 2
      %v7188 = vsel %vm2388, %v7184, %v7187
      %v7189 = vrot.slane %v7087, 2
      %v7190 = vsel %vm2388, %v7185, %v7189
      %v7191 = vrot.slane %v7088, 2
      %v7192 = vsel %vm2388, %v7187, %v7191
      %v7193 = vrot.slane %v7089, 2
      %v7194 = vrot.slane %v7090, 2
      %v7195 = vrot.slane %v7091, 2
      %v7196 = vsel %vm2388, %v7193, %v7195
      %v7197 = vrot.slane %v7092, 2
      %v7198 = vsel %vm2388, %v7194, %v7197
      %v7199 = vrot.slane %v7093, 2
      %v7200 = vsel %vm2388, %v7195, %v7199
      %v7201 = vrot.slane %v7094, 2
      %v7202 = vsel %vm2388, %v7197, %v7201
      %v7203 = vrot.slane %v7095, 2
      %v7204 = vrot.slane %v7096, 2
      %v7205 = vrot.slane %v7097, 2
      %v7206 = vsel %vm2388, %v7203, %v7205
      %v7207 = vrot.slane %v7098, 2
      %v7208 = vsel %vm2388, %v7204, %v7207
      %v7209 = vrot.slane %v7099, 2
      %v7210 = vsel %vm2388, %v7205, %v7209
      %v7211 = vrot.slane %v7100, 2
      %v7212 = vsel %vm2388, %v7207, %v7211
      %v7213 = vrot.slane %v7101, 2
      %v7214 = vrot.slane %v7102, 2
      %v7215 = vrot.slane %v7103, 2
      %v7216 = vsel %vm2388, %v7213, %v7215
      %v7217 = vrot.slane %v7104, 2
      %v7218 = vsel %vm2388, %v7214, %v7217
      %v7219 = vrot.slane %v7105, 2
      %v7220 = vsel %vm2388, %v7215, %v7219
      %v7221 = vrot.slane %v7106, 2
      %v7222 = vsel %vm2388, %v7217, %v7221
      %v7223 = vrot.slane %v7107, 2
      %v7224 = vrot.slane %v7108, 2
      %v7225 = vrot.slane %v7109, 2
      %v7226 = vsel %vm2388, %v7223, %v7225
      %v7227 = vrot.slane %v7110, 2
      %v7228 = vsel %vm2388, %v7224, %v7227
      %v7229 = vrot.slane %v7111, 2
      %v7230 = vsel %vm2388, %v7225, %v7229
      %v7231 = vrot.slane %v7112, 2
      %v7232 = vsel %vm2388, %v7227, %v7231
      %v7233 = vrot.slane %v7113, 2
      %v7234 = vrot.slane %v7114, 2
      %v7235 = vrot.slane %v7115, 2
      %v7236 = vsel %vm2388, %v7233, %v7235
      %v7237 = vrot.slane %v7116, 2
      %v7238 = vsel %vm2388, %v7234, %v7237
      %v7239 = vrot.slane %v7117, 2
      %v7240 = vsel %vm2388, %v7235, %v7239
      %v7241 = vrot.slane %v7118, 2
      %v7242 = vsel %vm2388, %v7237, %v7241
      %v7243 = vrot.slane %v7119, 2
      %v7244 = vrot.slane %v7120, 2
      %v7245 = vrot.slane %v7121, 2
      %v7246 = vsel %vm2388, %v7243, %v7245
      %v7247 = vrot.slane %v7122, 2
      %v7248 = vsel %vm2388, %v7244, %v7247
      %v7249 = vrot.slane %v7123, 2
      %v7250 = vsel %vm2388, %v7245, %v7249
      %v7251 = vrot.slane %v7124, 2
      %v7252 = vsel %vm2388, %v7247, %v7251
      %v7301 = vadd.f32 %v6995, %v7173
      %v7302 = vadd.f32 %v6996, %v7174
      %v7303 = vadd.f32 %v6997, %v7176
      %v7304 = vadd.f32 %v6998, %v7178
      %v7305 = vadd.f32 %v6999, %v7180
      %v7306 = vadd.f32 %v7000, %v7182
      %v7307 = vadd.f32 %v7001, %v7183
      %v7308 = vadd.f32 %v7002, %v7184
      %v7309 = vadd.f32 %v7003, %v7186
      %v7310 = vadd.f32 %v7004, %v7188
      %v7311 = vadd.f32 %v7005, %v7190
      %v7312 = vadd.f32 %v7006, %v7192
      %v7313 = vadd.f32 %v7007, %v7193
      %v7314 = vadd.f32 %v7008, %v7194
      %v7315 = vadd.f32 %v7009, %v7196
      %v7316 = vadd.f32 %v7010, %v7198
      %v7317 = vadd.f32 %v7011, %v7200
      %v7318 = vadd.f32 %v7012, %v7202
      %v7319 = vadd.f32 %v7013, %v7203
      %v7320 = vadd.f32 %v7014, %v7204
      %v7321 = vadd.f32 %v7015, %v7206
      %v7322 = vadd.f32 %v7016, %v7208
      %v7323 = vadd.f32 %v7017, %v7210
      %v7324 = vadd.f32 %v7018, %v7212
      %v7325 = vadd.f32 %v7019, %v7213
      %v7326 = vadd.f32 %v7020, %v7214
      %v7327 = vadd.f32 %v7021, %v7216
      %v7328 = vadd.f32 %v7022, %v7218
      %v7329 = vadd.f32 %v7023, %v7220
      %v7330 = vadd.f32 %v7024, %v7222
      %v7331 = vadd.f32 %v7025, %v7223
      %v7332 = vadd.f32 %v7026, %v7224
      %v7333 = vadd.f32 %v7027, %v7226
      %v7334 = vadd.f32 %v7028, %v7228
      %v7335 = vadd.f32 %v7029, %v7230
      %v7336 = vadd.f32 %v7030, %v7232
      %v7337 = vadd.f32 %v7031, %v7233
      %v7338 = vadd.f32 %v7032, %v7234
      %v7339 = vadd.f32 %v7033, %v7236
      %v7340 = vadd.f32 %v7034, %v7238
      %v7341 = vadd.f32 %v7035, %v7240
      %v7342 = vadd.f32 %v7036, %v7242
      %v7343 = vadd.f32 %v7037, %v7243
      %v7344 = vadd.f32 %v7038, %v7244
      %v7345 = vadd.f32 %v7039, %v7246
      %v7346 = vadd.f32 %v7040, %v7248
      %v7347 = vadd.f32 %v7041, %v7250
      %v7348 = vadd.f32 %v7042, %v7252
      %s7349 = scalar_lea.vmem [#allocation4], 128
      %v7350 = vld [vmem:[%s7349] sm:$0x80]
      %v7351 = vld [vmem:[%s7349 + $0x8] sm:$0x80]
      %v7352 = vld [vmem:[%s7349 + $0x10] sm:$0xff]
      %v7353 = vld [vmem:[%s7349 + $0x18] sm:$0xff]
      %v7354 = vld [vmem:[%s7349 + $0x20] sm:$0x7f]
      %v7355 = vld [vmem:[%s7349 + $0x28] sm:$0x7f]
      %v7356 = vld [vmem:[%s7349 + $0x40] sm:$0x80]
      %v7357 = vld [vmem:[%s7349 + $0x48] sm:$0x80]
      %v7358 = vld [vmem:[%s7349 + $0x50] sm:$0xff]
      %v7359 = vld [vmem:[%s7349 + $0x58] sm:$0xff]
      %v7360 = vld [vmem:[%s7349 + $0x60] sm:$0x7f]
      %v7361 = vld [vmem:[%s7349 + $0x68] sm:$0x7f]
      %v7362 = vld [vmem:[%s7349 + $0x80] sm:$0x80]
      %v7363 = vld [vmem:[%s7349 + $0x88] sm:$0x80]
      %v7364 = vld [vmem:[%s7349 + $0x90] sm:$0xff]
      %v7365 = vld [vmem:[%s7349 + $0x98] sm:$0xff]
      %v7366 = vld [vmem:[%s7349 + $0xa0] sm:$0x7f]
      %v7367 = vld [vmem:[%s7349 + $0xa8] sm:$0x7f]
      %v7368 = vld [vmem:[%s7349 + $0xc0] sm:$0x80]
      %v7369 = vld [vmem:[%s7349 + $0xc8] sm:$0x80]
      %v7370 = vld [vmem:[%s7349 + $0xd0] sm:$0xff]
      %v7371 = vld [vmem:[%s7349 + $0xd8] sm:$0xff]
      %v7372 = vld [vmem:[%s7349 + $0xe0] sm:$0x7f]
      %v7373 = vld [vmem:[%s7349 + $0xe8] sm:$0x7f]
      %v7374 = vld [vmem:[%s7349 + $0x100] sm:$0x80]
      %v7375 = vld [vmem:[%s7349 + $0x108] sm:$0x80]
      %v7376 = vld [vmem:[%s7349 + $0x110] sm:$0xff]
      %v7377 = vld [vmem:[%s7349 + $0x118] sm:$0xff]
      %v7378 = vld [vmem:[%s7349 + $0x120] sm:$0x7f]
      %v7379 = vld [vmem:[%s7349 + $0x128] sm:$0x7f]
      %v7380 = vld [vmem:[%s7349 + $0x140] sm:$0x80]
      %v7381 = vld [vmem:[%s7349 + $0x148] sm:$0x80]
      %v7382 = vld [vmem:[%s7349 + $0x150] sm:$0xff]
      %v7383 = vld [vmem:[%s7349 + $0x158] sm:$0xff]
      %v7384 = vld [vmem:[%s7349 + $0x160] sm:$0x7f]
      %v7385 = vld [vmem:[%s7349 + $0x168] sm:$0x7f]
      %v7386 = vld [vmem:[%s7349 + $0x180] sm:$0x80]
      %v7387 = vld [vmem:[%s7349 + $0x188] sm:$0x80]
      %v7388 = vld [vmem:[%s7349 + $0x190] sm:$0xff]
      %v7389 = vld [vmem:[%s7349 + $0x198] sm:$0xff]
      %v7390 = vld [vmem:[%s7349 + $0x1a0] sm:$0x7f]
      %v7391 = vld [vmem:[%s7349 + $0x1a8] sm:$0x7f]
      %v7392 = vld [vmem:[%s7349 + $0x1c0] sm:$0x80]
      %v7393 = vld [vmem:[%s7349 + $0x1c8] sm:$0x80]
      %v7394 = vld [vmem:[%s7349 + $0x1d0] sm:$0xff]
      %v7395 = vld [vmem:[%s7349 + $0x1d8] sm:$0xff]
      %v7396 = vld [vmem:[%s7349 + $0x1e0] sm:$0x7f]
      %v7397 = vld [vmem:[%s7349 + $0x1e8] sm:$0x7f]
      %v7398 = vperm.slane %v6035, 6
      %v7399 = vperm.slane %v6036, 6
      %v7400 = vmul.f32 %v7350, %v7398
      %v7401 = vmul.f32 %v7351, %v7399
      %v7402 = vmul.f32 %v7352, %v7398
      %v7403 = vmul.f32 %v7353, %v7399
      %v7404 = vmul.f32 %v7354, %v7398
      %v7405 = vmul.f32 %v7355, %v7399
      %v7406 = vmul.f32 %v7356, %v7398
      %v7407 = vmul.f32 %v7357, %v7399
      %v7408 = vmul.f32 %v7358, %v7398
      %v7409 = vmul.f32 %v7359, %v7399
      %v7410 = vmul.f32 %v7360, %v7398
      %v7411 = vmul.f32 %v7361, %v7399
      %v7412 = vmul.f32 %v7362, %v7398
      %v7413 = vmul.f32 %v7363, %v7399
      %v7414 = vmul.f32 %v7364, %v7398
      %v7415 = vmul.f32 %v7365, %v7399
      %v7416 = vmul.f32 %v7366, %v7398
      %v7417 = vmul.f32 %v7367, %v7399
      %v7418 = vmul.f32 %v7368, %v7398
      %v7419 = vmul.f32 %v7369, %v7399
      %v7420 = vmul.f32 %v7370, %v7398
      %v7421 = vmul.f32 %v7371, %v7399
      %v7422 = vmul.f32 %v7372, %v7398
      %v7423 = vmul.f32 %v7373, %v7399
      %v7424 = vmul.f32 %v7374, %v7398
      %v7425 = vmul.f32 %v7375, %v7399
      %v7426 = vmul.f32 %v7376, %v7398
      %v7427 = vmul.f32 %v7377, %v7399
      %v7428 = vmul.f32 %v7378, %v7398
      %v7429 = vmul.f32 %v7379, %v7399
      %v7430 = vmul.f32 %v7380, %v7398
      %v7431 = vmul.f32 %v7381, %v7399
      %v7432 = vmul.f32 %v7382, %v7398
      %v7433 = vmul.f32 %v7383, %v7399
      %v7434 = vmul.f32 %v7384, %v7398
      %v7435 = vmul.f32 %v7385, %v7399
      %v7436 = vmul.f32 %v7386, %v7398
      %v7437 = vmul.f32 %v7387, %v7399
      %v7438 = vmul.f32 %v7388, %v7398
      %v7439 = vmul.f32 %v7389, %v7399
      %v7440 = vmul.f32 %v7390, %v7398
      %v7441 = vmul.f32 %v7391, %v7399
      %v7442 = vmul.f32 %v7392, %v7398
      %v7443 = vmul.f32 %v7393, %v7399
      %v7444 = vmul.f32 %v7394, %v7398
      %v7445 = vmul.f32 %v7395, %v7399
      %v7446 = vmul.f32 %v7396, %v7398
      %v7447 = vmul.f32 %v7397, %v7399
      %v7448 = vadd.f32 %v7301, %v7400
      %v7449 = vadd.f32 %v7302, %v7401
      %v7450 = vadd.f32 %v7303, %v7402
      %v7451 = vadd.f32 %v7304, %v7403
      %v7452 = vadd.f32 %v7305, %v7404
      %v7453 = vadd.f32 %v7306, %v7405
      %v7454 = vadd.f32 %v7307, %v7406
      %v7455 = vadd.f32 %v7308, %v7407
      %v7456 = vadd.f32 %v7309, %v7408
      %v7457 = vadd.f32 %v7310, %v7409
      %v7458 = vadd.f32 %v7311, %v7410
      %v7459 = vadd.f32 %v7312, %v7411
      %v7460 = vadd.f32 %v7313, %v7412
      %v7461 = vadd.f32 %v7314, %v7413
      %v7462 = vadd.f32 %v7315, %v7414
      %v7463 = vadd.f32 %v7316, %v7415
      %v7464 = vadd.f32 %v7317, %v7416
      %v7465 = vadd.f32 %v7318, %v7417
      %v7466 = vadd.f32 %v7319, %v7418
      %v7467 = vadd.f32 %v7320, %v7419
      %v7468 = vadd.f32 %v7321, %v7420
      %v7469 = vadd.f32 %v7322, %v7421
      %v7470 = vadd.f32 %v7323, %v7422
      %v7471 = vadd.f32 %v7324, %v7423
      %v7472 = vadd.f32 %v7325, %v7424
      %v7473 = vadd.f32 %v7326, %v7425
      %v7474 = vadd.f32 %v7327, %v7426
      %v7475 = vadd.f32 %v7328, %v7427
      %v7476 = vadd.f32 %v7329, %v7428
      %v7477 = vadd.f32 %v7330, %v7429
      %v7478 = vadd.f32 %v7331, %v7430
      %v7479 = vadd.f32 %v7332, %v7431
      %v7480 = vadd.f32 %v7333, %v7432
      %v7481 = vadd.f32 %v7334, %v7433
      %v7482 = vadd.f32 %v7335, %v7434
      %v7483 = vadd.f32 %v7336, %v7435
      %v7484 = vadd.f32 %v7337, %v7436
      %v7485 = vadd.f32 %v7338, %v7437
      %v7486 = vadd.f32 %v7339, %v7438
      %v7487 = vadd.f32 %v7340, %v7439
      %v7488 = vadd.f32 %v7341, %v7440
      %v7489 = vadd.f32 %v7342, %v7441
      %v7490 = vadd.f32 %v7343, %v7442
      %v7491 = vadd.f32 %v7344, %v7443
      %v7492 = vadd.f32 %v7345, %v7444
      %v7493 = vadd.f32 %v7346, %v7445
      %v7494 = vadd.f32 %v7347, %v7446
      %v7495 = vadd.f32 %v7348, %v7447
      %v7496 = vld [vmem:[%s7349 + $0x20] sm:$0xff]
      %v7497 = vld [vmem:[%s7349 + $0x28] sm:$0xff]
      %v7498 = vld [vmem:[%s7349 + $0x60] sm:$0xff]
      %v7499 = vld [vmem:[%s7349 + $0x68] sm:$0xff]
      %v7500 = vld [vmem:[%s7349 + $0xa0] sm:$0xff]
      %v7501 = vld [vmem:[%s7349 + $0xa8] sm:$0xff]
      %v7502 = vld [vmem:[%s7349 + $0xe0] sm:$0xff]
      %v7503 = vld [vmem:[%s7349 + $0xe8] sm:$0xff]
      %v7504 = vld [vmem:[%s7349 + $0x120] sm:$0xff]
      %v7505 = vld [vmem:[%s7349 + $0x128] sm:$0xff]
      %v7506 = vld [vmem:[%s7349 + $0x160] sm:$0xff]
      %v7507 = vld [vmem:[%s7349 + $0x168] sm:$0xff]
      %v7508 = vld [vmem:[%s7349 + $0x1a0] sm:$0xff]
      %v7509 = vld [vmem:[%s7349 + $0x1a8] sm:$0xff]
      %v7510 = vld [vmem:[%s7349 + $0x1e0] sm:$0xff]
      %v7511 = vld [vmem:[%s7349 + $0x1e8] sm:$0xff]
      %v7512 = vperm.slane %v6035, 7
      %v7513 = vperm.slane %v6036, 7
      %v7514 = vmul.f32 %v7352, %v7512
      %v7515 = vmul.f32 %v7353, %v7513
      %v7516 = vmul.f32 %v7496, %v7512
      %v7517 = vmul.f32 %v7497, %v7513
      %v7518 = vmul.f32 %v7358, %v7512
      %v7519 = vmul.f32 %v7359, %v7513
      %v7520 = vmul.f32 %v7498, %v7512
      %v7521 = vmul.f32 %v7499, %v7513
      %v7522 = vmul.f32 %v7364, %v7512
      %v7523 = vmul.f32 %v7365, %v7513
      %v7524 = vmul.f32 %v7500, %v7512
      %v7525 = vmul.f32 %v7501, %v7513
      %v7526 = vmul.f32 %v7370, %v7512
      %v7527 = vmul.f32 %v7371, %v7513
      %v7528 = vmul.f32 %v7502, %v7512
      %v7529 = vmul.f32 %v7503, %v7513
      %v7530 = vmul.f32 %v7376, %v7512
      %v7531 = vmul.f32 %v7377, %v7513
      %v7532 = vmul.f32 %v7504, %v7512
      %v7533 = vmul.f32 %v7505, %v7513
      %v7534 = vmul.f32 %v7382, %v7512
      %v7535 = vmul.f32 %v7383, %v7513
      %v7536 = vmul.f32 %v7506, %v7512
      %v7537 = vmul.f32 %v7507, %v7513
      %v7538 = vmul.f32 %v7388, %v7512
      %v7539 = vmul.f32 %v7389, %v7513
      %v7540 = vmul.f32 %v7508, %v7512
      %v7541 = vmul.f32 %v7509, %v7513
      %v7542 = vmul.f32 %v7394, %v7512
      %v7543 = vmul.f32 %v7395, %v7513
      %v7544 = vmul.f32 %v7510, %v7512
      %v7545 = vmul.f32 %v7511, %v7513
      %v7578 = vrot.slane %v7514, 1
      %v7579 = vrot.slane %v7515, 1
      %v7580 = vrot.slane %v7516, 1
      %v7581 = vsel %vm2045, %v7578, %v7580
      %v7582 = vrot.slane %v7517, 1
      %v7583 = vsel %vm2045, %v7579, %v7582
      %v7584 = vrot.slane %v7518, 1
      %v7585 = vrot.slane %v7519, 1
      %v7586 = vrot.slane %v7520, 1
      %v7587 = vsel %vm2045, %v7584, %v7586
      %v7588 = vrot.slane %v7521, 1
      %v7589 = vsel %vm2045, %v7585, %v7588
      %v7590 = vrot.slane %v7522, 1
      %v7591 = vrot.slane %v7523, 1
      %v7592 = vrot.slane %v7524, 1
      %v7593 = vsel %vm2045, %v7590, %v7592
      %v7594 = vrot.slane %v7525, 1
      %v7595 = vsel %vm2045, %v7591, %v7594
      %v7596 = vrot.slane %v7526, 1
      %v7597 = vrot.slane %v7527, 1
      %v7598 = vrot.slane %v7528, 1
      %v7599 = vsel %vm2045, %v7596, %v7598
      %v7600 = vrot.slane %v7529, 1
      %v7601 = vsel %vm2045, %v7597, %v7600
      %v7602 = vrot.slane %v7530, 1
      %v7603 = vrot.slane %v7531, 1
      %v7604 = vrot.slane %v7532, 1
      %v7605 = vsel %vm2045, %v7602, %v7604
      %v7606 = vrot.slane %v7533, 1
      %v7607 = vsel %vm2045, %v7603, %v7606
      %v7608 = vrot.slane %v7534, 1
      %v7609 = vrot.slane %v7535, 1
      %v7610 = vrot.slane %v7536, 1
      %v7611 = vsel %vm2045, %v7608, %v7610
      %v7612 = vrot.slane %v7537, 1
      %v7613 = vsel %vm2045, %v7609, %v7612
      %v7614 = vrot.slane %v7538, 1
      %v7615 = vrot.slane %v7539, 1
      %v7616 = vrot.slane %v7540, 1
      %v7617 = vsel %vm2045, %v7614, %v7616
      %v7618 = vrot.slane %v7541, 1
      %v7619 = vsel %vm2045, %v7615, %v7618
      %v7620 = vrot.slane %v7542, 1
      %v7621 = vrot.slane %v7543, 1
      %v7622 = vrot.slane %v7544, 1
      %v7623 = vsel %vm2045, %v7620, %v7622
      %v7624 = vrot.slane %v7545, 1
      %v7625 = vsel %vm2045, %v7621, %v7624
      %v7674 = vadd.f32 %v7448, %v7578
      %v7675 = vadd.f32 %v7449, %v7579
      %v7676 = vadd.f32 %v7450, %v7581
      %v7677 = vadd.f32 %v7451, %v7583
      %v7678 = vadd.f32 %v7452, %v7580
      %v7679 = vadd.f32 %v7453, %v7582
      %v7680 = vadd.f32 %v7454, %v7584
      %v7681 = vadd.f32 %v7455, %v7585
      %v7682 = vadd.f32 %v7456, %v7587
      %v7683 = vadd.f32 %v7457, %v7589
      %v7684 = vadd.f32 %v7458, %v7586
      %v7685 = vadd.f32 %v7459, %v7588
      %v7686 = vadd.f32 %v7460, %v7590
      %v7687 = vadd.f32 %v7461, %v7591
      %v7688 = vadd.f32 %v7462, %v7593
      %v7689 = vadd.f32 %v7463, %v7595
      %v7690 = vadd.f32 %v7464, %v7592
      %v7691 = vadd.f32 %v7465, %v7594
      %v7692 = vadd.f32 %v7466, %v7596
      %v7693 = vadd.f32 %v7467, %v7597
      %v7694 = vadd.f32 %v7468, %v7599
      %v7695 = vadd.f32 %v7469, %v7601
      %v7696 = vadd.f32 %v7470, %v7598
      %v7697 = vadd.f32 %v7471, %v7600
      %v7698 = vadd.f32 %v7472, %v7602
      %v7699 = vadd.f32 %v7473, %v7603
      %v7700 = vadd.f32 %v7474, %v7605
      %v7701 = vadd.f32 %v7475, %v7607
      %v7702 = vadd.f32 %v7476, %v7604
      %v7703 = vadd.f32 %v7477, %v7606
      %v7704 = vadd.f32 %v7478, %v7608
      %v7705 = vadd.f32 %v7479, %v7609
      %v7706 = vadd.f32 %v7480, %v7611
      %v7707 = vadd.f32 %v7481, %v7613
      %v7708 = vadd.f32 %v7482, %v7610
      %v7709 = vadd.f32 %v7483, %v7612
      %v7710 = vadd.f32 %v7484, %v7614
      %v7711 = vadd.f32 %v7485, %v7615
      %v7712 = vadd.f32 %v7486, %v7617
      %v7713 = vadd.f32 %v7487, %v7619
      %v7714 = vadd.f32 %v7488, %v7616
      %v7715 = vadd.f32 %v7489, %v7618
      %v7716 = vadd.f32 %v7490, %v7620
      %v7717 = vadd.f32 %v7491, %v7621
      %v7718 = vadd.f32 %v7492, %v7623
      %v7719 = vadd.f32 %v7493, %v7625
      %v7720 = vadd.f32 %v7494, %v7622
      %v7721 = vadd.f32 %v7495, %v7624
      %v7722 = vld [vmem:[%s7349 + $0x10] sm:$0xfe]
      %v7723 = vld [vmem:[%s7349 + $0x18] sm:$0xfe]
      %v7724 = vld [vmem:[%s7349 + $0x30] sm:$0x1]
      %v7725 = vld [vmem:[%s7349 + $0x38] sm:$0x1]
      %v7726 = vld [vmem:[%s7349 + $0x50] sm:$0xfe]
      %v7727 = vld [vmem:[%s7349 + $0x58] sm:$0xfe]
      %v7728 = vld [vmem:[%s7349 + $0x70] sm:$0x1]
      %v7729 = vld [vmem:[%s7349 + $0x78] sm:$0x1]
      %v7730 = vld [vmem:[%s7349 + $0x90] sm:$0xfe]
      %v7731 = vld [vmem:[%s7349 + $0x98] sm:$0xfe]
      %v7732 = vld [vmem:[%s7349 + $0xb0] sm:$0x1]
      %v7733 = vld [vmem:[%s7349 + $0xb8] sm:$0x1]
      %v7734 = vld [vmem:[%s7349 + $0xd0] sm:$0xfe]
      %v7735 = vld [vmem:[%s7349 + $0xd8] sm:$0xfe]
      %v7736 = vld [vmem:[%s7349 + $0xf0] sm:$0x1]
      %v7737 = vld [vmem:[%s7349 + $0xf8] sm:$0x1]
      %v7738 = vld [vmem:[%s7349 + $0x110] sm:$0xfe]
      %v7739 = vld [vmem:[%s7349 + $0x118] sm:$0xfe]
      %v7740 = vld [vmem:[%s7349 + $0x130] sm:$0x1]
      %v7741 = vld [vmem:[%s7349 + $0x138] sm:$0x1]
      %v7742 = vld [vmem:[%s7349 + $0x150] sm:$0xfe]
      %v7743 = vld [vmem:[%s7349 + $0x158] sm:$0xfe]
      %v7744 = vld [vmem:[%s7349 + $0x170] sm:$0x1]
      %v7745 = vld [vmem:[%s7349 + $0x178] sm:$0x1]
      %v7746 = vld [vmem:[%s7349 + $0x190] sm:$0xfe]
      %v7747 = vld [vmem:[%s7349 + $0x198] sm:$0xfe]
      %v7748 = vld [vmem:[%s7349 + $0x1b0] sm:$0x1]
      %v7749 = vld [vmem:[%s7349 + $0x1b8] sm:$0x1]
      %v7750 = vld [vmem:[%s7349 + $0x1d0] sm:$0xfe]
      %v7751 = vld [vmem:[%s7349 + $0x1d8] sm:$0xfe]
      %v7752 = vld [vmem:[%s7349 + $0x1f0] sm:$0x1]
      %v7753 = vld [vmem:[%s7349 + $0x1f8] sm:$0x1]
      %v7754 = vperm.slane %v6037, 0
      %v7755 = vperm.slane %v6038, 0
      %v7756 = vmul.f32 %v7722, %v7754
      %v7757 = vmul.f32 %v7723, %v7755
      %v7758 = vmul.f32 %v7496, %v7754
      %v7759 = vmul.f32 %v7497, %v7755
      %v7760 = vmul.f32 %v7724, %v7754
      %v7761 = vmul.f32 %v7725, %v7755
      %v7762 = vmul.f32 %v7726, %v7754
      %v7763 = vmul.f32 %v7727, %v7755
      %v7764 = vmul.f32 %v7498, %v7754
      %v7765 = vmul.f32 %v7499, %v7755
      %v7766 = vmul.f32 %v7728, %v7754
      %v7767 = vmul.f32 %v7729, %v7755
      %v7768 = vmul.f32 %v7730, %v7754
      %v7769 = vmul.f32 %v7731, %v7755
      %v7770 = vmul.f32 %v7500, %v7754
      %v7771 = vmul.f32 %v7501, %v7755
      %v7772 = vmul.f32 %v7732, %v7754
      %v7773 = vmul.f32 %v7733, %v7755
      %v7774 = vmul.f32 %v7734, %v7754
      %v7775 = vmul.f32 %v7735, %v7755
      %v7776 = vmul.f32 %v7502, %v7754
      %v7777 = vmul.f32 %v7503, %v7755
      %v7778 = vmul.f32 %v7736, %v7754
      %v7779 = vmul.f32 %v7737, %v7755
      %v7780 = vmul.f32 %v7738, %v7754
      %v7781 = vmul.f32 %v7739, %v7755
      %v7782 = vmul.f32 %v7504, %v7754
      %v7783 = vmul.f32 %v7505, %v7755
      %v7784 = vmul.f32 %v7740, %v7754
      %v7785 = vmul.f32 %v7741, %v7755
      %v7786 = vmul.f32 %v7742, %v7754
      %v7787 = vmul.f32 %v7743, %v7755
      %v7788 = vmul.f32 %v7506, %v7754
      %v7789 = vmul.f32 %v7507, %v7755
      %v7790 = vmul.f32 %v7744, %v7754
      %v7791 = vmul.f32 %v7745, %v7755
      %v7792 = vmul.f32 %v7746, %v7754
      %v7793 = vmul.f32 %v7747, %v7755
      %v7794 = vmul.f32 %v7508, %v7754
      %v7795 = vmul.f32 %v7509, %v7755
      %v7796 = vmul.f32 %v7748, %v7754
      %v7797 = vmul.f32 %v7749, %v7755
      %v7798 = vmul.f32 %v7750, %v7754
      %v7799 = vmul.f32 %v7751, %v7755
      %v7800 = vmul.f32 %v7510, %v7754
      %v7801 = vmul.f32 %v7511, %v7755
      %v7802 = vmul.f32 %v7752, %v7754
      %v7803 = vmul.f32 %v7753, %v7755
      %v7852 = vrot.slane %v7756, 2
      %v7853 = vrot.slane %v7757, 2
      %v7854 = vrot.slane %v7758, 2
      %v7855 = vsel %vm2388, %v7852, %v7854
      %v7856 = vrot.slane %v7759, 2
      %v7857 = vsel %vm2388, %v7853, %v7856
      %v7858 = vrot.slane %v7760, 2
      %v7859 = vsel %vm2388, %v7854, %v7858
      %v7860 = vrot.slane %v7761, 2
      %v7861 = vsel %vm2388, %v7856, %v7860
      %v7862 = vrot.slane %v7762, 2
      %v7863 = vrot.slane %v7763, 2
      %v7864 = vrot.slane %v7764, 2
      %v7865 = vsel %vm2388, %v7862, %v7864
      %v7866 = vrot.slane %v7765, 2
      %v7867 = vsel %vm2388, %v7863, %v7866
      %v7868 = vrot.slane %v7766, 2
      %v7869 = vsel %vm2388, %v7864, %v7868
      %v7870 = vrot.slane %v7767, 2
      %v7871 = vsel %vm2388, %v7866, %v7870
      %v7872 = vrot.slane %v7768, 2
      %v7873 = vrot.slane %v7769, 2
      %v7874 = vrot.slane %v7770, 2
      %v7875 = vsel %vm2388, %v7872, %v7874
      %v7876 = vrot.slane %v7771, 2
      %v7877 = vsel %vm2388, %v7873, %v7876
      %v7878 = vrot.slane %v7772, 2
      %v7879 = vsel %vm2388, %v7874, %v7878
      %v7880 = vrot.slane %v7773, 2
      %v7881 = vsel %vm2388, %v7876, %v7880
      %v7882 = vrot.slane %v7774, 2
      %v7883 = vrot.slane %v7775, 2
      %v7884 = vrot.slane %v7776, 2
      %v7885 = vsel %vm2388, %v7882, %v7884
      %v7886 = vrot.slane %v7777, 2
      %v7887 = vsel %vm2388, %v7883, %v7886
      %v7888 = vrot.slane %v7778, 2
      %v7889 = vsel %vm2388, %v7884, %v7888
      %v7890 = vrot.slane %v7779, 2
      %v7891 = vsel %vm2388, %v7886, %v7890
      %v7892 = vrot.slane %v7780, 2
      %v7893 = vrot.slane %v7781, 2
      %v7894 = vrot.slane %v7782, 2
      %v7895 = vsel %vm2388, %v7892, %v7894
      %v7896 = vrot.slane %v7783, 2
      %v7897 = vsel %vm2388, %v7893, %v7896
      %v7898 = vrot.slane %v7784, 2
      %v7899 = vsel %vm2388, %v7894, %v7898
      %v7900 = vrot.slane %v7785, 2
      %v7901 = vsel %vm2388, %v7896, %v7900
      %v7902 = vrot.slane %v7786, 2
      %v7903 = vrot.slane %v7787, 2
      %v7904 = vrot.slane %v7788, 2
      %v7905 = vsel %vm2388, %v7902, %v7904
      %v7906 = vrot.slane %v7789, 2
      %v7907 = vsel %vm2388, %v7903, %v7906
      %v7908 = vrot.slane %v7790, 2
      %v7909 = vsel %vm2388, %v7904, %v7908
      %v7910 = vrot.slane %v7791, 2
      %v7911 = vsel %vm2388, %v7906, %v7910
      %v7912 = vrot.slane %v7792, 2
      %v7913 = vrot.slane %v7793, 2
      %v7914 = vrot.slane %v7794, 2
      %v7915 = vsel %vm2388, %v7912, %v7914
      %v7916 = vrot.slane %v7795, 2
      %v7917 = vsel %vm2388, %v7913, %v7916
      %v7918 = vrot.slane %v7796, 2
      %v7919 = vsel %vm2388, %v7914, %v7918
      %v7920 = vrot.slane %v7797, 2
      %v7921 = vsel %vm2388, %v7916, %v7920
      %v7922 = vrot.slane %v7798, 2
      %v7923 = vrot.slane %v7799, 2
      %v7924 = vrot.slane %v7800, 2
      %v7925 = vsel %vm2388, %v7922, %v7924
      %v7926 = vrot.slane %v7801, 2
      %v7927 = vsel %vm2388, %v7923, %v7926
      %v7928 = vrot.slane %v7802, 2
      %v7929 = vsel %vm2388, %v7924, %v7928
      %v7930 = vrot.slane %v7803, 2
      %v7931 = vsel %vm2388, %v7926, %v7930
      %v7980 = vadd.f32 %v7674, %v7852
      %v7981 = vadd.f32 %v7675, %v7853
      %v7982 = vadd.f32 %v7676, %v7855
      %v7983 = vadd.f32 %v7677, %v7857
      %v7984 = vadd.f32 %v7678, %v7859
      %v7985 = vadd.f32 %v7679, %v7861
      %v7986 = vadd.f32 %v7680, %v7862
      %v7987 = vadd.f32 %v7681, %v7863
      %v7988 = vadd.f32 %v7682, %v7865
      %v7989 = vadd.f32 %v7683, %v7867
      %v7990 = vadd.f32 %v7684, %v7869
      %v7991 = vadd.f32 %v7685, %v7871
      %v7992 = vadd.f32 %v7686, %v7872
      %v7993 = vadd.f32 %v7687, %v7873
      %v7994 = vadd.f32 %v7688, %v7875
      %v7995 = vadd.f32 %v7689, %v7877
      %v7996 = vadd.f32 %v7690, %v7879
      %v7997 = vadd.f32 %v7691, %v7881
      %v7998 = vadd.f32 %v7692, %v7882
      %v7999 = vadd.f32 %v7693, %v7883
      %v8000 = vadd.f32 %v7694, %v7885
      %v8001 = vadd.f32 %v7695, %v7887
      %v8002 = vadd.f32 %v7696, %v7889
      %v8003 = vadd.f32 %v7697, %v7891
      %v8004 = vadd.f32 %v7698, %v7892
      %v8005 = vadd.f32 %v7699, %v7893
      %v8006 = vadd.f32 %v7700, %v7895
      %v8007 = vadd.f32 %v7701, %v7897
      %v8008 = vadd.f32 %v7702, %v7899
      %v8009 = vadd.f32 %v7703, %v7901
      %v8010 = vadd.f32 %v7704, %v7902
      %v8011 = vadd.f32 %v7705, %v7903
      %v8012 = vadd.f32 %v7706, %v7905
      %v8013 = vadd.f32 %v7707, %v7907
      %v8014 = vadd.f32 %v7708, %v7909
      %v8015 = vadd.f32 %v7709, %v7911
      %v8016 = vadd.f32 %v7710, %v7912
      %v8017 = vadd.f32 %v7711, %v7913
      %v8018 = vadd.f32 %v7712, %v7915
      %v8019 = vadd.f32 %v7713, %v7917
      %v8020 = vadd.f32 %v7714, %v7919
      %v8021 = vadd.f32 %v7715, %v7921
      %v8022 = vadd.f32 %v7716, %v7922
      %v8023 = vadd.f32 %v7717, %v7923
      %v8024 = vadd.f32 %v7718, %v7925
      %v8025 = vadd.f32 %v7719, %v7927
      %v8026 = vadd.f32 %v7720, %v7929
      %v8027 = vadd.f32 %v7721, %v7931
      %v8029 = vperm.slane %v6039, 0
      %v8030 = vperm.slane %v6039, 1
      %v8033 = vadd.f32 %v7980, %v8029
      %v8034 = vadd.f32 %v7981, %v8030
      %v8035 = vadd.f32 %v7982, %v8029
      %v8036 = vadd.f32 %v7983, %v8030
      %v8037 = vadd.f32 %v7984, %v8029
      %v8038 = vadd.f32 %v7985, %v8030
      %v8039 = vadd.f32 %v7986, %v8029
      %v8040 = vadd.f32 %v7987, %v8030
      %v8041 = vadd.f32 %v7988, %v8029
      %v8042 = vadd.f32 %v7989, %v8030
      %v8043 = vadd.f32 %v7990, %v8029
      %v8044 = vadd.f32 %v7991, %v8030
      %v8045 = vadd.f32 %v7992, %v8029
      %v8046 = vadd.f32 %v7993, %v8030
      %v8047 = vadd.f32 %v7994, %v8029
      %v8048 = vadd.f32 %v7995, %v8030
      %v8049 = vadd.f32 %v7996, %v8029
      %v8050 = vadd.f32 %v7997, %v8030
      %v8051 = vadd.f32 %v7998, %v8029
      %v8052 = vadd.f32 %v7999, %v8030
      %v8053 = vadd.f32 %v8000, %v8029
      %v8054 = vadd.f32 %v8001, %v8030
      %v8055 = vadd.f32 %v8002, %v8029
      %v8056 = vadd.f32 %v8003, %v8030
      %v8057 = vadd.f32 %v8004, %v8029
      %v8058 = vadd.f32 %v8005, %v8030
      %v8059 = vadd.f32 %v8006, %v8029
      %v8060 = vadd.f32 %v8007, %v8030
      %v8061 = vadd.f32 %v8008, %v8029
      %v8062 = vadd.f32 %v8009, %v8030
      %v8063 = vadd.f32 %v8010, %v8029
      %v8064 = vadd.f32 %v8011, %v8030
      %v8065 = vadd.f32 %v8012, %v8029
      %v8066 = vadd.f32 %v8013, %v8030
      %v8067 = vadd.f32 %v8014, %v8029
      %v8068 = vadd.f32 %v8015, %v8030
      %v8069 = vadd.f32 %v8016, %v8029
      %v8070 = vadd.f32 %v8017, %v8030
      %v8071 = vadd.f32 %v8018, %v8029
      %v8072 = vadd.f32 %v8019, %v8030
      %v8073 = vadd.f32 %v8020, %v8029
      %v8074 = vadd.f32 %v8021, %v8030
      %v8075 = vadd.f32 %v8022, %v8029
      %v8076 = vadd.f32 %v8023, %v8030
      %v8077 = vadd.f32 %v8024, %v8029
      %v8078 = vadd.f32 %v8025, %v8030
      %v8079 = vadd.f32 %v8026, %v8029
      %v8080 = vadd.f32 %v8027, %v8030
      %v8081 = vmax.f32 %v8033, 0.0
      %v8082 = vmax.f32 %v8034, 0.0
      %v8083 = vmax.f32 %v8035, 0.0
      %v8084 = vmax.f32 %v8036, 0.0
      %v8085 = vmax.f32 %v8037, 0.0
      %v8086 = vmax.f32 %v8038, 0.0
      %v8087 = vmax.f32 %v8039, 0.0
      %v8088 = vmax.f32 %v8040, 0.0
      %v8089 = vmax.f32 %v8041, 0.0
      %v8090 = vmax.f32 %v8042, 0.0
      %v8091 = vmax.f32 %v8043, 0.0
      %v8092 = vmax.f32 %v8044, 0.0
      %v8093 = vmax.f32 %v8045, 0.0
      %v8094 = vmax.f32 %v8046, 0.0
      %v8095 = vmax.f32 %v8047, 0.0
      %v8096 = vmax.f32 %v8048, 0.0
      %v8097 = vmax.f32 %v8049, 0.0
      %v8098 = vmax.f32 %v8050, 0.0
      %v8099 = vmax.f32 %v8051, 0.0
      %v8100 = vmax.f32 %v8052, 0.0
      %v8101 = vmax.f32 %v8053, 0.0
      %v8102 = vmax.f32 %v8054, 0.0
      %v8103 = vmax.f32 %v8055, 0.0
      %v8104 = vmax.f32 %v8056, 0.0
      %v8105 = vmax.f32 %v8057, 0.0
      %v8106 = vmax.f32 %v8058, 0.0
      %v8107 = vmax.f32 %v8059, 0.0
      %v8108 = vmax.f32 %v8060, 0.0
      %v8109 = vmax.f32 %v8061, 0.0
      %v8110 = vmax.f32 %v8062, 0.0
      %v8111 = vmax.f32 %v8063, 0.0
      %v8112 = vmax.f32 %v8064, 0.0
      %v8113 = vmax.f32 %v8065, 0.0
      %v8114 = vmax.f32 %v8066, 0.0
      %v8115 = vmax.f32 %v8067, 0.0
      %v8116 = vmax.f32 %v8068, 0.0
      %v8117 = vmax.f32 %v8069, 0.0
      %v8118 = vmax.f32 %v8070, 0.0
      %v8119 = vmax.f32 %v8071, 0.0
      %v8120 = vmax.f32 %v8072, 0.0
      %v8121 = vmax.f32 %v8073, 0.0
      %v8122 = vmax.f32 %v8074, 0.0
      %v8123 = vmax.f32 %v8075, 0.0
      %v8124 = vmax.f32 %v8076, 0.0
      %v8125 = vmax.f32 %v8077, 0.0
      %v8126 = vmax.f32 %v8078, 0.0
      %v8127 = vmax.f32 %v8079, 0.0
      %v8128 = vmax.f32 %v8080, 0.0
      %v8177 = vrot.slane %v8081, 7
      %v8178 = vrot.slane %v8083, 7
      %v8179 = vsel %vm5063, %v8177, %v8178
      %v8180 = vrot.slane %v8082, 7
      %v8181 = vrot.slane %v8084, 7
      %v8182 = vsel %vm5063, %v8180, %v8181
      %v8183 = vrot.slane %v8085, 7
      %v8184 = vsel %vm5063, %v8178, %v8183
      %v8185 = vrot.slane %v8086, 7
      %v8186 = vsel %vm5063, %v8181, %v8185
      %v8187 = vrot.slane %v8087, 7
      %v8188 = vrot.slane %v8089, 7
      %v8189 = vsel %vm5063, %v8187, %v8188
      %v8190 = vrot.slane %v8088, 7
      %v8191 = vrot.slane %v8090, 7
      %v8192 = vsel %vm5063, %v8190, %v8191
      %v8193 = vrot.slane %v8091, 7
      %v8194 = vsel %vm5063, %v8188, %v8193
      %v8195 = vrot.slane %v8092, 7
      %v8196 = vsel %vm5063, %v8191, %v8195
      %v8197 = vrot.slane %v8093, 7
      %v8198 = vrot.slane %v8095, 7
      %v8199 = vsel %vm5063, %v8197, %v8198
      %v8200 = vrot.slane %v8094, 7
      %v8201 = vrot.slane %v8096, 7
      %v8202 = vsel %vm5063, %v8200, %v8201
      %v8203 = vrot.slane %v8097, 7
      %v8204 = vsel %vm5063, %v8198, %v8203
      %v8205 = vrot.slane %v8098, 7
      %v8206 = vsel %vm5063, %v8201, %v8205
      %v8207 = vrot.slane %v8099, 7
      %v8208 = vrot.slane %v8101, 7
      %v8209 = vsel %vm5063, %v8207, %v8208
      %v8210 = vrot.slane %v8100, 7
      %v8211 = vrot.slane %v8102, 7
      %v8212 = vsel %vm5063, %v8210, %v8211
      %v8213 = vrot.slane %v8103, 7
      %v8214 = vsel %vm5063, %v8208, %v8213
      %v8215 = vrot.slane %v8104, 7
      %v8216 = vsel %vm5063, %v8211, %v8215
      %v8217 = vrot.slane %v8105, 7
      %v8218 = vrot.slane %v8107, 7
      %v8219 = vsel %vm5063, %v8217, %v8218
      %v8220 = vrot.slane %v8106, 7
      %v8221 = vrot.slane %v8108, 7
      %v8222 = vsel %vm5063, %v8220, %v8221
      %v8223 = vrot.slane %v8109, 7
      %v8224 = vsel %vm5063, %v8218, %v8223
      %v8225 = vrot.slane %v8110, 7
      %v8226 = vsel %vm5063, %v8221, %v8225
      %v8227 = vrot.slane %v8111, 7
      %v8228 = vrot.slane %v8113, 7
      %v8229 = vsel %vm5063, %v8227, %v8228
      %v8230 = vrot.slane %v8112, 7
      %v8231 = vrot.slane %v8114, 7
      %v8232 = vsel %vm5063, %v8230, %v8231
      %v8233 = vrot.slane %v8115, 7
      %v8234 = vsel %vm5063, %v8228, %v8233
      %v8235 = vrot.slane %v8116, 7
      %v8236 = vsel %vm5063, %v8231, %v8235
      %v8237 = vrot.slane %v8117, 7
      %v8238 = vrot.slane %v8119, 7
      %v8239 = vsel %vm5063, %v8237, %v8238
      %v8240 = vrot.slane %v8118, 7
      %v8241 = vrot.slane %v8120, 7
      %v8242 = vsel %vm5063, %v8240, %v8241
      %v8243 = vrot.slane %v8121, 7
      %v8244 = vsel %vm5063, %v8238, %v8243
      %v8245 = vrot.slane %v8122, 7
      %v8246 = vsel %vm5063, %v8241, %v8245
      %v8247 = vrot.slane %v8123, 7
      %v8248 = vrot.slane %v8125, 7
      %v8249 = vsel %vm5063, %v8247, %v8248
      %v8250 = vrot.slane %v8124, 7
      %v8251 = vrot.slane %v8126, 7
      %v8252 = vsel %vm5063, %v8250, %v8251
      %v8253 = vrot.slane %v8127, 7
      %v8254 = vsel %vm5063, %v8248, %v8253
      %v8255 = vrot.slane %v8128, 7
      %v8256 = vsel %vm5063, %v8251, %v8255
      %v8289 = vpack.c.bf16 %v8184, %v8179
      %v8290 = vpack.c.bf16 %v8186, %v8182
      %v8291 = vpack.c.bf16 %v8194, %v8189
      %v8292 = vpack.c.bf16 %v8196, %v8192
      %v8293 = vpack.c.bf16 %v8204, %v8199
      %v8294 = vpack.c.bf16 %v8206, %v8202
      %v8295 = vpack.c.bf16 %v8214, %v8209
      %v8296 = vpack.c.bf16 %v8216, %v8212
      %v8297 = vpack.c.bf16 %v8224, %v8219
      %v8298 = vpack.c.bf16 %v8226, %v8222
      %v8299 = vpack.c.bf16 %v8234, %v8229
      %v8300 = vpack.c.bf16 %v8236, %v8232
      %v8301 = vpack.c.bf16 %v8244, %v8239
      %v8302 = vpack.c.bf16 %v8246, %v8242
      %v8303 = vpack.c.bf16 %v8254, %v8249
      %v8304 = vpack.c.bf16 %v8256, %v8252
      %v8305 = vld [vmem:[%s14] sm:$0xff]
      %v8306 = vld [vmem:[%s14 + $0x8] sm:$0xff]
      %v8307 = vld [vmem:[%s14 + $0x10] sm:$0xff]
      %v8308 = vld [vmem:[%s14 + $0x18] sm:$0xff]
      %v8309 = vld [vmem:[%s14 + $0x20] sm:$0xff]
      %v8310 = vld [vmem:[%s14 + $0x28] sm:$0xff]
      %v8311 = vld [vmem:[%s14 + $0x30] sm:$0xff]
      %v8312 = vld [vmem:[%s14 + $0x38] sm:$0xff]
      %v8313 = vld [vmem:[%s14 + $0x40] sm:$0xff]
      %v8314 = vld [vmem:[%s14 + $0x48] sm:$0xff]
      %v8315 = vld [vmem:[%s14 + $0x50] sm:$0xff]
      %v8316 = vld [vmem:[%s14 + $0x58] sm:$0xff]
      %v8317 = vld [vmem:[%s14 + $0x60] sm:$0xff]
      %v8318 = vld [vmem:[%s14 + $0x68] sm:$0xff]
      %v8319 = vld [vmem:[%s14 + $0x70] sm:$0xff]
      %v8320 = vld [vmem:[%s14 + $0x78] sm:$0xff]
      %v8321 = vld [vmem:[%s14 + $0x80] sm:$0xff]
      %v8322 = vld [vmem:[%s14 + $0x88] sm:$0xff]
      %v8323 = vld [vmem:[%s14 + $0x90] sm:$0xff]
      %v8324 = vld [vmem:[%s14 + $0x98] sm:$0xff]
      %v8325 = vld [vmem:[%s14 + $0xa0] sm:$0xff]
      %v8326 = vld [vmem:[%s14 + $0xa8] sm:$0xff]
      %v8327 = vld [vmem:[%s14 + $0xb0] sm:$0xff]
      %v8328 = vld [vmem:[%s14 + $0xb8] sm:$0xff]
      %v8329 = vld [vmem:[%s14 + $0xc0] sm:$0xff]
      %v8330 = vld [vmem:[%s14 + $0xc8] sm:$0xff]
      %v8331 = vld [vmem:[%s14 + $0xd0] sm:$0xff]
      %v8332 = vld [vmem:[%s14 + $0xd8] sm:$0xff]
      %v8333 = vld [vmem:[%s14 + $0xe0] sm:$0xff]
      %v8334 = vld [vmem:[%s14 + $0xe8] sm:$0xff]
      %v8335 = vld [vmem:[%s14 + $0xf0] sm:$0xff]
      %v8336 = vld [vmem:[%s14 + $0xf8] sm:$0xff]
      %v8337 = vld [vmem:[%s15] sm:$0x3]
      %v8339 = vperm.slane %v8337, 0
      %v8340 = vperm.slane %v8337, 1
      %v8375 = vunpack.c.l.b16 %v8305
      %v8376 = vunpack.c.h.b16 %v8305
      %v8377 = vunpack.c.l.b16 %v8306
      %v8378 = vunpack.c.h.b16 %v8306
      %v8379 = vunpack.c.l.b16 %v8307
      %v8380 = vunpack.c.h.b16 %v8307
      %v8381 = vunpack.c.l.b16 %v8308
      %v8382 = vunpack.c.h.b16 %v8308
      %v8383 = vunpack.c.l.b16 %v8309
      %v8384 = vunpack.c.h.b16 %v8309
      %v8385 = vunpack.c.l.b16 %v8310
      %v8386 = vunpack.c.h.b16 %v8310
      %v8387 = vunpack.c.l.b16 %v8311
      %v8388 = vunpack.c.h.b16 %v8311
      %v8389 = vunpack.c.l.b16 %v8312
      %v8390 = vunpack.c.h.b16 %v8312
      %v8391 = vunpack.c.l.b16 %v8313
      %v8392 = vunpack.c.h.b16 %v8313
      %v8393 = vunpack.c.l.b16 %v8314
      %v8394 = vunpack.c.h.b16 %v8314
      %v8395 = vunpack.c.l.b16 %v8315
      %v8396 = vunpack.c.h.b16 %v8315
      %v8397 = vunpack.c.l.b16 %v8316
      %v8398 = vunpack.c.h.b16 %v8316
      %v8399 = vunpack.c.l.b16 %v8317
      %v8400 = vunpack.c.h.b16 %v8317
      %v8401 = vunpack.c.l.b16 %v8318
      %v8402 = vunpack.c.h.b16 %v8318
      %v8403 = vunpack.c.l.b16 %v8319
      %v8404 = vunpack.c.h.b16 %v8319
      %v8405 = vunpack.c.l.b16 %v8320
      %v8406 = vunpack.c.h.b16 %v8320
      %v8407 = vunpack.c.l.b16 %v8321
      %v8408 = vunpack.c.h.b16 %v8321
      %v8409 = vunpack.c.l.b16 %v8322
      %v8410 = vunpack.c.h.b16 %v8322
      %v8411 = vunpack.c.l.b16 %v8323
      %v8412 = vunpack.c.h.b16 %v8323
      %v8413 = vunpack.c.l.b16 %v8324
      %v8414 = vunpack.c.h.b16 %v8324
      %v8415 = vunpack.c.l.b16 %v8325
      %v8416 = vunpack.c.h.b16 %v8325
      %v8417 = vunpack.c.l.b16 %v8326
      %v8418 = vunpack.c.h.b16 %v8326
      %v8419 = vunpack.c.l.b16 %v8327
      %v8420 = vunpack.c.h.b16 %v8327
      %v8421 = vunpack.c.l.b16 %v8328
      %v8422 = vunpack.c.h.b16 %v8328
      %v8423 = vunpack.c.l.b16 %v8329
      %v8424 = vunpack.c.h.b16 %v8329
      %v8425 = vunpack.c.l.b16 %v8330
      %v8426 = vunpack.c.h.b16 %v8330
      %v8427 = vunpack.c.l.b16 %v8331
      %v8428 = vunpack.c.h.b16 %v8331
      %v8429 = vunpack.c.l.b16 %v8332
      %v8430 = vunpack.c.h.b16 %v8332
      %v8431 = vunpack.c.l.b16 %v8333
      %v8432 = vunpack.c.h.b16 %v8333
      %v8433 = vunpack.c.l.b16 %v8334
      %v8434 = vunpack.c.h.b16 %v8334
      %v8435 = vunpack.c.l.b16 %v8335
      %v8436 = vunpack.c.h.b16 %v8335
      %v8437 = vunpack.c.l.b16 %v8336
      %v8438 = vunpack.c.h.b16 %v8336
      %v8439 = vpack.c.b16 %v8377, %v8375
      %v8440 = vpack.c.b16 %v8378, %v8376
      %v8441 = vpack.c.b16 %v8381, %v8379
      %v8442 = vpack.c.b16 %v8382, %v8380
      %v8443 = vpack.c.b16 %v8385, %v8383
      %v8444 = vpack.c.b16 %v8386, %v8384
      %v8445 = vpack.c.b16 %v8389, %v8387
      %v8446 = vpack.c.b16 %v8390, %v8388
      %v8447 = vpack.c.b16 %v8393, %v8391
      %v8448 = vpack.c.b16 %v8394, %v8392
      %v8449 = vpack.c.b16 %v8397, %v8395
      %v8450 = vpack.c.b16 %v8398, %v8396
      %v8451 = vpack.c.b16 %v8401, %v8399
      %v8452 = vpack.c.b16 %v8402, %v8400
      %v8453 = vpack.c.b16 %v8405, %v8403
      %v8454 = vpack.c.b16 %v8406, %v8404
      %v8455 = vpack.c.b16 %v8409, %v8407
      %v8456 = vpack.c.b16 %v8410, %v8408
      %v8457 = vpack.c.b16 %v8413, %v8411
      %v8458 = vpack.c.b16 %v8414, %v8412
      %v8459 = vpack.c.b16 %v8417, %v8415
      %v8460 = vpack.c.b16 %v8418, %v8416
      %v8461 = vpack.c.b16 %v8421, %v8419
      %v8462 = vpack.c.b16 %v8422, %v8420
      %v8463 = vpack.c.b16 %v8425, %v8423
      %v8464 = vpack.c.b16 %v8426, %v8424
      %v8465 = vpack.c.b16 %v8429, %v8427
      %v8466 = vpack.c.b16 %v8430, %v8428
      %v8467 = vpack.c.b16 %v8433, %v8431
      %v8468 = vpack.c.b16 %v8434, %v8432
      %v8469 = vpack.c.b16 %v8437, %v8435
      %v8470 = vpack.c.b16 %v8438, %v8436
      %8503 = vmatpush.bf16.msra.mxu0 %v8453
      %8504 = vmatpush.bf16.msra.mxu0 %v8451
      %8505 = vmatpush.bf16.msra.mxu0 %v8449
      %8506 = vmatpush.bf16.msra.mxu0 %v8447
      %8507 = vmatpush.bf16.msra.mxu0 %v8445
      %8508 = vmatpush.bf16.msra.mxu0 %v8443
      %8509 = vmatpush.bf16.msra.mxu0 %v8441
      %8510 = vmatpush.bf16.msra.mxu0 %v8439
      %8511 = vmatmul.bf16.gmra.mxu0 %v8289
      %v8512 = vpop.f32.mrf.mxu0
      %v8513 = vadd.f32 %v8339, %v8512
      %v8514 = vpop.f32.mrf.mxu0
      %v8515 = vadd.f32 %v8339, %v8514
      %8516 = vmatmul.bf16.gmra.mxu0 %v8291
      %v8517 = vpop.f32.mrf.mxu0
      %v8518 = vadd.f32 %v8339, %v8517
      %v8519 = vpop.f32.mrf.mxu0
      %v8520 = vadd.f32 %v8339, %v8519
      %8521 = vmatmul.bf16.gmra.mxu0 %v8293
      %v8522 = vpop.f32.mrf.mxu0
      %v8523 = vadd.f32 %v8339, %v8522
      %v8524 = vpop.f32.mrf.mxu0
      %v8525 = vadd.f32 %v8339, %v8524
      %8526 = vmatmul.bf16.gmra.mxu0 %v8295
      %v8527 = vpop.f32.mrf.mxu0
      %v8528 = vadd.f32 %v8339, %v8527
      %v8529 = vpop.f32.mrf.mxu0
      %v8530 = vadd.f32 %v8339, %v8529
      %8531 = vmatmul.bf16.gmra.mxu0 %v8297
      %v8532 = vpop.f32.mrf.mxu0
      %v8533 = vadd.f32 %v8339, %v8532
      %v8534 = vpop.f32.mrf.mxu0
      %v8535 = vadd.f32 %v8339, %v8534
      %8536 = vmatmul.bf16.gmra.mxu0 %v8299
      %v8537 = vpop.f32.mrf.mxu0
      %v8538 = vadd.f32 %v8339, %v8537
      %v8539 = vpop.f32.mrf.mxu0
      %v8540 = vadd.f32 %v8339, %v8539
      %8541 = vmatmul.bf16.gmra.mxu0 %v8301
      %v8542 = vpop.f32.mrf.mxu0
      %v8543 = vadd.f32 %v8339, %v8542
      %v8544 = vpop.f32.mrf.mxu0
      %v8545 = vadd.f32 %v8339, %v8544
      %8546 = vmatmul.bf16.gmra.mxu0 %v8303
      %v8547 = vpop.f32.mrf.mxu0
      %v8548 = vadd.f32 %v8339, %v8547
      %v8549 = vpop.f32.mrf.mxu0
      %v8550 = vadd.f32 %v8339, %v8549
      %8551 = vdwg.mxu0
      %8552 = vmatpush.bf16.msra.mxu0 %v8469
      %8553 = vmatpush.bf16.msra.mxu0 %v8467
      %8554 = vmatpush.bf16.msra.mxu0 %v8465
      %8555 = vmatpush.bf16.msra.mxu0 %v8463
      %8556 = vmatpush.bf16.msra.mxu0 %v8461
      %8557 = vmatpush.bf16.msra.mxu0 %v8459
      %8558 = vmatpush.bf16.msra.mxu0 %v8457
      %8559 = vmatpush.bf16.msra.mxu0 %v8455
      %8560 = vmatmul.bf16.gmra.mxu0 %v8290
      %v8561 = vpop.f32.mrf.mxu0
      %v8562 = vadd.f32 %v8513, %v8561
      %v8563 = vpop.f32.mrf.mxu0
      %v8564 = vadd.f32 %v8515, %v8563
      %8565 = vmatmul.bf16.gmra.mxu0 %v8292
      %v8566 = vpop.f32.mrf.mxu0
      %v8567 = vadd.f32 %v8518, %v8566
      %v8568 = vpop.f32.mrf.mxu0
      %v8569 = vadd.f32 %v8520, %v8568
      %8570 = vmatmul.bf16.gmra.mxu0 %v8294
      %v8571 = vpop.f32.mrf.mxu0
      %v8572 = vadd.f32 %v8523, %v8571
      %v8573 = vpop.f32.mrf.mxu0
      %v8574 = vadd.f32 %v8525, %v8573
      %8575 = vmatmul.bf16.gmra.mxu0 %v8296
      %v8576 = vpop.f32.mrf.mxu0
      %v8577 = vadd.f32 %v8528, %v8576
      %v8578 = vpop.f32.mrf.mxu0
      %v8579 = vadd.f32 %v8530, %v8578
      %8580 = vmatmul.bf16.gmra.mxu0 %v8298
      %v8581 = vpop.f32.mrf.mxu0
      %v8582 = vadd.f32 %v8533, %v8581
      %v8583 = vpop.f32.mrf.mxu0
      %v8584 = vadd.f32 %v8535, %v8583
      %8585 = vmatmul.bf16.gmra.mxu0 %v8300
      %v8586 = vpop.f32.mrf.mxu0
      %v8587 = vadd.f32 %v8538, %v8586
      %v8588 = vpop.f32.mrf.mxu0
      %v8589 = vadd.f32 %v8540, %v8588
      %8590 = vmatmul.bf16.gmra.mxu0 %v8302
      %v8591 = vpop.f32.mrf.mxu0
      %v8592 = vadd.f32 %v8543, %v8591
      %v8593 = vpop.f32.mrf.mxu0
      %v8594 = vadd.f32 %v8545, %v8593
      %8595 = vmatmul.bf16.gmra.mxu0 %v8304
      %v8596 = vpop.f32.mrf.mxu0
      %v8597 = vadd.f32 %v8548, %v8596
      %v8598 = vpop.f32.mrf.mxu0
      %v8599 = vadd.f32 %v8550, %v8598
      %8600 = vdwg.mxu0
      %8601 = vmatpush.bf16.msra.mxu0 %v8454
      %8602 = vmatpush.bf16.msra.mxu0 %v8452
      %8603 = vmatpush.bf16.msra.mxu0 %v8450
      %8604 = vmatpush.bf16.msra.mxu0 %v8448
      %8605 = vmatpush.bf16.msra.mxu0 %v8446
      %8606 = vmatpush.bf16.msra.mxu0 %v8444
      %8607 = vmatpush.bf16.msra.mxu0 %v8442
      %8608 = vmatpush.bf16.msra.mxu0 %v8440
      %8609 = vmatmul.bf16.gmra.mxu0 %v8289
      %v8610 = vpop.f32.mrf.mxu0
      %v8611 = vadd.f32 %v8340, %v8610
      %v8612 = vpop.f32.mrf.mxu0
      %v8613 = vadd.f32 %v8340, %v8612
      %8614 = vmatmul.bf16.gmra.mxu0 %v8291
      %v8615 = vpop.f32.mrf.mxu0
      %v8616 = vadd.f32 %v8340, %v8615
      %v8617 = vpop.f32.mrf.mxu0
      %v8618 = vadd.f32 %v8340, %v8617
      %8619 = vmatmul.bf16.gmra.mxu0 %v8293
      %v8620 = vpop.f32.mrf.mxu0
      %v8621 = vadd.f32 %v8340, %v8620
      %v8622 = vpop.f32.mrf.mxu0
      %v8623 = vadd.f32 %v8340, %v8622
      %8624 = vmatmul.bf16.gmra.mxu0 %v8295
      %v8625 = vpop.f32.mrf.mxu0
      %v8626 = vadd.f32 %v8340, %v8625
      %v8627 = vpop.f32.mrf.mxu0
      %v8628 = vadd.f32 %v8340, %v8627
      %8629 = vmatmul.bf16.gmra.mxu0 %v8297
      %v8630 = vpop.f32.mrf.mxu0
      %v8631 = vadd.f32 %v8340, %v8630
      %v8632 = vpop.f32.mrf.mxu0
      %v8633 = vadd.f32 %v8340, %v8632
      %8634 = vmatmul.bf16.gmra.mxu0 %v8299
      %v8635 = vpop.f32.mrf.mxu0
      %v8636 = vadd.f32 %v8340, %v8635
      %v8637 = vpop.f32.mrf.mxu0
      %v8638 = vadd.f32 %v8340, %v8637
      %8639 = vmatmul.bf16.gmra.mxu0 %v8301
      %v8640 = vpop.f32.mrf.mxu0
      %v8641 = vadd.f32 %v8340, %v8640
      %v8642 = vpop.f32.mrf.mxu0
      %v8643 = vadd.f32 %v8340, %v8642
      %8644 = vmatmul.bf16.gmra.mxu0 %v8303
      %v8645 = vpop.f32.mrf.mxu0
      %v8646 = vadd.f32 %v8340, %v8645
      %v8647 = vpop.f32.mrf.mxu0
      %v8648 = vadd.f32 %v8340, %v8647
      %8649 = vdwg.mxu0
      %8650 = vmatpush.bf16.msra.mxu0 %v8470
      %8651 = vmatpush.bf16.msra.mxu0 %v8468
      %8652 = vmatpush.bf16.msra.mxu0 %v8466
      %8653 = vmatpush.bf16.msra.mxu0 %v8464
      %8654 = vmatpush.bf16.msra.mxu0 %v8462
      %8655 = vmatpush.bf16.msra.mxu0 %v8460
      %8656 = vmatpush.bf16.msra.mxu0 %v8458
      %8657 = vmatpush.bf16.msra.mxu0 %v8456
      %8658 = vmatmul.bf16.gmra.mxu0 %v8290
      %v8659 = vpop.f32.mrf.mxu0
      %v8660 = vadd.f32 %v8611, %v8659
      %v8661 = vpop.f32.mrf.mxu0
      %v8662 = vadd.f32 %v8613, %v8661
      %8663 = vmatmul.bf16.gmra.mxu0 %v8292
      %v8664 = vpop.f32.mrf.mxu0
      %v8665 = vadd.f32 %v8616, %v8664
      %v8666 = vpop.f32.mrf.mxu0
      %v8667 = vadd.f32 %v8618, %v8666
      %8668 = vmatmul.bf16.gmra.mxu0 %v8294
      %v8669 = vpop.f32.mrf.mxu0
      %v8670 = vadd.f32 %v8621, %v8669
      %v8671 = vpop.f32.mrf.mxu0
      %v8672 = vadd.f32 %v8623, %v8671
      %8673 = vmatmul.bf16.gmra.mxu0 %v8296
      %v8674 = vpop.f32.mrf.mxu0
      %v8675 = vadd.f32 %v8626, %v8674
      %v8676 = vpop.f32.mrf.mxu0
      %v8677 = vadd.f32 %v8628, %v8676
      %8678 = vmatmul.bf16.gmra.mxu0 %v8298
      %v8679 = vpop.f32.mrf.mxu0
      %v8680 = vadd.f32 %v8631, %v8679
      %v8681 = vpop.f32.mrf.mxu0
      %v8682 = vadd.f32 %v8633, %v8681
      %8683 = vmatmul.bf16.gmra.mxu0 %v8300
      %v8684 = vpop.f32.mrf.mxu0
      %v8685 = vadd.f32 %v8636, %v8684
      %v8686 = vpop.f32.mrf.mxu0
      %v8687 = vadd.f32 %v8638, %v8686
      %8688 = vmatmul.bf16.gmra.mxu0 %v8302
      %v8689 = vpop.f32.mrf.mxu0
      %v8690 = vadd.f32 %v8641, %v8689
      %v8691 = vpop.f32.mrf.mxu0
      %v8692 = vadd.f32 %v8643, %v8691
      %8693 = vmatmul.bf16.gmra.mxu0 %v8304
      %v8694 = vpop.f32.mrf.mxu0
      %v8695 = vadd.f32 %v8646, %v8694
      %v8696 = vpop.f32.mrf.mxu0
      %v8697 = vadd.f32 %v8648, %v8696
      %8698 = vdwg.mxu0
      %v8699 = vmax.f32 %v8562, 0.0
      %v8700 = vmax.f32 %v8660, 0.0
      %v8701 = vmax.f32 %v8564, 0.0
      %v8702 = vmax.f32 %v8662, 0.0
      %v8703 = vmax.f32 %v8567, 0.0
      %v8704 = vmax.f32 %v8665, 0.0
      %v8705 = vmax.f32 %v8569, 0.0
      %v8706 = vmax.f32 %v8667, 0.0
      %v8707 = vmax.f32 %v8572, 0.0
      %v8708 = vmax.f32 %v8670, 0.0
      %v8709 = vmax.f32 %v8574, 0.0
      %v8710 = vmax.f32 %v8672, 0.0
      %v8711 = vmax.f32 %v8577, 0.0
      %v8712 = vmax.f32 %v8675, 0.0
      %v8713 = vmax.f32 %v8579, 0.0
      %v8714 = vmax.f32 %v8677, 0.0
      %v8715 = vmax.f32 %v8582, 0.0
      %v8716 = vmax.f32 %v8680, 0.0
      %v8717 = vmax.f32 %v8584, 0.0
      %v8718 = vmax.f32 %v8682, 0.0
      %v8719 = vmax.f32 %v8587, 0.0
      %v8720 = vmax.f32 %v8685, 0.0
      %v8721 = vmax.f32 %v8589, 0.0
      %v8722 = vmax.f32 %v8687, 0.0
      %v8723 = vmax.f32 %v8592, 0.0
      %v8724 = vmax.f32 %v8690, 0.0
      %v8725 = vmax.f32 %v8594, 0.0
      %v8726 = vmax.f32 %v8692, 0.0
      %v8727 = vmax.f32 %v8597, 0.0
      %v8728 = vmax.f32 %v8695, 0.0
      %v8729 = vmax.f32 %v8599, 0.0
      %v8730 = vmax.f32 %v8697, 0.0
      %v8731 = vpack.c.bf16 %v8700, %v8699
      %v8732 = vpack.c.bf16 %v8702, %v8701
      %v8733 = vpack.c.bf16 %v8704, %v8703
      %v8734 = vpack.c.bf16 %v8706, %v8705
      %v8735 = vpack.c.bf16 %v8708, %v8707
      %v8736 = vpack.c.bf16 %v8710, %v8709
      %v8737 = vpack.c.bf16 %v8712, %v8711
      %v8738 = vpack.c.bf16 %v8714, %v8713
      %v8739 = vpack.c.bf16 %v8716, %v8715
      %v8740 = vpack.c.bf16 %v8718, %v8717
      %v8741 = vpack.c.bf16 %v8720, %v8719
      %v8742 = vpack.c.bf16 %v8722, %v8721
      %v8743 = vpack.c.bf16 %v8724, %v8723
      %v8744 = vpack.c.bf16 %v8726, %v8725
      %v8745 = vpack.c.bf16 %v8728, %v8727
      %v8746 = vpack.c.bf16 %v8730, %v8729
      %8747 = vst [vmem:[%s565] sm:$0xff] %v8731
      %8748 = vst [vmem:[%s565 + $0x8] sm:$0xff] %v8732
      %8749 = vst [vmem:[%s565 + $0x10] sm:$0xff] %v8733
      %8750 = vst [vmem:[%s565 + $0x18] sm:$0xff] %v8734
      %8751 = vst [vmem:[%s565 + $0x20] sm:$0xff] %v8735
      %8752 = vst [vmem:[%s565 + $0x28] sm:$0xff] %v8736
      %8753 = vst [vmem:[%s565 + $0x30] sm:$0xff] %v8737
      %8754 = vst [vmem:[%s565 + $0x38] sm:$0xff] %v8738
      %8755 = vst [vmem:[%s565 + $0x40] sm:$0xff] %v8739
      %8756 = vst [vmem:[%s565 + $0x48] sm:$0xff] %v8740
      %8757 = vst [vmem:[%s565 + $0x50] sm:$0xff] %v8741
      %8758 = vst [vmem:[%s565 + $0x58] sm:$0xff] %v8742
      %8759 = vst [vmem:[%s565 + $0x60] sm:$0xff] %v8743
      %8760 = vst [vmem:[%s565 + $0x68] sm:$0xff] %v8744
      %8761 = vst [vmem:[%s565 + $0x70] sm:$0xff] %v8745
      %8762 = vst [vmem:[%s565 + $0x78] sm:$0xff] %v8746
      %s8763 = smul.u32 8, %s32
      %p8764 = scmp.lt.s32.totalorder %s31, 1
      %s8765 = scalar_select %p8764, %s31, 1
      %p8766 = scmp.lt.s32.totalorder %s8763, 15
      %s8767 = scalar_select %p8766, %s8763, 15
      %s8768 = smul.addr %s8767, 4
      %s8769 = smul.addr %s8765, 64
      %s8770 = sadd.s32 %s8768, %s8769
      %s8771 = smul.addr %s8770, 4
      %s8772 = scalar_lea.vmem %s16, %s8771
      // Predicated region
      $region101: #{decoder_spp_forward.1} parent=83 // pred_check
        %p8773 = pneg %p405
      $region102: #{decoder_spp_forward.1} parent=83 // pred_check_branch
        %8775 = sbr.rel (%p8773) target = $region104
      $region103: #{decoder_spp_forward.1} parent=83 // pred_region
        %s8776 = smul.u32 8, %s32
      $region104: #{decoder_spp_forward.1} parent=83 // pred_fallthru
        _
    $region84: #{decoder_spp_forward.1} parent=5 // pred_fallthru
      _
    %p8777 = scmp.le.s32.totalorder 2, %s22
    // Predicated region
    $region105: #{decoder_spp_forward.1} parent=5 // pred_check
      %p8778 = pneg %p8777
    $region106: #{decoder_spp_forward.1} parent=5 // pred_check_branch
      %8780 = sbr.rel (%p8778) target = $region108
    $region107: #{decoder_spp_forward.1} parent=5 // pred_region
      %s8781 = ssub.s32 %s22, 2
      // Predicated region
      $region109: #{decoder_spp_forward.1} parent=107 // pred_check
        %p8782 = pneg %p411
      $region110: #{decoder_spp_forward.1} parent=107 // pred_check_branch
        %8784 = sbr.rel (%p8782) target = $region112
      $region111: #{decoder_spp_forward.1} parent=107 // pred_region
        %s8785 = smul.u32 8, %s34
        %p8786 = scmp.lt.s32.totalorder %s33, 1
        %s8787 = scalar_select %p8786, %s33, 1
        %p8788 = scmp.lt.s32.totalorder %s8785, 15
        %s8789 = scalar_select %p8788, %s8785, 15
        %s8790 = smul.addr %s8789, 4
        %s8791 = smul.addr %s8787, 64
        %s8792 = sadd.s32 %s8790, %s8791
        %s8793 = smul.addr %s8792, 4
        %s8794 = scalar_lea.vmem %s16, %s8793
      $region112: #{decoder_spp_forward.1} parent=107 // pred_fallthru
        _
    $region108: #{decoder_spp_forward.1} parent=5 // pred_fallthru
      _
  $region6: #{decoder_spp_forward.1} parent=0 // loop_footer
    %s26 = sadd.s32 1, %s22
  $region7: #{decoder_spp_forward.1} parent=0 // loop_footer_branch
    %21 = sbr.rel target = $region3
  $region8: #{decoder_spp_forward.1} parent=0 // loop_exit
    _

</llo_original>
